<compile_context>
chip_gen: v7x
topology: tpu7x:2x2x1
jax: 0.10.0
libtpu: 0.0.40
codegen_flags: <defaults>
</compile_context>

<pallas_src>
import functools

import jax
import jax.numpy as jnp
from jax import lax
from jax.experimental import pallas as pl
from jax.experimental.pallas import tpu as pltpu


# ----------------------------- kernel helpers ------------------------------

def _layer_norm_affine(x, gamma, beta):
    """f32 LayerNorm over channels (eps=1e-6) + affine.  One-pass variance
    (E[x^2] - mean^2) to break the serial mean -> (x-mean)^2 chain; adequate in
    f32 at these activation magnitudes (switch to two-pass if checkpoint drift
    is observed)."""
    mean = jnp.mean(x, axis=-1, keepdims=True)
    meansq = jnp.mean(x * x, axis=-1, keepdims=True)
    var = meansq - mean * mean
    xn = (x - mean) * lax.rsqrt(var + 1e-6)
    return xn * gamma + beta


def _tap_masks(tbs, seq, ksize, pad):
    """(tbs, 1) float {0,1} masks per non-center tap.  Row index within its
    batch segment is row % seq, so a tap is zeroed both at sequence edges and
    across batch boundaries of the merged (TB*S, D) slab.  Column masks keep
    live state tiny; they broadcast across lanes at use time."""
    rowmod = lax.broadcasted_iota(jnp.int32, (tbs, 1), 0) % seq
    masks = {}
    for t in range(ksize):
        off = t - pad
        if off == 0:
            continue
        cond = (rowmod < (seq - off)) if off > 0 else (rowmod >= (-off))
        masks[t] = jnp.where(cond, 1.0, 0.0)
    return masks


# ------------------------------- kernels -----------------------------------

def _feat_enc_kernel_im2col(x_ref, pos_ref, gamma_ref, beta_ref, wf_ref,
                            bpw_ref, o_ref, *, num_layers, ksize, pad, tb,
                            seq, dim):
    """v6e/v7x path: depthwise taps folded into the pointwise matmul.
    im2col of the 7 masked shifts (TB*S, 7*D) bf16 @ fused weights
    Wf[l] = concat_t(diag(wdw_t) @ wpw)  -> one MXU matmul per layer."""
    tbs = tb * seq

    # features = x + pos_embedding(arange(S))   (pos broadcasts over batch)
    out = x_ref[...].astype(jnp.float32) + pos_ref[...].astype(jnp.float32)[None, :, :]
    out = out.reshape(tbs, dim)                     # merge batch tile into one slab

    masks = _tap_masks(tbs, seq, ksize, pad)

    for l in range(num_layers):
        residual = out
        xn = _layer_norm_affine(out, gamma_ref[l], beta_ref[l])

        cols = []
        for t in range(ksize):
            off = t - pad
            if off == 0:
                cols.append(xn.astype(jnp.bfloat16))
            else:
                shifted = pltpu.roll(xn, shift=(-off) % tbs, axis=0)      # XLU
                cols.append((shifted * masks[t]).astype(jnp.bfloat16))
        im2col = jnp.concatenate(cols, axis=-1)     # (TB*S, K*D), lane-aligned

        y = jnp.dot(im2col, wf_ref[l], preferred_element_type=jnp.float32)
        y = jnp.maximum(y + bpw_ref[l], 0.0)
        # TODO(synk): dropout is identity in eval mode; training-mode dropout
        # (pltpu.prng_seed / stateful_bernoulli) not implemented here.
        out = y + residual

    o_ref[...] = out.reshape(tb, seq, dim).astype(o_ref.dtype)


def _feat_enc_kernel_taps(x_ref, pos_ref, gamma_ref, beta_ref, wdw_ref,
                          wpw_ref, bpw_ref, o_ref, *, num_layers, ksize, pad,
                          tb, seq, dim):
    """v5e path: VPU/XLU depthwise tap chain + one pointwise MXU matmul per
    layer (7x matmul flops are not free on v5e's 128x128 MXU)."""
    tbs = tb * seq

    out = x_ref[...].astype(jnp.float32) + pos_ref[...].astype(jnp.float32)[None, :, :]
    out = out.reshape(tbs, dim)

    masks = _tap_masks(tbs, seq, ksize, pad)

    for l in range(num_layers):
        residual = out
        xn = _layer_norm_affine(out, gamma_ref[l], beta_ref[l])

        wdw_l = wdw_ref[l]                          # (K, D) f32
        conv = xn * wdw_l[pad:pad + 1, :]           # center-tap init (no zeros+add)
        for t in range(ksize):
            off = t - pad
            if off == 0:
                continue
            shifted = pltpu.roll(xn, shift=(-off) % tbs, axis=0)          # XLU
            conv = conv + (shifted * masks[t]) * wdw_l[t:t + 1, :]

        y = jnp.dot(conv.astype(jnp.bfloat16), wpw_ref[l],
                    preferred_element_type=jnp.float32)
        y = jnp.maximum(y + bpw_ref[l], 0.0)
        out = y + residual

    o_ref[...] = out.reshape(tb, seq, dim).astype(o_ref.dtype)


# ------------------------------- wrapper ------------------------------------

def _device_kind():
    try:
        return jax.devices()[0].device_kind.lower()
    except Exception:
        return ""


def _num_tensorcores(kind):
    # v7x: 2 TCs/chip; v4 / v5p megacore also expose 2.  v5e / v6e: 1.
    if "v7" in kind or "v4" in kind or "v5p" in kind:
        return 2
    return 1


def _is_v5e(kind):
    return ("v5e" in kind) or ("v5 lite" in kind) or ("v5lite" in kind)


def _pick_tb(batch, seq, dim, num_tc):
    """Per-step batch tile: one grid step per TensorCore when possible
    (grid=1 on single-TC chips), tb drawn from the divisors of batch, and the
    per-step slab capped so live (tb*S, D) f32 intermediates stay far below
    the scoped-VMEM budget when B/S/D scale up."""
    budget = 4 * 1024 * 1024                        # per live (tb*S, D) f32 slab
    for steps in range(1, batch + 1):
        if batch % steps != 0:
            continue
        tb = batch // steps
        if steps >= num_tc and tb * seq * dim * 4 <= budget:
            return tb
    return 1


def feature_encoder_conv_block(x, pos, gammas, betas, wdws, wpws, bpws, *,
                               tb=None, use_im2col=None):
    """features = DepthwiseSeparableConvBlock(x + pos_embedding) -- eval mode.

    x: (B, S, D) f32.  pos: (S, D) (rows 0..S-1 of the embedding table).
    gammas/betas/bpws: (L, 1, D).  wdws: (L, K, D) (PyTorch depthwise Conv1d
    weight (D,1,K) transposed).  wpws: (L, D_in, D_out) (PyTorch pointwise
    Conv1d weight (out,in,1) transposed), so the kernel computes conv @ wpw.
    """
    B, S, D = x.shape
    L, K, _ = wdws.shape
    pad = K // 2

    kind = _device_kind()
    num_tc = _num_tensorcores(kind)
    if use_im2col is None:
        # MXU offload of the depthwise taps pays off on v6e/v7x (large, mostly
        # idle MXU); keep the VPU/XLU tap chain on v5e.
        use_im2col = not _is_v5e(kind)
    if tb is None:
        tb = _pick_tb(B, S, D, num_tc)
    assert B % tb == 0, "per-step batch tile must divide the batch"

    compiler_params = pltpu.CompilerParams(
        dimension_semantics=("parallel",),          # shards grid steps over TCs (v7x)
        vmem_limit_bytes=32 * 1024 * 1024,          # explicit budget (v7x: 64 MiB phys)
    )
    out_shape = jax.ShapeDtypeStruct((B, S, D), x.dtype)
    out_spec = pl.BlockSpec((tb, S, D), lambda b: (b, 0, 0))
    # NOTE: the parameter inputs below have constant index_maps; when scaling
    # L/D, add pipeline_mode=pl.Buffered(1) on their BlockSpecs to drop the
    # useless double-buffer copies.  Negligible at D=128.

    if use_im2col:
        # Fuse depthwise + pointwise:  Wf[l, t*D + c, e] = wdw[l,t,c] * wpw[l,c,e]
        wf = (wdws[:, :, :, None] * wpws[:, None, :, :]).reshape(L, K * D, D)
        wf = wf.astype(jnp.bfloat16)                # bf16 MXU path, half the DMA
        kernel = functools.partial(_feat_enc_kernel_im2col, num_layers=L,
                                   ksize=K, pad=pad, tb=tb, seq=S, dim=D)
        in_specs = [
            pl.BlockSpec((tb, S, D), lambda b: (b, 0, 0)),
            pl.BlockSpec((S, D), lambda b: (0, 0)),
            pl.BlockSpec((L, 1, D), lambda b: (0, 0, 0)),
            pl.BlockSpec((L, 1, D), lambda b: (0, 0, 0)),
            pl.BlockSpec((L, K * D, D), lambda b: (0, 0, 0)),
            pl.BlockSpec((L, 1, D), lambda b: (0, 0, 0)),
        ]
        args = (x, pos, gammas, betas, wf, bpws)
    else:
        kernel = functools.partial(_feat_enc_kernel_taps, num_layers=L,
                                   ksize=K, pad=pad, tb=tb, seq=S, dim=D)
        in_specs = [
            pl.BlockSpec((tb, S, D), lambda b: (b, 0, 0)),
            pl.BlockSpec((S, D), lambda b: (0, 0)),
            pl.BlockSpec((L, 1, D), lambda b: (0, 0, 0)),
            pl.BlockSpec((L, 1, D), lambda b: (0, 0, 0)),
            pl.BlockSpec((L, K, D), lambda b: (0, 0, 0)),
            pl.BlockSpec((L, D, D), lambda b: (0, 0, 0)),
            pl.BlockSpec((L, 1, D), lambda b: (0, 0, 0)),
        ]
        args = (x, pos, gammas, betas, wdws, wpws.astype(jnp.bfloat16), bpws)

    return pl.pallas_call(
        kernel,
        out_shape=out_shape,
        grid=(B // tb,),
        in_specs=in_specs,
        out_specs=out_spec,
        compiler_params=compiler_params,
    )(*args)


# ------------------------------ reference -----------------------------------

def _reference(x, pos, gammas, betas, wdws, wpws, bpws, *, matmul_dtype=jnp.float32):
    """Pure-JAX reference matching the PyTorch forward (eval mode):
    conv_block(x + pos_embedding(x))."""
    L, K, D = wdws.shape
    pad = K // 2
    B, S, _ = x.shape
    out = x + pos[None]
    for l in range(L):
        residual = out
        mean = out.mean(-1, keepdims=True)
        var = ((out - mean) ** 2).mean(-1, keepdims=True)
        xn = (out - mean) / jnp.sqrt(var + 1e-6)
        xn = xn * gammas[l] + betas[l]
        xp = jnp.pad(xn, ((0, 0), (pad, pad), (0, 0)))
        conv = jnp.zeros_like(xn)
        for t in range(K):
            conv = conv + xp[:, t:t + S, :] * wdws[l, t]
        y = jnp.einsum("bsd,de->bse",
                       conv.astype(matmul_dtype), wpws[l].astype(matmul_dtype),
                       preferred_element_type=jnp.float32)
        y = jnp.maximum(y + bpws[l], 0.0)
        out = y + residual
    return out


if __name__ == "__main__":
    B, S, D = 8, 16, 128         # batch, sequence length, channels (lane-dense D)
    L, K = 4, 7                  # num_layers, kernel_size (module hard-codes 7)
    MAX_POS_LEN = 64
    droprate = 0.1               # inactive (eval mode)

    key = jax.random.PRNGKey(0)
    kx, kp, kg, kbeta, kdw, kpw, kb = jax.random.split(key, 7)

    x = jax.random.normal(kx, (B, S, D), dtype=jnp.float32)

    # Positional embedding table; position_ids = arange(S) -> slice first S rows.
    pos_table = jax.random.normal(kp, (MAX_POS_LEN, D), dtype=jnp.float32)
    pos = pos_table[:S]

    # LayerNorm params (perturbed from PyTorch's default init so the affine
    # path is actually exercised by the check).
    gammas = 1.0 + 0.1 * jax.random.normal(kg, (L, 1, D), dtype=jnp.float32)
    betas = 0.05 * jax.random.normal(kbeta, (L, 1, D), dtype=jnp.float32)

    # Depthwise Conv1d weights: PyTorch shape (D, 1, K) -> stored here as (L, K, D).
    wdws = 0.3 * jax.random.normal(kdw, (L, K, D), dtype=jnp.float32)
    # Pointwise Conv1d weights: PyTorch shape (D, D, 1) -> stored here as (L, D_in, D_out).
    wpws = 0.1 * jax.random.normal(kpw, (L, D, D), dtype=jnp.float32)
    bpws = 0.05 * jax.random.normal(kb, (L, 1, D), dtype=jnp.float32)

    out = feature_encoder_conv_block(x, pos, gammas, betas, wdws, wpws, bpws)
    out = jax.block_until_ready(out)
    assert out.shape == (B, S, D)

    # Check vs a bf16-matmul reference (kernel keeps all LN / elementwise math
    # in f32; only MXU operands are bf16 -- intentional deviation from the f32
    # PyTorch matmul) and, loosely, vs the PyTorch-faithful f32 reference.
    ref_bf16 = _reference(x, pos, gammas, betas, wdws, wpws, bpws,
                          matmul_dtype=jnp.bfloat16)
    ref_f32 = _reference(x, pos, gammas, betas, wdws, wpws, bpws,
                         matmul_dtype=jnp.float32)
    assert jnp.allclose(out, ref_bf16, rtol=3e-2, atol=3e-2), \
        "mismatch vs bf16-matmul JAX reference"
    assert jnp.allclose(out, ref_f32, rtol=5e-2, atol=5e-2), \
        "mismatch vs f32 JAX reference"

    print("KERNEL_OK")
</pallas_src>

<mosaic_0001>
module attributes {stable_mosaic.version = 11 : i64} {
  func.func @_feat_enc_kernel_im2col(%arg0: i32, %arg1: memref<8x16x128xf32, #tpu.memory_space<vmem>>, %arg2: memref<16x128xf32, #tpu.memory_space<vmem>>, %arg3: memref<4x1x128xf32, #tpu.memory_space<vmem>>, %arg4: memref<4x1x128xf32, #tpu.memory_space<vmem>>, %arg5: memref<4x896x128xbf16, #tpu.memory_space<vmem>>, %arg6: memref<4x1x128xf32, #tpu.memory_space<vmem>>, %arg7: memref<8x16x128xf32, #tpu.memory_space<vmem>>) attributes {dimension_semantics = [#tpu.dimension_semantics<parallel>], iteration_bounds = array<i64: 1>, scalar_prefetch = 0 : i64, scratch_operands = 0 : i64, tpu.core_type = #tpu.core_type<tc>, window_params = [{transform_indices = @transform_0, window_bounds = array<i64: 8, 16, 128>}, {pipeline_mode = #tpu.pipeline_mode<synchronous>, transform_indices = @transform_1, window_bounds = array<i64: 16, 128>}, {pipeline_mode = #tpu.pipeline_mode<synchronous>, transform_indices = @transform_2, window_bounds = array<i64: 4, 1, 128>}, {pipeline_mode = #tpu.pipeline_mode<synchronous>, transform_indices = @transform_3, window_bounds = array<i64: 4, 1, 128>}, {pipeline_mode = #tpu.pipeline_mode<synchronous>, transform_indices = @transform_4, window_bounds = array<i64: 4, 896, 128>}, {pipeline_mode = #tpu.pipeline_mode<synchronous>, transform_indices = @transform_5, window_bounds = array<i64: 4, 1, 128>}, {transform_indices = @transform_6, window_bounds = array<i64: 8, 16, 128>}]} {
    %c0 = arith.constant 0 : index
    %c0_0 = arith.constant 0 : index
    %c0_1 = arith.constant 0 : index
    %0 = vector.load %arg1[%c0, %c0_0, %c0_1] : memref<8x16x128xf32, #tpu.memory_space<vmem>>, vector<8x16x128xf32>
    %c0_2 = arith.constant 0 : index
    %c0_3 = arith.constant 0 : index
    %1 = vector.load %arg2[%c0_2, %c0_3] : memref<16x128xf32, #tpu.memory_space<vmem>>, vector<16x128xf32>
    %2 = vector.shape_cast %1 : vector<16x128xf32> to vector<1x16x128xf32>
    %3 = vector.broadcast %2 : vector<1x16x128xf32> to vector<8x16x128xf32>
    %4 = arith.addf %0, %3 : vector<8x16x128xf32>
    %5 = vector.shape_cast %4 : vector<8x16x128xf32> to vector<128x128xf32>
    %6 = tpu.iota {dimensions = array<i32: 0>} : vector<128x1xi32>
    %c16_i32 = arith.constant 16 : i32
    %c0_i32 = arith.constant 0 : i32
    %7 = arith.cmpi eq, %c16_i32, %c0_i32 : i32
    %c1_i32 = arith.constant 1 : i32
    %8 = arith.select %7, %c1_i32, %c16_i32 : i32
    %9 = vector.broadcast %8 : i32 to vector<128x1xi32>
    %10 = arith.remsi %6, %9 : vector<128x1xi32>
    %c0_i32_4 = arith.constant 0 : i32
    %11 = vector.broadcast %c0_i32_4 : i32 to vector<128x1xi32>
    %12 = arith.cmpi ne, %10, %11 : vector<128x1xi32>
    %c0_i32_5 = arith.constant 0 : i32
    %13 = vector.broadcast %c0_i32_5 : i32 to vector<128x1xi32>
    %14 = arith.cmpi slt, %10, %13 : vector<128x1xi32>
    %c0_i32_6 = arith.constant 0 : i32
    %15 = arith.cmpi slt, %8, %c0_i32_6 : i32
    %16 = vector.broadcast %15 : i1 to vector<128x1xi1>
    %17 = vector.broadcast %16 : vector<128x1xi1> to vector<128x1xi1>
    %18 = arith.xori %14, %17 : vector<128x1xi1>
    %19 = arith.andi %18, %12 : vector<128x1xi1>
    %20 = vector.broadcast %8 : i32 to vector<128x1xi32>
    %21 = arith.addi %10, %20 : vector<128x1xi32>
    %22 = arith.select %19, %21, %10 : vector<128x1xi1>, vector<128x1xi32>
    %c3_i32 = arith.constant 3 : i32
    %23 = vector.broadcast %c3_i32 : i32 to vector<128x1xi32>
    %24 = arith.cmpi sge, %22, %23 : vector<128x1xi32>
    %cst = arith.constant 1.000000e+00 : f32
    %cst_7 = arith.constant 0.000000e+00 : f32
    %25 = vector.broadcast %cst : f32 to vector<128x1xf32>
    %26 = vector.broadcast %cst_7 : f32 to vector<128x1xf32>
    %27 = arith.select %24, %25, %26 : vector<128x1xi1>, vector<128x1xf32>
    %c2_i32 = arith.constant 2 : i32
    %28 = vector.broadcast %c2_i32 : i32 to vector<128x1xi32>
    %29 = arith.cmpi sge, %22, %28 : vector<128x1xi32>
    %cst_8 = arith.constant 1.000000e+00 : f32
    %cst_9 = arith.constant 0.000000e+00 : f32
    %30 = vector.broadcast %cst_8 : f32 to vector<128x1xf32>
    %31 = vector.broadcast %cst_9 : f32 to vector<128x1xf32>
    %32 = arith.select %29, %30, %31 : vector<128x1xi1>, vector<128x1xf32>
    %c1_i32_10 = arith.constant 1 : i32
    %33 = vector.broadcast %c1_i32_10 : i32 to vector<128x1xi32>
    %34 = arith.cmpi sge, %22, %33 : vector<128x1xi32>
    %cst_11 = arith.constant 1.000000e+00 : f32
    %cst_12 = arith.constant 0.000000e+00 : f32
    %35 = vector.broadcast %cst_11 : f32 to vector<128x1xf32>
    %36 = vector.broadcast %cst_12 : f32 to vector<128x1xf32>
    %37 = arith.select %34, %35, %36 : vector<128x1xi1>, vector<128x1xf32>
    %c15_i32 = arith.constant 15 : i32
    %38 = vector.broadcast %c15_i32 : i32 to vector<128x1xi32>
    %39 = arith.cmpi slt, %22, %38 : vector<128x1xi32>
    %cst_13 = arith.constant 1.000000e+00 : f32
    %cst_14 = arith.constant 0.000000e+00 : f32
    %40 = vector.broadcast %cst_13 : f32 to vector<128x1xf32>
    %41 = vector.broadcast %cst_14 : f32 to vector<128x1xf32>
    %42 = arith.select %39, %40, %41 : vector<128x1xi1>, vector<128x1xf32>
    %c14_i32 = arith.constant 14 : i32
    %43 = vector.broadcast %c14_i32 : i32 to vector<128x1xi32>
    %44 = arith.cmpi slt, %22, %43 : vector<128x1xi32>
    %cst_15 = arith.constant 1.000000e+00 : f32
    %cst_16 = arith.constant 0.000000e+00 : f32
    %45 = vector.broadcast %cst_15 : f32 to vector<128x1xf32>
    %46 = vector.broadcast %cst_16 : f32 to vector<128x1xf32>
    %47 = arith.select %44, %45, %46 : vector<128x1xi1>, vector<128x1xf32>
    %c13_i32 = arith.constant 13 : i32
    %48 = vector.broadcast %c13_i32 : i32 to vector<128x1xi32>
    %49 = arith.cmpi slt, %22, %48 : vector<128x1xi32>
    %cst_17 = arith.constant 1.000000e+00 : f32
    %cst_18 = arith.constant 0.000000e+00 : f32
    %50 = vector.broadcast %cst_17 : f32 to vector<128x1xf32>
    %51 = vector.broadcast %cst_18 : f32 to vector<128x1xf32>
    %52 = arith.select %49, %50, %51 : vector<128x1xi1>, vector<128x1xf32>
    %c0_19 = arith.constant 0 : index
    %c0_20 = arith.constant 0 : index
    %c0_21 = arith.constant 0 : index
    %53 = vector.load %arg3[%c0_19, %c0_20, %c0_21] : memref<4x1x128xf32, #tpu.memory_space<vmem>>, vector<1x1x128xf32>
    %54 = vector.shape_cast %53 : vector<1x1x128xf32> to vector<1x128xf32>
    %c0_22 = arith.constant 0 : index
    %c0_23 = arith.constant 0 : index
    %c0_24 = arith.constant 0 : index
    %55 = vector.load %arg4[%c0_22, %c0_23, %c0_24] : memref<4x1x128xf32, #tpu.memory_space<vmem>>, vector<1x1x128xf32>
    %56 = vector.shape_cast %55 : vector<1x1x128xf32> to vector<1x128xf32>
    %cst_25 = arith.constant dense<0.000000e+00> : vector<128xf32>
    %57 = vector.multi_reduction <add>, %5, %cst_25 [1] : vector<128x128xf32> to vector<128xf32>
    %58 = vector.shape_cast %57 : vector<128xf32> to vector<128x1xf32>
    %cst_26 = arith.constant 1.280000e+02 : f32
    %59 = vector.broadcast %cst_26 : f32 to vector<128x1xf32>
    %60 = arith.divf %58, %59 : vector<128x1xf32>
    %61 = arith.mulf %5, %5 : vector<128x128xf32>
    %cst_27 = arith.constant dense<0.000000e+00> : vector<128xf32>
    %62 = vector.multi_reduction <add>, %61, %cst_27 [1] : vector<128x128xf32> to vector<128xf32>
    %63 = vector.shape_cast %62 : vector<128xf32> to vector<128x1xf32>
    %cst_28 = arith.constant 1.280000e+02 : f32
    %64 = vector.broadcast %cst_28 : f32 to vector<128x1xf32>
    %65 = arith.divf %63, %64 : vector<128x1xf32>
    %66 = arith.mulf %60, %60 : vector<128x1xf32>
    %67 = arith.subf %65, %66 : vector<128x1xf32>
    %68 = vector.broadcast %60 : vector<128x1xf32> to vector<128x128xf32>
    %69 = arith.subf %5, %68 : vector<128x128xf32>
    %cst_29 = arith.constant 9.99999997E-7 : f32
    %70 = vector.broadcast %cst_29 : f32 to vector<128x1xf32>
    %71 = arith.addf %67, %70 : vector<128x1xf32>
    %72 = math.rsqrt %71 : vector<128x1xf32>
    %73 = vector.broadcast %72 : vector<128x1xf32> to vector<128x128xf32>
    %74 = arith.mulf %69, %73 : vector<128x128xf32>
    %75 = vector.broadcast %54 : vector<1x128xf32> to vector<128x128xf32>
    %76 = arith.mulf %74, %75 : vector<128x128xf32>
    %77 = vector.broadcast %56 : vector<1x128xf32> to vector<128x128xf32>
    %78 = arith.addf %76, %77 : vector<128x128xf32>
    %c3_i32_30 = arith.constant 3 : i32
    %79 = tpu.dynamic_rotate %78 by %c3_i32_30 dim 0 : vector<128x128xf32>, i32 -> vector<128x128xf32>
    %80 = vector.broadcast %27 : vector<128x1xf32> to vector<128x128xf32>
    %81 = arith.mulf %79, %80 : vector<128x128xf32>
    %82 = arith.truncf %81 : vector<128x128xf32> to vector<128x128xbf16>
    %c2_i32_31 = arith.constant 2 : i32
    %83 = tpu.dynamic_rotate %78 by %c2_i32_31 dim 0 : vector<128x128xf32>, i32 -> vector<128x128xf32>
    %84 = vector.broadcast %32 : vector<128x1xf32> to vector<128x128xf32>
    %85 = arith.mulf %83, %84 : vector<128x128xf32>
    %86 = arith.truncf %85 : vector<128x128xf32> to vector<128x128xbf16>
    %c1_i32_32 = arith.constant 1 : i32
    %87 = tpu.dynamic_rotate %78 by %c1_i32_32 dim 0 : vector<128x128xf32>, i32 -> vector<128x128xf32>
    %88 = vector.broadcast %37 : vector<128x1xf32> to vector<128x128xf32>
    %89 = arith.mulf %87, %88 : vector<128x128xf32>
    %90 = arith.truncf %89 : vector<128x128xf32> to vector<128x128xbf16>
    %91 = arith.truncf %78 : vector<128x128xf32> to vector<128x128xbf16>
    %c127_i32 = arith.constant 127 : i32
    %92 = tpu.dynamic_rotate %78 by %c127_i32 dim 0 : vector<128x128xf32>, i32 -> vector<128x128xf32>
    %93 = vector.broadcast %42 : vector<128x1xf32> to vector<128x128xf32>
    %94 = arith.mulf %92, %93 : vector<128x128xf32>
    %95 = arith.truncf %94 : vector<128x128xf32> to vector<128x128xbf16>
    %c126_i32 = arith.constant 126 : i32
    %96 = tpu.dynamic_rotate %78 by %c126_i32 dim 0 : vector<128x128xf32>, i32 -> vector<128x128xf32>
    %97 = vector.broadcast %47 : vector<128x1xf32> to vector<128x128xf32>
    %98 = arith.mulf %96, %97 : vector<128x128xf32>
    %99 = arith.truncf %98 : vector<128x128xf32> to vector<128x128xbf16>
    %c125_i32 = arith.constant 125 : i32
    %100 = tpu.dynamic_rotate %78 by %c125_i32 dim 0 : vector<128x128xf32>, i32 -> vector<128x128xf32>
    %101 = vector.broadcast %52 : vector<128x1xf32> to vector<128x128xf32>
    %102 = arith.mulf %100, %101 : vector<128x128xf32>
    %103 = arith.truncf %102 : vector<128x128xf32> to vector<128x128xbf16>
    %104 = tpu.concatenate %82, %86, %90, %91, %95, %99, %103 in 1 : vector<128x128xbf16>, vector<128x128xbf16>, vector<128x128xbf16>, vector<128x128xbf16>, vector<128x128xbf16>, vector<128x128xbf16>, vector<128x128xbf16> -> vector<128x896xbf16>
    %c0_33 = arith.constant 0 : index
    %c0_34 = arith.constant 0 : index
    %c0_35 = arith.constant 0 : index
    %105 = vector.load %arg5[%c0_33, %c0_34, %c0_35] : memref<4x896x128xbf16, #tpu.memory_space<vmem>>, vector<1x896x128xbf16>
    %106 = vector.shape_cast %105 : vector<1x896x128xbf16> to vector<896x128xbf16>
    %cst_36 = arith.constant dense<0.000000e+00> : vector<128x128xf32>
    %107 = tpu.matmul %104, %106, %cst_36 {dimension_numbers = #tpu.dot_dimension_numbers<[1], [0], [0], [1], [0, 0, 1, 1], [], []>} : vector<128x896xbf16>, vector<896x128xbf16>, vector<128x128xf32> -> vector<128x128xf32>
    %c0_37 = arith.constant 0 : index
    %c0_38 = arith.constant 0 : index
    %c0_39 = arith.constant 0 : index
    %108 = vector.load %arg6[%c0_37, %c0_38, %c0_39] : memref<4x1x128xf32, #tpu.memory_space<vmem>>, vector<1x1x128xf32>
    %109 = vector.shape_cast %108 : vector<1x1x128xf32> to vector<1x128xf32>
    %110 = vector.broadcast %109 : vector<1x128xf32> to vector<128x128xf32>
    %111 = arith.addf %107, %110 : vector<128x128xf32>
    %cst_40 = arith.constant 0.000000e+00 : f32
    %112 = vector.broadcast %cst_40 : f32 to vector<128x128xf32>
    %113 = arith.maximumf %111, %112 : vector<128x128xf32>
    %114 = arith.addf %113, %5 : vector<128x128xf32>
    %c1 = arith.constant 1 : index
    %c0_41 = arith.constant 0 : index
    %c0_42 = arith.constant 0 : index
    %115 = vector.load %arg3[%c1, %c0_41, %c0_42] : memref<4x1x128xf32, #tpu.memory_space<vmem>>, vector<1x1x128xf32>
    %116 = vector.shape_cast %115 : vector<1x1x128xf32> to vector<1x128xf32>
    %c1_43 = arith.constant 1 : index
    %c0_44 = arith.constant 0 : index
    %c0_45 = arith.constant 0 : index
    %117 = vector.load %arg4[%c1_43, %c0_44, %c0_45] : memref<4x1x128xf32, #tpu.memory_space<vmem>>, vector<1x1x128xf32>
    %118 = vector.shape_cast %117 : vector<1x1x128xf32> to vector<1x128xf32>
    %cst_46 = arith.constant dense<0.000000e+00> : vector<128xf32>
    %119 = vector.multi_reduction <add>, %114, %cst_46 [1] : vector<128x128xf32> to vector<128xf32>
    %120 = vector.shape_cast %119 : vector<128xf32> to vector<128x1xf32>
    %cst_47 = arith.constant 1.280000e+02 : f32
    %121 = vector.broadcast %cst_47 : f32 to vector<128x1xf32>
    %122 = arith.divf %120, %121 : vector<128x1xf32>
    %123 = arith.mulf %114, %114 : vector<128x128xf32>
    %cst_48 = arith.constant dense<0.000000e+00> : vector<128xf32>
    %124 = vector.multi_reduction <add>, %123, %cst_48 [1] : vector<128x128xf32> to vector<128xf32>
    %125 = vector.shape_cast %124 : vector<128xf32> to vector<128x1xf32>
    %cst_49 = arith.constant 1.280000e+02 : f32
    %126 = vector.broadcast %cst_49 : f32 to vector<128x1xf32>
    %127 = arith.divf %125, %126 : vector<128x1xf32>
    %128 = arith.mulf %122, %122 : vector<128x1xf32>
    %129 = arith.subf %127, %128 : vector<128x1xf32>
    %130 = vector.broadcast %122 : vector<128x1xf32> to vector<128x128xf32>
    %131 = arith.subf %114, %130 : vector<128x128xf32>
    %cst_50 = arith.constant 9.99999997E-7 : f32
    %132 = vector.broadcast %cst_50 : f32 to vector<128x1xf32>
    %133 = arith.addf %129, %132 : vector<128x1xf32>
    %134 = math.rsqrt %133 : vector<128x1xf32>
    %135 = vector.broadcast %134 : vector<128x1xf32> to vector<128x128xf32>
    %136 = arith.mulf %131, %135 : vector<128x128xf32>
    %137 = vector.broadcast %116 : vector<1x128xf32> to vector<128x128xf32>
    %138 = arith.mulf %136, %137 : vector<128x128xf32>
    %139 = vector.broadcast %118 : vector<1x128xf32> to vector<128x128xf32>
    %140 = arith.addf %138, %139 : vector<128x128xf32>
    %c3_i32_51 = arith.constant 3 : i32
    %141 = tpu.dynamic_rotate %140 by %c3_i32_51 dim 0 : vector<128x128xf32>, i32 -> vector<128x128xf32>
    %142 = vector.broadcast %27 : vector<128x1xf32> to vector<128x128xf32>
    %143 = arith.mulf %141, %142 : vector<128x128xf32>
    %144 = arith.truncf %143 : vector<128x128xf32> to vector<128x128xbf16>
    %c2_i32_52 = arith.constant 2 : i32
    %145 = tpu.dynamic_rotate %140 by %c2_i32_52 dim 0 : vector<128x128xf32>, i32 -> vector<128x128xf32>
    %146 = vector.broadcast %32 : vector<128x1xf32> to vector<128x128xf32>
    %147 = arith.mulf %145, %146 : vector<128x128xf32>
    %148 = arith.truncf %147 : vector<128x128xf32> to vector<128x128xbf16>
    %c1_i32_53 = arith.constant 1 : i32
    %149 = tpu.dynamic_rotate %140 by %c1_i32_53 dim 0 : vector<128x128xf32>, i32 -> vector<128x128xf32>
    %150 = vector.broadcast %37 : vector<128x1xf32> to vector<128x128xf32>
    %151 = arith.mulf %149, %150 : vector<128x128xf32>
    %152 = arith.truncf %151 : vector<128x128xf32> to vector<128x128xbf16>
    %153 = arith.truncf %140 : vector<128x128xf32> to vector<128x128xbf16>
    %c127_i32_54 = arith.constant 127 : i32
    %154 = tpu.dynamic_rotate %140 by %c127_i32_54 dim 0 : vector<128x128xf32>, i32 -> vector<128x128xf32>
    %155 = vector.broadcast %42 : vector<128x1xf32> to vector<128x128xf32>
    %156 = arith.mulf %154, %155 : vector<128x128xf32>
    %157 = arith.truncf %156 : vector<128x128xf32> to vector<128x128xbf16>
    %c126_i32_55 = arith.constant 126 : i32
    %158 = tpu.dynamic_rotate %140 by %c126_i32_55 dim 0 : vector<128x128xf32>, i32 -> vector<128x128xf32>
    %159 = vector.broadcast %47 : vector<128x1xf32> to vector<128x128xf32>
    %160 = arith.mulf %158, %159 : vector<128x128xf32>
    %161 = arith.truncf %160 : vector<128x128xf32> to vector<128x128xbf16>
    %c125_i32_56 = arith.constant 125 : i32
    %162 = tpu.dynamic_rotate %140 by %c125_i32_56 dim 0 : vector<128x128xf32>, i32 -> vector<128x128xf32>
    %163 = vector.broadcast %52 : vector<128x1xf32> to vector<128x128xf32>
    %164 = arith.mulf %162, %163 : vector<128x128xf32>
    %165 = arith.truncf %164 : vector<128x128xf32> to vector<128x128xbf16>
    %166 = tpu.concatenate %144, %148, %152, %153, %157, %161, %165 in 1 : vector<128x128xbf16>, vector<128x128xbf16>, vector<128x128xbf16>, vector<128x128xbf16>, vector<128x128xbf16>, vector<128x128xbf16>, vector<128x128xbf16> -> vector<128x896xbf16>
    %c1_57 = arith.constant 1 : index
    %c0_58 = arith.constant 0 : index
    %c0_59 = arith.constant 0 : index
    %167 = vector.load %arg5[%c1_57, %c0_58, %c0_59] : memref<4x896x128xbf16, #tpu.memory_space<vmem>>, vector<1x896x128xbf16>
    %168 = vector.shape_cast %167 : vector<1x896x128xbf16> to vector<896x128xbf16>
    %cst_60 = arith.constant dense<0.000000e+00> : vector<128x128xf32>
    %169 = tpu.matmul %166, %168, %cst_60 {dimension_numbers = #tpu.dot_dimension_numbers<[1], [0], [0], [1], [0, 0, 1, 1], [], []>} : vector<128x896xbf16>, vector<896x128xbf16>, vector<128x128xf32> -> vector<128x128xf32>
    %c1_61 = arith.constant 1 : index
    %c0_62 = arith.constant 0 : index
    %c0_63 = arith.constant 0 : index
    %170 = vector.load %arg6[%c1_61, %c0_62, %c0_63] : memref<4x1x128xf32, #tpu.memory_space<vmem>>, vector<1x1x128xf32>
    %171 = vector.shape_cast %170 : vector<1x1x128xf32> to vector<1x128xf32>
    %172 = vector.broadcast %171 : vector<1x128xf32> to vector<128x128xf32>
    %173 = arith.addf %169, %172 : vector<128x128xf32>
    %cst_64 = arith.constant 0.000000e+00 : f32
    %174 = vector.broadcast %cst_64 : f32 to vector<128x128xf32>
    %175 = arith.maximumf %173, %174 : vector<128x128xf32>
    %176 = arith.addf %175, %114 : vector<128x128xf32>
    %c2 = arith.constant 2 : index
    %c0_65 = arith.constant 0 : index
    %c0_66 = arith.constant 0 : index
    %177 = vector.load %arg3[%c2, %c0_65, %c0_66] : memref<4x1x128xf32, #tpu.memory_space<vmem>>, vector<1x1x128xf32>
    %178 = vector.shape_cast %177 : vector<1x1x128xf32> to vector<1x128xf32>
    %c2_67 = arith.constant 2 : index
    %c0_68 = arith.constant 0 : index
    %c0_69 = arith.constant 0 : index
    %179 = vector.load %arg4[%c2_67, %c0_68, %c0_69] : memref<4x1x128xf32, #tpu.memory_space<vmem>>, vector<1x1x128xf32>
    %180 = vector.shape_cast %179 : vector<1x1x128xf32> to vector<1x128xf32>
    %cst_70 = arith.constant dense<0.000000e+00> : vector<128xf32>
    %181 = vector.multi_reduction <add>, %176, %cst_70 [1] : vector<128x128xf32> to vector<128xf32>
    %182 = vector.shape_cast %181 : vector<128xf32> to vector<128x1xf32>
    %cst_71 = arith.constant 1.280000e+02 : f32
    %183 = vector.broadcast %cst_71 : f32 to vector<128x1xf32>
    %184 = arith.divf %182, %183 : vector<128x1xf32>
    %185 = arith.mulf %176, %176 : vector<128x128xf32>
    %cst_72 = arith.constant dense<0.000000e+00> : vector<128xf32>
    %186 = vector.multi_reduction <add>, %185, %cst_72 [1] : vector<128x128xf32> to vector<128xf32>
    %187 = vector.shape_cast %186 : vector<128xf32> to vector<128x1xf32>
    %cst_73 = arith.constant 1.280000e+02 : f32
    %188 = vector.broadcast %cst_73 : f32 to vector<128x1xf32>
    %189 = arith.divf %187, %188 : vector<128x1xf32>
    %190 = arith.mulf %184, %184 : vector<128x1xf32>
    %191 = arith.subf %189, %190 : vector<128x1xf32>
    %192 = vector.broadcast %184 : vector<128x1xf32> to vector<128x128xf32>
    %193 = arith.subf %176, %192 : vector<128x128xf32>
    %cst_74 = arith.constant 9.99999997E-7 : f32
    %194 = vector.broadcast %cst_74 : f32 to vector<128x1xf32>
    %195 = arith.addf %191, %194 : vector<128x1xf32>
    %196 = math.rsqrt %195 : vector<128x1xf32>
    %197 = vector.broadcast %196 : vector<128x1xf32> to vector<128x128xf32>
    %198 = arith.mulf %193, %197 : vector<128x128xf32>
    %199 = vector.broadcast %178 : vector<1x128xf32> to vector<128x128xf32>
    %200 = arith.mulf %198, %199 : vector<128x128xf32>
    %201 = vector.broadcast %180 : vector<1x128xf32> to vector<128x128xf32>
    %202 = arith.addf %200, %201 : vector<128x128xf32>
    %c3_i32_75 = arith.constant 3 : i32
    %203 = tpu.dynamic_rotate %202 by %c3_i32_75 dim 0 : vector<128x128xf32>, i32 -> vector<128x128xf32>
    %204 = vector.broadcast %27 : vector<128x1xf32> to vector<128x128xf32>
    %205 = arith.mulf %203, %204 : vector<128x128xf32>
    %206 = arith.truncf %205 : vector<128x128xf32> to vector<128x128xbf16>
    %c2_i32_76 = arith.constant 2 : i32
    %207 = tpu.dynamic_rotate %202 by %c2_i32_76 dim 0 : vector<128x128xf32>, i32 -> vector<128x128xf32>
    %208 = vector.broadcast %32 : vector<128x1xf32> to vector<128x128xf32>
    %209 = arith.mulf %207, %208 : vector<128x128xf32>
    %210 = arith.truncf %209 : vector<128x128xf32> to vector<128x128xbf16>
    %c1_i32_77 = arith.constant 1 : i32
    %211 = tpu.dynamic_rotate %202 by %c1_i32_77 dim 0 : vector<128x128xf32>, i32 -> vector<128x128xf32>
    %212 = vector.broadcast %37 : vector<128x1xf32> to vector<128x128xf32>
    %213 = arith.mulf %211, %212 : vector<128x128xf32>
    %214 = arith.truncf %213 : vector<128x128xf32> to vector<128x128xbf16>
    %215 = arith.truncf %202 : vector<128x128xf32> to vector<128x128xbf16>
    %c127_i32_78 = arith.constant 127 : i32
    %216 = tpu.dynamic_rotate %202 by %c127_i32_78 dim 0 : vector<128x128xf32>, i32 -> vector<128x128xf32>
    %217 = vector.broadcast %42 : vector<128x1xf32> to vector<128x128xf32>
    %218 = arith.mulf %216, %217 : vector<128x128xf32>
    %219 = arith.truncf %218 : vector<128x128xf32> to vector<128x128xbf16>
    %c126_i32_79 = arith.constant 126 : i32
    %220 = tpu.dynamic_rotate %202 by %c126_i32_79 dim 0 : vector<128x128xf32>, i32 -> vector<128x128xf32>
    %221 = vector.broadcast %47 : vector<128x1xf32> to vector<128x128xf32>
    %222 = arith.mulf %220, %221 : vector<128x128xf32>
    %223 = arith.truncf %222 : vector<128x128xf32> to vector<128x128xbf16>
    %c125_i32_80 = arith.constant 125 : i32
    %224 = tpu.dynamic_rotate %202 by %c125_i32_80 dim 0 : vector<128x128xf32>, i32 -> vector<128x128xf32>
    %225 = vector.broadcast %52 : vector<128x1xf32> to vector<128x128xf32>
    %226 = arith.mulf %224, %225 : vector<128x128xf32>
    %227 = arith.truncf %226 : vector<128x128xf32> to vector<128x128xbf16>
    %228 = tpu.concatenate %206, %210, %214, %215, %219, %223, %227 in 1 : vector<128x128xbf16>, vector<128x128xbf16>, vector<128x128xbf16>, vector<128x128xbf16>, vector<128x128xbf16>, vector<128x128xbf16>, vector<128x128xbf16> -> vector<128x896xbf16>
    %c2_81 = arith.constant 2 : index
    %c0_82 = arith.constant 0 : index
    %c0_83 = arith.constant 0 : index
    %229 = vector.load %arg5[%c2_81, %c0_82, %c0_83] : memref<4x896x128xbf16, #tpu.memory_space<vmem>>, vector<1x896x128xbf16>
    %230 = vector.shape_cast %229 : vector<1x896x128xbf16> to vector<896x128xbf16>
    %cst_84 = arith.constant dense<0.000000e+00> : vector<128x128xf32>
    %231 = tpu.matmul %228, %230, %cst_84 {dimension_numbers = #tpu.dot_dimension_numbers<[1], [0], [0], [1], [0, 0, 1, 1], [], []>} : vector<128x896xbf16>, vector<896x128xbf16>, vector<128x128xf32> -> vector<128x128xf32>
    %c2_85 = arith.constant 2 : index
    %c0_86 = arith.constant 0 : index
    %c0_87 = arith.constant 0 : index
    %232 = vector.load %arg6[%c2_85, %c0_86, %c0_87] : memref<4x1x128xf32, #tpu.memory_space<vmem>>, vector<1x1x128xf32>
    %233 = vector.shape_cast %232 : vector<1x1x128xf32> to vector<1x128xf32>
    %234 = vector.broadcast %233 : vector<1x128xf32> to vector<128x128xf32>
    %235 = arith.addf %231, %234 : vector<128x128xf32>
    %cst_88 = arith.constant 0.000000e+00 : f32
    %236 = vector.broadcast %cst_88 : f32 to vector<128x128xf32>
    %237 = arith.maximumf %235, %236 : vector<128x128xf32>
    %238 = arith.addf %237, %176 : vector<128x128xf32>
    %c3 = arith.constant 3 : index
    %c0_89 = arith.constant 0 : index
    %c0_90 = arith.constant 0 : index
    %239 = vector.load %arg3[%c3, %c0_89, %c0_90] : memref<4x1x128xf32, #tpu.memory_space<vmem>>, vector<1x1x128xf32>
    %240 = vector.shape_cast %239 : vector<1x1x128xf32> to vector<1x128xf32>
    %c3_91 = arith.constant 3 : index
    %c0_92 = arith.constant 0 : index
    %c0_93 = arith.constant 0 : index
    %241 = vector.load %arg4[%c3_91, %c0_92, %c0_93] : memref<4x1x128xf32, #tpu.memory_space<vmem>>, vector<1x1x128xf32>
    %242 = vector.shape_cast %241 : vector<1x1x128xf32> to vector<1x128xf32>
    %cst_94 = arith.constant dense<0.000000e+00> : vector<128xf32>
    %243 = vector.multi_reduction <add>, %238, %cst_94 [1] : vector<128x128xf32> to vector<128xf32>
    %244 = vector.shape_cast %243 : vector<128xf32> to vector<128x1xf32>
    %cst_95 = arith.constant 1.280000e+02 : f32
    %245 = vector.broadcast %cst_95 : f32 to vector<128x1xf32>
    %246 = arith.divf %244, %245 : vector<128x1xf32>
    %247 = arith.mulf %238, %238 : vector<128x128xf32>
    %cst_96 = arith.constant dense<0.000000e+00> : vector<128xf32>
    %248 = vector.multi_reduction <add>, %247, %cst_96 [1] : vector<128x128xf32> to vector<128xf32>
    %249 = vector.shape_cast %248 : vector<128xf32> to vector<128x1xf32>
    %cst_97 = arith.constant 1.280000e+02 : f32
    %250 = vector.broadcast %cst_97 : f32 to vector<128x1xf32>
    %251 = arith.divf %249, %250 : vector<128x1xf32>
    %252 = arith.mulf %246, %246 : vector<128x1xf32>
    %253 = arith.subf %251, %252 : vector<128x1xf32>
    %254 = vector.broadcast %246 : vector<128x1xf32> to vector<128x128xf32>
    %255 = arith.subf %238, %254 : vector<128x128xf32>
    %cst_98 = arith.constant 9.99999997E-7 : f32
    %256 = vector.broadcast %cst_98 : f32 to vector<128x1xf32>
    %257 = arith.addf %253, %256 : vector<128x1xf32>
    %258 = math.rsqrt %257 : vector<128x1xf32>
    %259 = vector.broadcast %258 : vector<128x1xf32> to vector<128x128xf32>
    %260 = arith.mulf %255, %259 : vector<128x128xf32>
    %261 = vector.broadcast %240 : vector<1x128xf32> to vector<128x128xf32>
    %262 = arith.mulf %260, %261 : vector<128x128xf32>
    %263 = vector.broadcast %242 : vector<1x128xf32> to vector<128x128xf32>
    %264 = arith.addf %262, %263 : vector<128x128xf32>
    %c3_i32_99 = arith.constant 3 : i32
    %265 = tpu.dynamic_rotate %264 by %c3_i32_99 dim 0 : vector<128x128xf32>, i32 -> vector<128x128xf32>
    %266 = vector.broadcast %27 : vector<128x1xf32> to vector<128x128xf32>
    %267 = arith.mulf %265, %266 : vector<128x128xf32>
    %268 = arith.truncf %267 : vector<128x128xf32> to vector<128x128xbf16>
    %c2_i32_100 = arith.constant 2 : i32
    %269 = tpu.dynamic_rotate %264 by %c2_i32_100 dim 0 : vector<128x128xf32>, i32 -> vector<128x128xf32>
    %270 = vector.broadcast %32 : vector<128x1xf32> to vector<128x128xf32>
    %271 = arith.mulf %269, %270 : vector<128x128xf32>
    %272 = arith.truncf %271 : vector<128x128xf32> to vector<128x128xbf16>
    %c1_i32_101 = arith.constant 1 : i32
    %273 = tpu.dynamic_rotate %264 by %c1_i32_101 dim 0 : vector<128x128xf32>, i32 -> vector<128x128xf32>
    %274 = vector.broadcast %37 : vector<128x1xf32> to vector<128x128xf32>
    %275 = arith.mulf %273, %274 : vector<128x128xf32>
    %276 = arith.truncf %275 : vector<128x128xf32> to vector<128x128xbf16>
    %277 = arith.truncf %264 : vector<128x128xf32> to vector<128x128xbf16>
    %c127_i32_102 = arith.constant 127 : i32
    %278 = tpu.dynamic_rotate %264 by %c127_i32_102 dim 0 : vector<128x128xf32>, i32 -> vector<128x128xf32>
    %279 = vector.broadcast %42 : vector<128x1xf32> to vector<128x128xf32>
    %280 = arith.mulf %278, %279 : vector<128x128xf32>
    %281 = arith.truncf %280 : vector<128x128xf32> to vector<128x128xbf16>
    %c126_i32_103 = arith.constant 126 : i32
    %282 = tpu.dynamic_rotate %264 by %c126_i32_103 dim 0 : vector<128x128xf32>, i32 -> vector<128x128xf32>
    %283 = vector.broadcast %47 : vector<128x1xf32> to vector<128x128xf32>
    %284 = arith.mulf %282, %283 : vector<128x128xf32>
    %285 = arith.truncf %284 : vector<128x128xf32> to vector<128x128xbf16>
    %c125_i32_104 = arith.constant 125 : i32
    %286 = tpu.dynamic_rotate %264 by %c125_i32_104 dim 0 : vector<128x128xf32>, i32 -> vector<128x128xf32>
    %287 = vector.broadcast %52 : vector<128x1xf32> to vector<128x128xf32>
    %288 = arith.mulf %286, %287 : vector<128x128xf32>
    %289 = arith.truncf %288 : vector<128x128xf32> to vector<128x128xbf16>
    %290 = tpu.concatenate %268, %272, %276, %277, %281, %285, %289 in 1 : vector<128x128xbf16>, vector<128x128xbf16>, vector<128x128xbf16>, vector<128x128xbf16>, vector<128x128xbf16>, vector<128x128xbf16>, vector<128x128xbf16> -> vector<128x896xbf16>
    %c3_105 = arith.constant 3 : index
    %c0_106 = arith.constant 0 : index
    %c0_107 = arith.constant 0 : index
    %291 = vector.load %arg5[%c3_105, %c0_106, %c0_107] : memref<4x896x128xbf16, #tpu.memory_space<vmem>>, vector<1x896x128xbf16>
    %292 = vector.shape_cast %291 : vector<1x896x128xbf16> to vector<896x128xbf16>
    %cst_108 = arith.constant dense<0.000000e+00> : vector<128x128xf32>
    %293 = tpu.matmul %290, %292, %cst_108 {dimension_numbers = #tpu.dot_dimension_numbers<[1], [0], [0], [1], [0, 0, 1, 1], [], []>} : vector<128x896xbf16>, vector<896x128xbf16>, vector<128x128xf32> -> vector<128x128xf32>
    %c3_109 = arith.constant 3 : index
    %c0_110 = arith.constant 0 : index
    %c0_111 = arith.constant 0 : index
    %294 = vector.load %arg6[%c3_109, %c0_110, %c0_111] : memref<4x1x128xf32, #tpu.memory_space<vmem>>, vector<1x1x128xf32>
    %295 = vector.shape_cast %294 : vector<1x1x128xf32> to vector<1x128xf32>
    %296 = vector.broadcast %295 : vector<1x128xf32> to vector<128x128xf32>
    %297 = arith.addf %293, %296 : vector<128x128xf32>
    %cst_112 = arith.constant 0.000000e+00 : f32
    %298 = vector.broadcast %cst_112 : f32 to vector<128x128xf32>
    %299 = arith.maximumf %297, %298 : vector<128x128xf32>
    %300 = arith.addf %299, %238 : vector<128x128xf32>
    %301 = vector.shape_cast %300 : vector<128x128xf32> to vector<8x16x128xf32>
    %c0_113 = arith.constant 0 : index
    %c0_114 = arith.constant 0 : index
    %c0_115 = arith.constant 0 : index
    %302 = vector.load %arg7[%c0_113, %c0_114, %c0_115] : memref<8x16x128xf32, #tpu.memory_space<vmem>>, vector<8x16x128xf32>
    tpu.vector_store %arg7[%c0_113, %c0_114, %c0_115], %301 {strides = array<i32>} : memref<8x16x128xf32, #tpu.memory_space<vmem>>, vector<8x16x128xf32>,
    return
  }
  func.func @transform_0(%arg0: i32) -> (i32, i32, i32) {
    %c0_i32 = arith.constant 0 : i32
    %c0_i32_0 = arith.constant 0 : i32
    %c0_i32_1 = arith.constant 0 : i32
    return %arg0, %c0_i32, %c0_i32_0 : i32, i32, i32
  }
  func.func @transform_1(%arg0: i32) -> (i32, i32) {
    %c0_i32 = arith.constant 0 : i32
    %c0_i32_0 = arith.constant 0 : i32
    %c0_i32_1 = arith.constant 0 : i32
    return %c0_i32, %c0_i32_0 : i32, i32
  }
  func.func @transform_2(%arg0: i32) -> (i32, i32, i32) {
    %c0_i32 = arith.constant 0 : i32
    %c0_i32_0 = arith.constant 0 : i32
    %c0_i32_1 = arith.constant 0 : i32
    %c0_i32_2 = arith.constant 0 : i32
    return %c0_i32, %c0_i32_0, %c0_i32_1 : i32, i32, i32
  }
  func.func @transform_3(%arg0: i32) -> (i32, i32, i32) {
    %c0_i32 = arith.constant 0 : i32
    %c0_i32_0 = arith.constant 0 : i32
    %c0_i32_1 = arith.constant 0 : i32
    %c0_i32_2 = arith.constant 0 : i32
    return %c0_i32, %c0_i32_0, %c0_i32_1 : i32, i32, i32
  }
  func.func @transform_4(%arg0: i32) -> (i32, i32, i32) {
    %c0_i32 = arith.constant 0 : i32
    %c0_i32_0 = arith.constant 0 : i32
    %c0_i32_1 = arith.constant 0 : i32
    %c0_i32_2 = arith.constant 0 : i32
    return %c0_i32, %c0_i32_0, %c0_i32_1 : i32, i32, i32
  }
  func.func @transform_5(%arg0: i32) -> (i32, i32, i32) {
    %c0_i32 = arith.constant 0 : i32
    %c0_i32_0 = arith.constant 0 : i32
    %c0_i32_1 = arith.constant 0 : i32
    %c0_i32_2 = arith.constant 0 : i32
    return %c0_i32, %c0_i32_0, %c0_i32_1 : i32, i32, i32
  }
  func.func @transform_6(%arg0: i32) -> (i32, i32, i32) {
    %c0_i32 = arith.constant 0 : i32
    %c0_i32_0 = arith.constant 0 : i32
    %c0_i32_1 = arith.constant 0 : i32
    return %arg0, %c0_i32, %c0_i32_0 : i32, i32, i32
  }
}

</mosaic_0001>

<llo_original>
// kernel: tpu_custom_call.1
$region0: #{tpu_custom_call.1}
  #allocation0 [shape = 'u32[]', space=smem, size = 0x4, offset = 0x4, fixed_abs, tag = 'smem constant byte address 0x4 - core index']
  #allocation1 [shape = 'u32[144,128]{1,0:T(1,128)}', space=vmem, size = 0x12000, scoped, tag = 'internal scratch']
  %s0 = inlined_call_operand.hbm [shape: f32[8,16,128], index: 0, kind: input, shape index: {}]
  %s1 = inlined_call_operand.hbm [shape: f32[16,128], index: 1, kind: input, shape index: {}]
  %s2 = inlined_call_operand.vmem [shape: f32[4,1,128], index: 2, kind: input, shape index: {}]
  %s3 = inlined_call_operand.vmem [shape: f32[4,1,128], index: 3, kind: input, shape index: {}]
  %s4 = inlined_call_operand.hbm [shape: bf16[4,896,128], index: 4, kind: input, shape index: {}]
  %s5 = inlined_call_operand.vmem [shape: f32[4,1,128], index: 5, kind: input, shape index: {}]
  %s6 = inlined_call_operand.hbm [shape: f32[8,16,128], index: 6, kind: output, shape index: {}]
  %s7 = sld [smem:[#allocation0]]
  $region46: #{tpu_custom_call.1} parent=0
    _
  %s9 = ssub.s32 1, %s7
  %s10 = scalar_select 0, %s9, %s7
  $region1: #{tpu_custom_call.1} parent=0
    #allocation2 [shape = 'u8[65536]{0}', space=vmem, size = 0x10000, scoped, tag = 'input window, operand 0, single buffered']
    #allocation3 [shape = 's32[1]{0}', space=sflag, size = 0x4, scoped, tag = 'scoped memory for tpu_custom_call.1']
    #allocation4 [shape = 's32[1]{0}', space=sflag, size = 0x4, scoped, tag = 'scoped memory for tpu_custom_call.1']
    #allocation5 [shape = 'u8[8192]{0}', space=vmem, size = 0x2000, scoped, tag = 'input window, operand 1, single buffered']
    #allocation6 [shape = 's32[1]{0}', space=sflag, size = 0x4, scoped, tag = 'scoped memory for tpu_custom_call.1']
    #allocation7 [shape = 'u8[917504]{0}', space=vmem, size = 0xe0000, scoped, tag = 'input window, operand 4, single buffered']
    #allocation8 [shape = 'u8[65536]{0}', space=vmem, size = 0x10000, scoped, tag = 'output window, operand 0, single buffered']
    %11 = vsyncpa [#allocation3], 0
    %12 = vsyncpa [#allocation6], 0
    %13 = vsyncpa [#allocation4], 0
    // Predicated region
    $region2: #{tpu_custom_call.1} parent=1 // pred_check
      _
    $region3: #{tpu_custom_call.1} parent=1 // pred_check_branch
      %15 = sbr.rel (0) target = $region5
    $region4: #{tpu_custom_call.1} parent=1 // pred_region
      %s17 = ssub.s32 2048, 2048
      %18 = vsyncadd [#allocation3], %s17
      %s19 = sshll.u32 [#allocation2], 4
      %s20 = int_to_ptr.vmem [resolvable:$true] %s19
      %25 = dma.hbm_to_vmem [thread:$0]  %s0, 2048, %s20, [#allocation3], 128, 128, 8
    $region5: #{tpu_custom_call.1} parent=1 // pred_fallthru
      _
    // Predicated region
    $region6: #{tpu_custom_call.1} parent=1 // pred_check
      _
    $region7: #{tpu_custom_call.1} parent=1 // pred_check_branch
      %27 = sbr.rel (0) target = $region9
    $region8: #{tpu_custom_call.1} parent=1 // pred_region
      %s29 = ssub.s32 256, 256
      %30 = vsyncadd [#allocation6], %s29
      %s31 = sshll.u32 [#allocation5], 4
      %s32 = int_to_ptr.vmem [resolvable:$true] %s31
      %37 = dma.hbm_to_vmem [thread:$0]  %s1, 256, %s32, [#allocation6], 128, 128, 8
    $region9: #{tpu_custom_call.1} parent=1 // pred_fallthru
      _
    // Predicated region
    $region10: #{tpu_custom_call.1} parent=1 // pred_check
      _
    $region11: #{tpu_custom_call.1} parent=1 // pred_check_branch
      %39 = sbr.rel (0) target = $region13
    $region12: #{tpu_custom_call.1} parent=1 // pred_region
      _
    $region13: #{tpu_custom_call.1} parent=1 // pred_fallthru
      _
    // Predicated region
    $region14: #{tpu_custom_call.1} parent=1 // pred_check
      _
    $region15: #{tpu_custom_call.1} parent=1 // pred_check_branch
      %41 = sbr.rel (0) target = $region17
    $region16: #{tpu_custom_call.1} parent=1 // pred_region
      _
    $region17: #{tpu_custom_call.1} parent=1 // pred_fallthru
      _
    // Predicated region
    $region18: #{tpu_custom_call.1} parent=1 // pred_check
      _
    $region19: #{tpu_custom_call.1} parent=1 // pred_check_branch
      %43 = sbr.rel (0) target = $region21
    $region20: #{tpu_custom_call.1} parent=1 // pred_region
      %s45 = ssub.s32 28672, 28672
      %46 = vsyncadd [#allocation6], %s45
      %s47 = sshll.u32 [#allocation7], 4
      %s48 = int_to_ptr.vmem [resolvable:$true] %s47
      %53 = dma.hbm_to_vmem [thread:$0]  %s4, 28672, %s48, [#allocation6], 64, 64, 4
    $region21: #{tpu_custom_call.1} parent=1 // pred_fallthru
      _
    // Predicated region
    $region22: #{tpu_custom_call.1} parent=1 // pred_check
      _
    $region23: #{tpu_custom_call.1} parent=1 // pred_check_branch
      %55 = sbr.rel (0) target = $region25
    $region24: #{tpu_custom_call.1} parent=1 // pred_region
      _
    $region25: #{tpu_custom_call.1} parent=1 // pred_fallthru
      _
    // Predicated region
    $region26: #{tpu_custom_call.1} parent=1 // pred_check
      _
    $region27: #{tpu_custom_call.1} parent=1 // pred_check_branch
      %57 = sbr.rel (0) target = $region29
    $region28: #{tpu_custom_call.1} parent=1 // pred_region
      %58 = dma.done [#allocation3], 2048
    $region29: #{tpu_custom_call.1} parent=1 // pred_fallthru
      _
    // Predicated region
    $region30: #{tpu_custom_call.1} parent=1 // pred_check
      _
    $region31: #{tpu_custom_call.1} parent=1 // pred_check_branch
      %60 = sbr.rel (0) target = $region33
    $region32: #{tpu_custom_call.1} parent=1 // pred_region
      %61 = dma.done [#allocation6], 256
    $region33: #{tpu_custom_call.1} parent=1 // pred_fallthru
      _
    // Predicated region
    $region34: #{tpu_custom_call.1} parent=1 // pred_check
      _
    $region35: #{tpu_custom_call.1} parent=1 // pred_check_branch
      %63 = sbr.rel (0) target = $region37
    $region36: #{tpu_custom_call.1} parent=1 // pred_region
      %64 = dma.done [#allocation6], 28672
    $region37: #{tpu_custom_call.1} parent=1 // pred_fallthru
      _
    %v66 = vld [vmem:[#allocation2] sm:$0xff]
    %v67 = vld [vmem:[#allocation2 + $0x8] sm:$0xff]
    %v68 = vld [vmem:[#allocation2 + $0x10] sm:$0xff]
    %v69 = vld [vmem:[#allocation2 + $0x18] sm:$0xff]
    %v70 = vld [vmem:[#allocation2 + $0x20] sm:$0xff]
    %v71 = vld [vmem:[#allocation2 + $0x28] sm:$0xff]
    %v72 = vld [vmem:[#allocation2 + $0x30] sm:$0xff]
    %v73 = vld [vmem:[#allocation2 + $0x38] sm:$0xff]
    %v74 = vld [vmem:[#allocation2 + $0x40] sm:$0xff]
    %v75 = vld [vmem:[#allocation2 + $0x48] sm:$0xff]
    %v76 = vld [vmem:[#allocation2 + $0x50] sm:$0xff]
    %v77 = vld [vmem:[#allocation2 + $0x58] sm:$0xff]
    %v78 = vld [vmem:[#allocation2 + $0x60] sm:$0xff]
    %v79 = vld [vmem:[#allocation2 + $0x68] sm:$0xff]
    %v80 = vld [vmem:[#allocation2 + $0x70] sm:$0xff]
    %v81 = vld [vmem:[#allocation2 + $0x78] sm:$0xff]
    %v82 = vld [vmem:[#allocation5] sm:$0xff]
    %v83 = vld [vmem:[#allocation5 + $0x8] sm:$0xff]
    %v84 = vadd.f32 %v66, %v82
    %v85 = vadd.f32 %v67, %v83
    %v86 = vadd.f32 %v68, %v82
    %v87 = vadd.f32 %v69, %v83
    %v88 = vadd.f32 %v70, %v82
    %v89 = vadd.f32 %v71, %v83
    %v90 = vadd.f32 %v72, %v82
    %v91 = vadd.f32 %v73, %v83
    %v92 = vadd.f32 %v74, %v82
    %v93 = vadd.f32 %v75, %v83
    %v94 = vadd.f32 %v76, %v82
    %v95 = vadd.f32 %v77, %v83
    %v96 = vadd.f32 %v78, %v82
    %v97 = vadd.f32 %v79, %v83
    %v98 = vadd.f32 %v80, %v82
    %v99 = vadd.f32 %v81, %v83
    %v100 = vlaneseq
    %v101 = vshrl.u32 %v100, 7
    %v102 = vadd.s32 %v101, 8
    %v103 = vadd.s32 %v101, 16
    %v104 = vadd.s32 %v101, 24
    %v105 = vadd.s32 %v101, 32
    %v106 = vadd.s32 %v101, 40
    %v107 = vadd.s32 %v101, 48
    %v108 = vadd.s32 %v101, 56
    %v109 = vadd.s32 %v101, 64
    %v110 = vadd.s32 %v101, 72
    %v111 = vadd.s32 %v101, 80
    %v112 = vadd.s32 %v101, 88
    %v113 = vadd.s32 %v101, 96
    %v114 = vadd.s32 %v101, 104
    %v115 = vadd.s32 %v101, 112
    %v116 = vadd.s32 %v101, 120
    %vm117 = vcmp.lt.s32.totalorder %v101, 0
    %v118 = vsub.s32 0, %v101
    %v119 = vsel %vm117, %v118, %v101
    %v120 = vshrl.u32 %v119, 4
    %v121 = vand.u32 %v119, 15
    %v122 = vsub.s32 0, %v121
    %v123 = vsel %vm117, %v122, %v121
    %vm124 = vcmp.lt.s32.totalorder %v102, 0
    %v125 = vsub.s32 0, %v102
    %v126 = vsel %vm124, %v125, %v102
    %v127 = vshrl.u32 %v126, 4
    %v128 = vand.u32 %v126, 15
    %v129 = vsub.s32 0, %v128
    %v130 = vsel %vm124, %v129, %v128
    %vm131 = vcmp.lt.s32.totalorder %v103, 0
    %v132 = vsub.s32 0, %v103
    %v133 = vsel %vm131, %v132, %v103
    %v134 = vshrl.u32 %v133, 4
    %v135 = vand.u32 %v133, 15
    %v136 = vsub.s32 0, %v135
    %v137 = vsel %vm131, %v136, %v135
    %vm138 = vcmp.lt.s32.totalorder %v104, 0
    %v139 = vsub.s32 0, %v104
    %v140 = vsel %vm138, %v139, %v104
    %v141 = vshrl.u32 %v140, 4
    %v142 = vand.u32 %v140, 15
    %v143 = vsub.s32 0, %v142
    %v144 = vsel %vm138, %v143, %v142
    %vm145 = vcmp.lt.s32.totalorder %v105, 0
    %v146 = vsub.s32 0, %v105
    %v147 = vsel %vm145, %v146, %v105
    %v148 = vshrl.u32 %v147, 4
    %v149 = vand.u32 %v147, 15
    %v150 = vsub.s32 0, %v149
    %v151 = vsel %vm145, %v150, %v149
    %vm152 = vcmp.lt.s32.totalorder %v106, 0
    %v153 = vsub.s32 0, %v106
    %v154 = vsel %vm152, %v153, %v106
    %v155 = vshrl.u32 %v154, 4
    %v156 = vand.u32 %v154, 15
    %v157 = vsub.s32 0, %v156
    %v158 = vsel %vm152, %v157, %v156
    %vm159 = vcmp.lt.s32.totalorder %v107, 0
    %v160 = vsub.s32 0, %v107
    %v161 = vsel %vm159, %v160, %v107
    %v162 = vshrl.u32 %v161, 4
    %v163 = vand.u32 %v161, 15
    %v164 = vsub.s32 0, %v163
    %v165 = vsel %vm159, %v164, %v163
    %vm166 = vcmp.lt.s32.totalorder %v108, 0
    %v167 = vsub.s32 0, %v108
    %v168 = vsel %vm166, %v167, %v108
    %v169 = vshrl.u32 %v168, 4
    %v170 = vand.u32 %v168, 15
    %v171 = vsub.s32 0, %v170
    %v172 = vsel %vm166, %v171, %v170
    %vm173 = vcmp.lt.s32.totalorder %v109, 0
    %v174 = vsub.s32 0, %v109
    %v175 = vsel %vm173, %v174, %v109
    %v176 = vshrl.u32 %v175, 4
    %v177 = vand.u32 %v175, 15
    %v178 = vsub.s32 0, %v177
    %v179 = vsel %vm173, %v178, %v177
    %vm180 = vcmp.lt.s32.totalorder %v110, 0
    %v181 = vsub.s32 0, %v110
    %v182 = vsel %vm180, %v181, %v110
    %v183 = vshrl.u32 %v182, 4
    %v184 = vand.u32 %v182, 15
    %v185 = vsub.s32 0, %v184
    %v186 = vsel %vm180, %v185, %v184
    %vm187 = vcmp.lt.s32.totalorder %v111, 0
    %v188 = vsub.s32 0, %v111
    %v189 = vsel %vm187, %v188, %v111
    %v190 = vshrl.u32 %v189, 4
    %v191 = vand.u32 %v189, 15
    %v192 = vsub.s32 0, %v191
    %v193 = vsel %vm187, %v192, %v191
    %vm194 = vcmp.lt.s32.totalorder %v112, 0
    %v195 = vsub.s32 0, %v112
    %v196 = vsel %vm194, %v195, %v112
    %v197 = vshrl.u32 %v196, 4
    %v198 = vand.u32 %v196, 15
    %v199 = vsub.s32 0, %v198
    %v200 = vsel %vm194, %v199, %v198
    %vm201 = vcmp.lt.s32.totalorder %v113, 0
    %v202 = vsub.s32 0, %v113
    %v203 = vsel %vm201, %v202, %v113
    %v204 = vshrl.u32 %v203, 4
    %v205 = vand.u32 %v203, 15
    %v206 = vsub.s32 0, %v205
    %v207 = vsel %vm201, %v206, %v205
    %vm208 = vcmp.lt.s32.totalorder %v114, 0
    %v209 = vsub.s32 0, %v114
    %v210 = vsel %vm208, %v209, %v114
    %v211 = vshrl.u32 %v210, 4
    %v212 = vand.u32 %v210, 15
    %v213 = vsub.s32 0, %v212
    %v214 = vsel %vm208, %v213, %v212
    %vm215 = vcmp.lt.s32.totalorder %v115, 0
    %v216 = vsub.s32 0, %v115
    %v217 = vsel %vm215, %v216, %v115
    %v218 = vshrl.u32 %v217, 4
    %v219 = vand.u32 %v217, 15
    %v220 = vsub.s32 0, %v219
    %v221 = vsel %vm215, %v220, %v219
    %vm222 = vcmp.lt.s32.totalorder %v116, 0
    %v223 = vsub.s32 0, %v116
    %v224 = vsel %vm222, %v223, %v116
    %v225 = vshrl.u32 %v224, 4
    %v226 = vand.u32 %v224, 15
    %v227 = vsub.s32 0, %v226
    %v228 = vsel %vm222, %v227, %v226
    %vm229 = vcmp.ne.s32.totalorder %v123, 0
    %vm230 = vcmp.ne.s32.totalorder %v130, 0
    %vm231 = vcmp.ne.s32.totalorder %v137, 0
    %vm232 = vcmp.ne.s32.totalorder %v144, 0
    %vm233 = vcmp.ne.s32.totalorder %v151, 0
    %vm234 = vcmp.ne.s32.totalorder %v158, 0
    %vm235 = vcmp.ne.s32.totalorder %v165, 0
    %vm236 = vcmp.ne.s32.totalorder %v172, 0
    %vm237 = vcmp.ne.s32.totalorder %v179, 0
    %vm238 = vcmp.ne.s32.totalorder %v186, 0
    %vm239 = vcmp.ne.s32.totalorder %v193, 0
    %vm240 = vcmp.ne.s32.totalorder %v200, 0
    %vm241 = vcmp.ne.s32.totalorder %v207, 0
    %vm242 = vcmp.ne.s32.totalorder %v214, 0
    %vm243 = vcmp.ne.s32.totalorder %v221, 0
    %vm244 = vcmp.ne.s32.totalorder %v228, 0
    %vm245 = vcmp.lt.s32.totalorder %v123, 0
    %vm246 = vcmp.lt.s32.totalorder %v130, 0
    %vm247 = vcmp.lt.s32.totalorder %v137, 0
    %vm248 = vcmp.lt.s32.totalorder %v144, 0
    %vm249 = vcmp.lt.s32.totalorder %v151, 0
    %vm250 = vcmp.lt.s32.totalorder %v158, 0
    %vm251 = vcmp.lt.s32.totalorder %v165, 0
    %vm252 = vcmp.lt.s32.totalorder %v172, 0
    %vm253 = vcmp.lt.s32.totalorder %v179, 0
    %vm254 = vcmp.lt.s32.totalorder %v186, 0
    %vm255 = vcmp.lt.s32.totalorder %v193, 0
    %vm256 = vcmp.lt.s32.totalorder %v200, 0
    %vm257 = vcmp.lt.s32.totalorder %v207, 0
    %vm258 = vcmp.lt.s32.totalorder %v214, 0
    %vm259 = vcmp.lt.s32.totalorder %v221, 0
    %vm260 = vcmp.lt.s32.totalorder %v228, 0
    %vm261 = vmand %vm245, %vm229
    %vm262 = vmand %vm246, %vm230
    %vm263 = vmand %vm247, %vm231
    %vm264 = vmand %vm248, %vm232
    %vm265 = vmand %vm249, %vm233
    %vm266 = vmand %vm250, %vm234
    %vm267 = vmand %vm251, %vm235
    %vm268 = vmand %vm252, %vm236
    %vm269 = vmand %vm253, %vm237
    %vm270 = vmand %vm254, %vm238
    %vm271 = vmand %vm255, %vm239
    %vm272 = vmand %vm256, %vm240
    %vm273 = vmand %vm257, %vm241
    %vm274 = vmand %vm258, %vm242
    %vm275 = vmand %vm259, %vm243
    %vm276 = vmand %vm260, %vm244
    %v277 = vadd.s32 %v123, 16
    %v278 = vadd.s32 %v130, 16
    %v279 = vadd.s32 %v137, 16
    %v280 = vadd.s32 %v144, 16
    %v281 = vadd.s32 %v151, 16
    %v282 = vadd.s32 %v158, 16
    %v283 = vadd.s32 %v165, 16
    %v284 = vadd.s32 %v172, 16
    %v285 = vadd.s32 %v179, 16
    %v286 = vadd.s32 %v186, 16
    %v287 = vadd.s32 %v193, 16
    %v288 = vadd.s32 %v200, 16
    %v289 = vadd.s32 %v207, 16
    %v290 = vadd.s32 %v214, 16
    %v291 = vadd.s32 %v221, 16
    %v292 = vadd.s32 %v228, 16
    %v293 = vsel %vm261, %v277, %v123
    %v294 = vsel %vm262, %v278, %v130
    %v295 = vsel %vm263, %v279, %v137
    %v296 = vsel %vm264, %v280, %v144
    %v297 = vsel %vm265, %v281, %v151
    %v298 = vsel %vm266, %v282, %v158
    %v299 = vsel %vm267, %v283, %v165
    %v300 = vsel %vm268, %v284, %v172
    %v301 = vsel %vm269, %v285, %v179
    %v302 = vsel %vm270, %v286, %v186
    %v303 = vsel %vm271, %v287, %v193
    %v304 = vsel %vm272, %v288, %v200
    %v305 = vsel %vm273, %v289, %v207
    %v306 = vsel %vm274, %v290, %v214
    %v307 = vsel %vm275, %v291, %v221
    %v308 = vsel %vm276, %v292, %v228
    %vm309 = vcmp.ge.s32.totalorder %v293, 3
    %vm310 = vcmp.ge.s32.totalorder %v294, 3
    %vm311 = vcmp.ge.s32.totalorder %v295, 3
    %vm312 = vcmp.ge.s32.totalorder %v296, 3
    %vm313 = vcmp.ge.s32.totalorder %v297, 3
    %vm314 = vcmp.ge.s32.totalorder %v298, 3
    %vm315 = vcmp.ge.s32.totalorder %v299, 3
    %vm316 = vcmp.ge.s32.totalorder %v300, 3
    %vm317 = vcmp.ge.s32.totalorder %v301, 3
    %vm318 = vcmp.ge.s32.totalorder %v302, 3
    %vm319 = vcmp.ge.s32.totalorder %v303, 3
    %vm320 = vcmp.ge.s32.totalorder %v304, 3
    %vm321 = vcmp.ge.s32.totalorder %v305, 3
    %vm322 = vcmp.ge.s32.totalorder %v306, 3
    %vm323 = vcmp.ge.s32.totalorder %v307, 3
    %vm324 = vcmp.ge.s32.totalorder %v308, 3
    %v325 = vsel %vm309, 1.0, 0.0
    %v326 = vsel %vm310, 1.0, 0.0
    %v327 = vsel %vm311, 1.0, 0.0
    %v328 = vsel %vm312, 1.0, 0.0
    %v329 = vsel %vm313, 1.0, 0.0
    %v330 = vsel %vm314, 1.0, 0.0
    %v331 = vsel %vm315, 1.0, 0.0
    %v332 = vsel %vm316, 1.0, 0.0
    %v333 = vsel %vm317, 1.0, 0.0
    %v334 = vsel %vm318, 1.0, 0.0
    %v335 = vsel %vm319, 1.0, 0.0
    %v336 = vsel %vm320, 1.0, 0.0
    %v337 = vsel %vm321, 1.0, 0.0
    %v338 = vsel %vm322, 1.0, 0.0
    %v339 = vsel %vm323, 1.0, 0.0
    %v340 = vsel %vm324, 1.0, 0.0
    %vm341 = vcmp.ge.s32.totalorder %v293, 2
    %vm342 = vcmp.ge.s32.totalorder %v294, 2
    %vm343 = vcmp.ge.s32.totalorder %v295, 2
    %vm344 = vcmp.ge.s32.totalorder %v296, 2
    %vm345 = vcmp.ge.s32.totalorder %v297, 2
    %vm346 = vcmp.ge.s32.totalorder %v298, 2
    %vm347 = vcmp.ge.s32.totalorder %v299, 2
    %vm348 = vcmp.ge.s32.totalorder %v300, 2
    %vm349 = vcmp.ge.s32.totalorder %v301, 2
    %vm350 = vcmp.ge.s32.totalorder %v302, 2
    %vm351 = vcmp.ge.s32.totalorder %v303, 2
    %vm352 = vcmp.ge.s32.totalorder %v304, 2
    %vm353 = vcmp.ge.s32.totalorder %v305, 2
    %vm354 = vcmp.ge.s32.totalorder %v306, 2
    %vm355 = vcmp.ge.s32.totalorder %v307, 2
    %vm356 = vcmp.ge.s32.totalorder %v308, 2
    %v357 = vsel %vm341, 1.0, 0.0
    %v358 = vsel %vm342, 1.0, 0.0
    %v359 = vsel %vm343, 1.0, 0.0
    %v360 = vsel %vm344, 1.0, 0.0
    %v361 = vsel %vm345, 1.0, 0.0
    %v362 = vsel %vm346, 1.0, 0.0
    %v363 = vsel %vm347, 1.0, 0.0
    %v364 = vsel %vm348, 1.0, 0.0
    %v365 = vsel %vm349, 1.0, 0.0
    %v366 = vsel %vm350, 1.0, 0.0
    %v367 = vsel %vm351, 1.0, 0.0
    %v368 = vsel %vm352, 1.0, 0.0
    %v369 = vsel %vm353, 1.0, 0.0
    %v370 = vsel %vm354, 1.0, 0.0
    %v371 = vsel %vm355, 1.0, 0.0
    %v372 = vsel %vm356, 1.0, 0.0
    %vm373 = vcmp.ge.s32.totalorder %v293, 1
    %vm374 = vcmp.ge.s32.totalorder %v294, 1
    %vm375 = vcmp.ge.s32.totalorder %v295, 1
    %vm376 = vcmp.ge.s32.totalorder %v296, 1
    %vm377 = vcmp.ge.s32.totalorder %v297, 1
    %vm378 = vcmp.ge.s32.totalorder %v298, 1
    %vm379 = vcmp.ge.s32.totalorder %v299, 1
    %vm380 = vcmp.ge.s32.totalorder %v300, 1
    %vm381 = vcmp.ge.s32.totalorder %v301, 1
    %vm382 = vcmp.ge.s32.totalorder %v302, 1
    %vm383 = vcmp.ge.s32.totalorder %v303, 1
    %vm384 = vcmp.ge.s32.totalorder %v304, 1
    %vm385 = vcmp.ge.s32.totalorder %v305, 1
    %vm386 = vcmp.ge.s32.totalorder %v306, 1
    %vm387 = vcmp.ge.s32.totalorder %v307, 1
    %vm388 = vcmp.ge.s32.totalorder %v308, 1
    %v389 = vsel %vm373, 1.0, 0.0
    %v390 = vsel %vm374, 1.0, 0.0
    %v391 = vsel %vm375, 1.0, 0.0
    %v392 = vsel %vm376, 1.0, 0.0
    %v393 = vsel %vm377, 1.0, 0.0
    %v394 = vsel %vm378, 1.0, 0.0
    %v395 = vsel %vm379, 1.0, 0.0
    %v396 = vsel %vm380, 1.0, 0.0
    %v397 = vsel %vm381, 1.0, 0.0
    %v398 = vsel %vm382, 1.0, 0.0
    %v399 = vsel %vm383, 1.0, 0.0
    %v400 = vsel %vm384, 1.0, 0.0
    %v401 = vsel %vm385, 1.0, 0.0
    %v402 = vsel %vm386, 1.0, 0.0
    %v403 = vsel %vm387, 1.0, 0.0
    %v404 = vsel %vm388, 1.0, 0.0
    %vm405 = vcmp.lt.s32.totalorder %v293, 15
    %vm406 = vcmp.lt.s32.totalorder %v294, 15
    %vm407 = vcmp.lt.s32.totalorder %v295, 15
    %vm408 = vcmp.lt.s32.totalorder %v296, 15
    %vm409 = vcmp.lt.s32.totalorder %v297, 15
    %vm410 = vcmp.lt.s32.totalorder %v298, 15
    %vm411 = vcmp.lt.s32.totalorder %v299, 15
    %vm412 = vcmp.lt.s32.totalorder %v300, 15
    %vm413 = vcmp.lt.s32.totalorder %v301, 15
    %vm414 = vcmp.lt.s32.totalorder %v302, 15
    %vm415 = vcmp.lt.s32.totalorder %v303, 15
    %vm416 = vcmp.lt.s32.totalorder %v304, 15
    %vm417 = vcmp.lt.s32.totalorder %v305, 15
    %vm418 = vcmp.lt.s32.totalorder %v306, 15
    %vm419 = vcmp.lt.s32.totalorder %v307, 15
    %vm420 = vcmp.lt.s32.totalorder %v308, 15
    %v421 = vsel %vm405, 1.0, 0.0
    %v422 = vsel %vm406, 1.0, 0.0
    %v423 = vsel %vm407, 1.0, 0.0
    %v424 = vsel %vm408, 1.0, 0.0
    %v425 = vsel %vm409, 1.0, 0.0
    %v426 = vsel %vm410, 1.0, 0.0
    %v427 = vsel %vm411, 1.0, 0.0
    %v428 = vsel %vm412, 1.0, 0.0
    %v429 = vsel %vm413, 1.0, 0.0
    %v430 = vsel %vm414, 1.0, 0.0
    %v431 = vsel %vm415, 1.0, 0.0
    %v432 = vsel %vm416, 1.0, 0.0
    %v433 = vsel %vm417, 1.0, 0.0
    %v434 = vsel %vm418, 1.0, 0.0
    %v435 = vsel %vm419, 1.0, 0.0
    %v436 = vsel %vm420, 1.0, 0.0
    %vm437 = vcmp.lt.s32.totalorder %v293, 14
    %vm438 = vcmp.lt.s32.totalorder %v294, 14
    %vm439 = vcmp.lt.s32.totalorder %v295, 14
    %vm440 = vcmp.lt.s32.totalorder %v296, 14
    %vm441 = vcmp.lt.s32.totalorder %v297, 14
    %vm442 = vcmp.lt.s32.totalorder %v298, 14
    %vm443 = vcmp.lt.s32.totalorder %v299, 14
    %vm444 = vcmp.lt.s32.totalorder %v300, 14
    %vm445 = vcmp.lt.s32.totalorder %v301, 14
    %vm446 = vcmp.lt.s32.totalorder %v302, 14
    %vm447 = vcmp.lt.s32.totalorder %v303, 14
    %vm448 = vcmp.lt.s32.totalorder %v304, 14
    %vm449 = vcmp.lt.s32.totalorder %v305, 14
    %vm450 = vcmp.lt.s32.totalorder %v306, 14
    %vm451 = vcmp.lt.s32.totalorder %v307, 14
    %vm452 = vcmp.lt.s32.totalorder %v308, 14
    %v453 = vsel %vm437, 1.0, 0.0
    %v454 = vsel %vm438, 1.0, 0.0
    %v455 = vsel %vm439, 1.0, 0.0
    %v456 = vsel %vm440, 1.0, 0.0
    %v457 = vsel %vm441, 1.0, 0.0
    %v458 = vsel %vm442, 1.0, 0.0
    %v459 = vsel %vm443, 1.0, 0.0
    %v460 = vsel %vm444, 1.0, 0.0
    %v461 = vsel %vm445, 1.0, 0.0
    %v462 = vsel %vm446, 1.0, 0.0
    %v463 = vsel %vm447, 1.0, 0.0
    %v464 = vsel %vm448, 1.0, 0.0
    %v465 = vsel %vm449, 1.0, 0.0
    %v466 = vsel %vm450, 1.0, 0.0
    %v467 = vsel %vm451, 1.0, 0.0
    %v468 = vsel %vm452, 1.0, 0.0
    %vm469 = vcmp.lt.s32.totalorder %v293, 13
    %vm470 = vcmp.lt.s32.totalorder %v294, 13
    %vm471 = vcmp.lt.s32.totalorder %v295, 13
    %vm472 = vcmp.lt.s32.totalorder %v296, 13
    %vm473 = vcmp.lt.s32.totalorder %v297, 13
    %vm474 = vcmp.lt.s32.totalorder %v298, 13
    %vm475 = vcmp.lt.s32.totalorder %v299, 13
    %vm476 = vcmp.lt.s32.totalorder %v300, 13
    %vm477 = vcmp.lt.s32.totalorder %v301, 13
    %vm478 = vcmp.lt.s32.totalorder %v302, 13
    %vm479 = vcmp.lt.s32.totalorder %v303, 13
    %vm480 = vcmp.lt.s32.totalorder %v304, 13
    %vm481 = vcmp.lt.s32.totalorder %v305, 13
    %vm482 = vcmp.lt.s32.totalorder %v306, 13
    %vm483 = vcmp.lt.s32.totalorder %v307, 13
    %vm484 = vcmp.lt.s32.totalorder %v308, 13
    %v485 = vsel %vm469, 1.0, 0.0
    %v486 = vsel %vm470, 1.0, 0.0
    %v487 = vsel %vm471, 1.0, 0.0
    %v488 = vsel %vm472, 1.0, 0.0
    %v489 = vsel %vm473, 1.0, 0.0
    %v490 = vsel %vm474, 1.0, 0.0
    %v491 = vsel %vm475, 1.0, 0.0
    %v492 = vsel %vm476, 1.0, 0.0
    %v493 = vsel %vm477, 1.0, 0.0
    %v494 = vsel %vm478, 1.0, 0.0
    %v495 = vsel %vm479, 1.0, 0.0
    %v496 = vsel %vm480, 1.0, 0.0
    %v497 = vsel %vm481, 1.0, 0.0
    %v498 = vsel %vm482, 1.0, 0.0
    %v499 = vsel %vm483, 1.0, 0.0
    %v500 = vsel %vm484, 1.0, 0.0
    %v501 = vld [vmem:[%s2] sm:$0x1]
    %v502 = vld [vmem:[%s3] sm:$0x1]
    %503 = vadd.xlane.f32.xlu0 %v84
    %v504 = vpop.xlane.xlu0 %503
    %505 = vadd.xlane.f32.xlu0 %v85
    %v506 = vpop.xlane.xlu0 %505
    %507 = vadd.xlane.f32.xlu0 %v86
    %v508 = vpop.xlane.xlu0 %507
    %509 = vadd.xlane.f32.xlu0 %v87
    %v510 = vpop.xlane.xlu0 %509
    %511 = vadd.xlane.f32.xlu0 %v88
    %v512 = vpop.xlane.xlu0 %511
    %513 = vadd.xlane.f32.xlu0 %v89
    %v514 = vpop.xlane.xlu0 %513
    %515 = vadd.xlane.f32.xlu0 %v90
    %v516 = vpop.xlane.xlu0 %515
    %517 = vadd.xlane.f32.xlu0 %v91
    %v518 = vpop.xlane.xlu0 %517
    %519 = vadd.xlane.f32.xlu0 %v92
    %v520 = vpop.xlane.xlu0 %519
    %521 = vadd.xlane.f32.xlu0 %v93
    %v522 = vpop.xlane.xlu0 %521
    %523 = vadd.xlane.f32.xlu0 %v94
    %v524 = vpop.xlane.xlu0 %523
    %525 = vadd.xlane.f32.xlu0 %v95
    %v526 = vpop.xlane.xlu0 %525
    %527 = vadd.xlane.f32.xlu0 %v96
    %v528 = vpop.xlane.xlu0 %527
    %529 = vadd.xlane.f32.xlu0 %v97
    %v530 = vpop.xlane.xlu0 %529
    %531 = vadd.xlane.f32.xlu0 %v98
    %v532 = vpop.xlane.xlu0 %531
    %533 = vadd.xlane.f32.xlu0 %v99
    %v534 = vpop.xlane.xlu0 %533
    %v535 = vrcp.pop 128.0
    %v536 = vmul.f32 %v504, %v535
    %v537 = vmul.f32 %v506, %v535
    %v538 = vmul.f32 %v508, %v535
    %v539 = vmul.f32 %v510, %v535
    %v540 = vmul.f32 %v512, %v535
    %v541 = vmul.f32 %v514, %v535
    %v542 = vmul.f32 %v516, %v535
    %v543 = vmul.f32 %v518, %v535
    %v544 = vmul.f32 %v520, %v535
    %v545 = vmul.f32 %v522, %v535
    %v546 = vmul.f32 %v524, %v535
    %v547 = vmul.f32 %v526, %v535
    %v548 = vmul.f32 %v528, %v535
    %v549 = vmul.f32 %v530, %v535
    %v550 = vmul.f32 %v532, %v535
    %v551 = vmul.f32 %v534, %v535
    %v552 = vmul.f32 %v84, %v84
    %v553 = vmul.f32 %v85, %v85
    %v554 = vmul.f32 %v86, %v86
    %v555 = vmul.f32 %v87, %v87
    %v556 = vmul.f32 %v88, %v88
    %v557 = vmul.f32 %v89, %v89
    %v558 = vmul.f32 %v90, %v90
    %v559 = vmul.f32 %v91, %v91
    %v560 = vmul.f32 %v92, %v92
    %v561 = vmul.f32 %v93, %v93
    %v562 = vmul.f32 %v94, %v94
    %v563 = vmul.f32 %v95, %v95
    %v564 = vmul.f32 %v96, %v96
    %v565 = vmul.f32 %v97, %v97
    %v566 = vmul.f32 %v98, %v98
    %v567 = vmul.f32 %v99, %v99
    %568 = vadd.xlane.f32.xlu0 %v552
    %v569 = vpop.xlane.xlu0 %568
    %570 = vadd.xlane.f32.xlu0 %v553
    %v571 = vpop.xlane.xlu0 %570
    %572 = vadd.xlane.f32.xlu0 %v554
    %v573 = vpop.xlane.xlu0 %572
    %574 = vadd.xlane.f32.xlu0 %v555
    %v575 = vpop.xlane.xlu0 %574
    %576 = vadd.xlane.f32.xlu0 %v556
    %v577 = vpop.xlane.xlu0 %576
    %578 = vadd.xlane.f32.xlu0 %v557
    %v579 = vpop.xlane.xlu0 %578
    %580 = vadd.xlane.f32.xlu0 %v558
    %v581 = vpop.xlane.xlu0 %580
    %582 = vadd.xlane.f32.xlu0 %v559
    %v583 = vpop.xlane.xlu0 %582
    %584 = vadd.xlane.f32.xlu0 %v560
    %v585 = vpop.xlane.xlu0 %584
    %586 = vadd.xlane.f32.xlu0 %v561
    %v587 = vpop.xlane.xlu0 %586
    %588 = vadd.xlane.f32.xlu0 %v562
    %v589 = vpop.xlane.xlu0 %588
    %590 = vadd.xlane.f32.xlu0 %v563
    %v591 = vpop.xlane.xlu0 %590
    %592 = vadd.xlane.f32.xlu0 %v564
    %v593 = vpop.xlane.xlu0 %592
    %594 = vadd.xlane.f32.xlu0 %v565
    %v595 = vpop.xlane.xlu0 %594
    %596 = vadd.xlane.f32.xlu0 %v566
    %v597 = vpop.xlane.xlu0 %596
    %598 = vadd.xlane.f32.xlu0 %v567
    %v599 = vpop.xlane.xlu0 %598
    %v600 = vmul.f32 %v569, %v535
    %v601 = vmul.f32 %v571, %v535
    %v602 = vmul.f32 %v573, %v535
    %v603 = vmul.f32 %v575, %v535
    %v604 = vmul.f32 %v577, %v535
    %v605 = vmul.f32 %v579, %v535
    %v606 = vmul.f32 %v581, %v535
    %v607 = vmul.f32 %v583, %v535
    %v608 = vmul.f32 %v585, %v535
    %v609 = vmul.f32 %v587, %v535
    %v610 = vmul.f32 %v589, %v535
    %v611 = vmul.f32 %v591, %v535
    %v612 = vmul.f32 %v593, %v535
    %v613 = vmul.f32 %v595, %v535
    %v614 = vmul.f32 %v597, %v535
    %v615 = vmul.f32 %v599, %v535
    %v616 = vmul.f32 %v536, %v536
    %v617 = vmul.f32 %v537, %v537
    %v618 = vmul.f32 %v538, %v538
    %v619 = vmul.f32 %v539, %v539
    %v620 = vmul.f32 %v540, %v540
    %v621 = vmul.f32 %v541, %v541
    %v622 = vmul.f32 %v542, %v542
    %v623 = vmul.f32 %v543, %v543
    %v624 = vmul.f32 %v544, %v544
    %v625 = vmul.f32 %v545, %v545
    %v626 = vmul.f32 %v546, %v546
    %v627 = vmul.f32 %v547, %v547
    %v628 = vmul.f32 %v548, %v548
    %v629 = vmul.f32 %v549, %v549
    %v630 = vmul.f32 %v550, %v550
    %v631 = vmul.f32 %v551, %v551
    %v632 = vsub.f32 %v600, %v616
    %v633 = vsub.f32 %v601, %v617
    %v634 = vsub.f32 %v602, %v618
    %v635 = vsub.f32 %v603, %v619
    %v636 = vsub.f32 %v604, %v620
    %v637 = vsub.f32 %v605, %v621
    %v638 = vsub.f32 %v606, %v622
    %v639 = vsub.f32 %v607, %v623
    %v640 = vsub.f32 %v608, %v624
    %v641 = vsub.f32 %v609, %v625
    %v642 = vsub.f32 %v610, %v626
    %v643 = vsub.f32 %v611, %v627
    %v644 = vsub.f32 %v612, %v628
    %v645 = vsub.f32 %v613, %v629
    %v646 = vsub.f32 %v614, %v630
    %v647 = vsub.f32 %v615, %v631
    %v648 = vsub.f32 %v84, %v536
    %v649 = vsub.f32 %v85, %v537
    %v650 = vsub.f32 %v86, %v538
    %v651 = vsub.f32 %v87, %v539
    %v652 = vsub.f32 %v88, %v540
    %v653 = vsub.f32 %v89, %v541
    %v654 = vsub.f32 %v90, %v542
    %v655 = vsub.f32 %v91, %v543
    %v656 = vsub.f32 %v92, %v544
    %v657 = vsub.f32 %v93, %v545
    %v658 = vsub.f32 %v94, %v546
    %v659 = vsub.f32 %v95, %v547
    %v660 = vsub.f32 %v96, %v548
    %v661 = vsub.f32 %v97, %v549
    %v662 = vsub.f32 %v98, %v550
    %v663 = vsub.f32 %v99, %v551
    %v664 = vadd.f32 %v632, 1e-06
    %v665 = vadd.f32 %v633, 1e-06
    %v666 = vadd.f32 %v634, 1e-06
    %v667 = vadd.f32 %v635, 1e-06
    %v668 = vadd.f32 %v636, 1e-06
    %v669 = vadd.f32 %v637, 1e-06
    %v670 = vadd.f32 %v638, 1e-06
    %v671 = vadd.f32 %v639, 1e-06
    %v672 = vadd.f32 %v640, 1e-06
    %v673 = vadd.f32 %v641, 1e-06
    %v674 = vadd.f32 %v642, 1e-06
    %v675 = vadd.f32 %v643, 1e-06
    %v676 = vadd.f32 %v644, 1e-06
    %v677 = vadd.f32 %v645, 1e-06
    %v678 = vadd.f32 %v646, 1e-06
    %v679 = vadd.f32 %v647, 1e-06
    %v680 = vrsqrt.pop %v664
    %v681 = vrsqrt.pop %v665
    %v682 = vrsqrt.pop %v666
    %v683 = vrsqrt.pop %v667
    %v684 = vrsqrt.pop %v668
    %v685 = vrsqrt.pop %v669
    %v686 = vrsqrt.pop %v670
    %v687 = vrsqrt.pop %v671
    %v688 = vrsqrt.pop %v672
    %v689 = vrsqrt.pop %v673
    %v690 = vrsqrt.pop %v674
    %v691 = vrsqrt.pop %v675
    %v692 = vrsqrt.pop %v676
    %v693 = vrsqrt.pop %v677
    %v694 = vrsqrt.pop %v678
    %v695 = vrsqrt.pop %v679
    %v696 = vmul.f32 %v648, %v680
    %v697 = vmul.f32 %v649, %v681
    %v698 = vmul.f32 %v650, %v682
    %v699 = vmul.f32 %v651, %v683
    %v700 = vmul.f32 %v652, %v684
    %v701 = vmul.f32 %v653, %v685
    %v702 = vmul.f32 %v654, %v686
    %v703 = vmul.f32 %v655, %v687
    %v704 = vmul.f32 %v656, %v688
    %v705 = vmul.f32 %v657, %v689
    %v706 = vmul.f32 %v658, %v690
    %v707 = vmul.f32 %v659, %v691
    %v708 = vmul.f32 %v660, %v692
    %v709 = vmul.f32 %v661, %v693
    %v710 = vmul.f32 %v662, %v694
    %v711 = vmul.f32 %v663, %v695
    %v713 = vlaneseq
    %v714 = vshrl.u32 %v713, 7
    %v715 = vsub.s32 0, %v714
    %v716 = vrot.slane %v501, %v715
    %v718 = vmul.f32 %v696, %v716
    %v719 = vmul.f32 %v697, %v716
    %v720 = vmul.f32 %v698, %v716
    %v721 = vmul.f32 %v699, %v716
    %v722 = vmul.f32 %v700, %v716
    %v723 = vmul.f32 %v701, %v716
    %v724 = vmul.f32 %v702, %v716
    %v725 = vmul.f32 %v703, %v716
    %v726 = vmul.f32 %v704, %v716
    %v727 = vmul.f32 %v705, %v716
    %v728 = vmul.f32 %v706, %v716
    %v729 = vmul.f32 %v707, %v716
    %v730 = vmul.f32 %v708, %v716
    %v731 = vmul.f32 %v709, %v716
    %v732 = vmul.f32 %v710, %v716
    %v733 = vmul.f32 %v711, %v716
    %v735 = vlaneseq
    %v736 = vshrl.u32 %v735, 7
    %v737 = vsub.s32 0, %v736
    %v738 = vrot.slane %v502, %v737
    %v740 = vadd.f32 %v718, %v738
    %v741 = vadd.f32 %v719, %v738
    %v742 = vadd.f32 %v720, %v738
    %v743 = vadd.f32 %v721, %v738
    %v744 = vadd.f32 %v722, %v738
    %v745 = vadd.f32 %v723, %v738
    %v746 = vadd.f32 %v724, %v738
    %v747 = vadd.f32 %v725, %v738
    %v748 = vadd.f32 %v726, %v738
    %v749 = vadd.f32 %v727, %v738
    %v750 = vadd.f32 %v728, %v738
    %v751 = vadd.f32 %v729, %v738
    %v752 = vadd.f32 %v730, %v738
    %v753 = vadd.f32 %v731, %v738
    %v754 = vadd.f32 %v732, %v738
    %v755 = vadd.f32 %v733, %v738
    %v756 = vrot.slane %v740, 5
    %v757 = vrot.slane %v741, 5
    %v758 = vrot.slane %v742, 5
    %v759 = vrot.slane %v743, 5
    %v760 = vrot.slane %v744, 5
    %v761 = vrot.slane %v745, 5
    %v762 = vrot.slane %v746, 5
    %v763 = vrot.slane %v747, 5
    %v764 = vrot.slane %v748, 5
    %v765 = vrot.slane %v749, 5
    %v766 = vrot.slane %v750, 5
    %v767 = vrot.slane %v751, 5
    %v768 = vrot.slane %v752, 5
    %v769 = vrot.slane %v753, 5
    %v770 = vrot.slane %v754, 5
    %v771 = vrot.slane %v755, 5
    %vm772 = vcmp.lt.s32.totalorder %v101, 3
    %v773 = vsel %vm772, %v770, %v771
    %v774 = vsel %vm772, %v769, %v770
    %v775 = vsel %vm772, %v768, %v769
    %v776 = vsel %vm772, %v767, %v768
    %v777 = vsel %vm772, %v766, %v767
    %v778 = vsel %vm772, %v765, %v766
    %v779 = vsel %vm772, %v764, %v765
    %v780 = vsel %vm772, %v763, %v764
    %v781 = vsel %vm772, %v762, %v763
    %v782 = vsel %vm772, %v761, %v762
    %v783 = vsel %vm772, %v760, %v761
    %v784 = vsel %vm772, %v759, %v760
    %v785 = vsel %vm772, %v758, %v759
    %v786 = vsel %vm772, %v757, %v758
    %v787 = vsel %vm772, %v756, %v757
    %v788 = vsel %vm772, %v771, %v756
    %v789 = vmul.f32 %v788, %v325
    %v790 = vmul.f32 %v787, %v326
    %v791 = vmul.f32 %v786, %v327
    %v792 = vmul.f32 %v785, %v328
    %v793 = vmul.f32 %v784, %v329
    %v794 = vmul.f32 %v783, %v330
    %v795 = vmul.f32 %v782, %v331
    %v796 = vmul.f32 %v781, %v332
    %v797 = vmul.f32 %v780, %v333
    %v798 = vmul.f32 %v779, %v334
    %v799 = vmul.f32 %v778, %v335
    %v800 = vmul.f32 %v777, %v336
    %v801 = vmul.f32 %v776, %v337
    %v802 = vmul.f32 %v775, %v338
    %v803 = vmul.f32 %v774, %v339
    %v804 = vmul.f32 %v773, %v340
    %v805 = vpack.c.bf16 %v790, %v789
    %v806 = vpack.c.bf16 %v792, %v791
    %v807 = vpack.c.bf16 %v794, %v793
    %v808 = vpack.c.bf16 %v796, %v795
    %v809 = vpack.c.bf16 %v798, %v797
    %v810 = vpack.c.bf16 %v800, %v799
    %v811 = vpack.c.bf16 %v802, %v801
    %v812 = vpack.c.bf16 %v804, %v803
    %v813 = vrot.slane %v740, 6
    %v814 = vrot.slane %v741, 6
    %v815 = vrot.slane %v742, 6
    %v816 = vrot.slane %v743, 6
    %v817 = vrot.slane %v744, 6
    %v818 = vrot.slane %v745, 6
    %v819 = vrot.slane %v746, 6
    %v820 = vrot.slane %v747, 6
    %v821 = vrot.slane %v748, 6
    %v822 = vrot.slane %v749, 6
    %v823 = vrot.slane %v750, 6
    %v824 = vrot.slane %v751, 6
    %v825 = vrot.slane %v752, 6
    %v826 = vrot.slane %v753, 6
    %v827 = vrot.slane %v754, 6
    %v828 = vrot.slane %v755, 6
    %vm829 = vcmp.lt.s32.totalorder %v101, 2
    %v830 = vsel %vm829, %v827, %v828
    %v831 = vsel %vm829, %v826, %v827
    %v832 = vsel %vm829, %v825, %v826
    %v833 = vsel %vm829, %v824, %v825
    %v834 = vsel %vm829, %v823, %v824
    %v835 = vsel %vm829, %v822, %v823
    %v836 = vsel %vm829, %v821, %v822
    %v837 = vsel %vm829, %v820, %v821
    %v838 = vsel %vm829, %v819, %v820
    %v839 = vsel %vm829, %v818, %v819
    %v840 = vsel %vm829, %v817, %v818
    %v841 = vsel %vm829, %v816, %v817
    %v842 = vsel %vm829, %v815, %v816
    %v843 = vsel %vm829, %v814, %v815
    %v844 = vsel %vm829, %v813, %v814
    %v845 = vsel %vm829, %v828, %v813
    %v846 = vmul.f32 %v845, %v357
    %v847 = vmul.f32 %v844, %v358
    %v848 = vmul.f32 %v843, %v359
    %v849 = vmul.f32 %v842, %v360
    %v850 = vmul.f32 %v841, %v361
    %v851 = vmul.f32 %v840, %v362
    %v852 = vmul.f32 %v839, %v363
    %v853 = vmul.f32 %v838, %v364
    %v854 = vmul.f32 %v837, %v365
    %v855 = vmul.f32 %v836, %v366
    %v856 = vmul.f32 %v835, %v367
    %v857 = vmul.f32 %v834, %v368
    %v858 = vmul.f32 %v833, %v369
    %v859 = vmul.f32 %v832, %v370
    %v860 = vmul.f32 %v831, %v371
    %v861 = vmul.f32 %v830, %v372
    %v862 = vpack.c.bf16 %v847, %v846
    %v863 = vpack.c.bf16 %v849, %v848
    %v864 = vpack.c.bf16 %v851, %v850
    %v865 = vpack.c.bf16 %v853, %v852
    %v866 = vpack.c.bf16 %v855, %v854
    %v867 = vpack.c.bf16 %v857, %v856
    %v868 = vpack.c.bf16 %v859, %v858
    %v869 = vpack.c.bf16 %v861, %v860
    %v870 = vrot.slane %v740, 7
    %v871 = vrot.slane %v741, 7
    %v872 = vrot.slane %v742, 7
    %v873 = vrot.slane %v743, 7
    %v874 = vrot.slane %v744, 7
    %v875 = vrot.slane %v745, 7
    %v876 = vrot.slane %v746, 7
    %v877 = vrot.slane %v747, 7
    %v878 = vrot.slane %v748, 7
    %v879 = vrot.slane %v749, 7
    %v880 = vrot.slane %v750, 7
    %v881 = vrot.slane %v751, 7
    %v882 = vrot.slane %v752, 7
    %v883 = vrot.slane %v753, 7
    %v884 = vrot.slane %v754, 7
    %v885 = vrot.slane %v755, 7
    %vm886 = vcmp.lt.s32.totalorder %v101, 1
    %v887 = vsel %vm886, %v884, %v885
    %v888 = vsel %vm886, %v883, %v884
    %v889 = vsel %vm886, %v882, %v883
    %v890 = vsel %vm886, %v881, %v882
    %v891 = vsel %vm886, %v880, %v881
    %v892 = vsel %vm886, %v879, %v880
    %v893 = vsel %vm886, %v878, %v879
    %v894 = vsel %vm886, %v877, %v878
    %v895 = vsel %vm886, %v876, %v877
    %v896 = vsel %vm886, %v875, %v876
    %v897 = vsel %vm886, %v874, %v875
    %v898 = vsel %vm886, %v873, %v874
    %v899 = vsel %vm886, %v872, %v873
    %v900 = vsel %vm886, %v871, %v872
    %v901 = vsel %vm886, %v870, %v871
    %v902 = vsel %vm886, %v885, %v870
    %v903 = vmul.f32 %v902, %v389
    %v904 = vmul.f32 %v901, %v390
    %v905 = vmul.f32 %v900, %v391
    %v906 = vmul.f32 %v899, %v392
    %v907 = vmul.f32 %v898, %v393
    %v908 = vmul.f32 %v897, %v394
    %v909 = vmul.f32 %v896, %v395
    %v910 = vmul.f32 %v895, %v396
    %v911 = vmul.f32 %v894, %v397
    %v912 = vmul.f32 %v893, %v398
    %v913 = vmul.f32 %v892, %v399
    %v914 = vmul.f32 %v891, %v400
    %v915 = vmul.f32 %v890, %v401
    %v916 = vmul.f32 %v889, %v402
    %v917 = vmul.f32 %v888, %v403
    %v918 = vmul.f32 %v887, %v404
    %v919 = vpack.c.bf16 %v904, %v903
    %v920 = vpack.c.bf16 %v906, %v905
    %v921 = vpack.c.bf16 %v908, %v907
    %v922 = vpack.c.bf16 %v910, %v909
    %v923 = vpack.c.bf16 %v912, %v911
    %v924 = vpack.c.bf16 %v914, %v913
    %v925 = vpack.c.bf16 %v916, %v915
    %v926 = vpack.c.bf16 %v918, %v917
    %v927 = vpack.c.bf16 %v741, %v740
    %v928 = vpack.c.bf16 %v743, %v742
    %v929 = vpack.c.bf16 %v745, %v744
    %v930 = vpack.c.bf16 %v747, %v746
    %v931 = vpack.c.bf16 %v749, %v748
    %v932 = vpack.c.bf16 %v751, %v750
    %v933 = vpack.c.bf16 %v753, %v752
    %v934 = vpack.c.bf16 %v755, %v754
    %v935 = vrot.slane %v740, 1
    %v936 = vrot.slane %v741, 1
    %v937 = vrot.slane %v742, 1
    %v938 = vrot.slane %v743, 1
    %v939 = vrot.slane %v744, 1
    %v940 = vrot.slane %v745, 1
    %v941 = vrot.slane %v746, 1
    %v942 = vrot.slane %v747, 1
    %v943 = vrot.slane %v748, 1
    %v944 = vrot.slane %v749, 1
    %v945 = vrot.slane %v750, 1
    %v946 = vrot.slane %v751, 1
    %v947 = vrot.slane %v752, 1
    %v948 = vrot.slane %v753, 1
    %v949 = vrot.slane %v754, 1
    %v950 = vrot.slane %v755, 1
    %vm951 = vcmp.lt.s32.totalorder %v101, 7
    %v952 = vsel %vm951, %v949, %v950
    %v953 = vsel %vm951, %v948, %v949
    %v954 = vsel %vm951, %v947, %v948
    %v955 = vsel %vm951, %v946, %v947
    %v956 = vsel %vm951, %v945, %v946
    %v957 = vsel %vm951, %v944, %v945
    %v958 = vsel %vm951, %v943, %v944
    %v959 = vsel %vm951, %v942, %v943
    %v960 = vsel %vm951, %v941, %v942
    %v961 = vsel %vm951, %v940, %v941
    %v962 = vsel %vm951, %v939, %v940
    %v963 = vsel %vm951, %v938, %v939
    %v964 = vsel %vm951, %v937, %v938
    %v965 = vsel %vm951, %v936, %v937
    %v966 = vsel %vm951, %v935, %v936
    %v967 = vsel %vm951, %v950, %v935
    %v968 = vmul.f32 %v966, %v421
    %v969 = vmul.f32 %v965, %v422
    %v970 = vmul.f32 %v964, %v423
    %v971 = vmul.f32 %v963, %v424
    %v972 = vmul.f32 %v962, %v425
    %v973 = vmul.f32 %v961, %v426
    %v974 = vmul.f32 %v960, %v427
    %v975 = vmul.f32 %v959, %v428
    %v976 = vmul.f32 %v958, %v429
    %v977 = vmul.f32 %v957, %v430
    %v978 = vmul.f32 %v956, %v431
    %v979 = vmul.f32 %v955, %v432
    %v980 = vmul.f32 %v954, %v433
    %v981 = vmul.f32 %v953, %v434
    %v982 = vmul.f32 %v952, %v435
    %v983 = vmul.f32 %v967, %v436
    %v984 = vpack.c.bf16 %v969, %v968
    %v985 = vpack.c.bf16 %v971, %v970
    %v986 = vpack.c.bf16 %v973, %v972
    %v987 = vpack.c.bf16 %v975, %v974
    %v988 = vpack.c.bf16 %v977, %v976
    %v989 = vpack.c.bf16 %v979, %v978
    %v990 = vpack.c.bf16 %v981, %v980
    %v991 = vpack.c.bf16 %v983, %v982
    %v992 = vrot.slane %v740, 2
    %v993 = vrot.slane %v741, 2
    %v994 = vrot.slane %v742, 2
    %v995 = vrot.slane %v743, 2
    %v996 = vrot.slane %v744, 2
    %v997 = vrot.slane %v745, 2
    %v998 = vrot.slane %v746, 2
    %v999 = vrot.slane %v747, 2
    %v1000 = vrot.slane %v748, 2
    %v1001 = vrot.slane %v749, 2
    %v1002 = vrot.slane %v750, 2
    %v1003 = vrot.slane %v751, 2
    %v1004 = vrot.slane %v752, 2
    %v1005 = vrot.slane %v753, 2
    %v1006 = vrot.slane %v754, 2
    %v1007 = vrot.slane %v755, 2
    %vm1008 = vcmp.lt.s32.totalorder %v101, 6
    %v1009 = vsel %vm1008, %v1006, %v1007
    %v1010 = vsel %vm1008, %v1005, %v1006
    %v1011 = vsel %vm1008, %v1004, %v1005
    %v1012 = vsel %vm1008, %v1003, %v1004
    %v1013 = vsel %vm1008, %v1002, %v1003
    %v1014 = vsel %vm1008, %v1001, %v1002
    %v1015 = vsel %vm1008, %v1000, %v1001
    %v1016 = vsel %vm1008, %v999, %v1000
    %v1017 = vsel %vm1008, %v998, %v999
    %v1018 = vsel %vm1008, %v997, %v998
    %v1019 = vsel %vm1008, %v996, %v997
    %v1020 = vsel %vm1008, %v995, %v996
    %v1021 = vsel %vm1008, %v994, %v995
    %v1022 = vsel %vm1008, %v993, %v994
    %v1023 = vsel %vm1008, %v992, %v993
    %v1024 = vsel %vm1008, %v1007, %v992
    %v1025 = vmul.f32 %v1023, %v453
    %v1026 = vmul.f32 %v1022, %v454
    %v1027 = vmul.f32 %v1021, %v455
    %v1028 = vmul.f32 %v1020, %v456
    %v1029 = vmul.f32 %v1019, %v457
    %v1030 = vmul.f32 %v1018, %v458
    %v1031 = vmul.f32 %v1017, %v459
    %v1032 = vmul.f32 %v1016, %v460
    %v1033 = vmul.f32 %v1015, %v461
    %v1034 = vmul.f32 %v1014, %v462
    %v1035 = vmul.f32 %v1013, %v463
    %v1036 = vmul.f32 %v1012, %v464
    %v1037 = vmul.f32 %v1011, %v465
    %v1038 = vmul.f32 %v1010, %v466
    %v1039 = vmul.f32 %v1009, %v467
    %v1040 = vmul.f32 %v1024, %v468
    %v1041 = vpack.c.bf16 %v1026, %v1025
    %v1042 = vpack.c.bf16 %v1028, %v1027
    %v1043 = vpack.c.bf16 %v1030, %v1029
    %v1044 = vpack.c.bf16 %v1032, %v1031
    %v1045 = vpack.c.bf16 %v1034, %v1033
    %v1046 = vpack.c.bf16 %v1036, %v1035
    %v1047 = vpack.c.bf16 %v1038, %v1037
    %v1048 = vpack.c.bf16 %v1040, %v1039
    %v1049 = vrot.slane %v740, 3
    %v1050 = vrot.slane %v741, 3
    %v1051 = vrot.slane %v742, 3
    %v1052 = vrot.slane %v743, 3
    %v1053 = vrot.slane %v744, 3
    %v1054 = vrot.slane %v745, 3
    %v1055 = vrot.slane %v746, 3
    %v1056 = vrot.slane %v747, 3
    %v1057 = vrot.slane %v748, 3
    %v1058 = vrot.slane %v749, 3
    %v1059 = vrot.slane %v750, 3
    %v1060 = vrot.slane %v751, 3
    %v1061 = vrot.slane %v752, 3
    %v1062 = vrot.slane %v753, 3
    %v1063 = vrot.slane %v754, 3
    %v1064 = vrot.slane %v755, 3
    %vm1065 = vcmp.lt.s32.totalorder %v101, 5
    %v1066 = vsel %vm1065, %v1063, %v1064
    %v1067 = vsel %vm1065, %v1062, %v1063
    %v1068 = vsel %vm1065, %v1061, %v1062
    %v1069 = vsel %vm1065, %v1060, %v1061
    %v1070 = vsel %vm1065, %v1059, %v1060
    %v1071 = vsel %vm1065, %v1058, %v1059
    %v1072 = vsel %vm1065, %v1057, %v1058
    %v1073 = vsel %vm1065, %v1056, %v1057
    %v1074 = vsel %vm1065, %v1055, %v1056
    %v1075 = vsel %vm1065, %v1054, %v1055
    %v1076 = vsel %vm1065, %v1053, %v1054
    %v1077 = vsel %vm1065, %v1052, %v1053
    %v1078 = vsel %vm1065, %v1051, %v1052
    %v1079 = vsel %vm1065, %v1050, %v1051
    %v1080 = vsel %vm1065, %v1049, %v1050
    %v1081 = vsel %vm1065, %v1064, %v1049
    %v1082 = vmul.f32 %v1080, %v485
    %v1083 = vmul.f32 %v1079, %v486
    %v1084 = vmul.f32 %v1078, %v487
    %v1085 = vmul.f32 %v1077, %v488
    %v1086 = vmul.f32 %v1076, %v489
    %v1087 = vmul.f32 %v1075, %v490
    %v1088 = vmul.f32 %v1074, %v491
    %v1089 = vmul.f32 %v1073, %v492
    %v1090 = vmul.f32 %v1072, %v493
    %v1091 = vmul.f32 %v1071, %v494
    %v1092 = vmul.f32 %v1070, %v495
    %v1093 = vmul.f32 %v1069, %v496
    %v1094 = vmul.f32 %v1068, %v497
    %v1095 = vmul.f32 %v1067, %v498
    %v1096 = vmul.f32 %v1066, %v499
    %v1097 = vmul.f32 %v1081, %v500
    %v1098 = vpack.c.bf16 %v1083, %v1082
    %v1099 = vpack.c.bf16 %v1085, %v1084
    %v1100 = vpack.c.bf16 %v1087, %v1086
    %v1101 = vpack.c.bf16 %v1089, %v1088
    %v1102 = vpack.c.bf16 %v1091, %v1090
    %v1103 = vpack.c.bf16 %v1093, %v1092
    %v1104 = vpack.c.bf16 %v1095, %v1094
    %v1105 = vpack.c.bf16 %v1097, %v1096
    %v1106 = vld [vmem:[#allocation7] sm:$0xf]
    %v1107 = vld [vmem:[#allocation7 + $0x4] sm:$0xf]
    %v1108 = vld [vmem:[#allocation7 + $0x8] sm:$0xf]
    %v1109 = vld [vmem:[#allocation7 + $0xc] sm:$0xf]
    %v1110 = vld [vmem:[#allocation7 + $0x10] sm:$0xf]
    %v1111 = vld [vmem:[#allocation7 + $0x14] sm:$0xf]
    %v1112 = vld [vmem:[#allocation7 + $0x18] sm:$0xf]
    %v1113 = vld [vmem:[#allocation7 + $0x1c] sm:$0xf]
    %v1114 = vld [vmem:[#allocation7 + $0x20] sm:$0xf]
    %v1115 = vld [vmem:[#allocation7 + $0x24] sm:$0xf]
    %v1116 = vld [vmem:[#allocation7 + $0x28] sm:$0xf]
    %v1117 = vld [vmem:[#allocation7 + $0x2c] sm:$0xf]
    %v1118 = vld [vmem:[#allocation7 + $0x30] sm:$0xf]
    %v1119 = vld [vmem:[#allocation7 + $0x34] sm:$0xf]
    %v1120 = vld [vmem:[#allocation7 + $0x38] sm:$0xf]
    %v1121 = vld [vmem:[#allocation7 + $0x3c] sm:$0xf]
    %v1122 = vld [vmem:[#allocation7 + $0x40] sm:$0xf]
    %v1123 = vld [vmem:[#allocation7 + $0x44] sm:$0xf]
    %v1124 = vld [vmem:[#allocation7 + $0x48] sm:$0xf]
    %v1125 = vld [vmem:[#allocation7 + $0x4c] sm:$0xf]
    %v1126 = vld [vmem:[#allocation7 + $0x50] sm:$0xf]
    %v1127 = vld [vmem:[#allocation7 + $0x54] sm:$0xf]
    %v1128 = vld [vmem:[#allocation7 + $0x58] sm:$0xf]
    %v1129 = vld [vmem:[#allocation7 + $0x5c] sm:$0xf]
    %v1130 = vld [vmem:[#allocation7 + $0x60] sm:$0xf]
    %v1131 = vld [vmem:[#allocation7 + $0x64] sm:$0xf]
    %v1132 = vld [vmem:[#allocation7 + $0x68] sm:$0xf]
    %v1133 = vld [vmem:[#allocation7 + $0x6c] sm:$0xf]
    %v1134 = vld [vmem:[#allocation7 + $0x70] sm:$0xf]
    %v1135 = vld [vmem:[#allocation7 + $0x74] sm:$0xf]
    %v1136 = vld [vmem:[#allocation7 + $0x78] sm:$0xf]
    %v1137 = vld [vmem:[#allocation7 + $0x7c] sm:$0xf]
    %v1138 = vld [vmem:[#allocation7 + $0x80] sm:$0xf]
    %v1139 = vld [vmem:[#allocation7 + $0x84] sm:$0xf]
    %v1140 = vld [vmem:[#allocation7 + $0x88] sm:$0xf]
    %v1141 = vld [vmem:[#allocation7 + $0x8c] sm:$0xf]
    %v1142 = vld [vmem:[#allocation7 + $0x90] sm:$0xf]
    %v1143 = vld [vmem:[#allocation7 + $0x94] sm:$0xf]
    %v1144 = vld [vmem:[#allocation7 + $0x98] sm:$0xf]
    %v1145 = vld [vmem:[#allocation7 + $0x9c] sm:$0xf]
    %v1146 = vld [vmem:[#allocation7 + $0xa0] sm:$0xf]
    %v1147 = vld [vmem:[#allocation7 + $0xa4] sm:$0xf]
    %v1148 = vld [vmem:[#allocation7 + $0xa8] sm:$0xf]
    %v1149 = vld [vmem:[#allocation7 + $0xac] sm:$0xf]
    %v1150 = vld [vmem:[#allocation7 + $0xb0] sm:$0xf]
    %v1151 = vld [vmem:[#allocation7 + $0xb4] sm:$0xf]
    %v1152 = vld [vmem:[#allocation7 + $0xb8] sm:$0xf]
    %v1153 = vld [vmem:[#allocation7 + $0xbc] sm:$0xf]
    %v1154 = vld [vmem:[#allocation7 + $0xc0] sm:$0xf]
    %v1155 = vld [vmem:[#allocation7 + $0xc4] sm:$0xf]
    %v1156 = vld [vmem:[#allocation7 + $0xc8] sm:$0xf]
    %v1157 = vld [vmem:[#allocation7 + $0xcc] sm:$0xf]
    %v1158 = vld [vmem:[#allocation7 + $0xd0] sm:$0xf]
    %v1159 = vld [vmem:[#allocation7 + $0xd4] sm:$0xf]
    %v1160 = vld [vmem:[#allocation7 + $0xd8] sm:$0xf]
    %v1161 = vld [vmem:[#allocation7 + $0xdc] sm:$0xf]
    %v1162 = vld [vmem:[#allocation7 + $0xe0] sm:$0xf]
    %v1163 = vld [vmem:[#allocation7 + $0xe4] sm:$0xf]
    %v1164 = vld [vmem:[#allocation7 + $0xe8] sm:$0xf]
    %v1165 = vld [vmem:[#allocation7 + $0xec] sm:$0xf]
    %v1166 = vld [vmem:[#allocation7 + $0xf0] sm:$0xf]
    %v1167 = vld [vmem:[#allocation7 + $0xf4] sm:$0xf]
    %v1168 = vld [vmem:[#allocation7 + $0xf8] sm:$0xf]
    %v1169 = vld [vmem:[#allocation7 + $0xfc] sm:$0xf]
    %v1170 = vld [vmem:[#allocation7 + $0x100] sm:$0xf]
    %v1171 = vld [vmem:[#allocation7 + $0x104] sm:$0xf]
    %v1172 = vld [vmem:[#allocation7 + $0x108] sm:$0xf]
    %v1173 = vld [vmem:[#allocation7 + $0x10c] sm:$0xf]
    %v1174 = vld [vmem:[#allocation7 + $0x110] sm:$0xf]
    %v1175 = vld [vmem:[#allocation7 + $0x114] sm:$0xf]
    %v1176 = vld [vmem:[#allocation7 + $0x118] sm:$0xf]
    %v1177 = vld [vmem:[#allocation7 + $0x11c] sm:$0xf]
    %v1178 = vld [vmem:[#allocation7 + $0x120] sm:$0xf]
    %v1179 = vld [vmem:[#allocation7 + $0x124] sm:$0xf]
    %v1180 = vld [vmem:[#allocation7 + $0x128] sm:$0xf]
    %v1181 = vld [vmem:[#allocation7 + $0x12c] sm:$0xf]
    %v1182 = vld [vmem:[#allocation7 + $0x130] sm:$0xf]
    %v1183 = vld [vmem:[#allocation7 + $0x134] sm:$0xf]
    %v1184 = vld [vmem:[#allocation7 + $0x138] sm:$0xf]
    %v1185 = vld [vmem:[#allocation7 + $0x13c] sm:$0xf]
    %v1186 = vld [vmem:[#allocation7 + $0x140] sm:$0xf]
    %v1187 = vld [vmem:[#allocation7 + $0x144] sm:$0xf]
    %v1188 = vld [vmem:[#allocation7 + $0x148] sm:$0xf]
    %v1189 = vld [vmem:[#allocation7 + $0x14c] sm:$0xf]
    %v1190 = vld [vmem:[#allocation7 + $0x150] sm:$0xf]
    %v1191 = vld [vmem:[#allocation7 + $0x154] sm:$0xf]
    %v1192 = vld [vmem:[#allocation7 + $0x158] sm:$0xf]
    %v1193 = vld [vmem:[#allocation7 + $0x15c] sm:$0xf]
    %v1194 = vld [vmem:[#allocation7 + $0x160] sm:$0xf]
    %v1195 = vld [vmem:[#allocation7 + $0x164] sm:$0xf]
    %v1196 = vld [vmem:[#allocation7 + $0x168] sm:$0xf]
    %v1197 = vld [vmem:[#allocation7 + $0x16c] sm:$0xf]
    %v1198 = vld [vmem:[#allocation7 + $0x170] sm:$0xf]
    %v1199 = vld [vmem:[#allocation7 + $0x174] sm:$0xf]
    %v1200 = vld [vmem:[#allocation7 + $0x178] sm:$0xf]
    %v1201 = vld [vmem:[#allocation7 + $0x17c] sm:$0xf]
    %v1202 = vld [vmem:[#allocation7 + $0x180] sm:$0xf]
    %v1203 = vld [vmem:[#allocation7 + $0x184] sm:$0xf]
    %v1204 = vld [vmem:[#allocation7 + $0x188] sm:$0xf]
    %v1205 = vld [vmem:[#allocation7 + $0x18c] sm:$0xf]
    %v1206 = vld [vmem:[#allocation7 + $0x190] sm:$0xf]
    %v1207 = vld [vmem:[#allocation7 + $0x194] sm:$0xf]
    %v1208 = vld [vmem:[#allocation7 + $0x198] sm:$0xf]
    %v1209 = vld [vmem:[#allocation7 + $0x19c] sm:$0xf]
    %v1210 = vld [vmem:[#allocation7 + $0x1a0] sm:$0xf]
    %v1211 = vld [vmem:[#allocation7 + $0x1a4] sm:$0xf]
    %v1212 = vld [vmem:[#allocation7 + $0x1a8] sm:$0xf]
    %v1213 = vld [vmem:[#allocation7 + $0x1ac] sm:$0xf]
    %v1214 = vld [vmem:[#allocation7 + $0x1b0] sm:$0xf]
    %v1215 = vld [vmem:[#allocation7 + $0x1b4] sm:$0xf]
    %v1216 = vld [vmem:[#allocation7 + $0x1b8] sm:$0xf]
    %v1217 = vld [vmem:[#allocation7 + $0x1bc] sm:$0xf]
    %v1218 = vld [vmem:[%s5] sm:$0x1]
    %v1220 = vlaneseq
    %v1221 = vshrl.u32 %v1220, 7
    %v1222 = vsub.s32 0, %v1221
    %v1223 = vrot.slane %v1218, %v1222
    %v1337 = vunpack.c.l.b16 %v1106
    %v1338 = vunpack.c.l.b16 %v1107
    %v1339 = vunpack.c.l.b16 %v1108
    %v1340 = vunpack.c.l.b16 %v1109
    %v1341 = vunpack.c.l.b16 %v1110
    %v1342 = vunpack.c.l.b16 %v1111
    %v1343 = vunpack.c.l.b16 %v1112
    %v1344 = vunpack.c.l.b16 %v1113
    %v1345 = vunpack.c.l.b16 %v1114
    %v1346 = vunpack.c.l.b16 %v1115
    %v1347 = vunpack.c.l.b16 %v1116
    %v1348 = vunpack.c.l.b16 %v1117
    %v1349 = vunpack.c.l.b16 %v1118
    %v1350 = vunpack.c.l.b16 %v1119
    %v1351 = vunpack.c.l.b16 %v1120
    %v1352 = vunpack.c.l.b16 %v1121
    %v1353 = vunpack.c.l.b16 %v1122
    %v1354 = vunpack.c.l.b16 %v1123
    %v1355 = vunpack.c.l.b16 %v1124
    %v1356 = vunpack.c.l.b16 %v1125
    %v1357 = vunpack.c.l.b16 %v1126
    %v1358 = vunpack.c.l.b16 %v1127
    %v1359 = vunpack.c.l.b16 %v1128
    %v1360 = vunpack.c.l.b16 %v1129
    %v1361 = vunpack.c.l.b16 %v1130
    %v1362 = vunpack.c.l.b16 %v1131
    %v1363 = vunpack.c.l.b16 %v1132
    %v1364 = vunpack.c.l.b16 %v1133
    %v1365 = vunpack.c.l.b16 %v1134
    %v1366 = vunpack.c.l.b16 %v1135
    %v1367 = vunpack.c.l.b16 %v1136
    %v1368 = vunpack.c.l.b16 %v1137
    %v1369 = vunpack.c.l.b16 %v1138
    %v1370 = vunpack.c.l.b16 %v1139
    %v1371 = vunpack.c.l.b16 %v1140
    %v1372 = vunpack.c.l.b16 %v1141
    %v1373 = vunpack.c.l.b16 %v1142
    %v1374 = vunpack.c.l.b16 %v1143
    %v1375 = vunpack.c.l.b16 %v1144
    %v1376 = vunpack.c.l.b16 %v1145
    %v1377 = vunpack.c.l.b16 %v1146
    %v1378 = vunpack.c.l.b16 %v1147
    %v1379 = vunpack.c.l.b16 %v1148
    %v1380 = vunpack.c.l.b16 %v1149
    %v1381 = vunpack.c.l.b16 %v1150
    %v1382 = vunpack.c.l.b16 %v1151
    %v1383 = vunpack.c.l.b16 %v1152
    %v1384 = vunpack.c.l.b16 %v1153
    %v1385 = vunpack.c.l.b16 %v1154
    %v1386 = vunpack.c.l.b16 %v1155
    %v1387 = vunpack.c.l.b16 %v1156
    %v1388 = vunpack.c.l.b16 %v1157
    %v1389 = vunpack.c.l.b16 %v1158
    %v1390 = vunpack.c.l.b16 %v1159
    %v1391 = vunpack.c.l.b16 %v1160
    %v1392 = vunpack.c.l.b16 %v1161
    %v1393 = vunpack.c.l.b16 %v1162
    %v1394 = vunpack.c.l.b16 %v1163
    %v1395 = vunpack.c.l.b16 %v1164
    %v1396 = vunpack.c.l.b16 %v1165
    %v1397 = vunpack.c.l.b16 %v1166
    %v1398 = vunpack.c.l.b16 %v1167
    %v1399 = vunpack.c.l.b16 %v1168
    %v1400 = vunpack.c.l.b16 %v1169
    %v1401 = vunpack.c.l.b16 %v1170
    %v1402 = vunpack.c.l.b16 %v1171
    %v1403 = vunpack.c.l.b16 %v1172
    %v1404 = vunpack.c.l.b16 %v1173
    %v1405 = vunpack.c.l.b16 %v1174
    %v1406 = vunpack.c.l.b16 %v1175
    %v1407 = vunpack.c.l.b16 %v1176
    %v1408 = vunpack.c.l.b16 %v1177
    %v1409 = vunpack.c.l.b16 %v1178
    %v1410 = vunpack.c.l.b16 %v1179
    %v1411 = vunpack.c.l.b16 %v1180
    %v1412 = vunpack.c.l.b16 %v1181
    %v1413 = vunpack.c.l.b16 %v1182
    %v1414 = vunpack.c.l.b16 %v1183
    %v1415 = vunpack.c.l.b16 %v1184
    %v1416 = vunpack.c.l.b16 %v1185
    %v1417 = vunpack.c.l.b16 %v1186
    %v1418 = vunpack.c.l.b16 %v1187
    %v1419 = vunpack.c.l.b16 %v1188
    %v1420 = vunpack.c.l.b16 %v1189
    %v1421 = vunpack.c.l.b16 %v1190
    %v1422 = vunpack.c.l.b16 %v1191
    %v1423 = vunpack.c.l.b16 %v1192
    %v1424 = vunpack.c.l.b16 %v1193
    %v1425 = vunpack.c.l.b16 %v1194
    %v1426 = vunpack.c.l.b16 %v1195
    %v1427 = vunpack.c.l.b16 %v1196
    %v1428 = vunpack.c.l.b16 %v1197
    %v1429 = vunpack.c.l.b16 %v1198
    %v1430 = vunpack.c.l.b16 %v1199
    %v1431 = vunpack.c.l.b16 %v1200
    %v1432 = vunpack.c.l.b16 %v1201
    %v1433 = vunpack.c.l.b16 %v1202
    %v1434 = vunpack.c.l.b16 %v1203
    %v1435 = vunpack.c.l.b16 %v1204
    %v1436 = vunpack.c.l.b16 %v1205
    %v1437 = vunpack.c.l.b16 %v1206
    %v1438 = vunpack.c.l.b16 %v1207
    %v1439 = vunpack.c.l.b16 %v1208
    %v1440 = vunpack.c.l.b16 %v1209
    %v1441 = vunpack.c.l.b16 %v1210
    %v1442 = vunpack.c.l.b16 %v1211
    %v1443 = vunpack.c.l.b16 %v1212
    %v1444 = vunpack.c.l.b16 %v1213
    %v1445 = vunpack.c.l.b16 %v1214
    %v1446 = vunpack.c.l.b16 %v1215
    %v1447 = vunpack.c.l.b16 %v1216
    %v1448 = vunpack.c.l.b16 %v1217
    %v1449 = vpack.c.b16 %v1338, %v1337
    %v1450 = vpack.c.b16 %v1340, %v1339
    %v1451 = vpack.c.b16 %v1342, %v1341
    %v1452 = vpack.c.b16 %v1344, %v1343
    %v1453 = vpack.c.b16 %v1346, %v1345
    %v1454 = vpack.c.b16 %v1348, %v1347
    %v1455 = vpack.c.b16 %v1350, %v1349
    %v1456 = vpack.c.b16 %v1352, %v1351
    %v1457 = vpack.c.b16 %v1354, %v1353
    %v1458 = vpack.c.b16 %v1356, %v1355
    %v1459 = vpack.c.b16 %v1358, %v1357
    %v1460 = vpack.c.b16 %v1360, %v1359
    %v1461 = vpack.c.b16 %v1362, %v1361
    %v1462 = vpack.c.b16 %v1364, %v1363
    %v1463 = vpack.c.b16 %v1366, %v1365
    %v1464 = vpack.c.b16 %v1368, %v1367
    %v1465 = vpack.c.b16 %v1370, %v1369
    %v1466 = vpack.c.b16 %v1372, %v1371
    %v1467 = vpack.c.b16 %v1374, %v1373
    %v1468 = vpack.c.b16 %v1376, %v1375
    %v1469 = vpack.c.b16 %v1378, %v1377
    %v1470 = vpack.c.b16 %v1380, %v1379
    %v1471 = vpack.c.b16 %v1382, %v1381
    %v1472 = vpack.c.b16 %v1384, %v1383
    %v1473 = vpack.c.b16 %v1386, %v1385
    %v1474 = vpack.c.b16 %v1388, %v1387
    %v1475 = vpack.c.b16 %v1390, %v1389
    %v1476 = vpack.c.b16 %v1392, %v1391
    %v1477 = vpack.c.b16 %v1394, %v1393
    %v1478 = vpack.c.b16 %v1396, %v1395
    %v1479 = vpack.c.b16 %v1398, %v1397
    %v1480 = vpack.c.b16 %v1400, %v1399
    %v1481 = vpack.c.b16 %v1402, %v1401
    %v1482 = vpack.c.b16 %v1404, %v1403
    %v1483 = vpack.c.b16 %v1406, %v1405
    %v1484 = vpack.c.b16 %v1408, %v1407
    %v1485 = vpack.c.b16 %v1410, %v1409
    %v1486 = vpack.c.b16 %v1412, %v1411
    %v1487 = vpack.c.b16 %v1414, %v1413
    %v1488 = vpack.c.b16 %v1416, %v1415
    %v1489 = vpack.c.b16 %v1418, %v1417
    %v1490 = vpack.c.b16 %v1420, %v1419
    %v1491 = vpack.c.b16 %v1422, %v1421
    %v1492 = vpack.c.b16 %v1424, %v1423
    %v1493 = vpack.c.b16 %v1426, %v1425
    %v1494 = vpack.c.b16 %v1428, %v1427
    %v1495 = vpack.c.b16 %v1430, %v1429
    %v1496 = vpack.c.b16 %v1432, %v1431
    %v1497 = vpack.c.b16 %v1434, %v1433
    %v1498 = vpack.c.b16 %v1436, %v1435
    %v1499 = vpack.c.b16 %v1438, %v1437
    %v1500 = vpack.c.b16 %v1440, %v1439
    %v1501 = vpack.c.b16 %v1442, %v1441
    %v1502 = vpack.c.b16 %v1444, %v1443
    %v1503 = vpack.c.b16 %v1446, %v1445
    %v1504 = vpack.c.b16 %v1448, %v1447
    %1561 = vmatprep.subr.bf16.mxu0 0
    %1562 = vmatpush1.bf16.msra.mxu0 %v1449
    %1563 = vmatprep.subr.bf16.mxu0 0
    %1564 = vmatpush1.bf16.msra.mxu0 %v1450
    %1565 = vmatprep.subr.bf16.mxu0 0
    %1566 = vmatpush1.bf16.msra.mxu0 %v1451
    %1567 = vmatprep.subr.bf16.mxu0 0
    %1568 = vmatpush1.bf16.msra.mxu0 %v1452
    %1569 = vmatprep.subr.bf16.mxu0 0
    %1570 = vmatpush1.bf16.msra.mxu0 %v1453
    %1571 = vmatprep.subr.bf16.mxu0 0
    %1572 = vmatpush1.bf16.msra.mxu0 %v1454
    %1573 = vmatprep.subr.bf16.mxu0 0
    %1574 = vmatpush1.bf16.msra.mxu0 %v1455
    %1575 = vmatprep.subr.bf16.mxu0 0
    %1576 = vmatpush1.bf16.msra.mxu0 %v1456
    %1577 = vmatprep.subr.bf16.mxu0 0
    %1578 = vmatpush1.bf16.msra.mxu0 %v1457
    %1579 = vmatprep.subr.bf16.mxu0 0
    %1580 = vmatpush1.bf16.msra.mxu0 %v1458
    %1581 = vmatprep.subr.bf16.mxu0 0
    %1582 = vmatpush1.bf16.msra.mxu0 %v1459
    %1583 = vmatprep.subr.bf16.mxu0 0
    %1584 = vmatpush1.bf16.msra.mxu0 %v1460
    %1585 = vmatprep.subr.bf16.mxu0 0
    %1586 = vmatpush1.bf16.msra.mxu0 %v1461
    %1587 = vmatprep.subr.bf16.mxu0 0
    %1588 = vmatpush1.bf16.msra.mxu0 %v1462
    %1589 = vmatprep.subr.bf16.mxu0 0
    %1590 = vmatpush1.bf16.msra.mxu0 %v1463
    %1591 = vmatprep.subr.bf16.mxu0 0
    %1592 = vmatpush1.bf16.msra.mxu0 %v1464
    %1593 = vmatprep.mubr.bf16.mxu0 %v862
    %1594 = vmatmul.mubr.bf16.gmra.mrb[0].mxu0 %v805
    %v1595 = vpop.f32.mrb[0].mxu0
    %v1596 = vadd.f32 %v1223, %v1595
    %v1597 = vpop.f32.mrb[0].mxu0
    %v1598 = vpop.f32.mrb[0].mxu0
    %v1599 = vadd.f32 %v1223, %v1598
    %v1600 = vpop.f32.mrb[0].mxu0
    %1601 = vmatprep.mubr.bf16.mxu0 %v863
    %1602 = vmatmul.mubr.bf16.gmra.mrb[0].mxu0 %v806
    %v1603 = vpop.f32.mrb[0].mxu0
    %v1604 = vadd.f32 %v1223, %v1603
    %v1605 = vpop.f32.mrb[0].mxu0
    %v1606 = vpop.f32.mrb[0].mxu0
    %v1607 = vadd.f32 %v1223, %v1606
    %v1608 = vpop.f32.mrb[0].mxu0
    %1609 = vmatprep.mubr.bf16.mxu0 %v864
    %1610 = vmatmul.mubr.bf16.gmra.mrb[0].mxu0 %v807
    %v1611 = vpop.f32.mrb[0].mxu0
    %v1612 = vadd.f32 %v1223, %v1611
    %v1613 = vpop.f32.mrb[0].mxu0
    %v1614 = vpop.f32.mrb[0].mxu0
    %v1615 = vadd.f32 %v1223, %v1614
    %v1616 = vpop.f32.mrb[0].mxu0
    %1617 = vmatprep.mubr.bf16.mxu0 %v865
    %1618 = vmatmul.mubr.bf16.gmra.mrb[0].mxu0 %v808
    %v1619 = vpop.f32.mrb[0].mxu0
    %v1620 = vadd.f32 %v1223, %v1619
    %v1621 = vpop.f32.mrb[0].mxu0
    %v1622 = vpop.f32.mrb[0].mxu0
    %v1623 = vadd.f32 %v1223, %v1622
    %v1624 = vpop.f32.mrb[0].mxu0
    %1625 = vmatprep.mubr.bf16.mxu0 %v866
    %1626 = vmatmul.mubr.bf16.gmra.mrb[0].mxu0 %v809
    %v1627 = vpop.f32.mrb[0].mxu0
    %v1628 = vadd.f32 %v1223, %v1627
    %v1629 = vpop.f32.mrb[0].mxu0
    %v1630 = vpop.f32.mrb[0].mxu0
    %v1631 = vadd.f32 %v1223, %v1630
    %v1632 = vpop.f32.mrb[0].mxu0
    %1633 = vmatprep.mubr.bf16.mxu0 %v867
    %1634 = vmatmul.mubr.bf16.gmra.mrb[0].mxu0 %v810
    %v1635 = vpop.f32.mrb[0].mxu0
    %v1636 = vadd.f32 %v1223, %v1635
    %v1637 = vpop.f32.mrb[0].mxu0
    %v1638 = vpop.f32.mrb[0].mxu0
    %v1639 = vadd.f32 %v1223, %v1638
    %v1640 = vpop.f32.mrb[0].mxu0
    %1641 = vmatprep.mubr.bf16.mxu0 %v868
    %1642 = vmatmul.mubr.bf16.gmra.mrb[0].mxu0 %v811
    %v1643 = vpop.f32.mrb[0].mxu0
    %v1644 = vadd.f32 %v1223, %v1643
    %v1645 = vpop.f32.mrb[0].mxu0
    %v1646 = vpop.f32.mrb[0].mxu0
    %v1647 = vadd.f32 %v1223, %v1646
    %v1648 = vpop.f32.mrb[0].mxu0
    %1649 = vmatprep.mubr.bf16.mxu0 %v869
    %1650 = vmatmul.mubr.bf16.gmra.mrb[0].mxu0 %v812
    %v1651 = vpop.f32.mrb[0].mxu0
    %v1652 = vadd.f32 %v1223, %v1651
    %v1653 = vpop.f32.mrb[0].mxu0
    %v1654 = vpop.f32.mrb[0].mxu0
    %v1655 = vadd.f32 %v1223, %v1654
    %v1656 = vpop.f32.mrb[0].mxu0
    %1657 = vdwg.mxu0
    %1658 = vmatprep.subr.bf16.mxu0 0
    %1659 = vmatpush1.bf16.msra.mxu0 %v1465
    %1660 = vmatprep.subr.bf16.mxu0 0
    %1661 = vmatpush1.bf16.msra.mxu0 %v1466
    %1662 = vmatprep.subr.bf16.mxu0 0
    %1663 = vmatpush1.bf16.msra.mxu0 %v1467
    %1664 = vmatprep.subr.bf16.mxu0 0
    %1665 = vmatpush1.bf16.msra.mxu0 %v1468
    %1666 = vmatprep.subr.bf16.mxu0 0
    %1667 = vmatpush1.bf16.msra.mxu0 %v1469
    %1668 = vmatprep.subr.bf16.mxu0 0
    %1669 = vmatpush1.bf16.msra.mxu0 %v1470
    %1670 = vmatprep.subr.bf16.mxu0 0
    %1671 = vmatpush1.bf16.msra.mxu0 %v1471
    %1672 = vmatprep.subr.bf16.mxu0 0
    %1673 = vmatpush1.bf16.msra.mxu0 %v1472
    %1674 = vmatprep.subr.bf16.mxu0 0
    %1675 = vmatpush1.bf16.msra.mxu0 %v1473
    %1676 = vmatprep.subr.bf16.mxu0 0
    %1677 = vmatpush1.bf16.msra.mxu0 %v1474
    %1678 = vmatprep.subr.bf16.mxu0 0
    %1679 = vmatpush1.bf16.msra.mxu0 %v1475
    %1680 = vmatprep.subr.bf16.mxu0 0
    %1681 = vmatpush1.bf16.msra.mxu0 %v1476
    %1682 = vmatprep.subr.bf16.mxu0 0
    %1683 = vmatpush1.bf16.msra.mxu0 %v1477
    %1684 = vmatprep.subr.bf16.mxu0 0
    %1685 = vmatpush1.bf16.msra.mxu0 %v1478
    %1686 = vmatprep.subr.bf16.mxu0 0
    %1687 = vmatpush1.bf16.msra.mxu0 %v1479
    %1688 = vmatprep.subr.bf16.mxu0 0
    %1689 = vmatpush1.bf16.msra.mxu0 %v1480
    %1690 = vmatprep.mubr.bf16.mxu0 %v927
    %1691 = vmatmul.mubr.bf16.gmra.mrb[0].mxu0 %v919
    %v1692 = vpop.f32.mrb[0].mxu0
    %v1693 = vadd.f32 %v1596, %v1692
    %v1694 = vpop.f32.mrb[0].mxu0
    %v1695 = vpop.f32.mrb[0].mxu0
    %v1696 = vadd.f32 %v1599, %v1695
    %v1697 = vpop.f32.mrb[0].mxu0
    %1698 = vmatprep.mubr.bf16.mxu0 %v928
    %1699 = vmatmul.mubr.bf16.gmra.mrb[0].mxu0 %v920
    %v1700 = vpop.f32.mrb[0].mxu0
    %v1701 = vadd.f32 %v1604, %v1700
    %v1702 = vpop.f32.mrb[0].mxu0
    %v1703 = vpop.f32.mrb[0].mxu0
    %v1704 = vadd.f32 %v1607, %v1703
    %v1705 = vpop.f32.mrb[0].mxu0
    %1706 = vmatprep.mubr.bf16.mxu0 %v929
    %1707 = vmatmul.mubr.bf16.gmra.mrb[0].mxu0 %v921
    %v1708 = vpop.f32.mrb[0].mxu0
    %v1709 = vadd.f32 %v1612, %v1708
    %v1710 = vpop.f32.mrb[0].mxu0
    %v1711 = vpop.f32.mrb[0].mxu0
    %v1712 = vadd.f32 %v1615, %v1711
    %v1713 = vpop.f32.mrb[0].mxu0
    %1714 = vmatprep.mubr.bf16.mxu0 %v930
    %1715 = vmatmul.mubr.bf16.gmra.mrb[0].mxu0 %v922
    %v1716 = vpop.f32.mrb[0].mxu0
    %v1717 = vadd.f32 %v1620, %v1716
    %v1718 = vpop.f32.mrb[0].mxu0
    %v1719 = vpop.f32.mrb[0].mxu0
    %v1720 = vadd.f32 %v1623, %v1719
    %v1721 = vpop.f32.mrb[0].mxu0
    %1722 = vmatprep.mubr.bf16.mxu0 %v931
    %1723 = vmatmul.mubr.bf16.gmra.mrb[0].mxu0 %v923
    %v1724 = vpop.f32.mrb[0].mxu0
    %v1725 = vadd.f32 %v1628, %v1724
    %v1726 = vpop.f32.mrb[0].mxu0
    %v1727 = vpop.f32.mrb[0].mxu0
    %v1728 = vadd.f32 %v1631, %v1727
    %v1729 = vpop.f32.mrb[0].mxu0
    %1730 = vmatprep.mubr.bf16.mxu0 %v932
    %1731 = vmatmul.mubr.bf16.gmra.mrb[0].mxu0 %v924
    %v1732 = vpop.f32.mrb[0].mxu0
    %v1733 = vadd.f32 %v1636, %v1732
    %v1734 = vpop.f32.mrb[0].mxu0
    %v1735 = vpop.f32.mrb[0].mxu0
    %v1736 = vadd.f32 %v1639, %v1735
    %v1737 = vpop.f32.mrb[0].mxu0
    %1738 = vmatprep.mubr.bf16.mxu0 %v933
    %1739 = vmatmul.mubr.bf16.gmra.mrb[0].mxu0 %v925
    %v1740 = vpop.f32.mrb[0].mxu0
    %v1741 = vadd.f32 %v1644, %v1740
    %v1742 = vpop.f32.mrb[0].mxu0
    %v1743 = vpop.f32.mrb[0].mxu0
    %v1744 = vadd.f32 %v1647, %v1743
    %v1745 = vpop.f32.mrb[0].mxu0
    %1746 = vmatprep.mubr.bf16.mxu0 %v934
    %1747 = vmatmul.mubr.bf16.gmra.mrb[0].mxu0 %v926
    %v1748 = vpop.f32.mrb[0].mxu0
    %v1749 = vadd.f32 %v1652, %v1748
    %v1750 = vpop.f32.mrb[0].mxu0
    %v1751 = vpop.f32.mrb[0].mxu0
    %v1752 = vadd.f32 %v1655, %v1751
    %v1753 = vpop.f32.mrb[0].mxu0
    %1754 = vdwg.mxu0
    %1755 = vmatprep.subr.bf16.mxu0 0
    %1756 = vmatpush1.bf16.msra.mxu0 %v1481
    %1757 = vmatprep.subr.bf16.mxu0 0
    %1758 = vmatpush1.bf16.msra.mxu0 %v1482
    %1759 = vmatprep.subr.bf16.mxu0 0
    %1760 = vmatpush1.bf16.msra.mxu0 %v1483
    %1761 = vmatprep.subr.bf16.mxu0 0
    %1762 = vmatpush1.bf16.msra.mxu0 %v1484
    %1763 = vmatprep.subr.bf16.mxu0 0
    %1764 = vmatpush1.bf16.msra.mxu0 %v1485
    %1765 = vmatprep.subr.bf16.mxu0 0
    %1766 = vmatpush1.bf16.msra.mxu0 %v1486
    %1767 = vmatprep.subr.bf16.mxu0 0
    %1768 = vmatpush1.bf16.msra.mxu0 %v1487
    %1769 = vmatprep.subr.bf16.mxu0 0
    %1770 = vmatpush1.bf16.msra.mxu0 %v1488
    %1771 = vmatprep.subr.bf16.mxu0 0
    %1772 = vmatpush1.bf16.msra.mxu0 %v1489
    %1773 = vmatprep.subr.bf16.mxu0 0
    %1774 = vmatpush1.bf16.msra.mxu0 %v1490
    %1775 = vmatprep.subr.bf16.mxu0 0
    %1776 = vmatpush1.bf16.msra.mxu0 %v1491
    %1777 = vmatprep.subr.bf16.mxu0 0
    %1778 = vmatpush1.bf16.msra.mxu0 %v1492
    %1779 = vmatprep.subr.bf16.mxu0 0
    %1780 = vmatpush1.bf16.msra.mxu0 %v1493
    %1781 = vmatprep.subr.bf16.mxu0 0
    %1782 = vmatpush1.bf16.msra.mxu0 %v1494
    %1783 = vmatprep.subr.bf16.mxu0 0
    %1784 = vmatpush1.bf16.msra.mxu0 %v1495
    %1785 = vmatprep.subr.bf16.mxu0 0
    %1786 = vmatpush1.bf16.msra.mxu0 %v1496
    %1787 = vmatprep.mubr.bf16.mxu0 %v1041
    %1788 = vmatmul.mubr.bf16.gmra.mrb[0].mxu0 %v984
    %v1789 = vpop.f32.mrb[0].mxu0
    %v1790 = vadd.f32 %v1693, %v1789
    %v1791 = vpop.f32.mrb[0].mxu0
    %v1792 = vpop.f32.mrb[0].mxu0
    %v1793 = vadd.f32 %v1696, %v1792
    %v1794 = vpop.f32.mrb[0].mxu0
    %1795 = vmatprep.mubr.bf16.mxu0 %v1042
    %1796 = vmatmul.mubr.bf16.gmra.mrb[0].mxu0 %v985
    %v1797 = vpop.f32.mrb[0].mxu0
    %v1798 = vadd.f32 %v1701, %v1797
    %v1799 = vpop.f32.mrb[0].mxu0
    %v1800 = vpop.f32.mrb[0].mxu0
    %v1801 = vadd.f32 %v1704, %v1800
    %v1802 = vpop.f32.mrb[0].mxu0
    %1803 = vmatprep.mubr.bf16.mxu0 %v1043
    %1804 = vmatmul.mubr.bf16.gmra.mrb[0].mxu0 %v986
    %v1805 = vpop.f32.mrb[0].mxu0
    %v1806 = vadd.f32 %v1709, %v1805
    %v1807 = vpop.f32.mrb[0].mxu0
    %v1808 = vpop.f32.mrb[0].mxu0
    %v1809 = vadd.f32 %v1712, %v1808
    %v1810 = vpop.f32.mrb[0].mxu0
    %1811 = vmatprep.mubr.bf16.mxu0 %v1044
    %1812 = vmatmul.mubr.bf16.gmra.mrb[0].mxu0 %v987
    %v1813 = vpop.f32.mrb[0].mxu0
    %v1814 = vadd.f32 %v1717, %v1813
    %v1815 = vpop.f32.mrb[0].mxu0
    %v1816 = vpop.f32.mrb[0].mxu0
    %v1817 = vadd.f32 %v1720, %v1816
    %v1818 = vpop.f32.mrb[0].mxu0
    %1819 = vmatprep.mubr.bf16.mxu0 %v1045
    %1820 = vmatmul.mubr.bf16.gmra.mrb[0].mxu0 %v988
    %v1821 = vpop.f32.mrb[0].mxu0
    %v1822 = vadd.f32 %v1725, %v1821
    %v1823 = vpop.f32.mrb[0].mxu0
    %v1824 = vpop.f32.mrb[0].mxu0
    %v1825 = vadd.f32 %v1728, %v1824
    %v1826 = vpop.f32.mrb[0].mxu0
    %1827 = vmatprep.mubr.bf16.mxu0 %v1046
    %1828 = vmatmul.mubr.bf16.gmra.mrb[0].mxu0 %v989
    %v1829 = vpop.f32.mrb[0].mxu0
    %v1830 = vadd.f32 %v1733, %v1829
    %v1831 = vpop.f32.mrb[0].mxu0
    %v1832 = vpop.f32.mrb[0].mxu0
    %v1833 = vadd.f32 %v1736, %v1832
    %v1834 = vpop.f32.mrb[0].mxu0
    %1835 = vmatprep.mubr.bf16.mxu0 %v1047
    %1836 = vmatmul.mubr.bf16.gmra.mrb[0].mxu0 %v990
    %v1837 = vpop.f32.mrb[0].mxu0
    %v1838 = vadd.f32 %v1741, %v1837
    %v1839 = vpop.f32.mrb[0].mxu0
    %v1840 = vpop.f32.mrb[0].mxu0
    %v1841 = vadd.f32 %v1744, %v1840
    %v1842 = vpop.f32.mrb[0].mxu0
    %1843 = vmatprep.mubr.bf16.mxu0 %v1048
    %1844 = vmatmul.mubr.bf16.gmra.mrb[0].mxu0 %v991
    %v1845 = vpop.f32.mrb[0].mxu0
    %v1846 = vadd.f32 %v1749, %v1845
    %v1847 = vpop.f32.mrb[0].mxu0
    %v1848 = vpop.f32.mrb[0].mxu0
    %v1849 = vadd.f32 %v1752, %v1848
    %v1850 = vpop.f32.mrb[0].mxu0
    %1851 = vdwg.mxu0
    %1852 = vmatprep.subr.bf16.mxu0 0
    %1853 = vmatpush1.bf16.msra.mxu0 %v1497
    %1854 = vmatprep.subr.bf16.mxu0 0
    %1855 = vmatpush1.bf16.msra.mxu0 %v1498
    %1856 = vmatprep.subr.bf16.mxu0 0
    %1857 = vmatpush1.bf16.msra.mxu0 %v1499
    %1858 = vmatprep.subr.bf16.mxu0 0
    %1859 = vmatpush1.bf16.msra.mxu0 %v1500
    %1860 = vmatprep.subr.bf16.mxu0 0
    %1861 = vmatpush1.bf16.msra.mxu0 %v1501
    %1862 = vmatprep.subr.bf16.mxu0 0
    %1863 = vmatpush1.bf16.msra.mxu0 %v1502
    %1864 = vmatprep.subr.bf16.mxu0 0
    %1865 = vmatpush1.bf16.msra.mxu0 %v1503
    %1866 = vmatprep.subr.bf16.mxu0 0
    %1867 = vmatpush1.bf16.msra.mxu0 %v1504
    %1868 = vmatprep.subr.bf16.mxu0 0
    %1869 = vmatpush1.bf16.msra.mxu0 0
    %1870 = vmatprep.subr.bf16.mxu0 0
    %1871 = vmatpush1.bf16.msra.mxu0 0
    %1872 = vmatprep.subr.bf16.mxu0 0
    %1873 = vmatpush1.bf16.msra.mxu0 0
    %1874 = vmatprep.subr.bf16.mxu0 0
    %1875 = vmatpush1.bf16.msra.mxu0 0
    %1876 = vmatprep.subr.bf16.mxu0 0
    %1877 = vmatpush1.bf16.msra.mxu0 0
    %1878 = vmatprep.subr.bf16.mxu0 0
    %1879 = vmatpush1.bf16.msra.mxu0 0
    %1880 = vmatprep.subr.bf16.mxu0 0
    %1881 = vmatpush1.bf16.msra.mxu0 0
    %1882 = vmatprep.subr.bf16.mxu0 0
    %1883 = vmatpush1.bf16.msra.mxu0 0
    %1884 = vmatprep.mubr.bf16.mxu0 0
    %1885 = vmatmul.mubr.bf16.gmra.mrb[0].mxu0 %v1098
    %v1886 = vpop.f32.mrb[0].mxu0
    %v1887 = vadd.f32 %v1790, %v1886
    %v1888 = vpop.f32.mrb[0].mxu0
    %v1889 = vpop.f32.mrb[0].mxu0
    %v1890 = vadd.f32 %v1793, %v1889
    %v1891 = vpop.f32.mrb[0].mxu0
    %1892 = vmatprep.mubr.bf16.mxu0 0
    %1893 = vmatmul.mubr.bf16.gmra.mrb[0].mxu0 %v1099
    %v1894 = vpop.f32.mrb[0].mxu0
    %v1895 = vadd.f32 %v1798, %v1894
    %v1896 = vpop.f32.mrb[0].mxu0
    %v1897 = vpop.f32.mrb[0].mxu0
    %v1898 = vadd.f32 %v1801, %v1897
    %v1899 = vpop.f32.mrb[0].mxu0
    %1900 = vmatprep.mubr.bf16.mxu0 0
    %1901 = vmatmul.mubr.bf16.gmra.mrb[0].mxu0 %v1100
    %v1902 = vpop.f32.mrb[0].mxu0
    %v1903 = vadd.f32 %v1806, %v1902
    %v1904 = vpop.f32.mrb[0].mxu0
    %v1905 = vpop.f32.mrb[0].mxu0
    %v1906 = vadd.f32 %v1809, %v1905
    %v1907 = vpop.f32.mrb[0].mxu0
    %1908 = vmatprep.mubr.bf16.mxu0 0
    %1909 = vmatmul.mubr.bf16.gmra.mrb[0].mxu0 %v1101
    %v1910 = vpop.f32.mrb[0].mxu0
    %v1911 = vadd.f32 %v1814, %v1910
    %v1912 = vpop.f32.mrb[0].mxu0
    %v1913 = vpop.f32.mrb[0].mxu0
    %v1914 = vadd.f32 %v1817, %v1913
    %v1915 = vpop.f32.mrb[0].mxu0
    %1916 = vmatprep.mubr.bf16.mxu0 0
    %1917 = vmatmul.mubr.bf16.gmra.mrb[0].mxu0 %v1102
    %v1918 = vpop.f32.mrb[0].mxu0
    %v1919 = vadd.f32 %v1822, %v1918
    %v1920 = vpop.f32.mrb[0].mxu0
    %v1921 = vpop.f32.mrb[0].mxu0
    %v1922 = vadd.f32 %v1825, %v1921
    %v1923 = vpop.f32.mrb[0].mxu0
    %1924 = vmatprep.mubr.bf16.mxu0 0
    %1925 = vmatmul.mubr.bf16.gmra.mrb[0].mxu0 %v1103
    %v1926 = vpop.f32.mrb[0].mxu0
    %v1927 = vadd.f32 %v1830, %v1926
    %v1928 = vpop.f32.mrb[0].mxu0
    %v1929 = vpop.f32.mrb[0].mxu0
    %v1930 = vadd.f32 %v1833, %v1929
    %v1931 = vpop.f32.mrb[0].mxu0
    %1932 = vmatprep.mubr.bf16.mxu0 0
    %1933 = vmatmul.mubr.bf16.gmra.mrb[0].mxu0 %v1104
    %v1934 = vpop.f32.mrb[0].mxu0
    %v1935 = vadd.f32 %v1838, %v1934
    %v1936 = vpop.f32.mrb[0].mxu0
    %v1937 = vpop.f32.mrb[0].mxu0
    %v1938 = vadd.f32 %v1841, %v1937
    %v1939 = vpop.f32.mrb[0].mxu0
    %1940 = vmatprep.mubr.bf16.mxu0 0
    %1941 = vmatmul.mubr.bf16.gmra.mrb[0].mxu0 %v1105
    %v1942 = vpop.f32.mrb[0].mxu0
    %v1943 = vadd.f32 %v1846, %v1942
    %v1944 = vpop.f32.mrb[0].mxu0
    %v1945 = vpop.f32.mrb[0].mxu0
    %v1946 = vadd.f32 %v1849, %v1945
    %v1947 = vpop.f32.mrb[0].mxu0
    %1948 = vdwg.mxu0
    %v1949 = vmax.f32 %v1887, 0.0
    %v1950 = vmax.f32 %v1890, 0.0
    %v1951 = vmax.f32 %v1895, 0.0
    %v1952 = vmax.f32 %v1898, 0.0
    %v1953 = vmax.f32 %v1903, 0.0
    %v1954 = vmax.f32 %v1906, 0.0
    %v1955 = vmax.f32 %v1911, 0.0
    %v1956 = vmax.f32 %v1914, 0.0
    %v1957 = vmax.f32 %v1919, 0.0
    %v1958 = vmax.f32 %v1922, 0.0
    %v1959 = vmax.f32 %v1927, 0.0
    %v1960 = vmax.f32 %v1930, 0.0
    %v1961 = vmax.f32 %v1935, 0.0
    %v1962 = vmax.f32 %v1938, 0.0
    %v1963 = vmax.f32 %v1943, 0.0
    %v1964 = vmax.f32 %v1946, 0.0
    %v1965 = vadd.f32 %v1949, %v84
    %v1966 = vadd.f32 %v1950, %v85
    %v1967 = vadd.f32 %v1951, %v86
    %v1968 = vadd.f32 %v1952, %v87
    %v1969 = vadd.f32 %v1953, %v88
    %v1970 = vadd.f32 %v1954, %v89
    %v1971 = vadd.f32 %v1955, %v90
    %v1972 = vadd.f32 %v1956, %v91
    %v1973 = vadd.f32 %v1957, %v92
    %v1974 = vadd.f32 %v1958, %v93
    %v1975 = vadd.f32 %v1959, %v94
    %v1976 = vadd.f32 %v1960, %v95
    %v1977 = vadd.f32 %v1961, %v96
    %v1978 = vadd.f32 %v1962, %v97
    %v1979 = vadd.f32 %v1963, %v98
    %v1980 = vadd.f32 %v1964, %v99
    %s1981 = scalar_lea.vmem %s2, 1
    %v1982 = vld [vmem:[%s1981] sm:$0x1]
    %s1983 = scalar_lea.vmem %s3, 1
    %v1984 = vld [vmem:[%s1983] sm:$0x1]
    %1985 = vadd.xlane.f32.xlu0 %v1965
    %v1986 = vpop.xlane.xlu0 %1985
    %1987 = vadd.xlane.f32.xlu0 %v1966
    %v1988 = vpop.xlane.xlu0 %1987
    %1989 = vadd.xlane.f32.xlu0 %v1967
    %v1990 = vpop.xlane.xlu0 %1989
    %1991 = vadd.xlane.f32.xlu0 %v1968
    %v1992 = vpop.xlane.xlu0 %1991
    %1993 = vadd.xlane.f32.xlu0 %v1969
    %v1994 = vpop.xlane.xlu0 %1993
    %1995 = vadd.xlane.f32.xlu0 %v1970
    %v1996 = vpop.xlane.xlu0 %1995
    %1997 = vadd.xlane.f32.xlu0 %v1971
    %v1998 = vpop.xlane.xlu0 %1997
    %1999 = vadd.xlane.f32.xlu0 %v1972
    %v2000 = vpop.xlane.xlu0 %1999
    %2001 = vadd.xlane.f32.xlu0 %v1973
    %v2002 = vpop.xlane.xlu0 %2001
    %2003 = vadd.xlane.f32.xlu0 %v1974
    %v2004 = vpop.xlane.xlu0 %2003
    %2005 = vadd.xlane.f32.xlu0 %v1975
    %v2006 = vpop.xlane.xlu0 %2005
    %2007 = vadd.xlane.f32.xlu0 %v1976
    %v2008 = vpop.xlane.xlu0 %2007
    %2009 = vadd.xlane.f32.xlu0 %v1977
    %v2010 = vpop.xlane.xlu0 %2009
    %2011 = vadd.xlane.f32.xlu0 %v1978
    %v2012 = vpop.xlane.xlu0 %2011
    %2013 = vadd.xlane.f32.xlu0 %v1979
    %v2014 = vpop.xlane.xlu0 %2013
    %2015 = vadd.xlane.f32.xlu0 %v1980
    %v2016 = vpop.xlane.xlu0 %2015
    %v2017 = vmul.f32 %v1986, %v535
    %v2018 = vmul.f32 %v1988, %v535
    %v2019 = vmul.f32 %v1990, %v535
    %v2020 = vmul.f32 %v1992, %v535
    %v2021 = vmul.f32 %v1994, %v535
    %v2022 = vmul.f32 %v1996, %v535
    %v2023 = vmul.f32 %v1998, %v535
    %v2024 = vmul.f32 %v2000, %v535
    %v2025 = vmul.f32 %v2002, %v535
    %v2026 = vmul.f32 %v2004, %v535
    %v2027 = vmul.f32 %v2006, %v535
    %v2028 = vmul.f32 %v2008, %v535
    %v2029 = vmul.f32 %v2010, %v535
    %v2030 = vmul.f32 %v2012, %v535
    %v2031 = vmul.f32 %v2014, %v535
    %v2032 = vmul.f32 %v2016, %v535
    %v2033 = vmul.f32 %v1965, %v1965
    %v2034 = vmul.f32 %v1966, %v1966
    %v2035 = vmul.f32 %v1967, %v1967
    %v2036 = vmul.f32 %v1968, %v1968
    %v2037 = vmul.f32 %v1969, %v1969
    %v2038 = vmul.f32 %v1970, %v1970
    %v2039 = vmul.f32 %v1971, %v1971
    %v2040 = vmul.f32 %v1972, %v1972
    %v2041 = vmul.f32 %v1973, %v1973
    %v2042 = vmul.f32 %v1974, %v1974
    %v2043 = vmul.f32 %v1975, %v1975
    %v2044 = vmul.f32 %v1976, %v1976
    %v2045 = vmul.f32 %v1977, %v1977
    %v2046 = vmul.f32 %v1978, %v1978
    %v2047 = vmul.f32 %v1979, %v1979
    %v2048 = vmul.f32 %v1980, %v1980
    %2049 = vadd.xlane.f32.xlu0 %v2033
    %v2050 = vpop.xlane.xlu0 %2049
    %2051 = vadd.xlane.f32.xlu0 %v2034
    %v2052 = vpop.xlane.xlu0 %2051
    %2053 = vadd.xlane.f32.xlu0 %v2035
    %v2054 = vpop.xlane.xlu0 %2053
    %2055 = vadd.xlane.f32.xlu0 %v2036
    %v2056 = vpop.xlane.xlu0 %2055
    %2057 = vadd.xlane.f32.xlu0 %v2037
    %v2058 = vpop.xlane.xlu0 %2057
    %2059 = vadd.xlane.f32.xlu0 %v2038
    %v2060 = vpop.xlane.xlu0 %2059
    %2061 = vadd.xlane.f32.xlu0 %v2039
    %v2062 = vpop.xlane.xlu0 %2061
    %2063 = vadd.xlane.f32.xlu0 %v2040
    %v2064 = vpop.xlane.xlu0 %2063
    %2065 = vadd.xlane.f32.xlu0 %v2041
    %v2066 = vpop.xlane.xlu0 %2065
    %2067 = vadd.xlane.f32.xlu0 %v2042
    %v2068 = vpop.xlane.xlu0 %2067
    %2069 = vadd.xlane.f32.xlu0 %v2043
    %v2070 = vpop.xlane.xlu0 %2069
    %2071 = vadd.xlane.f32.xlu0 %v2044
    %v2072 = vpop.xlane.xlu0 %2071
    %2073 = vadd.xlane.f32.xlu0 %v2045
    %v2074 = vpop.xlane.xlu0 %2073
    %2075 = vadd.xlane.f32.xlu0 %v2046
    %v2076 = vpop.xlane.xlu0 %2075
    %2077 = vadd.xlane.f32.xlu0 %v2047
    %v2078 = vpop.xlane.xlu0 %2077
    %2079 = vadd.xlane.f32.xlu0 %v2048
    %v2080 = vpop.xlane.xlu0 %2079
    %v2081 = vmul.f32 %v2050, %v535
    %v2082 = vmul.f32 %v2052, %v535
    %v2083 = vmul.f32 %v2054, %v535
    %v2084 = vmul.f32 %v2056, %v535
    %v2085 = vmul.f32 %v2058, %v535
    %v2086 = vmul.f32 %v2060, %v535
    %v2087 = vmul.f32 %v2062, %v535
    %v2088 = vmul.f32 %v2064, %v535
    %v2089 = vmul.f32 %v2066, %v535
    %v2090 = vmul.f32 %v2068, %v535
    %v2091 = vmul.f32 %v2070, %v535
    %v2092 = vmul.f32 %v2072, %v535
    %v2093 = vmul.f32 %v2074, %v535
    %v2094 = vmul.f32 %v2076, %v535
    %v2095 = vmul.f32 %v2078, %v535
    %v2096 = vmul.f32 %v2080, %v535
    %v2097 = vmul.f32 %v2017, %v2017
    %v2098 = vmul.f32 %v2018, %v2018
    %v2099 = vmul.f32 %v2019, %v2019
    %v2100 = vmul.f32 %v2020, %v2020
    %v2101 = vmul.f32 %v2021, %v2021
    %v2102 = vmul.f32 %v2022, %v2022
    %v2103 = vmul.f32 %v2023, %v2023
    %v2104 = vmul.f32 %v2024, %v2024
    %v2105 = vmul.f32 %v2025, %v2025
    %v2106 = vmul.f32 %v2026, %v2026
    %v2107 = vmul.f32 %v2027, %v2027
    %v2108 = vmul.f32 %v2028, %v2028
    %v2109 = vmul.f32 %v2029, %v2029
    %v2110 = vmul.f32 %v2030, %v2030
    %v2111 = vmul.f32 %v2031, %v2031
    %v2112 = vmul.f32 %v2032, %v2032
    %v2113 = vsub.f32 %v2081, %v2097
    %v2114 = vsub.f32 %v2082, %v2098
    %v2115 = vsub.f32 %v2083, %v2099
    %v2116 = vsub.f32 %v2084, %v2100
    %v2117 = vsub.f32 %v2085, %v2101
    %v2118 = vsub.f32 %v2086, %v2102
    %v2119 = vsub.f32 %v2087, %v2103
    %v2120 = vsub.f32 %v2088, %v2104
    %v2121 = vsub.f32 %v2089, %v2105
    %v2122 = vsub.f32 %v2090, %v2106
    %v2123 = vsub.f32 %v2091, %v2107
    %v2124 = vsub.f32 %v2092, %v2108
    %v2125 = vsub.f32 %v2093, %v2109
    %v2126 = vsub.f32 %v2094, %v2110
    %v2127 = vsub.f32 %v2095, %v2111
    %v2128 = vsub.f32 %v2096, %v2112
    %v2129 = vsub.f32 %v1965, %v2017
    %v2130 = vsub.f32 %v1966, %v2018
    %v2131 = vsub.f32 %v1967, %v2019
    %v2132 = vsub.f32 %v1968, %v2020
    %v2133 = vsub.f32 %v1969, %v2021
    %v2134 = vsub.f32 %v1970, %v2022
    %v2135 = vsub.f32 %v1971, %v2023
    %v2136 = vsub.f32 %v1972, %v2024
    %v2137 = vsub.f32 %v1973, %v2025
    %v2138 = vsub.f32 %v1974, %v2026
    %v2139 = vsub.f32 %v1975, %v2027
    %v2140 = vsub.f32 %v1976, %v2028
    %v2141 = vsub.f32 %v1977, %v2029
    %v2142 = vsub.f32 %v1978, %v2030
    %v2143 = vsub.f32 %v1979, %v2031
    %v2144 = vsub.f32 %v1980, %v2032
    %v2145 = vadd.f32 %v2113, 1e-06
    %v2146 = vadd.f32 %v2114, 1e-06
    %v2147 = vadd.f32 %v2115, 1e-06
    %v2148 = vadd.f32 %v2116, 1e-06
    %v2149 = vadd.f32 %v2117, 1e-06
    %v2150 = vadd.f32 %v2118, 1e-06
    %v2151 = vadd.f32 %v2119, 1e-06
    %v2152 = vadd.f32 %v2120, 1e-06
    %v2153 = vadd.f32 %v2121, 1e-06
    %v2154 = vadd.f32 %v2122, 1e-06
    %v2155 = vadd.f32 %v2123, 1e-06
    %v2156 = vadd.f32 %v2124, 1e-06
    %v2157 = vadd.f32 %v2125, 1e-06
    %v2158 = vadd.f32 %v2126, 1e-06
    %v2159 = vadd.f32 %v2127, 1e-06
    %v2160 = vadd.f32 %v2128, 1e-06
    %v2161 = vrsqrt.pop %v2145
    %v2162 = vrsqrt.pop %v2146
    %v2163 = vrsqrt.pop %v2147
    %v2164 = vrsqrt.pop %v2148
    %v2165 = vrsqrt.pop %v2149
    %v2166 = vrsqrt.pop %v2150
    %v2167 = vrsqrt.pop %v2151
    %v2168 = vrsqrt.pop %v2152
    %v2169 = vrsqrt.pop %v2153
    %v2170 = vrsqrt.pop %v2154
    %v2171 = vrsqrt.pop %v2155
    %v2172 = vrsqrt.pop %v2156
    %v2173 = vrsqrt.pop %v2157
    %v2174 = vrsqrt.pop %v2158
    %v2175 = vrsqrt.pop %v2159
    %v2176 = vrsqrt.pop %v2160
    %v2177 = vmul.f32 %v2129, %v2161
    %v2178 = vmul.f32 %v2130, %v2162
    %v2179 = vmul.f32 %v2131, %v2163
    %v2180 = vmul.f32 %v2132, %v2164
    %v2181 = vmul.f32 %v2133, %v2165
    %v2182 = vmul.f32 %v2134, %v2166
    %v2183 = vmul.f32 %v2135, %v2167
    %v2184 = vmul.f32 %v2136, %v2168
    %v2185 = vmul.f32 %v2137, %v2169
    %v2186 = vmul.f32 %v2138, %v2170
    %v2187 = vmul.f32 %v2139, %v2171
    %v2188 = vmul.f32 %v2140, %v2172
    %v2189 = vmul.f32 %v2141, %v2173
    %v2190 = vmul.f32 %v2142, %v2174
    %v2191 = vmul.f32 %v2143, %v2175
    %v2192 = vmul.f32 %v2144, %v2176
    %v2194 = vlaneseq
    %v2195 = vshrl.u32 %v2194, 7
    %v2196 = vsub.s32 0, %v2195
    %v2197 = vrot.slane %v1982, %v2196
    %v2199 = vmul.f32 %v2177, %v2197
    %v2200 = vmul.f32 %v2178, %v2197
    %v2201 = vmul.f32 %v2179, %v2197
    %v2202 = vmul.f32 %v2180, %v2197
    %v2203 = vmul.f32 %v2181, %v2197
    %v2204 = vmul.f32 %v2182, %v2197
    %v2205 = vmul.f32 %v2183, %v2197
    %v2206 = vmul.f32 %v2184, %v2197
    %v2207 = vmul.f32 %v2185, %v2197
    %v2208 = vmul.f32 %v2186, %v2197
    %v2209 = vmul.f32 %v2187, %v2197
    %v2210 = vmul.f32 %v2188, %v2197
    %v2211 = vmul.f32 %v2189, %v2197
    %v2212 = vmul.f32 %v2190, %v2197
    %v2213 = vmul.f32 %v2191, %v2197
    %v2214 = vmul.f32 %v2192, %v2197
    %v2216 = vlaneseq
    %v2217 = vshrl.u32 %v2216, 7
    %v2218 = vsub.s32 0, %v2217
    %v2219 = vrot.slane %v1984, %v2218
    %v2221 = vadd.f32 %v2199, %v2219
    %v2222 = vadd.f32 %v2200, %v2219
    %v2223 = vadd.f32 %v2201, %v2219
    %v2224 = vadd.f32 %v2202, %v2219
    %v2225 = vadd.f32 %v2203, %v2219
    %v2226 = vadd.f32 %v2204, %v2219
    %v2227 = vadd.f32 %v2205, %v2219
    %v2228 = vadd.f32 %v2206, %v2219
    %v2229 = vadd.f32 %v2207, %v2219
    %v2230 = vadd.f32 %v2208, %v2219
    %v2231 = vadd.f32 %v2209, %v2219
    %v2232 = vadd.f32 %v2210, %v2219
    %v2233 = vadd.f32 %v2211, %v2219
    %v2234 = vadd.f32 %v2212, %v2219
    %v2235 = vadd.f32 %v2213, %v2219
    %v2236 = vadd.f32 %v2214, %v2219
    %v2237 = vrot.slane %v2221, 5
    %v2238 = vrot.slane %v2222, 5
    %v2239 = vrot.slane %v2223, 5
    %v2240 = vrot.slane %v2224, 5
    %v2241 = vrot.slane %v2225, 5
    %v2242 = vrot.slane %v2226, 5
    %v2243 = vrot.slane %v2227, 5
    %v2244 = vrot.slane %v2228, 5
    %v2245 = vrot.slane %v2229, 5
    %v2246 = vrot.slane %v2230, 5
    %v2247 = vrot.slane %v2231, 5
    %v2248 = vrot.slane %v2232, 5
    %v2249 = vrot.slane %v2233, 5
    %v2250 = vrot.slane %v2234, 5
    %v2251 = vrot.slane %v2235, 5
    %v2252 = vrot.slane %v2236, 5
    %v2253 = vsel %vm772, %v2251, %v2252
    %v2254 = vsel %vm772, %v2250, %v2251
    %v2255 = vsel %vm772, %v2249, %v2250
    %v2256 = vsel %vm772, %v2248, %v2249
    %v2257 = vsel %vm772, %v2247, %v2248
    %v2258 = vsel %vm772, %v2246, %v2247
    %v2259 = vsel %vm772, %v2245, %v2246
    %v2260 = vsel %vm772, %v2244, %v2245
    %v2261 = vsel %vm772, %v2243, %v2244
    %v2262 = vsel %vm772, %v2242, %v2243
    %v2263 = vsel %vm772, %v2241, %v2242
    %v2264 = vsel %vm772, %v2240, %v2241
    %v2265 = vsel %vm772, %v2239, %v2240
    %v2266 = vsel %vm772, %v2238, %v2239
    %v2267 = vsel %vm772, %v2237, %v2238
    %v2268 = vsel %vm772, %v2252, %v2237
    %v2269 = vmul.f32 %v2268, %v325
    %v2270 = vmul.f32 %v2267, %v326
    %v2271 = vmul.f32 %v2266, %v327
    %v2272 = vmul.f32 %v2265, %v328
    %v2273 = vmul.f32 %v2264, %v329
    %v2274 = vmul.f32 %v2263, %v330
    %v2275 = vmul.f32 %v2262, %v331
    %v2276 = vmul.f32 %v2261, %v332
    %v2277 = vmul.f32 %v2260, %v333
    %v2278 = vmul.f32 %v2259, %v334
    %v2279 = vmul.f32 %v2258, %v335
    %v2280 = vmul.f32 %v2257, %v336
    %v2281 = vmul.f32 %v2256, %v337
    %v2282 = vmul.f32 %v2255, %v338
    %v2283 = vmul.f32 %v2254, %v339
    %v2284 = vmul.f32 %v2253, %v340
    %v2285 = vpack.c.bf16 %v2270, %v2269
    %v2286 = vpack.c.bf16 %v2272, %v2271
    %v2287 = vpack.c.bf16 %v2274, %v2273
    %v2288 = vpack.c.bf16 %v2276, %v2275
    %v2289 = vpack.c.bf16 %v2278, %v2277
    %v2290 = vpack.c.bf16 %v2280, %v2279
    %v2291 = vpack.c.bf16 %v2282, %v2281
    %v2292 = vpack.c.bf16 %v2284, %v2283
    %v2293 = vrot.slane %v2221, 6
    %v2294 = vrot.slane %v2222, 6
    %v2295 = vrot.slane %v2223, 6
    %v2296 = vrot.slane %v2224, 6
    %v2297 = vrot.slane %v2225, 6
    %v2298 = vrot.slane %v2226, 6
    %v2299 = vrot.slane %v2227, 6
    %v2300 = vrot.slane %v2228, 6
    %v2301 = vrot.slane %v2229, 6
    %v2302 = vrot.slane %v2230, 6
    %v2303 = vrot.slane %v2231, 6
    %v2304 = vrot.slane %v2232, 6
    %v2305 = vrot.slane %v2233, 6
    %v2306 = vrot.slane %v2234, 6
    %v2307 = vrot.slane %v2235, 6
    %v2308 = vrot.slane %v2236, 6
    %v2309 = vsel %vm829, %v2307, %v2308
    %v2310 = vsel %vm829, %v2306, %v2307
    %v2311 = vsel %vm829, %v2305, %v2306
    %v2312 = vsel %vm829, %v2304, %v2305
    %v2313 = vsel %vm829, %v2303, %v2304
    %v2314 = vsel %vm829, %v2302, %v2303
    %v2315 = vsel %vm829, %v2301, %v2302
    %v2316 = vsel %vm829, %v2300, %v2301
    %v2317 = vsel %vm829, %v2299, %v2300
    %v2318 = vsel %vm829, %v2298, %v2299
    %v2319 = vsel %vm829, %v2297, %v2298
    %v2320 = vsel %vm829, %v2296, %v2297
    %v2321 = vsel %vm829, %v2295, %v2296
    %v2322 = vsel %vm829, %v2294, %v2295
    %v2323 = vsel %vm829, %v2293, %v2294
    %v2324 = vsel %vm829, %v2308, %v2293
    %v2325 = vmul.f32 %v2324, %v357
    %v2326 = vmul.f32 %v2323, %v358
    %v2327 = vmul.f32 %v2322, %v359
    %v2328 = vmul.f32 %v2321, %v360
    %v2329 = vmul.f32 %v2320, %v361
    %v2330 = vmul.f32 %v2319, %v362
    %v2331 = vmul.f32 %v2318, %v363
    %v2332 = vmul.f32 %v2317, %v364
    %v2333 = vmul.f32 %v2316, %v365
    %v2334 = vmul.f32 %v2315, %v366
    %v2335 = vmul.f32 %v2314, %v367
    %v2336 = vmul.f32 %v2313, %v368
    %v2337 = vmul.f32 %v2312, %v369
    %v2338 = vmul.f32 %v2311, %v370
    %v2339 = vmul.f32 %v2310, %v371
    %v2340 = vmul.f32 %v2309, %v372
    %v2341 = vpack.c.bf16 %v2326, %v2325
    %v2342 = vpack.c.bf16 %v2328, %v2327
    %v2343 = vpack.c.bf16 %v2330, %v2329
    %v2344 = vpack.c.bf16 %v2332, %v2331
    %v2345 = vpack.c.bf16 %v2334, %v2333
    %v2346 = vpack.c.bf16 %v2336, %v2335
    %v2347 = vpack.c.bf16 %v2338, %v2337
    %v2348 = vpack.c.bf16 %v2340, %v2339
    %v2349 = vrot.slane %v2221, 7
    %v2350 = vrot.slane %v2222, 7
    %v2351 = vrot.slane %v2223, 7
    %v2352 = vrot.slane %v2224, 7
    %v2353 = vrot.slane %v2225, 7
    %v2354 = vrot.slane %v2226, 7
    %v2355 = vrot.slane %v2227, 7
    %v2356 = vrot.slane %v2228, 7
    %v2357 = vrot.slane %v2229, 7
    %v2358 = vrot.slane %v2230, 7
    %v2359 = vrot.slane %v2231, 7
    %v2360 = vrot.slane %v2232, 7
    %v2361 = vrot.slane %v2233, 7
    %v2362 = vrot.slane %v2234, 7
    %v2363 = vrot.slane %v2235, 7
    %v2364 = vrot.slane %v2236, 7
    %v2365 = vsel %vm886, %v2363, %v2364
    %v2366 = vsel %vm886, %v2362, %v2363
    %v2367 = vsel %vm886, %v2361, %v2362
    %v2368 = vsel %vm886, %v2360, %v2361
    %v2369 = vsel %vm886, %v2359, %v2360
    %v2370 = vsel %vm886, %v2358, %v2359
    %v2371 = vsel %vm886, %v2357, %v2358
    %v2372 = vsel %vm886, %v2356, %v2357
    %v2373 = vsel %vm886, %v2355, %v2356
    %v2374 = vsel %vm886, %v2354, %v2355
    %v2375 = vsel %vm886, %v2353, %v2354
    %v2376 = vsel %vm886, %v2352, %v2353
    %v2377 = vsel %vm886, %v2351, %v2352
    %v2378 = vsel %vm886, %v2350, %v2351
    %v2379 = vsel %vm886, %v2349, %v2350
    %v2380 = vsel %vm886, %v2364, %v2349
    %v2381 = vmul.f32 %v2380, %v389
    %v2382 = vmul.f32 %v2379, %v390
    %v2383 = vmul.f32 %v2378, %v391
    %v2384 = vmul.f32 %v2377, %v392
    %v2385 = vmul.f32 %v2376, %v393
    %v2386 = vmul.f32 %v2375, %v394
    %v2387 = vmul.f32 %v2374, %v395
    %v2388 = vmul.f32 %v2373, %v396
    %v2389 = vmul.f32 %v2372, %v397
    %v2390 = vmul.f32 %v2371, %v398
    %v2391 = vmul.f32 %v2370, %v399
    %v2392 = vmul.f32 %v2369, %v400
    %v2393 = vmul.f32 %v2368, %v401
    %v2394 = vmul.f32 %v2367, %v402
    %v2395 = vmul.f32 %v2366, %v403
    %v2396 = vmul.f32 %v2365, %v404
    %v2397 = vpack.c.bf16 %v2382, %v2381
    %v2398 = vpack.c.bf16 %v2384, %v2383
    %v2399 = vpack.c.bf16 %v2386, %v2385
    %v2400 = vpack.c.bf16 %v2388, %v2387
    %v2401 = vpack.c.bf16 %v2390, %v2389
    %v2402 = vpack.c.bf16 %v2392, %v2391
    %v2403 = vpack.c.bf16 %v2394, %v2393
    %v2404 = vpack.c.bf16 %v2396, %v2395
    %v2405 = vpack.c.bf16 %v2222, %v2221
    %v2406 = vpack.c.bf16 %v2224, %v2223
    %v2407 = vpack.c.bf16 %v2226, %v2225
    %v2408 = vpack.c.bf16 %v2228, %v2227
    %v2409 = vpack.c.bf16 %v2230, %v2229
    %v2410 = vpack.c.bf16 %v2232, %v2231
    %v2411 = vpack.c.bf16 %v2234, %v2233
    %v2412 = vpack.c.bf16 %v2236, %v2235
    %v2413 = vrot.slane %v2221, 1
    %v2414 = vrot.slane %v2222, 1
    %v2415 = vrot.slane %v2223, 1
    %v2416 = vrot.slane %v2224, 1
    %v2417 = vrot.slane %v2225, 1
    %v2418 = vrot.slane %v2226, 1
    %v2419 = vrot.slane %v2227, 1
    %v2420 = vrot.slane %v2228, 1
    %v2421 = vrot.slane %v2229, 1
    %v2422 = vrot.slane %v2230, 1
    %v2423 = vrot.slane %v2231, 1
    %v2424 = vrot.slane %v2232, 1
    %v2425 = vrot.slane %v2233, 1
    %v2426 = vrot.slane %v2234, 1
    %v2427 = vrot.slane %v2235, 1
    %v2428 = vrot.slane %v2236, 1
    %v2429 = vsel %vm951, %v2427, %v2428
    %v2430 = vsel %vm951, %v2426, %v2427
    %v2431 = vsel %vm951, %v2425, %v2426
    %v2432 = vsel %vm951, %v2424, %v2425
    %v2433 = vsel %vm951, %v2423, %v2424
    %v2434 = vsel %vm951, %v2422, %v2423
    %v2435 = vsel %vm951, %v2421, %v2422
    %v2436 = vsel %vm951, %v2420, %v2421
    %v2437 = vsel %vm951, %v2419, %v2420
    %v2438 = vsel %vm951, %v2418, %v2419
    %v2439 = vsel %vm951, %v2417, %v2418
    %v2440 = vsel %vm951, %v2416, %v2417
    %v2441 = vsel %vm951, %v2415, %v2416
    %v2442 = vsel %vm951, %v2414, %v2415
    %v2443 = vsel %vm951, %v2413, %v2414
    %v2444 = vsel %vm951, %v2428, %v2413
    %v2445 = vmul.f32 %v2443, %v421
    %v2446 = vmul.f32 %v2442, %v422
    %v2447 = vmul.f32 %v2441, %v423
    %v2448 = vmul.f32 %v2440, %v424
    %v2449 = vmul.f32 %v2439, %v425
    %v2450 = vmul.f32 %v2438, %v426
    %v2451 = vmul.f32 %v2437, %v427
    %v2452 = vmul.f32 %v2436, %v428
    %v2453 = vmul.f32 %v2435, %v429
    %v2454 = vmul.f32 %v2434, %v430
    %v2455 = vmul.f32 %v2433, %v431
    %v2456 = vmul.f32 %v2432, %v432
    %v2457 = vmul.f32 %v2431, %v433
    %v2458 = vmul.f32 %v2430, %v434
    %v2459 = vmul.f32 %v2429, %v435
    %v2460 = vmul.f32 %v2444, %v436
    %v2461 = vpack.c.bf16 %v2446, %v2445
    %v2462 = vpack.c.bf16 %v2448, %v2447
    %v2463 = vpack.c.bf16 %v2450, %v2449
    %v2464 = vpack.c.bf16 %v2452, %v2451
    %v2465 = vpack.c.bf16 %v2454, %v2453
    %v2466 = vpack.c.bf16 %v2456, %v2455
    %v2467 = vpack.c.bf16 %v2458, %v2457
    %v2468 = vpack.c.bf16 %v2460, %v2459
    %v2469 = vrot.slane %v2221, 2
    %v2470 = vrot.slane %v2222, 2
    %v2471 = vrot.slane %v2223, 2
    %v2472 = vrot.slane %v2224, 2
    %v2473 = vrot.slane %v2225, 2
    %v2474 = vrot.slane %v2226, 2
    %v2475 = vrot.slane %v2227, 2
    %v2476 = vrot.slane %v2228, 2
    %v2477 = vrot.slane %v2229, 2
    %v2478 = vrot.slane %v2230, 2
    %v2479 = vrot.slane %v2231, 2
    %v2480 = vrot.slane %v2232, 2
    %v2481 = vrot.slane %v2233, 2
    %v2482 = vrot.slane %v2234, 2
    %v2483 = vrot.slane %v2235, 2
    %v2484 = vrot.slane %v2236, 2
    %v2485 = vsel %vm1008, %v2483, %v2484
    %v2486 = vsel %vm1008, %v2482, %v2483
    %v2487 = vsel %vm1008, %v2481, %v2482
    %v2488 = vsel %vm1008, %v2480, %v2481
    %v2489 = vsel %vm1008, %v2479, %v2480
    %v2490 = vsel %vm1008, %v2478, %v2479
    %v2491 = vsel %vm1008, %v2477, %v2478
    %v2492 = vsel %vm1008, %v2476, %v2477
    %v2493 = vsel %vm1008, %v2475, %v2476
    %v2494 = vsel %vm1008, %v2474, %v2475
    %v2495 = vsel %vm1008, %v2473, %v2474
    %v2496 = vsel %vm1008, %v2472, %v2473
    %v2497 = vsel %vm1008, %v2471, %v2472
    %v2498 = vsel %vm1008, %v2470, %v2471
    %v2499 = vsel %vm1008, %v2469, %v2470
    %v2500 = vsel %vm1008, %v2484, %v2469
    %v2501 = vmul.f32 %v2499, %v453
    %v2502 = vmul.f32 %v2498, %v454
    %v2503 = vmul.f32 %v2497, %v455
    %v2504 = vmul.f32 %v2496, %v456
    %v2505 = vmul.f32 %v2495, %v457
    %v2506 = vmul.f32 %v2494, %v458
    %v2507 = vmul.f32 %v2493, %v459
    %v2508 = vmul.f32 %v2492, %v460
    %v2509 = vmul.f32 %v2491, %v461
    %v2510 = vmul.f32 %v2490, %v462
    %v2511 = vmul.f32 %v2489, %v463
    %v2512 = vmul.f32 %v2488, %v464
    %v2513 = vmul.f32 %v2487, %v465
    %v2514 = vmul.f32 %v2486, %v466
    %v2515 = vmul.f32 %v2485, %v467
    %v2516 = vmul.f32 %v2500, %v468
    %v2517 = vpack.c.bf16 %v2502, %v2501
    %v2518 = vpack.c.bf16 %v2504, %v2503
    %v2519 = vpack.c.bf16 %v2506, %v2505
    %v2520 = vpack.c.bf16 %v2508, %v2507
    %v2521 = vpack.c.bf16 %v2510, %v2509
    %v2522 = vpack.c.bf16 %v2512, %v2511
    %v2523 = vpack.c.bf16 %v2514, %v2513
    %v2524 = vpack.c.bf16 %v2516, %v2515
    %v2525 = vrot.slane %v2221, 3
    %v2526 = vrot.slane %v2222, 3
    %v2527 = vrot.slane %v2223, 3
    %v2528 = vrot.slane %v2224, 3
    %v2529 = vrot.slane %v2225, 3
    %v2530 = vrot.slane %v2226, 3
    %v2531 = vrot.slane %v2227, 3
    %v2532 = vrot.slane %v2228, 3
    %v2533 = vrot.slane %v2229, 3
    %v2534 = vrot.slane %v2230, 3
    %v2535 = vrot.slane %v2231, 3
    %v2536 = vrot.slane %v2232, 3
    %v2537 = vrot.slane %v2233, 3
    %v2538 = vrot.slane %v2234, 3
    %v2539 = vrot.slane %v2235, 3
    %v2540 = vrot.slane %v2236, 3
    %v2541 = vsel %vm1065, %v2539, %v2540
    %v2542 = vsel %vm1065, %v2538, %v2539
    %v2543 = vsel %vm1065, %v2537, %v2538
    %v2544 = vsel %vm1065, %v2536, %v2537
    %v2545 = vsel %vm1065, %v2535, %v2536
    %v2546 = vsel %vm1065, %v2534, %v2535
    %v2547 = vsel %vm1065, %v2533, %v2534
    %v2548 = vsel %vm1065, %v2532, %v2533
    %v2549 = vsel %vm1065, %v2531, %v2532
    %v2550 = vsel %vm1065, %v2530, %v2531
    %v2551 = vsel %vm1065, %v2529, %v2530
    %v2552 = vsel %vm1065, %v2528, %v2529
    %v2553 = vsel %vm1065, %v2527, %v2528
    %v2554 = vsel %vm1065, %v2526, %v2527
    %v2555 = vsel %vm1065, %v2525, %v2526
    %v2556 = vsel %vm1065, %v2540, %v2525
    %v2557 = vmul.f32 %v2555, %v485
    %v2558 = vmul.f32 %v2554, %v486
    %v2559 = vmul.f32 %v2553, %v487
    %v2560 = vmul.f32 %v2552, %v488
    %v2561 = vmul.f32 %v2551, %v489
    %v2562 = vmul.f32 %v2550, %v490
    %v2563 = vmul.f32 %v2549, %v491
    %v2564 = vmul.f32 %v2548, %v492
    %v2565 = vmul.f32 %v2547, %v493
    %v2566 = vmul.f32 %v2546, %v494
    %v2567 = vmul.f32 %v2545, %v495
    %v2568 = vmul.f32 %v2544, %v496
    %v2569 = vmul.f32 %v2543, %v497
    %v2570 = vmul.f32 %v2542, %v498
    %v2571 = vmul.f32 %v2541, %v499
    %v2572 = vmul.f32 %v2556, %v500
    %v2573 = vpack.c.bf16 %v2558, %v2557
    %v2574 = vpack.c.bf16 %v2560, %v2559
    %v2575 = vpack.c.bf16 %v2562, %v2561
    %v2576 = vpack.c.bf16 %v2564, %v2563
    %v2577 = vpack.c.bf16 %v2566, %v2565
    %v2578 = vpack.c.bf16 %v2568, %v2567
    %v2579 = vpack.c.bf16 %v2570, %v2569
    %v2580 = vpack.c.bf16 %v2572, %v2571
    %s2581 = scalar_lea.vmem [#allocation7], 448
    %v2582 = vld [vmem:[%s2581] sm:$0xf]
    %v2583 = vld [vmem:[%s2581 + $0x4] sm:$0xf]
    %v2584 = vld [vmem:[%s2581 + $0x8] sm:$0xf]
    %v2585 = vld [vmem:[%s2581 + $0xc] sm:$0xf]
    %v2586 = vld [vmem:[%s2581 + $0x10] sm:$0xf]
    %v2587 = vld [vmem:[%s2581 + $0x14] sm:$0xf]
    %v2588 = vld [vmem:[%s2581 + $0x18] sm:$0xf]
    %v2589 = vld [vmem:[%s2581 + $0x1c] sm:$0xf]
    %v2590 = vld [vmem:[%s2581 + $0x20] sm:$0xf]
    %v2591 = vld [vmem:[%s2581 + $0x24] sm:$0xf]
    %v2592 = vld [vmem:[%s2581 + $0x28] sm:$0xf]
    %v2593 = vld [vmem:[%s2581 + $0x2c] sm:$0xf]
    %v2594 = vld [vmem:[%s2581 + $0x30] sm:$0xf]
    %v2595 = vld [vmem:[%s2581 + $0x34] sm:$0xf]
    %v2596 = vld [vmem:[%s2581 + $0x38] sm:$0xf]
    %v2597 = vld [vmem:[%s2581 + $0x3c] sm:$0xf]
    %v2598 = vld [vmem:[%s2581 + $0x40] sm:$0xf]
    %v2599 = vld [vmem:[%s2581 + $0x44] sm:$0xf]
    %v2600 = vld [vmem:[%s2581 + $0x48] sm:$0xf]
    %v2601 = vld [vmem:[%s2581 + $0x4c] sm:$0xf]
    %v2602 = vld [vmem:[%s2581 + $0x50] sm:$0xf]
    %v2603 = vld [vmem:[%s2581 + $0x54] sm:$0xf]
    %v2604 = vld [vmem:[%s2581 + $0x58] sm:$0xf]
    %v2605 = vld [vmem:[%s2581 + $0x5c] sm:$0xf]
    %v2606 = vld [vmem:[%s2581 + $0x60] sm:$0xf]
    %v2607 = vld [vmem:[%s2581 + $0x64] sm:$0xf]
    %v2608 = vld [vmem:[%s2581 + $0x68] sm:$0xf]
    %v2609 = vld [vmem:[%s2581 + $0x6c] sm:$0xf]
    %v2610 = vld [vmem:[%s2581 + $0x70] sm:$0xf]
    %v2611 = vld [vmem:[%s2581 + $0x74] sm:$0xf]
    %v2612 = vld [vmem:[%s2581 + $0x78] sm:$0xf]
    %v2613 = vld [vmem:[%s2581 + $0x7c] sm:$0xf]
    %v2614 = vld [vmem:[%s2581 + $0x80] sm:$0xf]
    %v2615 = vld [vmem:[%s2581 + $0x84] sm:$0xf]
    %v2616 = vld [vmem:[%s2581 + $0x88] sm:$0xf]
    %v2617 = vld [vmem:[%s2581 + $0x8c] sm:$0xf]
    %v2618 = vld [vmem:[%s2581 + $0x90] sm:$0xf]
    %v2619 = vld [vmem:[%s2581 + $0x94] sm:$0xf]
    %v2620 = vld [vmem:[%s2581 + $0x98] sm:$0xf]
    %v2621 = vld [vmem:[%s2581 + $0x9c] sm:$0xf]
    %v2622 = vld [vmem:[%s2581 + $0xa0] sm:$0xf]
    %v2623 = vld [vmem:[%s2581 + $0xa4] sm:$0xf]
    %v2624 = vld [vmem:[%s2581 + $0xa8] sm:$0xf]
    %v2625 = vld [vmem:[%s2581 + $0xac] sm:$0xf]
    %v2626 = vld [vmem:[%s2581 + $0xb0] sm:$0xf]
    %v2627 = vld [vmem:[%s2581 + $0xb4] sm:$0xf]
    %v2628 = vld [vmem:[%s2581 + $0xb8] sm:$0xf]
    %v2629 = vld [vmem:[%s2581 + $0xbc] sm:$0xf]
    %v2630 = vld [vmem:[%s2581 + $0xc0] sm:$0xf]
    %v2631 = vld [vmem:[%s2581 + $0xc4] sm:$0xf]
    %v2632 = vld [vmem:[%s2581 + $0xc8] sm:$0xf]
    %v2633 = vld [vmem:[%s2581 + $0xcc] sm:$0xf]
    %v2634 = vld [vmem:[%s2581 + $0xd0] sm:$0xf]
    %v2635 = vld [vmem:[%s2581 + $0xd4] sm:$0xf]
    %v2636 = vld [vmem:[%s2581 + $0xd8] sm:$0xf]
    %v2637 = vld [vmem:[%s2581 + $0xdc] sm:$0xf]
    %v2638 = vld [vmem:[%s2581 + $0xe0] sm:$0xf]
    %v2639 = vld [vmem:[%s2581 + $0xe4] sm:$0xf]
    %v2640 = vld [vmem:[%s2581 + $0xe8] sm:$0xf]
    %v2641 = vld [vmem:[%s2581 + $0xec] sm:$0xf]
    %v2642 = vld [vmem:[%s2581 + $0xf0] sm:$0xf]
    %v2643 = vld [vmem:[%s2581 + $0xf4] sm:$0xf]
    %v2644 = vld [vmem:[%s2581 + $0xf8] sm:$0xf]
    %v2645 = vld [vmem:[%s2581 + $0xfc] sm:$0xf]
    %v2646 = vld [vmem:[%s2581 + $0x100] sm:$0xf]
    %v2647 = vld [vmem:[%s2581 + $0x104] sm:$0xf]
    %v2648 = vld [vmem:[%s2581 + $0x108] sm:$0xf]
    %v2649 = vld [vmem:[%s2581 + $0x10c] sm:$0xf]
    %v2650 = vld [vmem:[%s2581 + $0x110] sm:$0xf]
    %v2651 = vld [vmem:[%s2581 + $0x114] sm:$0xf]
    %v2652 = vld [vmem:[%s2581 + $0x118] sm:$0xf]
    %v2653 = vld [vmem:[%s2581 + $0x11c] sm:$0xf]
    %v2654 = vld [vmem:[%s2581 + $0x120] sm:$0xf]
    %v2655 = vld [vmem:[%s2581 + $0x124] sm:$0xf]
    %v2656 = vld [vmem:[%s2581 + $0x128] sm:$0xf]
    %v2657 = vld [vmem:[%s2581 + $0x12c] sm:$0xf]
    %v2658 = vld [vmem:[%s2581 + $0x130] sm:$0xf]
    %v2659 = vld [vmem:[%s2581 + $0x134] sm:$0xf]
    %v2660 = vld [vmem:[%s2581 + $0x138] sm:$0xf]
    %v2661 = vld [vmem:[%s2581 + $0x13c] sm:$0xf]
    %v2662 = vld [vmem:[%s2581 + $0x140] sm:$0xf]
    %v2663 = vld [vmem:[%s2581 + $0x144] sm:$0xf]
    %v2664 = vld [vmem:[%s2581 + $0x148] sm:$0xf]
    %v2665 = vld [vmem:[%s2581 + $0x14c] sm:$0xf]
    %v2666 = vld [vmem:[%s2581 + $0x150] sm:$0xf]
    %v2667 = vld [vmem:[%s2581 + $0x154] sm:$0xf]
    %v2668 = vld [vmem:[%s2581 + $0x158] sm:$0xf]
    %v2669 = vld [vmem:[%s2581 + $0x15c] sm:$0xf]
    %v2670 = vld [vmem:[%s2581 + $0x160] sm:$0xf]
    %v2671 = vld [vmem:[%s2581 + $0x164] sm:$0xf]
    %v2672 = vld [vmem:[%s2581 + $0x168] sm:$0xf]
    %v2673 = vld [vmem:[%s2581 + $0x16c] sm:$0xf]
    %v2674 = vld [vmem:[%s2581 + $0x170] sm:$0xf]
    %v2675 = vld [vmem:[%s2581 + $0x174] sm:$0xf]
    %v2676 = vld [vmem:[%s2581 + $0x178] sm:$0xf]
    %v2677 = vld [vmem:[%s2581 + $0x17c] sm:$0xf]
    %v2678 = vld [vmem:[%s2581 + $0x180] sm:$0xf]
    %v2679 = vld [vmem:[%s2581 + $0x184] sm:$0xf]
    %v2680 = vld [vmem:[%s2581 + $0x188] sm:$0xf]
    %v2681 = vld [vmem:[%s2581 + $0x18c] sm:$0xf]
    %v2682 = vld [vmem:[%s2581 + $0x190] sm:$0xf]
    %v2683 = vld [vmem:[%s2581 + $0x194] sm:$0xf]
    %v2684 = vld [vmem:[%s2581 + $0x198] sm:$0xf]
    %v2685 = vld [vmem:[%s2581 + $0x19c] sm:$0xf]
    %v2686 = vld [vmem:[%s2581 + $0x1a0] sm:$0xf]
    %v2687 = vld [vmem:[%s2581 + $0x1a4] sm:$0xf]
    %v2688 = vld [vmem:[%s2581 + $0x1a8] sm:$0xf]
    %v2689 = vld [vmem:[%s2581 + $0x1ac] sm:$0xf]
    %v2690 = vld [vmem:[%s2581 + $0x1b0] sm:$0xf]
    %v2691 = vld [vmem:[%s2581 + $0x1b4] sm:$0xf]
    %v2692 = vld [vmem:[%s2581 + $0x1b8] sm:$0xf]
    %v2693 = vld [vmem:[%s2581 + $0x1bc] sm:$0xf]
    %s2694 = scalar_lea.vmem %s5, 1
    %v2695 = vld [vmem:[%s2694] sm:$0x1]
    %v2697 = vlaneseq
    %v2698 = vshrl.u32 %v2697, 7
    %v2699 = vsub.s32 0, %v2698
    %v2700 = vrot.slane %v2695, %v2699
    %v2814 = vunpack.c.l.b16 %v2582
    %v2815 = vunpack.c.l.b16 %v2583
    %v2816 = vunpack.c.l.b16 %v2584
    %v2817 = vunpack.c.l.b16 %v2585
    %v2818 = vunpack.c.l.b16 %v2586
    %v2819 = vunpack.c.l.b16 %v2587
    %v2820 = vunpack.c.l.b16 %v2588
    %v2821 = vunpack.c.l.b16 %v2589
    %v2822 = vunpack.c.l.b16 %v2590
    %v2823 = vunpack.c.l.b16 %v2591
    %v2824 = vunpack.c.l.b16 %v2592
    %v2825 = vunpack.c.l.b16 %v2593
    %v2826 = vunpack.c.l.b16 %v2594
    %v2827 = vunpack.c.l.b16 %v2595
    %v2828 = vunpack.c.l.b16 %v2596
    %v2829 = vunpack.c.l.b16 %v2597
    %v2830 = vunpack.c.l.b16 %v2598
    %v2831 = vunpack.c.l.b16 %v2599
    %v2832 = vunpack.c.l.b16 %v2600
    %v2833 = vunpack.c.l.b16 %v2601
    %v2834 = vunpack.c.l.b16 %v2602
    %v2835 = vunpack.c.l.b16 %v2603
    %v2836 = vunpack.c.l.b16 %v2604
    %v2837 = vunpack.c.l.b16 %v2605
    %v2838 = vunpack.c.l.b16 %v2606
    %v2839 = vunpack.c.l.b16 %v2607
    %v2840 = vunpack.c.l.b16 %v2608
    %v2841 = vunpack.c.l.b16 %v2609
    %v2842 = vunpack.c.l.b16 %v2610
    %v2843 = vunpack.c.l.b16 %v2611
    %v2844 = vunpack.c.l.b16 %v2612
    %v2845 = vunpack.c.l.b16 %v2613
    %v2846 = vunpack.c.l.b16 %v2614
    %v2847 = vunpack.c.l.b16 %v2615
    %v2848 = vunpack.c.l.b16 %v2616
    %v2849 = vunpack.c.l.b16 %v2617
    %v2850 = vunpack.c.l.b16 %v2618
    %v2851 = vunpack.c.l.b16 %v2619
    %v2852 = vunpack.c.l.b16 %v2620
    %v2853 = vunpack.c.l.b16 %v2621
    %v2854 = vunpack.c.l.b16 %v2622
    %v2855 = vunpack.c.l.b16 %v2623
    %v2856 = vunpack.c.l.b16 %v2624
    %v2857 = vunpack.c.l.b16 %v2625
    %v2858 = vunpack.c.l.b16 %v2626
    %v2859 = vunpack.c.l.b16 %v2627
    %v2860 = vunpack.c.l.b16 %v2628
    %v2861 = vunpack.c.l.b16 %v2629
    %v2862 = vunpack.c.l.b16 %v2630
    %v2863 = vunpack.c.l.b16 %v2631
    %v2864 = vunpack.c.l.b16 %v2632
    %v2865 = vunpack.c.l.b16 %v2633
    %v2866 = vunpack.c.l.b16 %v2634
    %v2867 = vunpack.c.l.b16 %v2635
    %v2868 = vunpack.c.l.b16 %v2636
    %v2869 = vunpack.c.l.b16 %v2637
    %v2870 = vunpack.c.l.b16 %v2638
    %v2871 = vunpack.c.l.b16 %v2639
    %v2872 = vunpack.c.l.b16 %v2640
    %v2873 = vunpack.c.l.b16 %v2641
    %v2874 = vunpack.c.l.b16 %v2642
    %v2875 = vunpack.c.l.b16 %v2643
    %v2876 = vunpack.c.l.b16 %v2644
    %v2877 = vunpack.c.l.b16 %v2645
    %v2878 = vunpack.c.l.b16 %v2646
    %v2879 = vunpack.c.l.b16 %v2647
    %v2880 = vunpack.c.l.b16 %v2648
    %v2881 = vunpack.c.l.b16 %v2649
    %v2882 = vunpack.c.l.b16 %v2650
    %v2883 = vunpack.c.l.b16 %v2651
    %v2884 = vunpack.c.l.b16 %v2652
    %v2885 = vunpack.c.l.b16 %v2653
    %v2886 = vunpack.c.l.b16 %v2654
    %v2887 = vunpack.c.l.b16 %v2655
    %v2888 = vunpack.c.l.b16 %v2656
    %v2889 = vunpack.c.l.b16 %v2657
    %v2890 = vunpack.c.l.b16 %v2658
    %v2891 = vunpack.c.l.b16 %v2659
    %v2892 = vunpack.c.l.b16 %v2660
    %v2893 = vunpack.c.l.b16 %v2661
    %v2894 = vunpack.c.l.b16 %v2662
    %v2895 = vunpack.c.l.b16 %v2663
    %v2896 = vunpack.c.l.b16 %v2664
    %v2897 = vunpack.c.l.b16 %v2665
    %v2898 = vunpack.c.l.b16 %v2666
    %v2899 = vunpack.c.l.b16 %v2667
    %v2900 = vunpack.c.l.b16 %v2668
    %v2901 = vunpack.c.l.b16 %v2669
    %v2902 = vunpack.c.l.b16 %v2670
    %v2903 = vunpack.c.l.b16 %v2671
    %v2904 = vunpack.c.l.b16 %v2672
    %v2905 = vunpack.c.l.b16 %v2673
    %v2906 = vunpack.c.l.b16 %v2674
    %v2907 = vunpack.c.l.b16 %v2675
    %v2908 = vunpack.c.l.b16 %v2676
    %v2909 = vunpack.c.l.b16 %v2677
    %v2910 = vunpack.c.l.b16 %v2678
    %v2911 = vunpack.c.l.b16 %v2679
    %v2912 = vunpack.c.l.b16 %v2680
    %v2913 = vunpack.c.l.b16 %v2681
    %v2914 = vunpack.c.l.b16 %v2682
    %v2915 = vunpack.c.l.b16 %v2683
    %v2916 = vunpack.c.l.b16 %v2684
    %v2917 = vunpack.c.l.b16 %v2685
    %v2918 = vunpack.c.l.b16 %v2686
    %v2919 = vunpack.c.l.b16 %v2687
    %v2920 = vunpack.c.l.b16 %v2688
    %v2921 = vunpack.c.l.b16 %v2689
    %v2922 = vunpack.c.l.b16 %v2690
    %v2923 = vunpack.c.l.b16 %v2691
    %v2924 = vunpack.c.l.b16 %v2692
    %v2925 = vunpack.c.l.b16 %v2693
    %v2926 = vpack.c.b16 %v2815, %v2814
    %v2927 = vpack.c.b16 %v2817, %v2816
    %v2928 = vpack.c.b16 %v2819, %v2818
    %v2929 = vpack.c.b16 %v2821, %v2820
    %v2930 = vpack.c.b16 %v2823, %v2822
    %v2931 = vpack.c.b16 %v2825, %v2824
    %v2932 = vpack.c.b16 %v2827, %v2826
    %v2933 = vpack.c.b16 %v2829, %v2828
    %v2934 = vpack.c.b16 %v2831, %v2830
    %v2935 = vpack.c.b16 %v2833, %v2832
    %v2936 = vpack.c.b16 %v2835, %v2834
    %v2937 = vpack.c.b16 %v2837, %v2836
    %v2938 = vpack.c.b16 %v2839, %v2838
    %v2939 = vpack.c.b16 %v2841, %v2840
    %v2940 = vpack.c.b16 %v2843, %v2842
    %v2941 = vpack.c.b16 %v2845, %v2844
    %v2942 = vpack.c.b16 %v2847, %v2846
    %v2943 = vpack.c.b16 %v2849, %v2848
    %v2944 = vpack.c.b16 %v2851, %v2850
    %v2945 = vpack.c.b16 %v2853, %v2852
    %v2946 = vpack.c.b16 %v2855, %v2854
    %v2947 = vpack.c.b16 %v2857, %v2856
    %v2948 = vpack.c.b16 %v2859, %v2858
    %v2949 = vpack.c.b16 %v2861, %v2860
    %v2950 = vpack.c.b16 %v2863, %v2862
    %v2951 = vpack.c.b16 %v2865, %v2864
    %v2952 = vpack.c.b16 %v2867, %v2866
    %v2953 = vpack.c.b16 %v2869, %v2868
    %v2954 = vpack.c.b16 %v2871, %v2870
    %v2955 = vpack.c.b16 %v2873, %v2872
    %v2956 = vpack.c.b16 %v2875, %v2874
    %v2957 = vpack.c.b16 %v2877, %v2876
    %v2958 = vpack.c.b16 %v2879, %v2878
    %v2959 = vpack.c.b16 %v2881, %v2880
    %v2960 = vpack.c.b16 %v2883, %v2882
    %v2961 = vpack.c.b16 %v2885, %v2884
    %v2962 = vpack.c.b16 %v2887, %v2886
    %v2963 = vpack.c.b16 %v2889, %v2888
    %v2964 = vpack.c.b16 %v2891, %v2890
    %v2965 = vpack.c.b16 %v2893, %v2892
    %v2966 = vpack.c.b16 %v2895, %v2894
    %v2967 = vpack.c.b16 %v2897, %v2896
    %v2968 = vpack.c.b16 %v2899, %v2898
    %v2969 = vpack.c.b16 %v2901, %v2900
    %v2970 = vpack.c.b16 %v2903, %v2902
    %v2971 = vpack.c.b16 %v2905, %v2904
    %v2972 = vpack.c.b16 %v2907, %v2906
    %v2973 = vpack.c.b16 %v2909, %v2908
    %v2974 = vpack.c.b16 %v2911, %v2910
    %v2975 = vpack.c.b16 %v2913, %v2912
    %v2976 = vpack.c.b16 %v2915, %v2914
    %v2977 = vpack.c.b16 %v2917, %v2916
    %v2978 = vpack.c.b16 %v2919, %v2918
    %v2979 = vpack.c.b16 %v2921, %v2920
    %v2980 = vpack.c.b16 %v2923, %v2922
    %v2981 = vpack.c.b16 %v2925, %v2924
    %3038 = vmatprep.subr.bf16.mxu0 0
    %3039 = vmatpush1.bf16.msra.mxu0 %v2926
    %3040 = vmatprep.subr.bf16.mxu0 0
    %3041 = vmatpush1.bf16.msra.mxu0 %v2927
    %3042 = vmatprep.subr.bf16.mxu0 0
    %3043 = vmatpush1.bf16.msra.mxu0 %v2928
    %3044 = vmatprep.subr.bf16.mxu0 0
    %3045 = vmatpush1.bf16.msra.mxu0 %v2929
    %3046 = vmatprep.subr.bf16.mxu0 0
    %3047 = vmatpush1.bf16.msra.mxu0 %v2930
    %3048 = vmatprep.subr.bf16.mxu0 0
    %3049 = vmatpush1.bf16.msra.mxu0 %v2931
    %3050 = vmatprep.subr.bf16.mxu0 0
    %3051 = vmatpush1.bf16.msra.mxu0 %v2932
    %3052 = vmatprep.subr.bf16.mxu0 0
    %3053 = vmatpush1.bf16.msra.mxu0 %v2933
    %3054 = vmatprep.subr.bf16.mxu0 0
    %3055 = vmatpush1.bf16.msra.mxu0 %v2934
    %3056 = vmatprep.subr.bf16.mxu0 0
    %3057 = vmatpush1.bf16.msra.mxu0 %v2935
    %3058 = vmatprep.subr.bf16.mxu0 0
    %3059 = vmatpush1.bf16.msra.mxu0 %v2936
    %3060 = vmatprep.subr.bf16.mxu0 0
    %3061 = vmatpush1.bf16.msra.mxu0 %v2937
    %3062 = vmatprep.subr.bf16.mxu0 0
    %3063 = vmatpush1.bf16.msra.mxu0 %v2938
    %3064 = vmatprep.subr.bf16.mxu0 0
    %3065 = vmatpush1.bf16.msra.mxu0 %v2939
    %3066 = vmatprep.subr.bf16.mxu0 0
    %3067 = vmatpush1.bf16.msra.mxu0 %v2940
    %3068 = vmatprep.subr.bf16.mxu0 0
    %3069 = vmatpush1.bf16.msra.mxu0 %v2941
    %3070 = vmatprep.mubr.bf16.mxu0 %v2341
    %3071 = vmatmul.mubr.bf16.gmra.mrb[0].mxu0 %v2285
    %v3072 = vpop.f32.mrb[0].mxu0
    %v3073 = vadd.f32 %v2700, %v3072
    %v3074 = vpop.f32.mrb[0].mxu0
    %v3075 = vpop.f32.mrb[0].mxu0
    %v3076 = vadd.f32 %v2700, %v3075
    %v3077 = vpop.f32.mrb[0].mxu0
    %3078 = vmatprep.mubr.bf16.mxu0 %v2342
    %3079 = vmatmul.mubr.bf16.gmra.mrb[0].mxu0 %v2286
    %v3080 = vpop.f32.mrb[0].mxu0
    %v3081 = vadd.f32 %v2700, %v3080
    %v3082 = vpop.f32.mrb[0].mxu0
    %v3083 = vpop.f32.mrb[0].mxu0
    %v3084 = vadd.f32 %v2700, %v3083
    %v3085 = vpop.f32.mrb[0].mxu0
    %3086 = vmatprep.mubr.bf16.mxu0 %v2343
    %3087 = vmatmul.mubr.bf16.gmra.mrb[0].mxu0 %v2287
    %v3088 = vpop.f32.mrb[0].mxu0
    %v3089 = vadd.f32 %v2700, %v3088
    %v3090 = vpop.f32.mrb[0].mxu0
    %v3091 = vpop.f32.mrb[0].mxu0
    %v3092 = vadd.f32 %v2700, %v3091
    %v3093 = vpop.f32.mrb[0].mxu0
    %3094 = vmatprep.mubr.bf16.mxu0 %v2344
    %3095 = vmatmul.mubr.bf16.gmra.mrb[0].mxu0 %v2288
    %v3096 = vpop.f32.mrb[0].mxu0
    %v3097 = vadd.f32 %v2700, %v3096
    %v3098 = vpop.f32.mrb[0].mxu0
    %v3099 = vpop.f32.mrb[0].mxu0
    %v3100 = vadd.f32 %v2700, %v3099
    %v3101 = vpop.f32.mrb[0].mxu0
    %3102 = vmatprep.mubr.bf16.mxu0 %v2345
    %3103 = vmatmul.mubr.bf16.gmra.mrb[0].mxu0 %v2289
    %v3104 = vpop.f32.mrb[0].mxu0
    %v3105 = vadd.f32 %v2700, %v3104
    %v3106 = vpop.f32.mrb[0].mxu0
    %v3107 = vpop.f32.mrb[0].mxu0
    %v3108 = vadd.f32 %v2700, %v3107
    %v3109 = vpop.f32.mrb[0].mxu0
    %3110 = vmatprep.mubr.bf16.mxu0 %v2346
    %3111 = vmatmul.mubr.bf16.gmra.mrb[0].mxu0 %v2290
    %v3112 = vpop.f32.mrb[0].mxu0
    %v3113 = vadd.f32 %v2700, %v3112
    %v3114 = vpop.f32.mrb[0].mxu0
    %v3115 = vpop.f32.mrb[0].mxu0
    %v3116 = vadd.f32 %v2700, %v3115
    %v3117 = vpop.f32.mrb[0].mxu0
    %3118 = vmatprep.mubr.bf16.mxu0 %v2347
    %3119 = vmatmul.mubr.bf16.gmra.mrb[0].mxu0 %v2291
    %v3120 = vpop.f32.mrb[0].mxu0
    %v3121 = vadd.f32 %v2700, %v3120
    %v3122 = vpop.f32.mrb[0].mxu0
    %v3123 = vpop.f32.mrb[0].mxu0
    %v3124 = vadd.f32 %v2700, %v3123
    %v3125 = vpop.f32.mrb[0].mxu0
    %3126 = vmatprep.mubr.bf16.mxu0 %v2348
    %3127 = vmatmul.mubr.bf16.gmra.mrb[0].mxu0 %v2292
    %v3128 = vpop.f32.mrb[0].mxu0
    %v3129 = vadd.f32 %v2700, %v3128
    %v3130 = vpop.f32.mrb[0].mxu0
    %v3131 = vpop.f32.mrb[0].mxu0
    %v3132 = vadd.f32 %v2700, %v3131
    %v3133 = vpop.f32.mrb[0].mxu0
    %3134 = vdwg.mxu0
    %3135 = vmatprep.subr.bf16.mxu0 0
    %3136 = vmatpush1.bf16.msra.mxu0 %v2942
    %3137 = vmatprep.subr.bf16.mxu0 0
    %3138 = vmatpush1.bf16.msra.mxu0 %v2943
    %3139 = vmatprep.subr.bf16.mxu0 0
    %3140 = vmatpush1.bf16.msra.mxu0 %v2944
    %3141 = vmatprep.subr.bf16.mxu0 0
    %3142 = vmatpush1.bf16.msra.mxu0 %v2945
    %3143 = vmatprep.subr.bf16.mxu0 0
    %3144 = vmatpush1.bf16.msra.mxu0 %v2946
    %3145 = vmatprep.subr.bf16.mxu0 0
    %3146 = vmatpush1.bf16.msra.mxu0 %v2947
    %3147 = vmatprep.subr.bf16.mxu0 0
    %3148 = vmatpush1.bf16.msra.mxu0 %v2948
    %3149 = vmatprep.subr.bf16.mxu0 0
    %3150 = vmatpush1.bf16.msra.mxu0 %v2949
    %3151 = vmatprep.subr.bf16.mxu0 0
    %3152 = vmatpush1.bf16.msra.mxu0 %v2950
    %3153 = vmatprep.subr.bf16.mxu0 0
    %3154 = vmatpush1.bf16.msra.mxu0 %v2951
    %3155 = vmatprep.subr.bf16.mxu0 0
    %3156 = vmatpush1.bf16.msra.mxu0 %v2952
    %3157 = vmatprep.subr.bf16.mxu0 0
    %3158 = vmatpush1.bf16.msra.mxu0 %v2953
    %3159 = vmatprep.subr.bf16.mxu0 0
    %3160 = vmatpush1.bf16.msra.mxu0 %v2954
    %3161 = vmatprep.subr.bf16.mxu0 0
    %3162 = vmatpush1.bf16.msra.mxu0 %v2955
    %3163 = vmatprep.subr.bf16.mxu0 0
    %3164 = vmatpush1.bf16.msra.mxu0 %v2956
    %3165 = vmatprep.subr.bf16.mxu0 0
    %3166 = vmatpush1.bf16.msra.mxu0 %v2957
    %3167 = vmatprep.mubr.bf16.mxu0 %v2405
    %3168 = vmatmul.mubr.bf16.gmra.mrb[0].mxu0 %v2397
    %v3169 = vpop.f32.mrb[0].mxu0
    %v3170 = vadd.f32 %v3073, %v3169
    %v3171 = vpop.f32.mrb[0].mxu0
    %v3172 = vpop.f32.mrb[0].mxu0
    %v3173 = vadd.f32 %v3076, %v3172
    %v3174 = vpop.f32.mrb[0].mxu0
    %3175 = vmatprep.mubr.bf16.mxu0 %v2406
    %3176 = vmatmul.mubr.bf16.gmra.mrb[0].mxu0 %v2398
    %v3177 = vpop.f32.mrb[0].mxu0
    %v3178 = vadd.f32 %v3081, %v3177
    %v3179 = vpop.f32.mrb[0].mxu0
    %v3180 = vpop.f32.mrb[0].mxu0
    %v3181 = vadd.f32 %v3084, %v3180
    %v3182 = vpop.f32.mrb[0].mxu0
    %3183 = vmatprep.mubr.bf16.mxu0 %v2407
    %3184 = vmatmul.mubr.bf16.gmra.mrb[0].mxu0 %v2399
    %v3185 = vpop.f32.mrb[0].mxu0
    %v3186 = vadd.f32 %v3089, %v3185
    %v3187 = vpop.f32.mrb[0].mxu0
    %v3188 = vpop.f32.mrb[0].mxu0
    %v3189 = vadd.f32 %v3092, %v3188
    %v3190 = vpop.f32.mrb[0].mxu0
    %3191 = vmatprep.mubr.bf16.mxu0 %v2408
    %3192 = vmatmul.mubr.bf16.gmra.mrb[0].mxu0 %v2400
    %v3193 = vpop.f32.mrb[0].mxu0
    %v3194 = vadd.f32 %v3097, %v3193
    %v3195 = vpop.f32.mrb[0].mxu0
    %v3196 = vpop.f32.mrb[0].mxu0
    %v3197 = vadd.f32 %v3100, %v3196
    %v3198 = vpop.f32.mrb[0].mxu0
    %3199 = vmatprep.mubr.bf16.mxu0 %v2409
    %3200 = vmatmul.mubr.bf16.gmra.mrb[0].mxu0 %v2401
    %v3201 = vpop.f32.mrb[0].mxu0
    %v3202 = vadd.f32 %v3105, %v3201
    %v3203 = vpop.f32.mrb[0].mxu0
    %v3204 = vpop.f32.mrb[0].mxu0
    %v3205 = vadd.f32 %v3108, %v3204
    %v3206 = vpop.f32.mrb[0].mxu0
    %3207 = vmatprep.mubr.bf16.mxu0 %v2410
    %3208 = vmatmul.mubr.bf16.gmra.mrb[0].mxu0 %v2402
    %v3209 = vpop.f32.mrb[0].mxu0
    %v3210 = vadd.f32 %v3113, %v3209
    %v3211 = vpop.f32.mrb[0].mxu0
    %v3212 = vpop.f32.mrb[0].mxu0
    %v3213 = vadd.f32 %v3116, %v3212
    %v3214 = vpop.f32.mrb[0].mxu0
    %3215 = vmatprep.mubr.bf16.mxu0 %v2411
    %3216 = vmatmul.mubr.bf16.gmra.mrb[0].mxu0 %v2403
    %v3217 = vpop.f32.mrb[0].mxu0
    %v3218 = vadd.f32 %v3121, %v3217
    %v3219 = vpop.f32.mrb[0].mxu0
    %v3220 = vpop.f32.mrb[0].mxu0
    %v3221 = vadd.f32 %v3124, %v3220
    %v3222 = vpop.f32.mrb[0].mxu0
    %3223 = vmatprep.mubr.bf16.mxu0 %v2412
    %3224 = vmatmul.mubr.bf16.gmra.mrb[0].mxu0 %v2404
    %v3225 = vpop.f32.mrb[0].mxu0
    %v3226 = vadd.f32 %v3129, %v3225
    %v3227 = vpop.f32.mrb[0].mxu0
    %v3228 = vpop.f32.mrb[0].mxu0
    %v3229 = vadd.f32 %v3132, %v3228
    %v3230 = vpop.f32.mrb[0].mxu0
    %3231 = vdwg.mxu0
    %3232 = vmatprep.subr.bf16.mxu0 0
    %3233 = vmatpush1.bf16.msra.mxu0 %v2958
    %3234 = vmatprep.subr.bf16.mxu0 0
    %3235 = vmatpush1.bf16.msra.mxu0 %v2959
    %3236 = vmatprep.subr.bf16.mxu0 0
    %3237 = vmatpush1.bf16.msra.mxu0 %v2960
    %3238 = vmatprep.subr.bf16.mxu0 0
    %3239 = vmatpush1.bf16.msra.mxu0 %v2961
    %3240 = vmatprep.subr.bf16.mxu0 0
    %3241 = vmatpush1.bf16.msra.mxu0 %v2962
    %3242 = vmatprep.subr.bf16.mxu0 0
    %3243 = vmatpush1.bf16.msra.mxu0 %v2963
    %3244 = vmatprep.subr.bf16.mxu0 0
    %3245 = vmatpush1.bf16.msra.mxu0 %v2964
    %3246 = vmatprep.subr.bf16.mxu0 0
    %3247 = vmatpush1.bf16.msra.mxu0 %v2965
    %3248 = vmatprep.subr.bf16.mxu0 0
    %3249 = vmatpush1.bf16.msra.mxu0 %v2966
    %3250 = vmatprep.subr.bf16.mxu0 0
    %3251 = vmatpush1.bf16.msra.mxu0 %v2967
    %3252 = vmatprep.subr.bf16.mxu0 0
    %3253 = vmatpush1.bf16.msra.mxu0 %v2968
    %3254 = vmatprep.subr.bf16.mxu0 0
    %3255 = vmatpush1.bf16.msra.mxu0 %v2969
    %3256 = vmatprep.subr.bf16.mxu0 0
    %3257 = vmatpush1.bf16.msra.mxu0 %v2970
    %3258 = vmatprep.subr.bf16.mxu0 0
    %3259 = vmatpush1.bf16.msra.mxu0 %v2971
    %3260 = vmatprep.subr.bf16.mxu0 0
    %3261 = vmatpush1.bf16.msra.mxu0 %v2972
    %3262 = vmatprep.subr.bf16.mxu0 0
    %3263 = vmatpush1.bf16.msra.mxu0 %v2973
    %3264 = vmatprep.mubr.bf16.mxu0 %v2517
    %3265 = vmatmul.mubr.bf16.gmra.mrb[0].mxu0 %v2461
    %v3266 = vpop.f32.mrb[0].mxu0
    %v3267 = vadd.f32 %v3170, %v3266
    %v3268 = vpop.f32.mrb[0].mxu0
    %v3269 = vpop.f32.mrb[0].mxu0
    %v3270 = vadd.f32 %v3173, %v3269
    %v3271 = vpop.f32.mrb[0].mxu0
    %3272 = vmatprep.mubr.bf16.mxu0 %v2518
    %3273 = vmatmul.mubr.bf16.gmra.mrb[0].mxu0 %v2462
    %v3274 = vpop.f32.mrb[0].mxu0
    %v3275 = vadd.f32 %v3178, %v3274
    %v3276 = vpop.f32.mrb[0].mxu0
    %v3277 = vpop.f32.mrb[0].mxu0
    %v3278 = vadd.f32 %v3181, %v3277
    %v3279 = vpop.f32.mrb[0].mxu0
    %3280 = vmatprep.mubr.bf16.mxu0 %v2519
    %3281 = vmatmul.mubr.bf16.gmra.mrb[0].mxu0 %v2463
    %v3282 = vpop.f32.mrb[0].mxu0
    %v3283 = vadd.f32 %v3186, %v3282
    %v3284 = vpop.f32.mrb[0].mxu0
    %v3285 = vpop.f32.mrb[0].mxu0
    %v3286 = vadd.f32 %v3189, %v3285
    %v3287 = vpop.f32.mrb[0].mxu0
    %3288 = vmatprep.mubr.bf16.mxu0 %v2520
    %3289 = vmatmul.mubr.bf16.gmra.mrb[0].mxu0 %v2464
    %v3290 = vpop.f32.mrb[0].mxu0
    %v3291 = vadd.f32 %v3194, %v3290
    %v3292 = vpop.f32.mrb[0].mxu0
    %v3293 = vpop.f32.mrb[0].mxu0
    %v3294 = vadd.f32 %v3197, %v3293
    %v3295 = vpop.f32.mrb[0].mxu0
    %3296 = vmatprep.mubr.bf16.mxu0 %v2521
    %3297 = vmatmul.mubr.bf16.gmra.mrb[0].mxu0 %v2465
    %v3298 = vpop.f32.mrb[0].mxu0
    %v3299 = vadd.f32 %v3202, %v3298
    %v3300 = vpop.f32.mrb[0].mxu0
    %v3301 = vpop.f32.mrb[0].mxu0
    %v3302 = vadd.f32 %v3205, %v3301
    %v3303 = vpop.f32.mrb[0].mxu0
    %3304 = vmatprep.mubr.bf16.mxu0 %v2522
    %3305 = vmatmul.mubr.bf16.gmra.mrb[0].mxu0 %v2466
    %v3306 = vpop.f32.mrb[0].mxu0
    %v3307 = vadd.f32 %v3210, %v3306
    %v3308 = vpop.f32.mrb[0].mxu0
    %v3309 = vpop.f32.mrb[0].mxu0
    %v3310 = vadd.f32 %v3213, %v3309
    %v3311 = vpop.f32.mrb[0].mxu0
    %3312 = vmatprep.mubr.bf16.mxu0 %v2523
    %3313 = vmatmul.mubr.bf16.gmra.mrb[0].mxu0 %v2467
    %v3314 = vpop.f32.mrb[0].mxu0
    %v3315 = vadd.f32 %v3218, %v3314
    %v3316 = vpop.f32.mrb[0].mxu0
    %v3317 = vpop.f32.mrb[0].mxu0
    %v3318 = vadd.f32 %v3221, %v3317
    %v3319 = vpop.f32.mrb[0].mxu0
    %3320 = vmatprep.mubr.bf16.mxu0 %v2524
    %3321 = vmatmul.mubr.bf16.gmra.mrb[0].mxu0 %v2468
    %v3322 = vpop.f32.mrb[0].mxu0
    %v3323 = vadd.f32 %v3226, %v3322
    %v3324 = vpop.f32.mrb[0].mxu0
    %v3325 = vpop.f32.mrb[0].mxu0
    %v3326 = vadd.f32 %v3229, %v3325
    %v3327 = vpop.f32.mrb[0].mxu0
    %3328 = vdwg.mxu0
    %3329 = vmatprep.subr.bf16.mxu0 0
    %3330 = vmatpush1.bf16.msra.mxu0 %v2974
    %3331 = vmatprep.subr.bf16.mxu0 0
    %3332 = vmatpush1.bf16.msra.mxu0 %v2975
    %3333 = vmatprep.subr.bf16.mxu0 0
    %3334 = vmatpush1.bf16.msra.mxu0 %v2976
    %3335 = vmatprep.subr.bf16.mxu0 0
    %3336 = vmatpush1.bf16.msra.mxu0 %v2977
    %3337 = vmatprep.subr.bf16.mxu0 0
    %3338 = vmatpush1.bf16.msra.mxu0 %v2978
    %3339 = vmatprep.subr.bf16.mxu0 0
    %3340 = vmatpush1.bf16.msra.mxu0 %v2979
    %3341 = vmatprep.subr.bf16.mxu0 0
    %3342 = vmatpush1.bf16.msra.mxu0 %v2980
    %3343 = vmatprep.subr.bf16.mxu0 0
    %3344 = vmatpush1.bf16.msra.mxu0 %v2981
    %3345 = vmatprep.subr.bf16.mxu0 0
    %3346 = vmatpush1.bf16.msra.mxu0 0
    %3347 = vmatprep.subr.bf16.mxu0 0
    %3348 = vmatpush1.bf16.msra.mxu0 0
    %3349 = vmatprep.subr.bf16.mxu0 0
    %3350 = vmatpush1.bf16.msra.mxu0 0
    %3351 = vmatprep.subr.bf16.mxu0 0
    %3352 = vmatpush1.bf16.msra.mxu0 0
    %3353 = vmatprep.subr.bf16.mxu0 0
    %3354 = vmatpush1.bf16.msra.mxu0 0
    %3355 = vmatprep.subr.bf16.mxu0 0
    %3356 = vmatpush1.bf16.msra.mxu0 0
    %3357 = vmatprep.subr.bf16.mxu0 0
    %3358 = vmatpush1.bf16.msra.mxu0 0
    %3359 = vmatprep.subr.bf16.mxu0 0
    %3360 = vmatpush1.bf16.msra.mxu0 0
    %3361 = vmatprep.mubr.bf16.mxu0 0
    %3362 = vmatmul.mubr.bf16.gmra.mrb[0].mxu0 %v2573
    %v3363 = vpop.f32.mrb[0].mxu0
    %v3364 = vadd.f32 %v3267, %v3363
    %v3365 = vpop.f32.mrb[0].mxu0
    %v3366 = vpop.f32.mrb[0].mxu0
    %v3367 = vadd.f32 %v3270, %v3366
    %v3368 = vpop.f32.mrb[0].mxu0
    %3369 = vmatprep.mubr.bf16.mxu0 0
    %3370 = vmatmul.mubr.bf16.gmra.mrb[0].mxu0 %v2574
    %v3371 = vpop.f32.mrb[0].mxu0
    %v3372 = vadd.f32 %v3275, %v3371
    %v3373 = vpop.f32.mrb[0].mxu0
    %v3374 = vpop.f32.mrb[0].mxu0
    %v3375 = vadd.f32 %v3278, %v3374
    %v3376 = vpop.f32.mrb[0].mxu0
    %3377 = vmatprep.mubr.bf16.mxu0 0
    %3378 = vmatmul.mubr.bf16.gmra.mrb[0].mxu0 %v2575
    %v3379 = vpop.f32.mrb[0].mxu0
    %v3380 = vadd.f32 %v3283, %v3379
    %v3381 = vpop.f32.mrb[0].mxu0
    %v3382 = vpop.f32.mrb[0].mxu0
    %v3383 = vadd.f32 %v3286, %v3382
    %v3384 = vpop.f32.mrb[0].mxu0
    %3385 = vmatprep.mubr.bf16.mxu0 0
    %3386 = vmatmul.mubr.bf16.gmra.mrb[0].mxu0 %v2576
    %v3387 = vpop.f32.mrb[0].mxu0
    %v3388 = vadd.f32 %v3291, %v3387
    %v3389 = vpop.f32.mrb[0].mxu0
    %v3390 = vpop.f32.mrb[0].mxu0
    %v3391 = vadd.f32 %v3294, %v3390
    %v3392 = vpop.f32.mrb[0].mxu0
    %3393 = vmatprep.mubr.bf16.mxu0 0
    %3394 = vmatmul.mubr.bf16.gmra.mrb[0].mxu0 %v2577
    %v3395 = vpop.f32.mrb[0].mxu0
    %v3396 = vadd.f32 %v3299, %v3395
    %v3397 = vpop.f32.mrb[0].mxu0
    %v3398 = vpop.f32.mrb[0].mxu0
    %v3399 = vadd.f32 %v3302, %v3398
    %v3400 = vpop.f32.mrb[0].mxu0
    %3401 = vmatprep.mubr.bf16.mxu0 0
    %3402 = vmatmul.mubr.bf16.gmra.mrb[0].mxu0 %v2578
    %v3403 = vpop.f32.mrb[0].mxu0
    %v3404 = vadd.f32 %v3307, %v3403
    %v3405 = vpop.f32.mrb[0].mxu0
    %v3406 = vpop.f32.mrb[0].mxu0
    %v3407 = vadd.f32 %v3310, %v3406
    %v3408 = vpop.f32.mrb[0].mxu0
    %3409 = vmatprep.mubr.bf16.mxu0 0
    %3410 = vmatmul.mubr.bf16.gmra.mrb[0].mxu0 %v2579
    %v3411 = vpop.f32.mrb[0].mxu0
    %v3412 = vadd.f32 %v3315, %v3411
    %v3413 = vpop.f32.mrb[0].mxu0
    %v3414 = vpop.f32.mrb[0].mxu0
    %v3415 = vadd.f32 %v3318, %v3414
    %v3416 = vpop.f32.mrb[0].mxu0
    %3417 = vmatprep.mubr.bf16.mxu0 0
    %3418 = vmatmul.mubr.bf16.gmra.mrb[0].mxu0 %v2580
    %v3419 = vpop.f32.mrb[0].mxu0
    %v3420 = vadd.f32 %v3323, %v3419
    %v3421 = vpop.f32.mrb[0].mxu0
    %v3422 = vpop.f32.mrb[0].mxu0
    %v3423 = vadd.f32 %v3326, %v3422
    %v3424 = vpop.f32.mrb[0].mxu0
    %3425 = vdwg.mxu0
    %v3426 = vmax.f32 %v3364, 0.0
    %v3427 = vmax.f32 %v3367, 0.0
    %v3428 = vmax.f32 %v3372, 0.0
    %v3429 = vmax.f32 %v3375, 0.0
    %v3430 = vmax.f32 %v3380, 0.0
    %v3431 = vmax.f32 %v3383, 0.0
    %v3432 = vmax.f32 %v3388, 0.0
    %v3433 = vmax.f32 %v3391, 0.0
    %v3434 = vmax.f32 %v3396, 0.0
    %v3435 = vmax.f32 %v3399, 0.0
    %v3436 = vmax.f32 %v3404, 0.0
    %v3437 = vmax.f32 %v3407, 0.0
    %v3438 = vmax.f32 %v3412, 0.0
    %v3439 = vmax.f32 %v3415, 0.0
    %v3440 = vmax.f32 %v3420, 0.0
    %v3441 = vmax.f32 %v3423, 0.0
    %v3442 = vadd.f32 %v3426, %v1965
    %v3443 = vadd.f32 %v3427, %v1966
    %v3444 = vadd.f32 %v3428, %v1967
    %v3445 = vadd.f32 %v3429, %v1968
    %v3446 = vadd.f32 %v3430, %v1969
    %v3447 = vadd.f32 %v3431, %v1970
    %v3448 = vadd.f32 %v3432, %v1971
    %v3449 = vadd.f32 %v3433, %v1972
    %v3450 = vadd.f32 %v3434, %v1973
    %v3451 = vadd.f32 %v3435, %v1974
    %v3452 = vadd.f32 %v3436, %v1975
    %v3453 = vadd.f32 %v3437, %v1976
    %v3454 = vadd.f32 %v3438, %v1977
    %v3455 = vadd.f32 %v3439, %v1978
    %v3456 = vadd.f32 %v3440, %v1979
    %v3457 = vadd.f32 %v3441, %v1980
    %s3458 = scalar_lea.vmem %s2, 2
    %v3459 = vld [vmem:[%s3458] sm:$0x1]
    %s3460 = scalar_lea.vmem %s3, 2
    %v3461 = vld [vmem:[%s3460] sm:$0x1]
    %3462 = vadd.xlane.f32.xlu0 %v3442
    %v3463 = vpop.xlane.xlu0 %3462
    %3464 = vadd.xlane.f32.xlu0 %v3443
    %v3465 = vpop.xlane.xlu0 %3464
    %3466 = vadd.xlane.f32.xlu0 %v3444
    %v3467 = vpop.xlane.xlu0 %3466
    %3468 = vadd.xlane.f32.xlu0 %v3445
    %v3469 = vpop.xlane.xlu0 %3468
    %3470 = vadd.xlane.f32.xlu0 %v3446
    %v3471 = vpop.xlane.xlu0 %3470
    %3472 = vadd.xlane.f32.xlu0 %v3447
    %v3473 = vpop.xlane.xlu0 %3472
    %3474 = vadd.xlane.f32.xlu0 %v3448
    %v3475 = vpop.xlane.xlu0 %3474
    %3476 = vadd.xlane.f32.xlu0 %v3449
    %v3477 = vpop.xlane.xlu0 %3476
    %3478 = vadd.xlane.f32.xlu0 %v3450
    %v3479 = vpop.xlane.xlu0 %3478
    %3480 = vadd.xlane.f32.xlu0 %v3451
    %v3481 = vpop.xlane.xlu0 %3480
    %3482 = vadd.xlane.f32.xlu0 %v3452
    %v3483 = vpop.xlane.xlu0 %3482
    %3484 = vadd.xlane.f32.xlu0 %v3453
    %v3485 = vpop.xlane.xlu0 %3484
    %3486 = vadd.xlane.f32.xlu0 %v3454
    %v3487 = vpop.xlane.xlu0 %3486
    %3488 = vadd.xlane.f32.xlu0 %v3455
    %v3489 = vpop.xlane.xlu0 %3488
    %3490 = vadd.xlane.f32.xlu0 %v3456
    %v3491 = vpop.xlane.xlu0 %3490
    %3492 = vadd.xlane.f32.xlu0 %v3457
    %v3493 = vpop.xlane.xlu0 %3492
    %v3494 = vmul.f32 %v3463, %v535
    %v3495 = vmul.f32 %v3465, %v535
    %v3496 = vmul.f32 %v3467, %v535
    %v3497 = vmul.f32 %v3469, %v535
    %v3498 = vmul.f32 %v3471, %v535
    %v3499 = vmul.f32 %v3473, %v535
    %v3500 = vmul.f32 %v3475, %v535
    %v3501 = vmul.f32 %v3477, %v535
    %v3502 = vmul.f32 %v3479, %v535
    %v3503 = vmul.f32 %v3481, %v535
    %v3504 = vmul.f32 %v3483, %v535
    %v3505 = vmul.f32 %v3485, %v535
    %v3506 = vmul.f32 %v3487, %v535
    %v3507 = vmul.f32 %v3489, %v535
    %v3508 = vmul.f32 %v3491, %v535
    %v3509 = vmul.f32 %v3493, %v535
    %v3510 = vmul.f32 %v3442, %v3442
    %v3511 = vmul.f32 %v3443, %v3443
    %v3512 = vmul.f32 %v3444, %v3444
    %v3513 = vmul.f32 %v3445, %v3445
    %v3514 = vmul.f32 %v3446, %v3446
    %v3515 = vmul.f32 %v3447, %v3447
    %v3516 = vmul.f32 %v3448, %v3448
    %v3517 = vmul.f32 %v3449, %v3449
    %v3518 = vmul.f32 %v3450, %v3450
    %v3519 = vmul.f32 %v3451, %v3451
    %v3520 = vmul.f32 %v3452, %v3452
    %v3521 = vmul.f32 %v3453, %v3453
    %v3522 = vmul.f32 %v3454, %v3454
    %v3523 = vmul.f32 %v3455, %v3455
    %v3524 = vmul.f32 %v3456, %v3456
    %v3525 = vmul.f32 %v3457, %v3457
    %3526 = vadd.xlane.f32.xlu0 %v3510
    %v3527 = vpop.xlane.xlu0 %3526
    %3528 = vadd.xlane.f32.xlu0 %v3511
    %v3529 = vpop.xlane.xlu0 %3528
    %3530 = vadd.xlane.f32.xlu0 %v3512
    %v3531 = vpop.xlane.xlu0 %3530
    %3532 = vadd.xlane.f32.xlu0 %v3513
    %v3533 = vpop.xlane.xlu0 %3532
    %3534 = vadd.xlane.f32.xlu0 %v3514
    %v3535 = vpop.xlane.xlu0 %3534
    %3536 = vadd.xlane.f32.xlu0 %v3515
    %v3537 = vpop.xlane.xlu0 %3536
    %3538 = vadd.xlane.f32.xlu0 %v3516
    %v3539 = vpop.xlane.xlu0 %3538
    %3540 = vadd.xlane.f32.xlu0 %v3517
    %v3541 = vpop.xlane.xlu0 %3540
    %3542 = vadd.xlane.f32.xlu0 %v3518
    %v3543 = vpop.xlane.xlu0 %3542
    %3544 = vadd.xlane.f32.xlu0 %v3519
    %v3545 = vpop.xlane.xlu0 %3544
    %3546 = vadd.xlane.f32.xlu0 %v3520
    %v3547 = vpop.xlane.xlu0 %3546
    %3548 = vadd.xlane.f32.xlu0 %v3521
    %v3549 = vpop.xlane.xlu0 %3548
    %3550 = vadd.xlane.f32.xlu0 %v3522
    %v3551 = vpop.xlane.xlu0 %3550
    %3552 = vadd.xlane.f32.xlu0 %v3523
    %v3553 = vpop.xlane.xlu0 %3552
    %3554 = vadd.xlane.f32.xlu0 %v3524
    %v3555 = vpop.xlane.xlu0 %3554
    %3556 = vadd.xlane.f32.xlu0 %v3525
    %v3557 = vpop.xlane.xlu0 %3556
    %v3558 = vmul.f32 %v3527, %v535
    %v3559 = vmul.f32 %v3529, %v535
    %v3560 = vmul.f32 %v3531, %v535
    %v3561 = vmul.f32 %v3533, %v535
    %v3562 = vmul.f32 %v3535, %v535
    %v3563 = vmul.f32 %v3537, %v535
    %v3564 = vmul.f32 %v3539, %v535
    %v3565 = vmul.f32 %v3541, %v535
    %v3566 = vmul.f32 %v3543, %v535
    %v3567 = vmul.f32 %v3545, %v535
    %v3568 = vmul.f32 %v3547, %v535
    %v3569 = vmul.f32 %v3549, %v535
    %v3570 = vmul.f32 %v3551, %v535
    %v3571 = vmul.f32 %v3553, %v535
    %v3572 = vmul.f32 %v3555, %v535
    %v3573 = vmul.f32 %v3557, %v535
    %v3574 = vmul.f32 %v3494, %v3494
    %v3575 = vmul.f32 %v3495, %v3495
    %v3576 = vmul.f32 %v3496, %v3496
    %v3577 = vmul.f32 %v3497, %v3497
    %v3578 = vmul.f32 %v3498, %v3498
    %v3579 = vmul.f32 %v3499, %v3499
    %v3580 = vmul.f32 %v3500, %v3500
    %v3581 = vmul.f32 %v3501, %v3501
    %v3582 = vmul.f32 %v3502, %v3502
    %v3583 = vmul.f32 %v3503, %v3503
    %v3584 = vmul.f32 %v3504, %v3504
    %v3585 = vmul.f32 %v3505, %v3505
    %v3586 = vmul.f32 %v3506, %v3506
    %v3587 = vmul.f32 %v3507, %v3507
    %v3588 = vmul.f32 %v3508, %v3508
    %v3589 = vmul.f32 %v3509, %v3509
    %v3590 = vsub.f32 %v3558, %v3574
    %v3591 = vsub.f32 %v3559, %v3575
    %v3592 = vsub.f32 %v3560, %v3576
    %v3593 = vsub.f32 %v3561, %v3577
    %v3594 = vsub.f32 %v3562, %v3578
    %v3595 = vsub.f32 %v3563, %v3579
    %v3596 = vsub.f32 %v3564, %v3580
    %v3597 = vsub.f32 %v3565, %v3581
    %v3598 = vsub.f32 %v3566, %v3582
    %v3599 = vsub.f32 %v3567, %v3583
    %v3600 = vsub.f32 %v3568, %v3584
    %v3601 = vsub.f32 %v3569, %v3585
    %v3602 = vsub.f32 %v3570, %v3586
    %v3603 = vsub.f32 %v3571, %v3587
    %v3604 = vsub.f32 %v3572, %v3588
    %v3605 = vsub.f32 %v3573, %v3589
    %v3606 = vsub.f32 %v3442, %v3494
    %v3607 = vsub.f32 %v3443, %v3495
    %v3608 = vsub.f32 %v3444, %v3496
    %v3609 = vsub.f32 %v3445, %v3497
    %v3610 = vsub.f32 %v3446, %v3498
    %v3611 = vsub.f32 %v3447, %v3499
    %v3612 = vsub.f32 %v3448, %v3500
    %v3613 = vsub.f32 %v3449, %v3501
    %v3614 = vsub.f32 %v3450, %v3502
    %v3615 = vsub.f32 %v3451, %v3503
    %v3616 = vsub.f32 %v3452, %v3504
    %v3617 = vsub.f32 %v3453, %v3505
    %v3618 = vsub.f32 %v3454, %v3506
    %v3619 = vsub.f32 %v3455, %v3507
    %v3620 = vsub.f32 %v3456, %v3508
    %v3621 = vsub.f32 %v3457, %v3509
    %v3622 = vadd.f32 %v3590, 1e-06
    %v3623 = vadd.f32 %v3591, 1e-06
    %v3624 = vadd.f32 %v3592, 1e-06
    %v3625 = vadd.f32 %v3593, 1e-06
    %v3626 = vadd.f32 %v3594, 1e-06
    %v3627 = vadd.f32 %v3595, 1e-06
    %v3628 = vadd.f32 %v3596, 1e-06
    %v3629 = vadd.f32 %v3597, 1e-06
    %v3630 = vadd.f32 %v3598, 1e-06
    %v3631 = vadd.f32 %v3599, 1e-06
    %v3632 = vadd.f32 %v3600, 1e-06
    %v3633 = vadd.f32 %v3601, 1e-06
    %v3634 = vadd.f32 %v3602, 1e-06
    %v3635 = vadd.f32 %v3603, 1e-06
    %v3636 = vadd.f32 %v3604, 1e-06
    %v3637 = vadd.f32 %v3605, 1e-06
    %v3638 = vrsqrt.pop %v3622
    %v3639 = vrsqrt.pop %v3623
    %v3640 = vrsqrt.pop %v3624
    %v3641 = vrsqrt.pop %v3625
    %v3642 = vrsqrt.pop %v3626
    %v3643 = vrsqrt.pop %v3627
    %v3644 = vrsqrt.pop %v3628
    %v3645 = vrsqrt.pop %v3629
    %v3646 = vrsqrt.pop %v3630
    %v3647 = vrsqrt.pop %v3631
    %v3648 = vrsqrt.pop %v3632
    %v3649 = vrsqrt.pop %v3633
    %v3650 = vrsqrt.pop %v3634
    %v3651 = vrsqrt.pop %v3635
    %v3652 = vrsqrt.pop %v3636
    %v3653 = vrsqrt.pop %v3637
    %v3654 = vmul.f32 %v3606, %v3638
    %v3655 = vmul.f32 %v3607, %v3639
    %v3656 = vmul.f32 %v3608, %v3640
    %v3657 = vmul.f32 %v3609, %v3641
    %v3658 = vmul.f32 %v3610, %v3642
    %v3659 = vmul.f32 %v3611, %v3643
    %v3660 = vmul.f32 %v3612, %v3644
    %v3661 = vmul.f32 %v3613, %v3645
    %v3662 = vmul.f32 %v3614, %v3646
    %v3663 = vmul.f32 %v3615, %v3647
    %v3664 = vmul.f32 %v3616, %v3648
    %v3665 = vmul.f32 %v3617, %v3649
    %v3666 = vmul.f32 %v3618, %v3650
    %v3667 = vmul.f32 %v3619, %v3651
    %v3668 = vmul.f32 %v3620, %v3652
    %v3669 = vmul.f32 %v3621, %v3653
    %v3671 = vlaneseq
    %v3672 = vshrl.u32 %v3671, 7
    %v3673 = vsub.s32 0, %v3672
    %v3674 = vrot.slane %v3459, %v3673
    %v3676 = vmul.f32 %v3654, %v3674
    %v3677 = vmul.f32 %v3655, %v3674
    %v3678 = vmul.f32 %v3656, %v3674
    %v3679 = vmul.f32 %v3657, %v3674
    %v3680 = vmul.f32 %v3658, %v3674
    %v3681 = vmul.f32 %v3659, %v3674
    %v3682 = vmul.f32 %v3660, %v3674
    %v3683 = vmul.f32 %v3661, %v3674
    %v3684 = vmul.f32 %v3662, %v3674
    %v3685 = vmul.f32 %v3663, %v3674
    %v3686 = vmul.f32 %v3664, %v3674
    %v3687 = vmul.f32 %v3665, %v3674
    %v3688 = vmul.f32 %v3666, %v3674
    %v3689 = vmul.f32 %v3667, %v3674
    %v3690 = vmul.f32 %v3668, %v3674
    %v3691 = vmul.f32 %v3669, %v3674
    %v3693 = vlaneseq
    %v3694 = vshrl.u32 %v3693, 7
    %v3695 = vsub.s32 0, %v3694
    %v3696 = vrot.slane %v3461, %v3695
    %v3698 = vadd.f32 %v3676, %v3696
    %v3699 = vadd.f32 %v3677, %v3696
    %v3700 = vadd.f32 %v3678, %v3696
    %v3701 = vadd.f32 %v3679, %v3696
    %v3702 = vadd.f32 %v3680, %v3696
    %v3703 = vadd.f32 %v3681, %v3696
    %v3704 = vadd.f32 %v3682, %v3696
    %v3705 = vadd.f32 %v3683, %v3696
    %v3706 = vadd.f32 %v3684, %v3696
    %v3707 = vadd.f32 %v3685, %v3696
    %v3708 = vadd.f32 %v3686, %v3696
    %v3709 = vadd.f32 %v3687, %v3696
    %v3710 = vadd.f32 %v3688, %v3696
    %v3711 = vadd.f32 %v3689, %v3696
    %v3712 = vadd.f32 %v3690, %v3696
    %v3713 = vadd.f32 %v3691, %v3696
    %v3714 = vrot.slane %v3698, 5
    %v3715 = vrot.slane %v3699, 5
    %v3716 = vrot.slane %v3700, 5
    %v3717 = vrot.slane %v3701, 5
    %v3718 = vrot.slane %v3702, 5
    %v3719 = vrot.slane %v3703, 5
    %v3720 = vrot.slane %v3704, 5
    %v3721 = vrot.slane %v3705, 5
    %v3722 = vrot.slane %v3706, 5
    %v3723 = vrot.slane %v3707, 5
    %v3724 = vrot.slane %v3708, 5
    %v3725 = vrot.slane %v3709, 5
    %v3726 = vrot.slane %v3710, 5
    %v3727 = vrot.slane %v3711, 5
    %v3728 = vrot.slane %v3712, 5
    %v3729 = vrot.slane %v3713, 5
    %v3730 = vsel %vm772, %v3728, %v3729
    %v3731 = vsel %vm772, %v3727, %v3728
    %v3732 = vsel %vm772, %v3726, %v3727
    %v3733 = vsel %vm772, %v3725, %v3726
    %v3734 = vsel %vm772, %v3724, %v3725
    %v3735 = vsel %vm772, %v3723, %v3724
    %v3736 = vsel %vm772, %v3722, %v3723
    %v3737 = vsel %vm772, %v3721, %v3722
    %v3738 = vsel %vm772, %v3720, %v3721
    %v3739 = vsel %vm772, %v3719, %v3720
    %v3740 = vsel %vm772, %v3718, %v3719
    %v3741 = vsel %vm772, %v3717, %v3718
    %v3742 = vsel %vm772, %v3716, %v3717
    %v3743 = vsel %vm772, %v3715, %v3716
    %v3744 = vsel %vm772, %v3714, %v3715
    %v3745 = vsel %vm772, %v3729, %v3714
    %v3746 = vmul.f32 %v3745, %v325
    %v3747 = vmul.f32 %v3744, %v326
    %v3748 = vmul.f32 %v3743, %v327
    %v3749 = vmul.f32 %v3742, %v328
    %v3750 = vmul.f32 %v3741, %v329
    %v3751 = vmul.f32 %v3740, %v330
    %v3752 = vmul.f32 %v3739, %v331
    %v3753 = vmul.f32 %v3738, %v332
    %v3754 = vmul.f32 %v3737, %v333
    %v3755 = vmul.f32 %v3736, %v334
    %v3756 = vmul.f32 %v3735, %v335
    %v3757 = vmul.f32 %v3734, %v336
    %v3758 = vmul.f32 %v3733, %v337
    %v3759 = vmul.f32 %v3732, %v338
    %v3760 = vmul.f32 %v3731, %v339
    %v3761 = vmul.f32 %v3730, %v340
    %v3762 = vpack.c.bf16 %v3747, %v3746
    %v3763 = vpack.c.bf16 %v3749, %v3748
    %v3764 = vpack.c.bf16 %v3751, %v3750
    %v3765 = vpack.c.bf16 %v3753, %v3752
    %v3766 = vpack.c.bf16 %v3755, %v3754
    %v3767 = vpack.c.bf16 %v3757, %v3756
    %v3768 = vpack.c.bf16 %v3759, %v3758
    %v3769 = vpack.c.bf16 %v3761, %v3760
    %v3770 = vrot.slane %v3698, 6
    %v3771 = vrot.slane %v3699, 6
    %v3772 = vrot.slane %v3700, 6
    %v3773 = vrot.slane %v3701, 6
    %v3774 = vrot.slane %v3702, 6
    %v3775 = vrot.slane %v3703, 6
    %v3776 = vrot.slane %v3704, 6
    %v3777 = vrot.slane %v3705, 6
    %v3778 = vrot.slane %v3706, 6
    %v3779 = vrot.slane %v3707, 6
    %v3780 = vrot.slane %v3708, 6
    %v3781 = vrot.slane %v3709, 6
    %v3782 = vrot.slane %v3710, 6
    %v3783 = vrot.slane %v3711, 6
    %v3784 = vrot.slane %v3712, 6
    %v3785 = vrot.slane %v3713, 6
    %v3786 = vsel %vm829, %v3784, %v3785
    %v3787 = vsel %vm829, %v3783, %v3784
    %v3788 = vsel %vm829, %v3782, %v3783
    %v3789 = vsel %vm829, %v3781, %v3782
    %v3790 = vsel %vm829, %v3780, %v3781
    %v3791 = vsel %vm829, %v3779, %v3780
    %v3792 = vsel %vm829, %v3778, %v3779
    %v3793 = vsel %vm829, %v3777, %v3778
    %v3794 = vsel %vm829, %v3776, %v3777
    %v3795 = vsel %vm829, %v3775, %v3776
    %v3796 = vsel %vm829, %v3774, %v3775
    %v3797 = vsel %vm829, %v3773, %v3774
    %v3798 = vsel %vm829, %v3772, %v3773
    %v3799 = vsel %vm829, %v3771, %v3772
    %v3800 = vsel %vm829, %v3770, %v3771
    %v3801 = vsel %vm829, %v3785, %v3770
    %v3802 = vmul.f32 %v3801, %v357
    %v3803 = vmul.f32 %v3800, %v358
    %v3804 = vmul.f32 %v3799, %v359
    %v3805 = vmul.f32 %v3798, %v360
    %v3806 = vmul.f32 %v3797, %v361
    %v3807 = vmul.f32 %v3796, %v362
    %v3808 = vmul.f32 %v3795, %v363
    %v3809 = vmul.f32 %v3794, %v364
    %v3810 = vmul.f32 %v3793, %v365
    %v3811 = vmul.f32 %v3792, %v366
    %v3812 = vmul.f32 %v3791, %v367
    %v3813 = vmul.f32 %v3790, %v368
    %v3814 = vmul.f32 %v3789, %v369
    %v3815 = vmul.f32 %v3788, %v370
    %v3816 = vmul.f32 %v3787, %v371
    %v3817 = vmul.f32 %v3786, %v372
    %v3818 = vpack.c.bf16 %v3803, %v3802
    %v3819 = vpack.c.bf16 %v3805, %v3804
    %v3820 = vpack.c.bf16 %v3807, %v3806
    %v3821 = vpack.c.bf16 %v3809, %v3808
    %v3822 = vpack.c.bf16 %v3811, %v3810
    %v3823 = vpack.c.bf16 %v3813, %v3812
    %v3824 = vpack.c.bf16 %v3815, %v3814
    %v3825 = vpack.c.bf16 %v3817, %v3816
    %v3826 = vrot.slane %v3698, 7
    %v3827 = vrot.slane %v3699, 7
    %v3828 = vrot.slane %v3700, 7
    %v3829 = vrot.slane %v3701, 7
    %v3830 = vrot.slane %v3702, 7
    %v3831 = vrot.slane %v3703, 7
    %v3832 = vrot.slane %v3704, 7
    %v3833 = vrot.slane %v3705, 7
    %v3834 = vrot.slane %v3706, 7
    %v3835 = vrot.slane %v3707, 7
    %v3836 = vrot.slane %v3708, 7
    %v3837 = vrot.slane %v3709, 7
    %v3838 = vrot.slane %v3710, 7
    %v3839 = vrot.slane %v3711, 7
    %v3840 = vrot.slane %v3712, 7
    %v3841 = vrot.slane %v3713, 7
    %v3842 = vsel %vm886, %v3840, %v3841
    %v3843 = vsel %vm886, %v3839, %v3840
    %v3844 = vsel %vm886, %v3838, %v3839
    %v3845 = vsel %vm886, %v3837, %v3838
    %v3846 = vsel %vm886, %v3836, %v3837
    %v3847 = vsel %vm886, %v3835, %v3836
    %v3848 = vsel %vm886, %v3834, %v3835
    %v3849 = vsel %vm886, %v3833, %v3834
    %v3850 = vsel %vm886, %v3832, %v3833
    %v3851 = vsel %vm886, %v3831, %v3832
    %v3852 = vsel %vm886, %v3830, %v3831
    %v3853 = vsel %vm886, %v3829, %v3830
    %v3854 = vsel %vm886, %v3828, %v3829
    %v3855 = vsel %vm886, %v3827, %v3828
    %v3856 = vsel %vm886, %v3826, %v3827
    %v3857 = vsel %vm886, %v3841, %v3826
    %v3858 = vmul.f32 %v3857, %v389
    %v3859 = vmul.f32 %v3856, %v390
    %v3860 = vmul.f32 %v3855, %v391
    %v3861 = vmul.f32 %v3854, %v392
    %v3862 = vmul.f32 %v3853, %v393
    %v3863 = vmul.f32 %v3852, %v394
    %v3864 = vmul.f32 %v3851, %v395
    %v3865 = vmul.f32 %v3850, %v396
    %v3866 = vmul.f32 %v3849, %v397
    %v3867 = vmul.f32 %v3848, %v398
    %v3868 = vmul.f32 %v3847, %v399
    %v3869 = vmul.f32 %v3846, %v400
    %v3870 = vmul.f32 %v3845, %v401
    %v3871 = vmul.f32 %v3844, %v402
    %v3872 = vmul.f32 %v3843, %v403
    %v3873 = vmul.f32 %v3842, %v404
    %v3874 = vpack.c.bf16 %v3859, %v3858
    %v3875 = vpack.c.bf16 %v3861, %v3860
    %v3876 = vpack.c.bf16 %v3863, %v3862
    %v3877 = vpack.c.bf16 %v3865, %v3864
    %v3878 = vpack.c.bf16 %v3867, %v3866
    %v3879 = vpack.c.bf16 %v3869, %v3868
    %v3880 = vpack.c.bf16 %v3871, %v3870
    %v3881 = vpack.c.bf16 %v3873, %v3872
    %v3882 = vpack.c.bf16 %v3699, %v3698
    %v3883 = vpack.c.bf16 %v3701, %v3700
    %v3884 = vpack.c.bf16 %v3703, %v3702
    %v3885 = vpack.c.bf16 %v3705, %v3704
    %v3886 = vpack.c.bf16 %v3707, %v3706
    %v3887 = vpack.c.bf16 %v3709, %v3708
    %v3888 = vpack.c.bf16 %v3711, %v3710
    %v3889 = vpack.c.bf16 %v3713, %v3712
    %v3890 = vrot.slane %v3698, 1
    %v3891 = vrot.slane %v3699, 1
    %v3892 = vrot.slane %v3700, 1
    %v3893 = vrot.slane %v3701, 1
    %v3894 = vrot.slane %v3702, 1
    %v3895 = vrot.slane %v3703, 1
    %v3896 = vrot.slane %v3704, 1
    %v3897 = vrot.slane %v3705, 1
    %v3898 = vrot.slane %v3706, 1
    %v3899 = vrot.slane %v3707, 1
    %v3900 = vrot.slane %v3708, 1
    %v3901 = vrot.slane %v3709, 1
    %v3902 = vrot.slane %v3710, 1
    %v3903 = vrot.slane %v3711, 1
    %v3904 = vrot.slane %v3712, 1
    %v3905 = vrot.slane %v3713, 1
    %v3906 = vsel %vm951, %v3904, %v3905
    %v3907 = vsel %vm951, %v3903, %v3904
    %v3908 = vsel %vm951, %v3902, %v3903
    %v3909 = vsel %vm951, %v3901, %v3902
    %v3910 = vsel %vm951, %v3900, %v3901
    %v3911 = vsel %vm951, %v3899, %v3900
    %v3912 = vsel %vm951, %v3898, %v3899
    %v3913 = vsel %vm951, %v3897, %v3898
    %v3914 = vsel %vm951, %v3896, %v3897
    %v3915 = vsel %vm951, %v3895, %v3896
    %v3916 = vsel %vm951, %v3894, %v3895
    %v3917 = vsel %vm951, %v3893, %v3894
    %v3918 = vsel %vm951, %v3892, %v3893
    %v3919 = vsel %vm951, %v3891, %v3892
    %v3920 = vsel %vm951, %v3890, %v3891
    %v3921 = vsel %vm951, %v3905, %v3890
    %v3922 = vmul.f32 %v3920, %v421
    %v3923 = vmul.f32 %v3919, %v422
    %v3924 = vmul.f32 %v3918, %v423
    %v3925 = vmul.f32 %v3917, %v424
    %v3926 = vmul.f32 %v3916, %v425
    %v3927 = vmul.f32 %v3915, %v426
    %v3928 = vmul.f32 %v3914, %v427
    %v3929 = vmul.f32 %v3913, %v428
    %v3930 = vmul.f32 %v3912, %v429
    %v3931 = vmul.f32 %v3911, %v430
    %v3932 = vmul.f32 %v3910, %v431
    %v3933 = vmul.f32 %v3909, %v432
    %v3934 = vmul.f32 %v3908, %v433
    %v3935 = vmul.f32 %v3907, %v434
    %v3936 = vmul.f32 %v3906, %v435
    %v3937 = vmul.f32 %v3921, %v436
    %v3938 = vpack.c.bf16 %v3923, %v3922
    %v3939 = vpack.c.bf16 %v3925, %v3924
    %v3940 = vpack.c.bf16 %v3927, %v3926
    %v3941 = vpack.c.bf16 %v3929, %v3928
    %v3942 = vpack.c.bf16 %v3931, %v3930
    %v3943 = vpack.c.bf16 %v3933, %v3932
    %v3944 = vpack.c.bf16 %v3935, %v3934
    %v3945 = vpack.c.bf16 %v3937, %v3936
    %v3946 = vrot.slane %v3698, 2
    %v3947 = vrot.slane %v3699, 2
    %v3948 = vrot.slane %v3700, 2
    %v3949 = vrot.slane %v3701, 2
    %v3950 = vrot.slane %v3702, 2
    %v3951 = vrot.slane %v3703, 2
    %v3952 = vrot.slane %v3704, 2
    %v3953 = vrot.slane %v3705, 2
    %v3954 = vrot.slane %v3706, 2
    %v3955 = vrot.slane %v3707, 2
    %v3956 = vrot.slane %v3708, 2
    %v3957 = vrot.slane %v3709, 2
    %v3958 = vrot.slane %v3710, 2
    %v3959 = vrot.slane %v3711, 2
    %v3960 = vrot.slane %v3712, 2
    %v3961 = vrot.slane %v3713, 2
    %v3962 = vsel %vm1008, %v3960, %v3961
    %v3963 = vsel %vm1008, %v3959, %v3960
    %v3964 = vsel %vm1008, %v3958, %v3959
    %v3965 = vsel %vm1008, %v3957, %v3958
    %v3966 = vsel %vm1008, %v3956, %v3957
    %v3967 = vsel %vm1008, %v3955, %v3956
    %v3968 = vsel %vm1008, %v3954, %v3955
    %v3969 = vsel %vm1008, %v3953, %v3954
    %v3970 = vsel %vm1008, %v3952, %v3953
    %v3971 = vsel %vm1008, %v3951, %v3952
    %v3972 = vsel %vm1008, %v3950, %v3951
    %v3973 = vsel %vm1008, %v3949, %v3950
    %v3974 = vsel %vm1008, %v3948, %v3949
    %v3975 = vsel %vm1008, %v3947, %v3948
    %v3976 = vsel %vm1008, %v3946, %v3947
    %v3977 = vsel %vm1008, %v3961, %v3946
    %v3978 = vmul.f32 %v3976, %v453
    %v3979 = vmul.f32 %v3975, %v454
    %v3980 = vmul.f32 %v3974, %v455
    %v3981 = vmul.f32 %v3973, %v456
    %v3982 = vmul.f32 %v3972, %v457
    %v3983 = vmul.f32 %v3971, %v458
    %v3984 = vmul.f32 %v3970, %v459
    %v3985 = vmul.f32 %v3969, %v460
    %v3986 = vmul.f32 %v3968, %v461
    %v3987 = vmul.f32 %v3967, %v462
    %v3988 = vmul.f32 %v3966, %v463
    %v3989 = vmul.f32 %v3965, %v464
    %v3990 = vmul.f32 %v3964, %v465
    %v3991 = vmul.f32 %v3963, %v466
    %v3992 = vmul.f32 %v3962, %v467
    %v3993 = vmul.f32 %v3977, %v468
    %v3994 = vpack.c.bf16 %v3979, %v3978
    %v3995 = vpack.c.bf16 %v3981, %v3980
    %v3996 = vpack.c.bf16 %v3983, %v3982
    %v3997 = vpack.c.bf16 %v3985, %v3984
    %v3998 = vpack.c.bf16 %v3987, %v3986
    %v3999 = vpack.c.bf16 %v3989, %v3988
    %v4000 = vpack.c.bf16 %v3991, %v3990
    %v4001 = vpack.c.bf16 %v3993, %v3992
    %v4002 = vrot.slane %v3698, 3
    %v4003 = vrot.slane %v3699, 3
    %v4004 = vrot.slane %v3700, 3
    %v4005 = vrot.slane %v3701, 3
    %v4006 = vrot.slane %v3702, 3
    %v4007 = vrot.slane %v3703, 3
    %v4008 = vrot.slane %v3704, 3
    %v4009 = vrot.slane %v3705, 3
    %v4010 = vrot.slane %v3706, 3
    %v4011 = vrot.slane %v3707, 3
    %v4012 = vrot.slane %v3708, 3
    %v4013 = vrot.slane %v3709, 3
    %v4014 = vrot.slane %v3710, 3
    %v4015 = vrot.slane %v3711, 3
    %v4016 = vrot.slane %v3712, 3
    %v4017 = vrot.slane %v3713, 3
    %v4018 = vsel %vm1065, %v4016, %v4017
    %v4019 = vsel %vm1065, %v4015, %v4016
    %v4020 = vsel %vm1065, %v4014, %v4015
    %v4021 = vsel %vm1065, %v4013, %v4014
    %v4022 = vsel %vm1065, %v4012, %v4013
    %v4023 = vsel %vm1065, %v4011, %v4012
    %v4024 = vsel %vm1065, %v4010, %v4011
    %v4025 = vsel %vm1065, %v4009, %v4010
    %v4026 = vsel %vm1065, %v4008, %v4009
    %v4027 = vsel %vm1065, %v4007, %v4008
    %v4028 = vsel %vm1065, %v4006, %v4007
    %v4029 = vsel %vm1065, %v4005, %v4006
    %v4030 = vsel %vm1065, %v4004, %v4005
    %v4031 = vsel %vm1065, %v4003, %v4004
    %v4032 = vsel %vm1065, %v4002, %v4003
    %v4033 = vsel %vm1065, %v4017, %v4002
    %v4034 = vmul.f32 %v4032, %v485
    %v4035 = vmul.f32 %v4031, %v486
    %v4036 = vmul.f32 %v4030, %v487
    %v4037 = vmul.f32 %v4029, %v488
    %v4038 = vmul.f32 %v4028, %v489
    %v4039 = vmul.f32 %v4027, %v490
    %v4040 = vmul.f32 %v4026, %v491
    %v4041 = vmul.f32 %v4025, %v492
    %v4042 = vmul.f32 %v4024, %v493
    %v4043 = vmul.f32 %v4023, %v494
    %v4044 = vmul.f32 %v4022, %v495
    %v4045 = vmul.f32 %v4021, %v496
    %v4046 = vmul.f32 %v4020, %v497
    %v4047 = vmul.f32 %v4019, %v498
    %v4048 = vmul.f32 %v4018, %v499
    %v4049 = vmul.f32 %v4033, %v500
    %v4050 = vpack.c.bf16 %v4035, %v4034
    %v4051 = vpack.c.bf16 %v4037, %v4036
    %v4052 = vpack.c.bf16 %v4039, %v4038
    %v4053 = vpack.c.bf16 %v4041, %v4040
    %v4054 = vpack.c.bf16 %v4043, %v4042
    %v4055 = vpack.c.bf16 %v4045, %v4044
    %v4056 = vpack.c.bf16 %v4047, %v4046
    %v4057 = vpack.c.bf16 %v4049, %v4048
    %s4058 = scalar_lea.vmem [#allocation7], 896
    %v4059 = vld [vmem:[%s4058] sm:$0xf]
    %v4060 = vld [vmem:[%s4058 + $0x4] sm:$0xf]
    %v4061 = vld [vmem:[%s4058 + $0x8] sm:$0xf]
    %v4062 = vld [vmem:[%s4058 + $0xc] sm:$0xf]
    %v4063 = vld [vmem:[%s4058 + $0x10] sm:$0xf]
    %v4064 = vld [vmem:[%s4058 + $0x14] sm:$0xf]
    %v4065 = vld [vmem:[%s4058 + $0x18] sm:$0xf]
    %v4066 = vld [vmem:[%s4058 + $0x1c] sm:$0xf]
    %v4067 = vld [vmem:[%s4058 + $0x20] sm:$0xf]
    %v4068 = vld [vmem:[%s4058 + $0x24] sm:$0xf]
    %v4069 = vld [vmem:[%s4058 + $0x28] sm:$0xf]
    %v4070 = vld [vmem:[%s4058 + $0x2c] sm:$0xf]
    %v4071 = vld [vmem:[%s4058 + $0x30] sm:$0xf]
    %v4072 = vld [vmem:[%s4058 + $0x34] sm:$0xf]
    %v4073 = vld [vmem:[%s4058 + $0x38] sm:$0xf]
    %v4074 = vld [vmem:[%s4058 + $0x3c] sm:$0xf]
    %v4075 = vld [vmem:[%s4058 + $0x40] sm:$0xf]
    %v4076 = vld [vmem:[%s4058 + $0x44] sm:$0xf]
    %v4077 = vld [vmem:[%s4058 + $0x48] sm:$0xf]
    %v4078 = vld [vmem:[%s4058 + $0x4c] sm:$0xf]
    %v4079 = vld [vmem:[%s4058 + $0x50] sm:$0xf]
    %v4080 = vld [vmem:[%s4058 + $0x54] sm:$0xf]
    %v4081 = vld [vmem:[%s4058 + $0x58] sm:$0xf]
    %v4082 = vld [vmem:[%s4058 + $0x5c] sm:$0xf]
    %v4083 = vld [vmem:[%s4058 + $0x60] sm:$0xf]
    %v4084 = vld [vmem:[%s4058 + $0x64] sm:$0xf]
    %v4085 = vld [vmem:[%s4058 + $0x68] sm:$0xf]
    %v4086 = vld [vmem:[%s4058 + $0x6c] sm:$0xf]
    %v4087 = vld [vmem:[%s4058 + $0x70] sm:$0xf]
    %v4088 = vld [vmem:[%s4058 + $0x74] sm:$0xf]
    %v4089 = vld [vmem:[%s4058 + $0x78] sm:$0xf]
    %v4090 = vld [vmem:[%s4058 + $0x7c] sm:$0xf]
    %v4091 = vld [vmem:[%s4058 + $0x80] sm:$0xf]
    %v4092 = vld [vmem:[%s4058 + $0x84] sm:$0xf]
    %v4093 = vld [vmem:[%s4058 + $0x88] sm:$0xf]
    %v4094 = vld [vmem:[%s4058 + $0x8c] sm:$0xf]
    %v4095 = vld [vmem:[%s4058 + $0x90] sm:$0xf]
    %v4096 = vld [vmem:[%s4058 + $0x94] sm:$0xf]
    %v4097 = vld [vmem:[%s4058 + $0x98] sm:$0xf]
    %v4098 = vld [vmem:[%s4058 + $0x9c] sm:$0xf]
    %v4099 = vld [vmem:[%s4058 + $0xa0] sm:$0xf]
    %v4100 = vld [vmem:[%s4058 + $0xa4] sm:$0xf]
    %v4101 = vld [vmem:[%s4058 + $0xa8] sm:$0xf]
    %v4102 = vld [vmem:[%s4058 + $0xac] sm:$0xf]
    %v4103 = vld [vmem:[%s4058 + $0xb0] sm:$0xf]
    %v4104 = vld [vmem:[%s4058 + $0xb4] sm:$0xf]
    %v4105 = vld [vmem:[%s4058 + $0xb8] sm:$0xf]
    %v4106 = vld [vmem:[%s4058 + $0xbc] sm:$0xf]
    %v4107 = vld [vmem:[%s4058 + $0xc0] sm:$0xf]
    %v4108 = vld [vmem:[%s4058 + $0xc4] sm:$0xf]
    %v4109 = vld [vmem:[%s4058 + $0xc8] sm:$0xf]
    %v4110 = vld [vmem:[%s4058 + $0xcc] sm:$0xf]
    %v4111 = vld [vmem:[%s4058 + $0xd0] sm:$0xf]
    %v4112 = vld [vmem:[%s4058 + $0xd4] sm:$0xf]
    %v4113 = vld [vmem:[%s4058 + $0xd8] sm:$0xf]
    %v4114 = vld [vmem:[%s4058 + $0xdc] sm:$0xf]
    %v4115 = vld [vmem:[%s4058 + $0xe0] sm:$0xf]
    %v4116 = vld [vmem:[%s4058 + $0xe4] sm:$0xf]
    %v4117 = vld [vmem:[%s4058 + $0xe8] sm:$0xf]
    %v4118 = vld [vmem:[%s4058 + $0xec] sm:$0xf]
    %v4119 = vld [vmem:[%s4058 + $0xf0] sm:$0xf]
    %v4120 = vld [vmem:[%s4058 + $0xf4] sm:$0xf]
    %v4121 = vld [vmem:[%s4058 + $0xf8] sm:$0xf]
    %v4122 = vld [vmem:[%s4058 + $0xfc] sm:$0xf]
    %v4123 = vld [vmem:[%s4058 + $0x100] sm:$0xf]
    %v4124 = vld [vmem:[%s4058 + $0x104] sm:$0xf]
    %v4125 = vld [vmem:[%s4058 + $0x108] sm:$0xf]
    %v4126 = vld [vmem:[%s4058 + $0x10c] sm:$0xf]
    %v4127 = vld [vmem:[%s4058 + $0x110] sm:$0xf]
    %v4128 = vld [vmem:[%s4058 + $0x114] sm:$0xf]
    %v4129 = vld [vmem:[%s4058 + $0x118] sm:$0xf]
    %v4130 = vld [vmem:[%s4058 + $0x11c] sm:$0xf]
    %v4131 = vld [vmem:[%s4058 + $0x120] sm:$0xf]
    %v4132 = vld [vmem:[%s4058 + $0x124] sm:$0xf]
    %v4133 = vld [vmem:[%s4058 + $0x128] sm:$0xf]
    %v4134 = vld [vmem:[%s4058 + $0x12c] sm:$0xf]
    %v4135 = vld [vmem:[%s4058 + $0x130] sm:$0xf]
    %v4136 = vld [vmem:[%s4058 + $0x134] sm:$0xf]
    %v4137 = vld [vmem:[%s4058 + $0x138] sm:$0xf]
    %v4138 = vld [vmem:[%s4058 + $0x13c] sm:$0xf]
    %v4139 = vld [vmem:[%s4058 + $0x140] sm:$0xf]
    %v4140 = vld [vmem:[%s4058 + $0x144] sm:$0xf]
    %v4141 = vld [vmem:[%s4058 + $0x148] sm:$0xf]
    %v4142 = vld [vmem:[%s4058 + $0x14c] sm:$0xf]
    %v4143 = vld [vmem:[%s4058 + $0x150] sm:$0xf]
    %v4144 = vld [vmem:[%s4058 + $0x154] sm:$0xf]
    %v4145 = vld [vmem:[%s4058 + $0x158] sm:$0xf]
    %v4146 = vld [vmem:[%s4058 + $0x15c] sm:$0xf]
    %v4147 = vld [vmem:[%s4058 + $0x160] sm:$0xf]
    %v4148 = vld [vmem:[%s4058 + $0x164] sm:$0xf]
    %v4149 = vld [vmem:[%s4058 + $0x168] sm:$0xf]
    %v4150 = vld [vmem:[%s4058 + $0x16c] sm:$0xf]
    %v4151 = vld [vmem:[%s4058 + $0x170] sm:$0xf]
    %v4152 = vld [vmem:[%s4058 + $0x174] sm:$0xf]
    %v4153 = vld [vmem:[%s4058 + $0x178] sm:$0xf]
    %v4154 = vld [vmem:[%s4058 + $0x17c] sm:$0xf]
    %v4155 = vld [vmem:[%s4058 + $0x180] sm:$0xf]
    %v4156 = vld [vmem:[%s4058 + $0x184] sm:$0xf]
    %v4157 = vld [vmem:[%s4058 + $0x188] sm:$0xf]
    %v4158 = vld [vmem:[%s4058 + $0x18c] sm:$0xf]
    %v4159 = vld [vmem:[%s4058 + $0x190] sm:$0xf]
    %v4160 = vld [vmem:[%s4058 + $0x194] sm:$0xf]
    %v4161 = vld [vmem:[%s4058 + $0x198] sm:$0xf]
    %v4162 = vld [vmem:[%s4058 + $0x19c] sm:$0xf]
    %v4163 = vld [vmem:[%s4058 + $0x1a0] sm:$0xf]
    %v4164 = vld [vmem:[%s4058 + $0x1a4] sm:$0xf]
    %v4165 = vld [vmem:[%s4058 + $0x1a8] sm:$0xf]
    %v4166 = vld [vmem:[%s4058 + $0x1ac] sm:$0xf]
    %v4167 = vld [vmem:[%s4058 + $0x1b0] sm:$0xf]
    %v4168 = vld [vmem:[%s4058 + $0x1b4] sm:$0xf]
    %v4169 = vld [vmem:[%s4058 + $0x1b8] sm:$0xf]
    %v4170 = vld [vmem:[%s4058 + $0x1bc] sm:$0xf]
    %s4171 = scalar_lea.vmem %s5, 2
    %v4172 = vld [vmem:[%s4171] sm:$0x1]
    %v4174 = vlaneseq
    %v4175 = vshrl.u32 %v4174, 7
    %v4176 = vsub.s32 0, %v4175
    %v4177 = vrot.slane %v4172, %v4176
    %v4291 = vunpack.c.l.b16 %v4059
    %v4292 = vunpack.c.l.b16 %v4060
    %v4293 = vunpack.c.l.b16 %v4061
    %v4294 = vunpack.c.l.b16 %v4062
    %v4295 = vunpack.c.l.b16 %v4063
    %v4296 = vunpack.c.l.b16 %v4064
    %v4297 = vunpack.c.l.b16 %v4065
    %v4298 = vunpack.c.l.b16 %v4066
    %v4299 = vunpack.c.l.b16 %v4067
    %v4300 = vunpack.c.l.b16 %v4068
    %v4301 = vunpack.c.l.b16 %v4069
    %v4302 = vunpack.c.l.b16 %v4070
    %v4303 = vunpack.c.l.b16 %v4071
    %v4304 = vunpack.c.l.b16 %v4072
    %v4305 = vunpack.c.l.b16 %v4073
    %v4306 = vunpack.c.l.b16 %v4074
    %v4307 = vunpack.c.l.b16 %v4075
    %v4308 = vunpack.c.l.b16 %v4076
    %v4309 = vunpack.c.l.b16 %v4077
    %v4310 = vunpack.c.l.b16 %v4078
    %v4311 = vunpack.c.l.b16 %v4079
    %v4312 = vunpack.c.l.b16 %v4080
    %v4313 = vunpack.c.l.b16 %v4081
    %v4314 = vunpack.c.l.b16 %v4082
    %v4315 = vunpack.c.l.b16 %v4083
    %v4316 = vunpack.c.l.b16 %v4084
    %v4317 = vunpack.c.l.b16 %v4085
    %v4318 = vunpack.c.l.b16 %v4086
    %v4319 = vunpack.c.l.b16 %v4087
    %v4320 = vunpack.c.l.b16 %v4088
    %v4321 = vunpack.c.l.b16 %v4089
    %v4322 = vunpack.c.l.b16 %v4090
    %v4323 = vunpack.c.l.b16 %v4091
    %v4324 = vunpack.c.l.b16 %v4092
    %v4325 = vunpack.c.l.b16 %v4093
    %v4326 = vunpack.c.l.b16 %v4094
    %v4327 = vunpack.c.l.b16 %v4095
    %v4328 = vunpack.c.l.b16 %v4096
    %v4329 = vunpack.c.l.b16 %v4097
    %v4330 = vunpack.c.l.b16 %v4098
    %v4331 = vunpack.c.l.b16 %v4099
    %v4332 = vunpack.c.l.b16 %v4100
    %v4333 = vunpack.c.l.b16 %v4101
    %v4334 = vunpack.c.l.b16 %v4102
    %v4335 = vunpack.c.l.b16 %v4103
    %v4336 = vunpack.c.l.b16 %v4104
    %v4337 = vunpack.c.l.b16 %v4105
    %v4338 = vunpack.c.l.b16 %v4106
    %v4339 = vunpack.c.l.b16 %v4107
    %v4340 = vunpack.c.l.b16 %v4108
    %v4341 = vunpack.c.l.b16 %v4109
    %v4342 = vunpack.c.l.b16 %v4110
    %v4343 = vunpack.c.l.b16 %v4111
    %v4344 = vunpack.c.l.b16 %v4112
    %v4345 = vunpack.c.l.b16 %v4113
    %v4346 = vunpack.c.l.b16 %v4114
    %v4347 = vunpack.c.l.b16 %v4115
    %v4348 = vunpack.c.l.b16 %v4116
    %v4349 = vunpack.c.l.b16 %v4117
    %v4350 = vunpack.c.l.b16 %v4118
    %v4351 = vunpack.c.l.b16 %v4119
    %v4352 = vunpack.c.l.b16 %v4120
    %v4353 = vunpack.c.l.b16 %v4121
    %v4354 = vunpack.c.l.b16 %v4122
    %v4355 = vunpack.c.l.b16 %v4123
    %v4356 = vunpack.c.l.b16 %v4124
    %v4357 = vunpack.c.l.b16 %v4125
    %v4358 = vunpack.c.l.b16 %v4126
    %v4359 = vunpack.c.l.b16 %v4127
    %v4360 = vunpack.c.l.b16 %v4128
    %v4361 = vunpack.c.l.b16 %v4129
    %v4362 = vunpack.c.l.b16 %v4130
    %v4363 = vunpack.c.l.b16 %v4131
    %v4364 = vunpack.c.l.b16 %v4132
    %v4365 = vunpack.c.l.b16 %v4133
    %v4366 = vunpack.c.l.b16 %v4134
    %v4367 = vunpack.c.l.b16 %v4135
    %v4368 = vunpack.c.l.b16 %v4136
    %v4369 = vunpack.c.l.b16 %v4137
    %v4370 = vunpack.c.l.b16 %v4138
    %v4371 = vunpack.c.l.b16 %v4139
    %v4372 = vunpack.c.l.b16 %v4140
    %v4373 = vunpack.c.l.b16 %v4141
    %v4374 = vunpack.c.l.b16 %v4142
    %v4375 = vunpack.c.l.b16 %v4143
    %v4376 = vunpack.c.l.b16 %v4144
    %v4377 = vunpack.c.l.b16 %v4145
    %v4378 = vunpack.c.l.b16 %v4146
    %v4379 = vunpack.c.l.b16 %v4147
    %v4380 = vunpack.c.l.b16 %v4148
    %v4381 = vunpack.c.l.b16 %v4149
    %v4382 = vunpack.c.l.b16 %v4150
    %v4383 = vunpack.c.l.b16 %v4151
    %v4384 = vunpack.c.l.b16 %v4152
    %v4385 = vunpack.c.l.b16 %v4153
    %v4386 = vunpack.c.l.b16 %v4154
    %v4387 = vunpack.c.l.b16 %v4155
    %v4388 = vunpack.c.l.b16 %v4156
    %v4389 = vunpack.c.l.b16 %v4157
    %v4390 = vunpack.c.l.b16 %v4158
    %v4391 = vunpack.c.l.b16 %v4159
    %v4392 = vunpack.c.l.b16 %v4160
    %v4393 = vunpack.c.l.b16 %v4161
    %v4394 = vunpack.c.l.b16 %v4162
    %v4395 = vunpack.c.l.b16 %v4163
    %v4396 = vunpack.c.l.b16 %v4164
    %v4397 = vunpack.c.l.b16 %v4165
    %v4398 = vunpack.c.l.b16 %v4166
    %v4399 = vunpack.c.l.b16 %v4167
    %v4400 = vunpack.c.l.b16 %v4168
    %v4401 = vunpack.c.l.b16 %v4169
    %v4402 = vunpack.c.l.b16 %v4170
    %v4403 = vpack.c.b16 %v4292, %v4291
    %v4404 = vpack.c.b16 %v4294, %v4293
    %v4405 = vpack.c.b16 %v4296, %v4295
    %v4406 = vpack.c.b16 %v4298, %v4297
    %v4407 = vpack.c.b16 %v4300, %v4299
    %v4408 = vpack.c.b16 %v4302, %v4301
    %v4409 = vpack.c.b16 %v4304, %v4303
    %v4410 = vpack.c.b16 %v4306, %v4305
    %v4411 = vpack.c.b16 %v4308, %v4307
    %v4412 = vpack.c.b16 %v4310, %v4309
    %v4413 = vpack.c.b16 %v4312, %v4311
    %v4414 = vpack.c.b16 %v4314, %v4313
    %v4415 = vpack.c.b16 %v4316, %v4315
    %v4416 = vpack.c.b16 %v4318, %v4317
    %v4417 = vpack.c.b16 %v4320, %v4319
    %v4418 = vpack.c.b16 %v4322, %v4321
    %v4419 = vpack.c.b16 %v4324, %v4323
    %v4420 = vpack.c.b16 %v4326, %v4325
    %v4421 = vpack.c.b16 %v4328, %v4327
    %v4422 = vpack.c.b16 %v4330, %v4329
    %v4423 = vpack.c.b16 %v4332, %v4331
    %v4424 = vpack.c.b16 %v4334, %v4333
    %v4425 = vpack.c.b16 %v4336, %v4335
    %v4426 = vpack.c.b16 %v4338, %v4337
    %v4427 = vpack.c.b16 %v4340, %v4339
    %v4428 = vpack.c.b16 %v4342, %v4341
    %v4429 = vpack.c.b16 %v4344, %v4343
    %v4430 = vpack.c.b16 %v4346, %v4345
    %v4431 = vpack.c.b16 %v4348, %v4347
    %v4432 = vpack.c.b16 %v4350, %v4349
    %v4433 = vpack.c.b16 %v4352, %v4351
    %v4434 = vpack.c.b16 %v4354, %v4353
    %v4435 = vpack.c.b16 %v4356, %v4355
    %v4436 = vpack.c.b16 %v4358, %v4357
    %v4437 = vpack.c.b16 %v4360, %v4359
    %v4438 = vpack.c.b16 %v4362, %v4361
    %v4439 = vpack.c.b16 %v4364, %v4363
    %v4440 = vpack.c.b16 %v4366, %v4365
    %v4441 = vpack.c.b16 %v4368, %v4367
    %v4442 = vpack.c.b16 %v4370, %v4369
    %v4443 = vpack.c.b16 %v4372, %v4371
    %v4444 = vpack.c.b16 %v4374, %v4373
    %v4445 = vpack.c.b16 %v4376, %v4375
    %v4446 = vpack.c.b16 %v4378, %v4377
    %v4447 = vpack.c.b16 %v4380, %v4379
    %v4448 = vpack.c.b16 %v4382, %v4381
    %v4449 = vpack.c.b16 %v4384, %v4383
    %v4450 = vpack.c.b16 %v4386, %v4385
    %v4451 = vpack.c.b16 %v4388, %v4387
    %v4452 = vpack.c.b16 %v4390, %v4389
    %v4453 = vpack.c.b16 %v4392, %v4391
    %v4454 = vpack.c.b16 %v4394, %v4393
    %v4455 = vpack.c.b16 %v4396, %v4395
    %v4456 = vpack.c.b16 %v4398, %v4397
    %v4457 = vpack.c.b16 %v4400, %v4399
    %v4458 = vpack.c.b16 %v4402, %v4401
    %4515 = vmatprep.subr.bf16.mxu0 0
    %4516 = vmatpush1.bf16.msra.mxu0 %v4403
    %4517 = vmatprep.subr.bf16.mxu0 0
    %4518 = vmatpush1.bf16.msra.mxu0 %v4404
    %4519 = vmatprep.subr.bf16.mxu0 0
    %4520 = vmatpush1.bf16.msra.mxu0 %v4405
    %4521 = vmatprep.subr.bf16.mxu0 0
    %4522 = vmatpush1.bf16.msra.mxu0 %v4406
    %4523 = vmatprep.subr.bf16.mxu0 0
    %4524 = vmatpush1.bf16.msra.mxu0 %v4407
    %4525 = vmatprep.subr.bf16.mxu0 0
    %4526 = vmatpush1.bf16.msra.mxu0 %v4408
    %4527 = vmatprep.subr.bf16.mxu0 0
    %4528 = vmatpush1.bf16.msra.mxu0 %v4409
    %4529 = vmatprep.subr.bf16.mxu0 0
    %4530 = vmatpush1.bf16.msra.mxu0 %v4410
    %4531 = vmatprep.subr.bf16.mxu0 0
    %4532 = vmatpush1.bf16.msra.mxu0 %v4411
    %4533 = vmatprep.subr.bf16.mxu0 0
    %4534 = vmatpush1.bf16.msra.mxu0 %v4412
    %4535 = vmatprep.subr.bf16.mxu0 0
    %4536 = vmatpush1.bf16.msra.mxu0 %v4413
    %4537 = vmatprep.subr.bf16.mxu0 0
    %4538 = vmatpush1.bf16.msra.mxu0 %v4414
    %4539 = vmatprep.subr.bf16.mxu0 0
    %4540 = vmatpush1.bf16.msra.mxu0 %v4415
    %4541 = vmatprep.subr.bf16.mxu0 0
    %4542 = vmatpush1.bf16.msra.mxu0 %v4416
    %4543 = vmatprep.subr.bf16.mxu0 0
    %4544 = vmatpush1.bf16.msra.mxu0 %v4417
    %4545 = vmatprep.subr.bf16.mxu0 0
    %4546 = vmatpush1.bf16.msra.mxu0 %v4418
    %4547 = vmatprep.mubr.bf16.mxu0 %v3818
    %4548 = vmatmul.mubr.bf16.gmra.mrb[0].mxu0 %v3762
    %v4549 = vpop.f32.mrb[0].mxu0
    %v4550 = vadd.f32 %v4177, %v4549
    %v4551 = vpop.f32.mrb[0].mxu0
    %v4552 = vpop.f32.mrb[0].mxu0
    %v4553 = vadd.f32 %v4177, %v4552
    %v4554 = vpop.f32.mrb[0].mxu0
    %4555 = vmatprep.mubr.bf16.mxu0 %v3819
    %4556 = vmatmul.mubr.bf16.gmra.mrb[0].mxu0 %v3763
    %v4557 = vpop.f32.mrb[0].mxu0
    %v4558 = vadd.f32 %v4177, %v4557
    %v4559 = vpop.f32.mrb[0].mxu0
    %v4560 = vpop.f32.mrb[0].mxu0
    %v4561 = vadd.f32 %v4177, %v4560
    %v4562 = vpop.f32.mrb[0].mxu0
    %4563 = vmatprep.mubr.bf16.mxu0 %v3820
    %4564 = vmatmul.mubr.bf16.gmra.mrb[0].mxu0 %v3764
    %v4565 = vpop.f32.mrb[0].mxu0
    %v4566 = vadd.f32 %v4177, %v4565
    %v4567 = vpop.f32.mrb[0].mxu0
    %v4568 = vpop.f32.mrb[0].mxu0
    %v4569 = vadd.f32 %v4177, %v4568
    %v4570 = vpop.f32.mrb[0].mxu0
    %4571 = vmatprep.mubr.bf16.mxu0 %v3821
    %4572 = vmatmul.mubr.bf16.gmra.mrb[0].mxu0 %v3765
    %v4573 = vpop.f32.mrb[0].mxu0
    %v4574 = vadd.f32 %v4177, %v4573
    %v4575 = vpop.f32.mrb[0].mxu0
    %v4576 = vpop.f32.mrb[0].mxu0
    %v4577 = vadd.f32 %v4177, %v4576
    %v4578 = vpop.f32.mrb[0].mxu0
    %4579 = vmatprep.mubr.bf16.mxu0 %v3822
    %4580 = vmatmul.mubr.bf16.gmra.mrb[0].mxu0 %v3766
    %v4581 = vpop.f32.mrb[0].mxu0
    %v4582 = vadd.f32 %v4177, %v4581
    %v4583 = vpop.f32.mrb[0].mxu0
    %v4584 = vpop.f32.mrb[0].mxu0
    %v4585 = vadd.f32 %v4177, %v4584
    %v4586 = vpop.f32.mrb[0].mxu0
    %4587 = vmatprep.mubr.bf16.mxu0 %v3823
    %4588 = vmatmul.mubr.bf16.gmra.mrb[0].mxu0 %v3767
    %v4589 = vpop.f32.mrb[0].mxu0
    %v4590 = vadd.f32 %v4177, %v4589
    %v4591 = vpop.f32.mrb[0].mxu0
    %v4592 = vpop.f32.mrb[0].mxu0
    %v4593 = vadd.f32 %v4177, %v4592
    %v4594 = vpop.f32.mrb[0].mxu0
    %4595 = vmatprep.mubr.bf16.mxu0 %v3824
    %4596 = vmatmul.mubr.bf16.gmra.mrb[0].mxu0 %v3768
    %v4597 = vpop.f32.mrb[0].mxu0
    %v4598 = vadd.f32 %v4177, %v4597
    %v4599 = vpop.f32.mrb[0].mxu0
    %v4600 = vpop.f32.mrb[0].mxu0
    %v4601 = vadd.f32 %v4177, %v4600
    %v4602 = vpop.f32.mrb[0].mxu0
    %4603 = vmatprep.mubr.bf16.mxu0 %v3825
    %4604 = vmatmul.mubr.bf16.gmra.mrb[0].mxu0 %v3769
    %v4605 = vpop.f32.mrb[0].mxu0
    %v4606 = vadd.f32 %v4177, %v4605
    %v4607 = vpop.f32.mrb[0].mxu0
    %v4608 = vpop.f32.mrb[0].mxu0
    %v4609 = vadd.f32 %v4177, %v4608
    %v4610 = vpop.f32.mrb[0].mxu0
    %4611 = vdwg.mxu0
    %4612 = vmatprep.subr.bf16.mxu0 0
    %4613 = vmatpush1.bf16.msra.mxu0 %v4419
    %4614 = vmatprep.subr.bf16.mxu0 0
    %4615 = vmatpush1.bf16.msra.mxu0 %v4420
    %4616 = vmatprep.subr.bf16.mxu0 0
    %4617 = vmatpush1.bf16.msra.mxu0 %v4421
    %4618 = vmatprep.subr.bf16.mxu0 0
    %4619 = vmatpush1.bf16.msra.mxu0 %v4422
    %4620 = vmatprep.subr.bf16.mxu0 0
    %4621 = vmatpush1.bf16.msra.mxu0 %v4423
    %4622 = vmatprep.subr.bf16.mxu0 0
    %4623 = vmatpush1.bf16.msra.mxu0 %v4424
    %4624 = vmatprep.subr.bf16.mxu0 0
    %4625 = vmatpush1.bf16.msra.mxu0 %v4425
    %4626 = vmatprep.subr.bf16.mxu0 0
    %4627 = vmatpush1.bf16.msra.mxu0 %v4426
    %4628 = vmatprep.subr.bf16.mxu0 0
    %4629 = vmatpush1.bf16.msra.mxu0 %v4427
    %4630 = vmatprep.subr.bf16.mxu0 0
    %4631 = vmatpush1.bf16.msra.mxu0 %v4428
    %4632 = vmatprep.subr.bf16.mxu0 0
    %4633 = vmatpush1.bf16.msra.mxu0 %v4429
    %4634 = vmatprep.subr.bf16.mxu0 0
    %4635 = vmatpush1.bf16.msra.mxu0 %v4430
    %4636 = vmatprep.subr.bf16.mxu0 0
    %4637 = vmatpush1.bf16.msra.mxu0 %v4431
    %4638 = vmatprep.subr.bf16.mxu0 0
    %4639 = vmatpush1.bf16.msra.mxu0 %v4432
    %4640 = vmatprep.subr.bf16.mxu0 0
    %4641 = vmatpush1.bf16.msra.mxu0 %v4433
    %4642 = vmatprep.subr.bf16.mxu0 0
    %4643 = vmatpush1.bf16.msra.mxu0 %v4434
    %4644 = vmatprep.mubr.bf16.mxu0 %v3882
    %4645 = vmatmul.mubr.bf16.gmra.mrb[0].mxu0 %v3874
    %v4646 = vpop.f32.mrb[0].mxu0
    %v4647 = vadd.f32 %v4550, %v4646
    %v4648 = vpop.f32.mrb[0].mxu0
    %v4649 = vpop.f32.mrb[0].mxu0
    %v4650 = vadd.f32 %v4553, %v4649
    %v4651 = vpop.f32.mrb[0].mxu0
    %4652 = vmatprep.mubr.bf16.mxu0 %v3883
    %4653 = vmatmul.mubr.bf16.gmra.mrb[0].mxu0 %v3875
    %v4654 = vpop.f32.mrb[0].mxu0
    %v4655 = vadd.f32 %v4558, %v4654
    %v4656 = vpop.f32.mrb[0].mxu0
    %v4657 = vpop.f32.mrb[0].mxu0
    %v4658 = vadd.f32 %v4561, %v4657
    %v4659 = vpop.f32.mrb[0].mxu0
    %4660 = vmatprep.mubr.bf16.mxu0 %v3884
    %4661 = vmatmul.mubr.bf16.gmra.mrb[0].mxu0 %v3876
    %v4662 = vpop.f32.mrb[0].mxu0
    %v4663 = vadd.f32 %v4566, %v4662
    %v4664 = vpop.f32.mrb[0].mxu0
    %v4665 = vpop.f32.mrb[0].mxu0
    %v4666 = vadd.f32 %v4569, %v4665
    %v4667 = vpop.f32.mrb[0].mxu0
    %4668 = vmatprep.mubr.bf16.mxu0 %v3885
    %4669 = vmatmul.mubr.bf16.gmra.mrb[0].mxu0 %v3877
    %v4670 = vpop.f32.mrb[0].mxu0
    %v4671 = vadd.f32 %v4574, %v4670
    %v4672 = vpop.f32.mrb[0].mxu0
    %v4673 = vpop.f32.mrb[0].mxu0
    %v4674 = vadd.f32 %v4577, %v4673
    %v4675 = vpop.f32.mrb[0].mxu0
    %4676 = vmatprep.mubr.bf16.mxu0 %v3886
    %4677 = vmatmul.mubr.bf16.gmra.mrb[0].mxu0 %v3878
    %v4678 = vpop.f32.mrb[0].mxu0
    %v4679 = vadd.f32 %v4582, %v4678
    %v4680 = vpop.f32.mrb[0].mxu0
    %v4681 = vpop.f32.mrb[0].mxu0
    %v4682 = vadd.f32 %v4585, %v4681
    %v4683 = vpop.f32.mrb[0].mxu0
    %4684 = vmatprep.mubr.bf16.mxu0 %v3887
    %4685 = vmatmul.mubr.bf16.gmra.mrb[0].mxu0 %v3879
    %v4686 = vpop.f32.mrb[0].mxu0
    %v4687 = vadd.f32 %v4590, %v4686
    %v4688 = vpop.f32.mrb[0].mxu0
    %v4689 = vpop.f32.mrb[0].mxu0
    %v4690 = vadd.f32 %v4593, %v4689
    %v4691 = vpop.f32.mrb[0].mxu0
    %4692 = vmatprep.mubr.bf16.mxu0 %v3888
    %4693 = vmatmul.mubr.bf16.gmra.mrb[0].mxu0 %v3880
    %v4694 = vpop.f32.mrb[0].mxu0
    %v4695 = vadd.f32 %v4598, %v4694
    %v4696 = vpop.f32.mrb[0].mxu0
    %v4697 = vpop.f32.mrb[0].mxu0
    %v4698 = vadd.f32 %v4601, %v4697
    %v4699 = vpop.f32.mrb[0].mxu0
    %4700 = vmatprep.mubr.bf16.mxu0 %v3889
    %4701 = vmatmul.mubr.bf16.gmra.mrb[0].mxu0 %v3881
    %v4702 = vpop.f32.mrb[0].mxu0
    %v4703 = vadd.f32 %v4606, %v4702
    %v4704 = vpop.f32.mrb[0].mxu0
    %v4705 = vpop.f32.mrb[0].mxu0
    %v4706 = vadd.f32 %v4609, %v4705
    %v4707 = vpop.f32.mrb[0].mxu0
    %4708 = vdwg.mxu0
    %4709 = vmatprep.subr.bf16.mxu0 0
    %4710 = vmatpush1.bf16.msra.mxu0 %v4435
    %4711 = vmatprep.subr.bf16.mxu0 0
    %4712 = vmatpush1.bf16.msra.mxu0 %v4436
    %4713 = vmatprep.subr.bf16.mxu0 0
    %4714 = vmatpush1.bf16.msra.mxu0 %v4437
    %4715 = vmatprep.subr.bf16.mxu0 0
    %4716 = vmatpush1.bf16.msra.mxu0 %v4438
    %4717 = vmatprep.subr.bf16.mxu0 0
    %4718 = vmatpush1.bf16.msra.mxu0 %v4439
    %4719 = vmatprep.subr.bf16.mxu0 0
    %4720 = vmatpush1.bf16.msra.mxu0 %v4440
    %4721 = vmatprep.subr.bf16.mxu0 0
    %4722 = vmatpush1.bf16.msra.mxu0 %v4441
    %4723 = vmatprep.subr.bf16.mxu0 0
    %4724 = vmatpush1.bf16.msra.mxu0 %v4442
    %4725 = vmatprep.subr.bf16.mxu0 0
    %4726 = vmatpush1.bf16.msra.mxu0 %v4443
    %4727 = vmatprep.subr.bf16.mxu0 0
    %4728 = vmatpush1.bf16.msra.mxu0 %v4444
    %4729 = vmatprep.subr.bf16.mxu0 0
    %4730 = vmatpush1.bf16.msra.mxu0 %v4445
    %4731 = vmatprep.subr.bf16.mxu0 0
    %4732 = vmatpush1.bf16.msra.mxu0 %v4446
    %4733 = vmatprep.subr.bf16.mxu0 0
    %4734 = vmatpush1.bf16.msra.mxu0 %v4447
    %4735 = vmatprep.subr.bf16.mxu0 0
    %4736 = vmatpush1.bf16.msra.mxu0 %v4448
    %4737 = vmatprep.subr.bf16.mxu0 0
    %4738 = vmatpush1.bf16.msra.mxu0 %v4449
    %4739 = vmatprep.subr.bf16.mxu0 0
    %4740 = vmatpush1.bf16.msra.mxu0 %v4450
    %4741 = vmatprep.mubr.bf16.mxu0 %v3994
    %4742 = vmatmul.mubr.bf16.gmra.mrb[0].mxu0 %v3938
    %v4743 = vpop.f32.mrb[0].mxu0
    %v4744 = vadd.f32 %v4647, %v4743
    %v4745 = vpop.f32.mrb[0].mxu0
    %v4746 = vpop.f32.mrb[0].mxu0
    %v4747 = vadd.f32 %v4650, %v4746
    %v4748 = vpop.f32.mrb[0].mxu0
    %4749 = vmatprep.mubr.bf16.mxu0 %v3995
    %4750 = vmatmul.mubr.bf16.gmra.mrb[0].mxu0 %v3939
    %v4751 = vpop.f32.mrb[0].mxu0
    %v4752 = vadd.f32 %v4655, %v4751
    %v4753 = vpop.f32.mrb[0].mxu0
    %v4754 = vpop.f32.mrb[0].mxu0
    %v4755 = vadd.f32 %v4658, %v4754
    %v4756 = vpop.f32.mrb[0].mxu0
    %4757 = vmatprep.mubr.bf16.mxu0 %v3996
    %4758 = vmatmul.mubr.bf16.gmra.mrb[0].mxu0 %v3940
    %v4759 = vpop.f32.mrb[0].mxu0
    %v4760 = vadd.f32 %v4663, %v4759
    %v4761 = vpop.f32.mrb[0].mxu0
    %v4762 = vpop.f32.mrb[0].mxu0
    %v4763 = vadd.f32 %v4666, %v4762
    %v4764 = vpop.f32.mrb[0].mxu0
    %4765 = vmatprep.mubr.bf16.mxu0 %v3997
    %4766 = vmatmul.mubr.bf16.gmra.mrb[0].mxu0 %v3941
    %v4767 = vpop.f32.mrb[0].mxu0
    %v4768 = vadd.f32 %v4671, %v4767
    %v4769 = vpop.f32.mrb[0].mxu0
    %v4770 = vpop.f32.mrb[0].mxu0
    %v4771 = vadd.f32 %v4674, %v4770
    %v4772 = vpop.f32.mrb[0].mxu0
    %4773 = vmatprep.mubr.bf16.mxu0 %v3998
    %4774 = vmatmul.mubr.bf16.gmra.mrb[0].mxu0 %v3942
    %v4775 = vpop.f32.mrb[0].mxu0
    %v4776 = vadd.f32 %v4679, %v4775
    %v4777 = vpop.f32.mrb[0].mxu0
    %v4778 = vpop.f32.mrb[0].mxu0
    %v4779 = vadd.f32 %v4682, %v4778
    %v4780 = vpop.f32.mrb[0].mxu0
    %4781 = vmatprep.mubr.bf16.mxu0 %v3999
    %4782 = vmatmul.mubr.bf16.gmra.mrb[0].mxu0 %v3943
    %v4783 = vpop.f32.mrb[0].mxu0
    %v4784 = vadd.f32 %v4687, %v4783
    %v4785 = vpop.f32.mrb[0].mxu0
    %v4786 = vpop.f32.mrb[0].mxu0
    %v4787 = vadd.f32 %v4690, %v4786
    %v4788 = vpop.f32.mrb[0].mxu0
    %4789 = vmatprep.mubr.bf16.mxu0 %v4000
    %4790 = vmatmul.mubr.bf16.gmra.mrb[0].mxu0 %v3944
    %v4791 = vpop.f32.mrb[0].mxu0
    %v4792 = vadd.f32 %v4695, %v4791
    %v4793 = vpop.f32.mrb[0].mxu0
    %v4794 = vpop.f32.mrb[0].mxu0
    %v4795 = vadd.f32 %v4698, %v4794
    %v4796 = vpop.f32.mrb[0].mxu0
    %4797 = vmatprep.mubr.bf16.mxu0 %v4001
    %4798 = vmatmul.mubr.bf16.gmra.mrb[0].mxu0 %v3945
    %v4799 = vpop.f32.mrb[0].mxu0
    %v4800 = vadd.f32 %v4703, %v4799
    %v4801 = vpop.f32.mrb[0].mxu0
    %v4802 = vpop.f32.mrb[0].mxu0
    %v4803 = vadd.f32 %v4706, %v4802
    %v4804 = vpop.f32.mrb[0].mxu0
    %4805 = vdwg.mxu0
    %4806 = vmatprep.subr.bf16.mxu0 0
    %4807 = vmatpush1.bf16.msra.mxu0 %v4451
    %4808 = vmatprep.subr.bf16.mxu0 0
    %4809 = vmatpush1.bf16.msra.mxu0 %v4452
    %4810 = vmatprep.subr.bf16.mxu0 0
    %4811 = vmatpush1.bf16.msra.mxu0 %v4453
    %4812 = vmatprep.subr.bf16.mxu0 0
    %4813 = vmatpush1.bf16.msra.mxu0 %v4454
    %4814 = vmatprep.subr.bf16.mxu0 0
    %4815 = vmatpush1.bf16.msra.mxu0 %v4455
    %4816 = vmatprep.subr.bf16.mxu0 0
    %4817 = vmatpush1.bf16.msra.mxu0 %v4456
    %4818 = vmatprep.subr.bf16.mxu0 0
    %4819 = vmatpush1.bf16.msra.mxu0 %v4457
    %4820 = vmatprep.subr.bf16.mxu0 0
    %4821 = vmatpush1.bf16.msra.mxu0 %v4458
    %4822 = vmatprep.subr.bf16.mxu0 0
    %4823 = vmatpush1.bf16.msra.mxu0 0
    %4824 = vmatprep.subr.bf16.mxu0 0
    %4825 = vmatpush1.bf16.msra.mxu0 0
    %4826 = vmatprep.subr.bf16.mxu0 0
    %4827 = vmatpush1.bf16.msra.mxu0 0
    %4828 = vmatprep.subr.bf16.mxu0 0
    %4829 = vmatpush1.bf16.msra.mxu0 0
    %4830 = vmatprep.subr.bf16.mxu0 0
    %4831 = vmatpush1.bf16.msra.mxu0 0
    %4832 = vmatprep.subr.bf16.mxu0 0
    %4833 = vmatpush1.bf16.msra.mxu0 0
    %4834 = vmatprep.subr.bf16.mxu0 0
    %4835 = vmatpush1.bf16.msra.mxu0 0
    %4836 = vmatprep.subr.bf16.mxu0 0
    %4837 = vmatpush1.bf16.msra.mxu0 0
    %4838 = vmatprep.mubr.bf16.mxu0 0
    %4839 = vmatmul.mubr.bf16.gmra.mrb[0].mxu0 %v4050
    %v4840 = vpop.f32.mrb[0].mxu0
    %v4841 = vadd.f32 %v4744, %v4840
    %v4842 = vpop.f32.mrb[0].mxu0
    %v4843 = vpop.f32.mrb[0].mxu0
    %v4844 = vadd.f32 %v4747, %v4843
    %v4845 = vpop.f32.mrb[0].mxu0
    %4846 = vmatprep.mubr.bf16.mxu0 0
    %4847 = vmatmul.mubr.bf16.gmra.mrb[0].mxu0 %v4051
    %v4848 = vpop.f32.mrb[0].mxu0
    %v4849 = vadd.f32 %v4752, %v4848
    %v4850 = vpop.f32.mrb[0].mxu0
    %v4851 = vpop.f32.mrb[0].mxu0
    %v4852 = vadd.f32 %v4755, %v4851
    %v4853 = vpop.f32.mrb[0].mxu0
    %4854 = vmatprep.mubr.bf16.mxu0 0
    %4855 = vmatmul.mubr.bf16.gmra.mrb[0].mxu0 %v4052
    %v4856 = vpop.f32.mrb[0].mxu0
    %v4857 = vadd.f32 %v4760, %v4856
    %v4858 = vpop.f32.mrb[0].mxu0
    %v4859 = vpop.f32.mrb[0].mxu0
    %v4860 = vadd.f32 %v4763, %v4859
    %v4861 = vpop.f32.mrb[0].mxu0
    %4862 = vmatprep.mubr.bf16.mxu0 0
    %4863 = vmatmul.mubr.bf16.gmra.mrb[0].mxu0 %v4053
    %v4864 = vpop.f32.mrb[0].mxu0
    %v4865 = vadd.f32 %v4768, %v4864
    %v4866 = vpop.f32.mrb[0].mxu0
    %v4867 = vpop.f32.mrb[0].mxu0
    %v4868 = vadd.f32 %v4771, %v4867
    %v4869 = vpop.f32.mrb[0].mxu0
    %4870 = vmatprep.mubr.bf16.mxu0 0
    %4871 = vmatmul.mubr.bf16.gmra.mrb[0].mxu0 %v4054
    %v4872 = vpop.f32.mrb[0].mxu0
    %v4873 = vadd.f32 %v4776, %v4872
    %v4874 = vpop.f32.mrb[0].mxu0
    %v4875 = vpop.f32.mrb[0].mxu0
    %v4876 = vadd.f32 %v4779, %v4875
    %v4877 = vpop.f32.mrb[0].mxu0
    %4878 = vmatprep.mubr.bf16.mxu0 0
    %4879 = vmatmul.mubr.bf16.gmra.mrb[0].mxu0 %v4055
    %v4880 = vpop.f32.mrb[0].mxu0
    %v4881 = vadd.f32 %v4784, %v4880
    %v4882 = vpop.f32.mrb[0].mxu0
    %v4883 = vpop.f32.mrb[0].mxu0
    %v4884 = vadd.f32 %v4787, %v4883
    %v4885 = vpop.f32.mrb[0].mxu0
    %4886 = vmatprep.mubr.bf16.mxu0 0
    %4887 = vmatmul.mubr.bf16.gmra.mrb[0].mxu0 %v4056
    %v4888 = vpop.f32.mrb[0].mxu0
    %v4889 = vadd.f32 %v4792, %v4888
    %v4890 = vpop.f32.mrb[0].mxu0
    %v4891 = vpop.f32.mrb[0].mxu0
    %v4892 = vadd.f32 %v4795, %v4891
    %v4893 = vpop.f32.mrb[0].mxu0
    %4894 = vmatprep.mubr.bf16.mxu0 0
    %4895 = vmatmul.mubr.bf16.gmra.mrb[0].mxu0 %v4057
    %v4896 = vpop.f32.mrb[0].mxu0
    %v4897 = vadd.f32 %v4800, %v4896
    %v4898 = vpop.f32.mrb[0].mxu0
    %v4899 = vpop.f32.mrb[0].mxu0
    %v4900 = vadd.f32 %v4803, %v4899
    %v4901 = vpop.f32.mrb[0].mxu0
    %4902 = vdwg.mxu0
    %v4903 = vmax.f32 %v4841, 0.0
    %v4904 = vmax.f32 %v4844, 0.0
    %v4905 = vmax.f32 %v4849, 0.0
    %v4906 = vmax.f32 %v4852, 0.0
    %v4907 = vmax.f32 %v4857, 0.0
    %v4908 = vmax.f32 %v4860, 0.0
    %v4909 = vmax.f32 %v4865, 0.0
    %v4910 = vmax.f32 %v4868, 0.0
    %v4911 = vmax.f32 %v4873, 0.0
    %v4912 = vmax.f32 %v4876, 0.0
    %v4913 = vmax.f32 %v4881, 0.0
    %v4914 = vmax.f32 %v4884, 0.0
    %v4915 = vmax.f32 %v4889, 0.0
    %v4916 = vmax.f32 %v4892, 0.0
    %v4917 = vmax.f32 %v4897, 0.0
    %v4918 = vmax.f32 %v4900, 0.0
    %v4919 = vadd.f32 %v4903, %v3442
    %v4920 = vadd.f32 %v4904, %v3443
    %v4921 = vadd.f32 %v4905, %v3444
    %v4922 = vadd.f32 %v4906, %v3445
    %v4923 = vadd.f32 %v4907, %v3446
    %v4924 = vadd.f32 %v4908, %v3447
    %v4925 = vadd.f32 %v4909, %v3448
    %v4926 = vadd.f32 %v4910, %v3449
    %v4927 = vadd.f32 %v4911, %v3450
    %v4928 = vadd.f32 %v4912, %v3451
    %v4929 = vadd.f32 %v4913, %v3452
    %v4930 = vadd.f32 %v4914, %v3453
    %v4931 = vadd.f32 %v4915, %v3454
    %v4932 = vadd.f32 %v4916, %v3455
    %v4933 = vadd.f32 %v4917, %v3456
    %v4934 = vadd.f32 %v4918, %v3457
    %s4935 = scalar_lea.vmem %s2, 3
    %v4936 = vld [vmem:[%s4935] sm:$0x1]
    %s4937 = scalar_lea.vmem %s3, 3
    %v4938 = vld [vmem:[%s4937] sm:$0x1]
    %4939 = vadd.xlane.f32.xlu0 %v4919
    %v4940 = vpop.xlane.xlu0 %4939
    %4941 = vadd.xlane.f32.xlu0 %v4920
    %v4942 = vpop.xlane.xlu0 %4941
    %4943 = vadd.xlane.f32.xlu0 %v4921
    %v4944 = vpop.xlane.xlu0 %4943
    %4945 = vadd.xlane.f32.xlu0 %v4922
    %v4946 = vpop.xlane.xlu0 %4945
    %4947 = vadd.xlane.f32.xlu0 %v4923
    %v4948 = vpop.xlane.xlu0 %4947
    %4949 = vadd.xlane.f32.xlu0 %v4924
    %v4950 = vpop.xlane.xlu0 %4949
    %4951 = vadd.xlane.f32.xlu0 %v4925
    %v4952 = vpop.xlane.xlu0 %4951
    %4953 = vadd.xlane.f32.xlu0 %v4926
    %v4954 = vpop.xlane.xlu0 %4953
    %4955 = vadd.xlane.f32.xlu0 %v4927
    %v4956 = vpop.xlane.xlu0 %4955
    %4957 = vadd.xlane.f32.xlu0 %v4928
    %v4958 = vpop.xlane.xlu0 %4957
    %4959 = vadd.xlane.f32.xlu0 %v4929
    %v4960 = vpop.xlane.xlu0 %4959
    %4961 = vadd.xlane.f32.xlu0 %v4930
    %v4962 = vpop.xlane.xlu0 %4961
    %4963 = vadd.xlane.f32.xlu0 %v4931
    %v4964 = vpop.xlane.xlu0 %4963
    %4965 = vadd.xlane.f32.xlu0 %v4932
    %v4966 = vpop.xlane.xlu0 %4965
    %4967 = vadd.xlane.f32.xlu0 %v4933
    %v4968 = vpop.xlane.xlu0 %4967
    %4969 = vadd.xlane.f32.xlu0 %v4934
    %v4970 = vpop.xlane.xlu0 %4969
    %v4971 = vmul.f32 %v4940, %v535
    %v4972 = vmul.f32 %v4942, %v535
    %v4973 = vmul.f32 %v4944, %v535
    %v4974 = vmul.f32 %v4946, %v535
    %v4975 = vmul.f32 %v4948, %v535
    %v4976 = vmul.f32 %v4950, %v535
    %v4977 = vmul.f32 %v4952, %v535
    %v4978 = vmul.f32 %v4954, %v535
    %v4979 = vmul.f32 %v4956, %v535
    %v4980 = vmul.f32 %v4958, %v535
    %v4981 = vmul.f32 %v4960, %v535
    %v4982 = vmul.f32 %v4962, %v535
    %v4983 = vmul.f32 %v4964, %v535
    %v4984 = vmul.f32 %v4966, %v535
    %v4985 = vmul.f32 %v4968, %v535
    %v4986 = vmul.f32 %v4970, %v535
    %v4987 = vmul.f32 %v4919, %v4919
    %v4988 = vmul.f32 %v4920, %v4920
    %v4989 = vmul.f32 %v4921, %v4921
    %v4990 = vmul.f32 %v4922, %v4922
    %v4991 = vmul.f32 %v4923, %v4923
    %v4992 = vmul.f32 %v4924, %v4924
    %v4993 = vmul.f32 %v4925, %v4925
    %v4994 = vmul.f32 %v4926, %v4926
    %v4995 = vmul.f32 %v4927, %v4927
    %v4996 = vmul.f32 %v4928, %v4928
    %v4997 = vmul.f32 %v4929, %v4929
    %v4998 = vmul.f32 %v4930, %v4930
    %v4999 = vmul.f32 %v4931, %v4931
    %v5000 = vmul.f32 %v4932, %v4932
    %v5001 = vmul.f32 %v4933, %v4933
    %v5002 = vmul.f32 %v4934, %v4934
    %5003 = vadd.xlane.f32.xlu0 %v4987
    %v5004 = vpop.xlane.xlu0 %5003
    %5005 = vadd.xlane.f32.xlu0 %v4988
    %v5006 = vpop.xlane.xlu0 %5005
    %5007 = vadd.xlane.f32.xlu0 %v4989
    %v5008 = vpop.xlane.xlu0 %5007
    %5009 = vadd.xlane.f32.xlu0 %v4990
    %v5010 = vpop.xlane.xlu0 %5009
    %5011 = vadd.xlane.f32.xlu0 %v4991
    %v5012 = vpop.xlane.xlu0 %5011
    %5013 = vadd.xlane.f32.xlu0 %v4992
    %v5014 = vpop.xlane.xlu0 %5013
    %5015 = vadd.xlane.f32.xlu0 %v4993
    %v5016 = vpop.xlane.xlu0 %5015
    %5017 = vadd.xlane.f32.xlu0 %v4994
    %v5018 = vpop.xlane.xlu0 %5017
    %5019 = vadd.xlane.f32.xlu0 %v4995
    %v5020 = vpop.xlane.xlu0 %5019
    %5021 = vadd.xlane.f32.xlu0 %v4996
    %v5022 = vpop.xlane.xlu0 %5021
    %5023 = vadd.xlane.f32.xlu0 %v4997
    %v5024 = vpop.xlane.xlu0 %5023
    %5025 = vadd.xlane.f32.xlu0 %v4998
    %v5026 = vpop.xlane.xlu0 %5025
    %5027 = vadd.xlane.f32.xlu0 %v4999
    %v5028 = vpop.xlane.xlu0 %5027
    %5029 = vadd.xlane.f32.xlu0 %v5000
    %v5030 = vpop.xlane.xlu0 %5029
    %5031 = vadd.xlane.f32.xlu0 %v5001
    %v5032 = vpop.xlane.xlu0 %5031
    %5033 = vadd.xlane.f32.xlu0 %v5002
    %v5034 = vpop.xlane.xlu0 %5033
    %v5035 = vmul.f32 %v5004, %v535
    %v5036 = vmul.f32 %v5006, %v535
    %v5037 = vmul.f32 %v5008, %v535
    %v5038 = vmul.f32 %v5010, %v535
    %v5039 = vmul.f32 %v5012, %v535
    %v5040 = vmul.f32 %v5014, %v535
    %v5041 = vmul.f32 %v5016, %v535
    %v5042 = vmul.f32 %v5018, %v535
    %v5043 = vmul.f32 %v5020, %v535
    %v5044 = vmul.f32 %v5022, %v535
    %v5045 = vmul.f32 %v5024, %v535
    %v5046 = vmul.f32 %v5026, %v535
    %v5047 = vmul.f32 %v5028, %v535
    %v5048 = vmul.f32 %v5030, %v535
    %v5049 = vmul.f32 %v5032, %v535
    %v5050 = vmul.f32 %v5034, %v535
    %v5051 = vmul.f32 %v4971, %v4971
    %v5052 = vmul.f32 %v4972, %v4972
    %v5053 = vmul.f32 %v4973, %v4973
    %v5054 = vmul.f32 %v4974, %v4974
    %v5055 = vmul.f32 %v4975, %v4975
    %v5056 = vmul.f32 %v4976, %v4976
    %v5057 = vmul.f32 %v4977, %v4977
    %v5058 = vmul.f32 %v4978, %v4978
    %v5059 = vmul.f32 %v4979, %v4979
    %v5060 = vmul.f32 %v4980, %v4980
    %v5061 = vmul.f32 %v4981, %v4981
    %v5062 = vmul.f32 %v4982, %v4982
    %v5063 = vmul.f32 %v4983, %v4983
    %v5064 = vmul.f32 %v4984, %v4984
    %v5065 = vmul.f32 %v4985, %v4985
    %v5066 = vmul.f32 %v4986, %v4986
    %v5067 = vsub.f32 %v5035, %v5051
    %v5068 = vsub.f32 %v5036, %v5052
    %v5069 = vsub.f32 %v5037, %v5053
    %v5070 = vsub.f32 %v5038, %v5054
    %v5071 = vsub.f32 %v5039, %v5055
    %v5072 = vsub.f32 %v5040, %v5056
    %v5073 = vsub.f32 %v5041, %v5057
    %v5074 = vsub.f32 %v5042, %v5058
    %v5075 = vsub.f32 %v5043, %v5059
    %v5076 = vsub.f32 %v5044, %v5060
    %v5077 = vsub.f32 %v5045, %v5061
    %v5078 = vsub.f32 %v5046, %v5062
    %v5079 = vsub.f32 %v5047, %v5063
    %v5080 = vsub.f32 %v5048, %v5064
    %v5081 = vsub.f32 %v5049, %v5065
    %v5082 = vsub.f32 %v5050, %v5066
    %v5083 = vsub.f32 %v4919, %v4971
    %v5084 = vsub.f32 %v4920, %v4972
    %v5085 = vsub.f32 %v4921, %v4973
    %v5086 = vsub.f32 %v4922, %v4974
    %v5087 = vsub.f32 %v4923, %v4975
    %v5088 = vsub.f32 %v4924, %v4976
    %v5089 = vsub.f32 %v4925, %v4977
    %v5090 = vsub.f32 %v4926, %v4978
    %v5091 = vsub.f32 %v4927, %v4979
    %v5092 = vsub.f32 %v4928, %v4980
    %v5093 = vsub.f32 %v4929, %v4981
    %v5094 = vsub.f32 %v4930, %v4982
    %v5095 = vsub.f32 %v4931, %v4983
    %v5096 = vsub.f32 %v4932, %v4984
    %v5097 = vsub.f32 %v4933, %v4985
    %v5098 = vsub.f32 %v4934, %v4986
    %v5099 = vadd.f32 %v5067, 1e-06
    %v5100 = vadd.f32 %v5068, 1e-06
    %v5101 = vadd.f32 %v5069, 1e-06
    %v5102 = vadd.f32 %v5070, 1e-06
    %v5103 = vadd.f32 %v5071, 1e-06
    %v5104 = vadd.f32 %v5072, 1e-06
    %v5105 = vadd.f32 %v5073, 1e-06
    %v5106 = vadd.f32 %v5074, 1e-06
    %v5107 = vadd.f32 %v5075, 1e-06
    %v5108 = vadd.f32 %v5076, 1e-06
    %v5109 = vadd.f32 %v5077, 1e-06
    %v5110 = vadd.f32 %v5078, 1e-06
    %v5111 = vadd.f32 %v5079, 1e-06
    %v5112 = vadd.f32 %v5080, 1e-06
    %v5113 = vadd.f32 %v5081, 1e-06
    %v5114 = vadd.f32 %v5082, 1e-06
    %v5115 = vrsqrt.pop %v5099
    %v5116 = vrsqrt.pop %v5100
    %v5117 = vrsqrt.pop %v5101
    %v5118 = vrsqrt.pop %v5102
    %v5119 = vrsqrt.pop %v5103
    %v5120 = vrsqrt.pop %v5104
    %v5121 = vrsqrt.pop %v5105
    %v5122 = vrsqrt.pop %v5106
    %v5123 = vrsqrt.pop %v5107
    %v5124 = vrsqrt.pop %v5108
    %v5125 = vrsqrt.pop %v5109
    %v5126 = vrsqrt.pop %v5110
    %v5127 = vrsqrt.pop %v5111
    %v5128 = vrsqrt.pop %v5112
    %v5129 = vrsqrt.pop %v5113
    %v5130 = vrsqrt.pop %v5114
    %v5131 = vmul.f32 %v5083, %v5115
    %v5132 = vmul.f32 %v5084, %v5116
    %v5133 = vmul.f32 %v5085, %v5117
    %v5134 = vmul.f32 %v5086, %v5118
    %v5135 = vmul.f32 %v5087, %v5119
    %v5136 = vmul.f32 %v5088, %v5120
    %v5137 = vmul.f32 %v5089, %v5121
    %v5138 = vmul.f32 %v5090, %v5122
    %v5139 = vmul.f32 %v5091, %v5123
    %v5140 = vmul.f32 %v5092, %v5124
    %v5141 = vmul.f32 %v5093, %v5125
    %v5142 = vmul.f32 %v5094, %v5126
    %v5143 = vmul.f32 %v5095, %v5127
    %v5144 = vmul.f32 %v5096, %v5128
    %v5145 = vmul.f32 %v5097, %v5129
    %v5146 = vmul.f32 %v5098, %v5130
    %v5148 = vlaneseq
    %v5149 = vshrl.u32 %v5148, 7
    %v5150 = vsub.s32 0, %v5149
    %v5151 = vrot.slane %v4936, %v5150
    %v5153 = vmul.f32 %v5131, %v5151
    %v5154 = vmul.f32 %v5132, %v5151
    %v5155 = vmul.f32 %v5133, %v5151
    %v5156 = vmul.f32 %v5134, %v5151
    %v5157 = vmul.f32 %v5135, %v5151
    %v5158 = vmul.f32 %v5136, %v5151
    %v5159 = vmul.f32 %v5137, %v5151
    %v5160 = vmul.f32 %v5138, %v5151
    %v5161 = vmul.f32 %v5139, %v5151
    %v5162 = vmul.f32 %v5140, %v5151
    %v5163 = vmul.f32 %v5141, %v5151
    %v5164 = vmul.f32 %v5142, %v5151
    %v5165 = vmul.f32 %v5143, %v5151
    %v5166 = vmul.f32 %v5144, %v5151
    %v5167 = vmul.f32 %v5145, %v5151
    %v5168 = vmul.f32 %v5146, %v5151
    %v5170 = vlaneseq
    %v5171 = vshrl.u32 %v5170, 7
    %v5172 = vsub.s32 0, %v5171
    %v5173 = vrot.slane %v4938, %v5172
    %v5175 = vadd.f32 %v5153, %v5173
    %v5176 = vadd.f32 %v5154, %v5173
    %v5177 = vadd.f32 %v5155, %v5173
    %v5178 = vadd.f32 %v5156, %v5173
    %v5179 = vadd.f32 %v5157, %v5173
    %v5180 = vadd.f32 %v5158, %v5173
    %v5181 = vadd.f32 %v5159, %v5173
    %v5182 = vadd.f32 %v5160, %v5173
    %v5183 = vadd.f32 %v5161, %v5173
    %v5184 = vadd.f32 %v5162, %v5173
    %v5185 = vadd.f32 %v5163, %v5173
    %v5186 = vadd.f32 %v5164, %v5173
    %v5187 = vadd.f32 %v5165, %v5173
    %v5188 = vadd.f32 %v5166, %v5173
    %v5189 = vadd.f32 %v5167, %v5173
    %v5190 = vadd.f32 %v5168, %v5173
    %v5191 = vrot.slane %v5175, 5
    %v5192 = vrot.slane %v5176, 5
    %v5193 = vrot.slane %v5177, 5
    %v5194 = vrot.slane %v5178, 5
    %v5195 = vrot.slane %v5179, 5
    %v5196 = vrot.slane %v5180, 5
    %v5197 = vrot.slane %v5181, 5
    %v5198 = vrot.slane %v5182, 5
    %v5199 = vrot.slane %v5183, 5
    %v5200 = vrot.slane %v5184, 5
    %v5201 = vrot.slane %v5185, 5
    %v5202 = vrot.slane %v5186, 5
    %v5203 = vrot.slane %v5187, 5
    %v5204 = vrot.slane %v5188, 5
    %v5205 = vrot.slane %v5189, 5
    %v5206 = vrot.slane %v5190, 5
    %v5207 = vsel %vm772, %v5205, %v5206
    %v5208 = vsel %vm772, %v5204, %v5205
    %v5209 = vsel %vm772, %v5203, %v5204
    %v5210 = vsel %vm772, %v5202, %v5203
    %v5211 = vsel %vm772, %v5201, %v5202
    %v5212 = vsel %vm772, %v5200, %v5201
    %v5213 = vsel %vm772, %v5199, %v5200
    %v5214 = vsel %vm772, %v5198, %v5199
    %v5215 = vsel %vm772, %v5197, %v5198
    %v5216 = vsel %vm772, %v5196, %v5197
    %v5217 = vsel %vm772, %v5195, %v5196
    %v5218 = vsel %vm772, %v5194, %v5195
    %v5219 = vsel %vm772, %v5193, %v5194
    %v5220 = vsel %vm772, %v5192, %v5193
    %v5221 = vsel %vm772, %v5191, %v5192
    %v5222 = vsel %vm772, %v5206, %v5191
    %v5223 = vmul.f32 %v5222, %v325
    %v5224 = vmul.f32 %v5221, %v326
    %v5225 = vmul.f32 %v5220, %v327
    %v5226 = vmul.f32 %v5219, %v328
    %v5227 = vmul.f32 %v5218, %v329
    %v5228 = vmul.f32 %v5217, %v330
    %v5229 = vmul.f32 %v5216, %v331
    %v5230 = vmul.f32 %v5215, %v332
    %v5231 = vmul.f32 %v5214, %v333
    %v5232 = vmul.f32 %v5213, %v334
    %v5233 = vmul.f32 %v5212, %v335
    %v5234 = vmul.f32 %v5211, %v336
    %v5235 = vmul.f32 %v5210, %v337
    %v5236 = vmul.f32 %v5209, %v338
    %v5237 = vmul.f32 %v5208, %v339
    %v5238 = vmul.f32 %v5207, %v340
    %v5239 = vpack.c.bf16 %v5224, %v5223
    %v5240 = vpack.c.bf16 %v5226, %v5225
    %v5241 = vpack.c.bf16 %v5228, %v5227
    %v5242 = vpack.c.bf16 %v5230, %v5229
    %v5243 = vpack.c.bf16 %v5232, %v5231
    %v5244 = vpack.c.bf16 %v5234, %v5233
    %v5245 = vpack.c.bf16 %v5236, %v5235
    %v5246 = vpack.c.bf16 %v5238, %v5237
    %v5247 = vrot.slane %v5175, 6
    %v5248 = vrot.slane %v5176, 6
    %v5249 = vrot.slane %v5177, 6
    %v5250 = vrot.slane %v5178, 6
    %v5251 = vrot.slane %v5179, 6
    %v5252 = vrot.slane %v5180, 6
    %v5253 = vrot.slane %v5181, 6
    %v5254 = vrot.slane %v5182, 6
    %v5255 = vrot.slane %v5183, 6
    %v5256 = vrot.slane %v5184, 6
    %v5257 = vrot.slane %v5185, 6
    %v5258 = vrot.slane %v5186, 6
    %v5259 = vrot.slane %v5187, 6
    %v5260 = vrot.slane %v5188, 6
    %v5261 = vrot.slane %v5189, 6
    %v5262 = vrot.slane %v5190, 6
    %v5263 = vsel %vm829, %v5261, %v5262
    %v5264 = vsel %vm829, %v5260, %v5261
    %v5265 = vsel %vm829, %v5259, %v5260
    %v5266 = vsel %vm829, %v5258, %v5259
    %v5267 = vsel %vm829, %v5257, %v5258
    %v5268 = vsel %vm829, %v5256, %v5257
    %v5269 = vsel %vm829, %v5255, %v5256
    %v5270 = vsel %vm829, %v5254, %v5255
    %v5271 = vsel %vm829, %v5253, %v5254
    %v5272 = vsel %vm829, %v5252, %v5253
    %v5273 = vsel %vm829, %v5251, %v5252
    %v5274 = vsel %vm829, %v5250, %v5251
    %v5275 = vsel %vm829, %v5249, %v5250
    %v5276 = vsel %vm829, %v5248, %v5249
    %v5277 = vsel %vm829, %v5247, %v5248
    %v5278 = vsel %vm829, %v5262, %v5247
    %v5279 = vmul.f32 %v5278, %v357
    %v5280 = vmul.f32 %v5277, %v358
    %v5281 = vmul.f32 %v5276, %v359
    %v5282 = vmul.f32 %v5275, %v360
    %v5283 = vmul.f32 %v5274, %v361
    %v5284 = vmul.f32 %v5273, %v362
    %v5285 = vmul.f32 %v5272, %v363
    %v5286 = vmul.f32 %v5271, %v364
    %v5287 = vmul.f32 %v5270, %v365
    %v5288 = vmul.f32 %v5269, %v366
    %v5289 = vmul.f32 %v5268, %v367
    %v5290 = vmul.f32 %v5267, %v368
    %v5291 = vmul.f32 %v5266, %v369
    %v5292 = vmul.f32 %v5265, %v370
    %v5293 = vmul.f32 %v5264, %v371
    %v5294 = vmul.f32 %v5263, %v372
    %v5295 = vpack.c.bf16 %v5280, %v5279
    %v5296 = vpack.c.bf16 %v5282, %v5281
    %v5297 = vpack.c.bf16 %v5284, %v5283
    %v5298 = vpack.c.bf16 %v5286, %v5285
    %v5299 = vpack.c.bf16 %v5288, %v5287
    %v5300 = vpack.c.bf16 %v5290, %v5289
    %v5301 = vpack.c.bf16 %v5292, %v5291
    %v5302 = vpack.c.bf16 %v5294, %v5293
    %v5303 = vrot.slane %v5175, 7
    %v5304 = vrot.slane %v5176, 7
    %v5305 = vrot.slane %v5177, 7
    %v5306 = vrot.slane %v5178, 7
    %v5307 = vrot.slane %v5179, 7
    %v5308 = vrot.slane %v5180, 7
    %v5309 = vrot.slane %v5181, 7
    %v5310 = vrot.slane %v5182, 7
    %v5311 = vrot.slane %v5183, 7
    %v5312 = vrot.slane %v5184, 7
    %v5313 = vrot.slane %v5185, 7
    %v5314 = vrot.slane %v5186, 7
    %v5315 = vrot.slane %v5187, 7
    %v5316 = vrot.slane %v5188, 7
    %v5317 = vrot.slane %v5189, 7
    %v5318 = vrot.slane %v5190, 7
    %v5319 = vsel %vm886, %v5317, %v5318
    %v5320 = vsel %vm886, %v5316, %v5317
    %v5321 = vsel %vm886, %v5315, %v5316
    %v5322 = vsel %vm886, %v5314, %v5315
    %v5323 = vsel %vm886, %v5313, %v5314
    %v5324 = vsel %vm886, %v5312, %v5313
    %v5325 = vsel %vm886, %v5311, %v5312
    %v5326 = vsel %vm886, %v5310, %v5311
    %v5327 = vsel %vm886, %v5309, %v5310
    %v5328 = vsel %vm886, %v5308, %v5309
    %v5329 = vsel %vm886, %v5307, %v5308
    %v5330 = vsel %vm886, %v5306, %v5307
    %v5331 = vsel %vm886, %v5305, %v5306
    %v5332 = vsel %vm886, %v5304, %v5305
    %v5333 = vsel %vm886, %v5303, %v5304
    %v5334 = vsel %vm886, %v5318, %v5303
    %v5335 = vmul.f32 %v5334, %v389
    %v5336 = vmul.f32 %v5333, %v390
    %v5337 = vmul.f32 %v5332, %v391
    %v5338 = vmul.f32 %v5331, %v392
    %v5339 = vmul.f32 %v5330, %v393
    %v5340 = vmul.f32 %v5329, %v394
    %v5341 = vmul.f32 %v5328, %v395
    %v5342 = vmul.f32 %v5327, %v396
    %v5343 = vmul.f32 %v5326, %v397
    %v5344 = vmul.f32 %v5325, %v398
    %v5345 = vmul.f32 %v5324, %v399
    %v5346 = vmul.f32 %v5323, %v400
    %v5347 = vmul.f32 %v5322, %v401
    %v5348 = vmul.f32 %v5321, %v402
    %v5349 = vmul.f32 %v5320, %v403
    %v5350 = vmul.f32 %v5319, %v404
    %v5351 = vpack.c.bf16 %v5336, %v5335
    %v5352 = vpack.c.bf16 %v5338, %v5337
    %v5353 = vpack.c.bf16 %v5340, %v5339
    %v5354 = vpack.c.bf16 %v5342, %v5341
    %v5355 = vpack.c.bf16 %v5344, %v5343
    %v5356 = vpack.c.bf16 %v5346, %v5345
    %v5357 = vpack.c.bf16 %v5348, %v5347
    %v5358 = vpack.c.bf16 %v5350, %v5349
    %v5359 = vpack.c.bf16 %v5176, %v5175
    %v5360 = vpack.c.bf16 %v5178, %v5177
    %v5361 = vpack.c.bf16 %v5180, %v5179
    %v5362 = vpack.c.bf16 %v5182, %v5181
    %v5363 = vpack.c.bf16 %v5184, %v5183
    %v5364 = vpack.c.bf16 %v5186, %v5185
    %v5365 = vpack.c.bf16 %v5188, %v5187
    %v5366 = vpack.c.bf16 %v5190, %v5189
    %v5367 = vrot.slane %v5175, 1
    %v5368 = vrot.slane %v5176, 1
    %v5369 = vrot.slane %v5177, 1
    %v5370 = vrot.slane %v5178, 1
    %v5371 = vrot.slane %v5179, 1
    %v5372 = vrot.slane %v5180, 1
    %v5373 = vrot.slane %v5181, 1
    %v5374 = vrot.slane %v5182, 1
    %v5375 = vrot.slane %v5183, 1
    %v5376 = vrot.slane %v5184, 1
    %v5377 = vrot.slane %v5185, 1
    %v5378 = vrot.slane %v5186, 1
    %v5379 = vrot.slane %v5187, 1
    %v5380 = vrot.slane %v5188, 1
    %v5381 = vrot.slane %v5189, 1
    %v5382 = vrot.slane %v5190, 1
    %v5383 = vsel %vm951, %v5381, %v5382
    %v5384 = vsel %vm951, %v5380, %v5381
    %v5385 = vsel %vm951, %v5379, %v5380
    %v5386 = vsel %vm951, %v5378, %v5379
    %v5387 = vsel %vm951, %v5377, %v5378
    %v5388 = vsel %vm951, %v5376, %v5377
    %v5389 = vsel %vm951, %v5375, %v5376
    %v5390 = vsel %vm951, %v5374, %v5375
    %v5391 = vsel %vm951, %v5373, %v5374
    %v5392 = vsel %vm951, %v5372, %v5373
    %v5393 = vsel %vm951, %v5371, %v5372
    %v5394 = vsel %vm951, %v5370, %v5371
    %v5395 = vsel %vm951, %v5369, %v5370
    %v5396 = vsel %vm951, %v5368, %v5369
    %v5397 = vsel %vm951, %v5367, %v5368
    %v5398 = vsel %vm951, %v5382, %v5367
    %v5399 = vmul.f32 %v5397, %v421
    %v5400 = vmul.f32 %v5396, %v422
    %v5401 = vmul.f32 %v5395, %v423
    %v5402 = vmul.f32 %v5394, %v424
    %v5403 = vmul.f32 %v5393, %v425
    %v5404 = vmul.f32 %v5392, %v426
    %v5405 = vmul.f32 %v5391, %v427
    %v5406 = vmul.f32 %v5390, %v428
    %v5407 = vmul.f32 %v5389, %v429
    %v5408 = vmul.f32 %v5388, %v430
    %v5409 = vmul.f32 %v5387, %v431
    %v5410 = vmul.f32 %v5386, %v432
    %v5411 = vmul.f32 %v5385, %v433
    %v5412 = vmul.f32 %v5384, %v434
    %v5413 = vmul.f32 %v5383, %v435
    %v5414 = vmul.f32 %v5398, %v436
    %v5415 = vpack.c.bf16 %v5400, %v5399
    %v5416 = vpack.c.bf16 %v5402, %v5401
    %v5417 = vpack.c.bf16 %v5404, %v5403
    %v5418 = vpack.c.bf16 %v5406, %v5405
    %v5419 = vpack.c.bf16 %v5408, %v5407
    %v5420 = vpack.c.bf16 %v5410, %v5409
    %v5421 = vpack.c.bf16 %v5412, %v5411
    %v5422 = vpack.c.bf16 %v5414, %v5413
    %v5423 = vrot.slane %v5175, 2
    %v5424 = vrot.slane %v5176, 2
    %v5425 = vrot.slane %v5177, 2
    %v5426 = vrot.slane %v5178, 2
    %v5427 = vrot.slane %v5179, 2
    %v5428 = vrot.slane %v5180, 2
    %v5429 = vrot.slane %v5181, 2
    %v5430 = vrot.slane %v5182, 2
    %v5431 = vrot.slane %v5183, 2
    %v5432 = vrot.slane %v5184, 2
    %v5433 = vrot.slane %v5185, 2
    %v5434 = vrot.slane %v5186, 2
    %v5435 = vrot.slane %v5187, 2
    %v5436 = vrot.slane %v5188, 2
    %v5437 = vrot.slane %v5189, 2
    %v5438 = vrot.slane %v5190, 2
    %v5439 = vsel %vm1008, %v5437, %v5438
    %v5440 = vsel %vm1008, %v5436, %v5437
    %v5441 = vsel %vm1008, %v5435, %v5436
    %v5442 = vsel %vm1008, %v5434, %v5435
    %v5443 = vsel %vm1008, %v5433, %v5434
    %v5444 = vsel %vm1008, %v5432, %v5433
    %v5445 = vsel %vm1008, %v5431, %v5432
    %v5446 = vsel %vm1008, %v5430, %v5431
    %v5447 = vsel %vm1008, %v5429, %v5430
    %v5448 = vsel %vm1008, %v5428, %v5429
    %v5449 = vsel %vm1008, %v5427, %v5428
    %v5450 = vsel %vm1008, %v5426, %v5427
    %v5451 = vsel %vm1008, %v5425, %v5426
    %v5452 = vsel %vm1008, %v5424, %v5425
    %v5453 = vsel %vm1008, %v5423, %v5424
    %v5454 = vsel %vm1008, %v5438, %v5423
    %v5455 = vmul.f32 %v5453, %v453
    %v5456 = vmul.f32 %v5452, %v454
    %v5457 = vmul.f32 %v5451, %v455
    %v5458 = vmul.f32 %v5450, %v456
    %v5459 = vmul.f32 %v5449, %v457
    %v5460 = vmul.f32 %v5448, %v458
    %v5461 = vmul.f32 %v5447, %v459
    %v5462 = vmul.f32 %v5446, %v460
    %v5463 = vmul.f32 %v5445, %v461
    %v5464 = vmul.f32 %v5444, %v462
    %v5465 = vmul.f32 %v5443, %v463
    %v5466 = vmul.f32 %v5442, %v464
    %v5467 = vmul.f32 %v5441, %v465
    %v5468 = vmul.f32 %v5440, %v466
    %v5469 = vmul.f32 %v5439, %v467
    %v5470 = vmul.f32 %v5454, %v468
    %v5471 = vpack.c.bf16 %v5456, %v5455
    %v5472 = vpack.c.bf16 %v5458, %v5457
    %v5473 = vpack.c.bf16 %v5460, %v5459
    %v5474 = vpack.c.bf16 %v5462, %v5461
    %v5475 = vpack.c.bf16 %v5464, %v5463
    %v5476 = vpack.c.bf16 %v5466, %v5465
    %v5477 = vpack.c.bf16 %v5468, %v5467
    %v5478 = vpack.c.bf16 %v5470, %v5469
    %v5479 = vrot.slane %v5175, 3
    %v5480 = vrot.slane %v5176, 3
    %v5481 = vrot.slane %v5177, 3
    %v5482 = vrot.slane %v5178, 3
    %v5483 = vrot.slane %v5179, 3
    %v5484 = vrot.slane %v5180, 3
    %v5485 = vrot.slane %v5181, 3
    %v5486 = vrot.slane %v5182, 3
    %v5487 = vrot.slane %v5183, 3
    %v5488 = vrot.slane %v5184, 3
    %v5489 = vrot.slane %v5185, 3
    %v5490 = vrot.slane %v5186, 3
    %v5491 = vrot.slane %v5187, 3
    %v5492 = vrot.slane %v5188, 3
    %v5493 = vrot.slane %v5189, 3
    %v5494 = vrot.slane %v5190, 3
    %v5495 = vsel %vm1065, %v5493, %v5494
    %v5496 = vsel %vm1065, %v5492, %v5493
    %v5497 = vsel %vm1065, %v5491, %v5492
    %v5498 = vsel %vm1065, %v5490, %v5491
    %v5499 = vsel %vm1065, %v5489, %v5490
    %v5500 = vsel %vm1065, %v5488, %v5489
    %v5501 = vsel %vm1065, %v5487, %v5488
    %v5502 = vsel %vm1065, %v5486, %v5487
    %v5503 = vsel %vm1065, %v5485, %v5486
    %v5504 = vsel %vm1065, %v5484, %v5485
    %v5505 = vsel %vm1065, %v5483, %v5484
    %v5506 = vsel %vm1065, %v5482, %v5483
    %v5507 = vsel %vm1065, %v5481, %v5482
    %v5508 = vsel %vm1065, %v5480, %v5481
    %v5509 = vsel %vm1065, %v5479, %v5480
    %v5510 = vsel %vm1065, %v5494, %v5479
    %v5511 = vmul.f32 %v5509, %v485
    %v5512 = vmul.f32 %v5508, %v486
    %v5513 = vmul.f32 %v5507, %v487
    %v5514 = vmul.f32 %v5506, %v488
    %v5515 = vmul.f32 %v5505, %v489
    %v5516 = vmul.f32 %v5504, %v490
    %v5517 = vmul.f32 %v5503, %v491
    %v5518 = vmul.f32 %v5502, %v492
    %v5519 = vmul.f32 %v5501, %v493
    %v5520 = vmul.f32 %v5500, %v494
    %v5521 = vmul.f32 %v5499, %v495
    %v5522 = vmul.f32 %v5498, %v496
    %v5523 = vmul.f32 %v5497, %v497
    %v5524 = vmul.f32 %v5496, %v498
    %v5525 = vmul.f32 %v5495, %v499
    %v5526 = vmul.f32 %v5510, %v500
    %v5527 = vpack.c.bf16 %v5512, %v5511
    %v5528 = vpack.c.bf16 %v5514, %v5513
    %v5529 = vpack.c.bf16 %v5516, %v5515
    %v5530 = vpack.c.bf16 %v5518, %v5517
    %v5531 = vpack.c.bf16 %v5520, %v5519
    %v5532 = vpack.c.bf16 %v5522, %v5521
    %v5533 = vpack.c.bf16 %v5524, %v5523
    %v5534 = vpack.c.bf16 %v5526, %v5525
    %s5535 = scalar_lea.vmem [#allocation7], 1344
    %v5536 = vld [vmem:[%s5535] sm:$0xf]
    %v5537 = vld [vmem:[%s5535 + $0x4] sm:$0xf]
    %v5538 = vld [vmem:[%s5535 + $0x8] sm:$0xf]
    %v5539 = vld [vmem:[%s5535 + $0xc] sm:$0xf]
    %v5540 = vld [vmem:[%s5535 + $0x10] sm:$0xf]
    %v5541 = vld [vmem:[%s5535 + $0x14] sm:$0xf]
    %v5542 = vld [vmem:[%s5535 + $0x18] sm:$0xf]
    %v5543 = vld [vmem:[%s5535 + $0x1c] sm:$0xf]
    %v5544 = vld [vmem:[%s5535 + $0x20] sm:$0xf]
    %v5545 = vld [vmem:[%s5535 + $0x24] sm:$0xf]
    %v5546 = vld [vmem:[%s5535 + $0x28] sm:$0xf]
    %v5547 = vld [vmem:[%s5535 + $0x2c] sm:$0xf]
    %v5548 = vld [vmem:[%s5535 + $0x30] sm:$0xf]
    %v5549 = vld [vmem:[%s5535 + $0x34] sm:$0xf]
    %v5550 = vld [vmem:[%s5535 + $0x38] sm:$0xf]
    %v5551 = vld [vmem:[%s5535 + $0x3c] sm:$0xf]
    %v5552 = vld [vmem:[%s5535 + $0x40] sm:$0xf]
    %v5553 = vld [vmem:[%s5535 + $0x44] sm:$0xf]
    %v5554 = vld [vmem:[%s5535 + $0x48] sm:$0xf]
    %v5555 = vld [vmem:[%s5535 + $0x4c] sm:$0xf]
    %v5556 = vld [vmem:[%s5535 + $0x50] sm:$0xf]
    %v5557 = vld [vmem:[%s5535 + $0x54] sm:$0xf]
    %v5558 = vld [vmem:[%s5535 + $0x58] sm:$0xf]
    %v5559 = vld [vmem:[%s5535 + $0x5c] sm:$0xf]
    %v5560 = vld [vmem:[%s5535 + $0x60] sm:$0xf]
    %v5561 = vld [vmem:[%s5535 + $0x64] sm:$0xf]
    %v5562 = vld [vmem:[%s5535 + $0x68] sm:$0xf]
    %v5563 = vld [vmem:[%s5535 + $0x6c] sm:$0xf]
    %v5564 = vld [vmem:[%s5535 + $0x70] sm:$0xf]
    %v5565 = vld [vmem:[%s5535 + $0x74] sm:$0xf]
    %v5566 = vld [vmem:[%s5535 + $0x78] sm:$0xf]
    %v5567 = vld [vmem:[%s5535 + $0x7c] sm:$0xf]
    %v5568 = vld [vmem:[%s5535 + $0x80] sm:$0xf]
    %v5569 = vld [vmem:[%s5535 + $0x84] sm:$0xf]
    %v5570 = vld [vmem:[%s5535 + $0x88] sm:$0xf]
    %v5571 = vld [vmem:[%s5535 + $0x8c] sm:$0xf]
    %v5572 = vld [vmem:[%s5535 + $0x90] sm:$0xf]
    %v5573 = vld [vmem:[%s5535 + $0x94] sm:$0xf]
    %v5574 = vld [vmem:[%s5535 + $0x98] sm:$0xf]
    %v5575 = vld [vmem:[%s5535 + $0x9c] sm:$0xf]
    %v5576 = vld [vmem:[%s5535 + $0xa0] sm:$0xf]
    %v5577 = vld [vmem:[%s5535 + $0xa4] sm:$0xf]
    %v5578 = vld [vmem:[%s5535 + $0xa8] sm:$0xf]
    %v5579 = vld [vmem:[%s5535 + $0xac] sm:$0xf]
    %v5580 = vld [vmem:[%s5535 + $0xb0] sm:$0xf]
    %v5581 = vld [vmem:[%s5535 + $0xb4] sm:$0xf]
    %v5582 = vld [vmem:[%s5535 + $0xb8] sm:$0xf]
    %v5583 = vld [vmem:[%s5535 + $0xbc] sm:$0xf]
    %v5584 = vld [vmem:[%s5535 + $0xc0] sm:$0xf]
    %v5585 = vld [vmem:[%s5535 + $0xc4] sm:$0xf]
    %v5586 = vld [vmem:[%s5535 + $0xc8] sm:$0xf]
    %v5587 = vld [vmem:[%s5535 + $0xcc] sm:$0xf]
    %v5588 = vld [vmem:[%s5535 + $0xd0] sm:$0xf]
    %v5589 = vld [vmem:[%s5535 + $0xd4] sm:$0xf]
    %v5590 = vld [vmem:[%s5535 + $0xd8] sm:$0xf]
    %v5591 = vld [vmem:[%s5535 + $0xdc] sm:$0xf]
    %v5592 = vld [vmem:[%s5535 + $0xe0] sm:$0xf]
    %v5593 = vld [vmem:[%s5535 + $0xe4] sm:$0xf]
    %v5594 = vld [vmem:[%s5535 + $0xe8] sm:$0xf]
    %v5595 = vld [vmem:[%s5535 + $0xec] sm:$0xf]
    %v5596 = vld [vmem:[%s5535 + $0xf0] sm:$0xf]
    %v5597 = vld [vmem:[%s5535 + $0xf4] sm:$0xf]
    %v5598 = vld [vmem:[%s5535 + $0xf8] sm:$0xf]
    %v5599 = vld [vmem:[%s5535 + $0xfc] sm:$0xf]
    %v5600 = vld [vmem:[%s5535 + $0x100] sm:$0xf]
    %v5601 = vld [vmem:[%s5535 + $0x104] sm:$0xf]
    %v5602 = vld [vmem:[%s5535 + $0x108] sm:$0xf]
    %v5603 = vld [vmem:[%s5535 + $0x10c] sm:$0xf]
    %v5604 = vld [vmem:[%s5535 + $0x110] sm:$0xf]
    %v5605 = vld [vmem:[%s5535 + $0x114] sm:$0xf]
    %v5606 = vld [vmem:[%s5535 + $0x118] sm:$0xf]
    %v5607 = vld [vmem:[%s5535 + $0x11c] sm:$0xf]
    %v5608 = vld [vmem:[%s5535 + $0x120] sm:$0xf]
    %v5609 = vld [vmem:[%s5535 + $0x124] sm:$0xf]
    %v5610 = vld [vmem:[%s5535 + $0x128] sm:$0xf]
    %v5611 = vld [vmem:[%s5535 + $0x12c] sm:$0xf]
    %v5612 = vld [vmem:[%s5535 + $0x130] sm:$0xf]
    %v5613 = vld [vmem:[%s5535 + $0x134] sm:$0xf]
    %v5614 = vld [vmem:[%s5535 + $0x138] sm:$0xf]
    %v5615 = vld [vmem:[%s5535 + $0x13c] sm:$0xf]
    %v5616 = vld [vmem:[%s5535 + $0x140] sm:$0xf]
    %v5617 = vld [vmem:[%s5535 + $0x144] sm:$0xf]
    %v5618 = vld [vmem:[%s5535 + $0x148] sm:$0xf]
    %v5619 = vld [vmem:[%s5535 + $0x14c] sm:$0xf]
    %v5620 = vld [vmem:[%s5535 + $0x150] sm:$0xf]
    %v5621 = vld [vmem:[%s5535 + $0x154] sm:$0xf]
    %v5622 = vld [vmem:[%s5535 + $0x158] sm:$0xf]
    %v5623 = vld [vmem:[%s5535 + $0x15c] sm:$0xf]
    %v5624 = vld [vmem:[%s5535 + $0x160] sm:$0xf]
    %v5625 = vld [vmem:[%s5535 + $0x164] sm:$0xf]
    %v5626 = vld [vmem:[%s5535 + $0x168] sm:$0xf]
    %v5627 = vld [vmem:[%s5535 + $0x16c] sm:$0xf]
    %v5628 = vld [vmem:[%s5535 + $0x170] sm:$0xf]
    %v5629 = vld [vmem:[%s5535 + $0x174] sm:$0xf]
    %v5630 = vld [vmem:[%s5535 + $0x178] sm:$0xf]
    %v5631 = vld [vmem:[%s5535 + $0x17c] sm:$0xf]
    %v5632 = vld [vmem:[%s5535 + $0x180] sm:$0xf]
    %v5633 = vld [vmem:[%s5535 + $0x184] sm:$0xf]
    %v5634 = vld [vmem:[%s5535 + $0x188] sm:$0xf]
    %v5635 = vld [vmem:[%s5535 + $0x18c] sm:$0xf]
    %v5636 = vld [vmem:[%s5535 + $0x190] sm:$0xf]
    %v5637 = vld [vmem:[%s5535 + $0x194] sm:$0xf]
    %v5638 = vld [vmem:[%s5535 + $0x198] sm:$0xf]
    %v5639 = vld [vmem:[%s5535 + $0x19c] sm:$0xf]
    %v5640 = vld [vmem:[%s5535 + $0x1a0] sm:$0xf]
    %v5641 = vld [vmem:[%s5535 + $0x1a4] sm:$0xf]
    %v5642 = vld [vmem:[%s5535 + $0x1a8] sm:$0xf]
    %v5643 = vld [vmem:[%s5535 + $0x1ac] sm:$0xf]
    %v5644 = vld [vmem:[%s5535 + $0x1b0] sm:$0xf]
    %v5645 = vld [vmem:[%s5535 + $0x1b4] sm:$0xf]
    %v5646 = vld [vmem:[%s5535 + $0x1b8] sm:$0xf]
    %v5647 = vld [vmem:[%s5535 + $0x1bc] sm:$0xf]
    %s5648 = scalar_lea.vmem %s5, 3
    %v5649 = vld [vmem:[%s5648] sm:$0x1]
    %v5651 = vlaneseq
    %v5652 = vshrl.u32 %v5651, 7
    %v5653 = vsub.s32 0, %v5652
    %v5654 = vrot.slane %v5649, %v5653
    %v5768 = vunpack.c.l.b16 %v5536
    %v5769 = vunpack.c.l.b16 %v5537
    %v5770 = vunpack.c.l.b16 %v5538
    %v5771 = vunpack.c.l.b16 %v5539
    %v5772 = vunpack.c.l.b16 %v5540
    %v5773 = vunpack.c.l.b16 %v5541
    %v5774 = vunpack.c.l.b16 %v5542
    %v5775 = vunpack.c.l.b16 %v5543
    %v5776 = vunpack.c.l.b16 %v5544
    %v5777 = vunpack.c.l.b16 %v5545
    %v5778 = vunpack.c.l.b16 %v5546
    %v5779 = vunpack.c.l.b16 %v5547
    %v5780 = vunpack.c.l.b16 %v5548
    %v5781 = vunpack.c.l.b16 %v5549
    %v5782 = vunpack.c.l.b16 %v5550
    %v5783 = vunpack.c.l.b16 %v5551
    %v5784 = vunpack.c.l.b16 %v5552
    %v5785 = vunpack.c.l.b16 %v5553
    %v5786 = vunpack.c.l.b16 %v5554
    %v5787 = vunpack.c.l.b16 %v5555
    %v5788 = vunpack.c.l.b16 %v5556
    %v5789 = vunpack.c.l.b16 %v5557
    %v5790 = vunpack.c.l.b16 %v5558
    %v5791 = vunpack.c.l.b16 %v5559
    %v5792 = vunpack.c.l.b16 %v5560
    %v5793 = vunpack.c.l.b16 %v5561
    %v5794 = vunpack.c.l.b16 %v5562
    %v5795 = vunpack.c.l.b16 %v5563
    %v5796 = vunpack.c.l.b16 %v5564
    %v5797 = vunpack.c.l.b16 %v5565
    %v5798 = vunpack.c.l.b16 %v5566
    %v5799 = vunpack.c.l.b16 %v5567
    %v5800 = vunpack.c.l.b16 %v5568
    %v5801 = vunpack.c.l.b16 %v5569
    %v5802 = vunpack.c.l.b16 %v5570
    %v5803 = vunpack.c.l.b16 %v5571
    %v5804 = vunpack.c.l.b16 %v5572
    %v5805 = vunpack.c.l.b16 %v5573
    %v5806 = vunpack.c.l.b16 %v5574
    %v5807 = vunpack.c.l.b16 %v5575
    %v5808 = vunpack.c.l.b16 %v5576
    %v5809 = vunpack.c.l.b16 %v5577
    %v5810 = vunpack.c.l.b16 %v5578
    %v5811 = vunpack.c.l.b16 %v5579
    %v5812 = vunpack.c.l.b16 %v5580
    %v5813 = vunpack.c.l.b16 %v5581
    %v5814 = vunpack.c.l.b16 %v5582
    %v5815 = vunpack.c.l.b16 %v5583
    %v5816 = vunpack.c.l.b16 %v5584
    %v5817 = vunpack.c.l.b16 %v5585
    %v5818 = vunpack.c.l.b16 %v5586
    %v5819 = vunpack.c.l.b16 %v5587
    %v5820 = vunpack.c.l.b16 %v5588
    %v5821 = vunpack.c.l.b16 %v5589
    %v5822 = vunpack.c.l.b16 %v5590
    %v5823 = vunpack.c.l.b16 %v5591
    %v5824 = vunpack.c.l.b16 %v5592
    %v5825 = vunpack.c.l.b16 %v5593
    %v5826 = vunpack.c.l.b16 %v5594
    %v5827 = vunpack.c.l.b16 %v5595
    %v5828 = vunpack.c.l.b16 %v5596
    %v5829 = vunpack.c.l.b16 %v5597
    %v5830 = vunpack.c.l.b16 %v5598
    %v5831 = vunpack.c.l.b16 %v5599
    %v5832 = vunpack.c.l.b16 %v5600
    %v5833 = vunpack.c.l.b16 %v5601
    %v5834 = vunpack.c.l.b16 %v5602
    %v5835 = vunpack.c.l.b16 %v5603
    %v5836 = vunpack.c.l.b16 %v5604
    %v5837 = vunpack.c.l.b16 %v5605
    %v5838 = vunpack.c.l.b16 %v5606
    %v5839 = vunpack.c.l.b16 %v5607
    %v5840 = vunpack.c.l.b16 %v5608
    %v5841 = vunpack.c.l.b16 %v5609
    %v5842 = vunpack.c.l.b16 %v5610
    %v5843 = vunpack.c.l.b16 %v5611
    %v5844 = vunpack.c.l.b16 %v5612
    %v5845 = vunpack.c.l.b16 %v5613
    %v5846 = vunpack.c.l.b16 %v5614
    %v5847 = vunpack.c.l.b16 %v5615
    %v5848 = vunpack.c.l.b16 %v5616
    %v5849 = vunpack.c.l.b16 %v5617
    %v5850 = vunpack.c.l.b16 %v5618
    %v5851 = vunpack.c.l.b16 %v5619
    %v5852 = vunpack.c.l.b16 %v5620
    %v5853 = vunpack.c.l.b16 %v5621
    %v5854 = vunpack.c.l.b16 %v5622
    %v5855 = vunpack.c.l.b16 %v5623
    %v5856 = vunpack.c.l.b16 %v5624
    %v5857 = vunpack.c.l.b16 %v5625
    %v5858 = vunpack.c.l.b16 %v5626
    %v5859 = vunpack.c.l.b16 %v5627
    %v5860 = vunpack.c.l.b16 %v5628
    %v5861 = vunpack.c.l.b16 %v5629
    %v5862 = vunpack.c.l.b16 %v5630
    %v5863 = vunpack.c.l.b16 %v5631
    %v5864 = vunpack.c.l.b16 %v5632
    %v5865 = vunpack.c.l.b16 %v5633
    %v5866 = vunpack.c.l.b16 %v5634
    %v5867 = vunpack.c.l.b16 %v5635
    %v5868 = vunpack.c.l.b16 %v5636
    %v5869 = vunpack.c.l.b16 %v5637
    %v5870 = vunpack.c.l.b16 %v5638
    %v5871 = vunpack.c.l.b16 %v5639
    %v5872 = vunpack.c.l.b16 %v5640
    %v5873 = vunpack.c.l.b16 %v5641
    %v5874 = vunpack.c.l.b16 %v5642
    %v5875 = vunpack.c.l.b16 %v5643
    %v5876 = vunpack.c.l.b16 %v5644
    %v5877 = vunpack.c.l.b16 %v5645
    %v5878 = vunpack.c.l.b16 %v5646
    %v5879 = vunpack.c.l.b16 %v5647
    %v5880 = vpack.c.b16 %v5769, %v5768
    %v5881 = vpack.c.b16 %v5771, %v5770
    %v5882 = vpack.c.b16 %v5773, %v5772
    %v5883 = vpack.c.b16 %v5775, %v5774
    %v5884 = vpack.c.b16 %v5777, %v5776
    %v5885 = vpack.c.b16 %v5779, %v5778
    %v5886 = vpack.c.b16 %v5781, %v5780
    %v5887 = vpack.c.b16 %v5783, %v5782
    %v5888 = vpack.c.b16 %v5785, %v5784
    %v5889 = vpack.c.b16 %v5787, %v5786
    %v5890 = vpack.c.b16 %v5789, %v5788
    %v5891 = vpack.c.b16 %v5791, %v5790
    %v5892 = vpack.c.b16 %v5793, %v5792
    %v5893 = vpack.c.b16 %v5795, %v5794
    %v5894 = vpack.c.b16 %v5797, %v5796
    %v5895 = vpack.c.b16 %v5799, %v5798
    %v5896 = vpack.c.b16 %v5801, %v5800
    %v5897 = vpack.c.b16 %v5803, %v5802
    %v5898 = vpack.c.b16 %v5805, %v5804
    %v5899 = vpack.c.b16 %v5807, %v5806
    %v5900 = vpack.c.b16 %v5809, %v5808
    %v5901 = vpack.c.b16 %v5811, %v5810
    %v5902 = vpack.c.b16 %v5813, %v5812
    %v5903 = vpack.c.b16 %v5815, %v5814
    %v5904 = vpack.c.b16 %v5817, %v5816
    %v5905 = vpack.c.b16 %v5819, %v5818
    %v5906 = vpack.c.b16 %v5821, %v5820
    %v5907 = vpack.c.b16 %v5823, %v5822
    %v5908 = vpack.c.b16 %v5825, %v5824
    %v5909 = vpack.c.b16 %v5827, %v5826
    %v5910 = vpack.c.b16 %v5829, %v5828
    %v5911 = vpack.c.b16 %v5831, %v5830
    %v5912 = vpack.c.b16 %v5833, %v5832
    %v5913 = vpack.c.b16 %v5835, %v5834
    %v5914 = vpack.c.b16 %v5837, %v5836
    %v5915 = vpack.c.b16 %v5839, %v5838
    %v5916 = vpack.c.b16 %v5841, %v5840
    %v5917 = vpack.c.b16 %v5843, %v5842
    %v5918 = vpack.c.b16 %v5845, %v5844
    %v5919 = vpack.c.b16 %v5847, %v5846
    %v5920 = vpack.c.b16 %v5849, %v5848
    %v5921 = vpack.c.b16 %v5851, %v5850
    %v5922 = vpack.c.b16 %v5853, %v5852
    %v5923 = vpack.c.b16 %v5855, %v5854
    %v5924 = vpack.c.b16 %v5857, %v5856
    %v5925 = vpack.c.b16 %v5859, %v5858
    %v5926 = vpack.c.b16 %v5861, %v5860
    %v5927 = vpack.c.b16 %v5863, %v5862
    %v5928 = vpack.c.b16 %v5865, %v5864
    %v5929 = vpack.c.b16 %v5867, %v5866
    %v5930 = vpack.c.b16 %v5869, %v5868
    %v5931 = vpack.c.b16 %v5871, %v5870
    %v5932 = vpack.c.b16 %v5873, %v5872
    %v5933 = vpack.c.b16 %v5875, %v5874
    %v5934 = vpack.c.b16 %v5877, %v5876
    %v5935 = vpack.c.b16 %v5879, %v5878
    %5992 = vmatprep.subr.bf16.mxu0 0
    %5993 = vmatpush1.bf16.msra.mxu0 %v5880
    %5994 = vmatprep.subr.bf16.mxu0 0
    %5995 = vmatpush1.bf16.msra.mxu0 %v5881
    %5996 = vmatprep.subr.bf16.mxu0 0
    %5997 = vmatpush1.bf16.msra.mxu0 %v5882
    %5998 = vmatprep.subr.bf16.mxu0 0
    %5999 = vmatpush1.bf16.msra.mxu0 %v5883
    %6000 = vmatprep.subr.bf16.mxu0 0
    %6001 = vmatpush1.bf16.msra.mxu0 %v5884
    %6002 = vmatprep.subr.bf16.mxu0 0
    %6003 = vmatpush1.bf16.msra.mxu0 %v5885
    %6004 = vmatprep.subr.bf16.mxu0 0
    %6005 = vmatpush1.bf16.msra.mxu0 %v5886
    %6006 = vmatprep.subr.bf16.mxu0 0
    %6007 = vmatpush1.bf16.msra.mxu0 %v5887
    %6008 = vmatprep.subr.bf16.mxu0 0
    %6009 = vmatpush1.bf16.msra.mxu0 %v5888
    %6010 = vmatprep.subr.bf16.mxu0 0
    %6011 = vmatpush1.bf16.msra.mxu0 %v5889
    %6012 = vmatprep.subr.bf16.mxu0 0
    %6013 = vmatpush1.bf16.msra.mxu0 %v5890
    %6014 = vmatprep.subr.bf16.mxu0 0
    %6015 = vmatpush1.bf16.msra.mxu0 %v5891
    %6016 = vmatprep.subr.bf16.mxu0 0
    %6017 = vmatpush1.bf16.msra.mxu0 %v5892
    %6018 = vmatprep.subr.bf16.mxu0 0
    %6019 = vmatpush1.bf16.msra.mxu0 %v5893
    %6020 = vmatprep.subr.bf16.mxu0 0
    %6021 = vmatpush1.bf16.msra.mxu0 %v5894
    %6022 = vmatprep.subr.bf16.mxu0 0
    %6023 = vmatpush1.bf16.msra.mxu0 %v5895
    %6024 = vmatprep.mubr.bf16.mxu0 %v5295
    %6025 = vmatmul.mubr.bf16.gmra.mrb[0].mxu0 %v5239
    %v6026 = vpop.f32.mrb[0].mxu0
    %v6027 = vadd.f32 %v5654, %v6026
    %v6028 = vpop.f32.mrb[0].mxu0
    %v6029 = vpop.f32.mrb[0].mxu0
    %v6030 = vadd.f32 %v5654, %v6029
    %v6031 = vpop.f32.mrb[0].mxu0
    %6032 = vmatprep.mubr.bf16.mxu0 %v5296
    %6033 = vmatmul.mubr.bf16.gmra.mrb[0].mxu0 %v5240
    %v6034 = vpop.f32.mrb[0].mxu0
    %v6035 = vadd.f32 %v5654, %v6034
    %v6036 = vpop.f32.mrb[0].mxu0
    %v6037 = vpop.f32.mrb[0].mxu0
    %v6038 = vadd.f32 %v5654, %v6037
    %v6039 = vpop.f32.mrb[0].mxu0
    %6040 = vmatprep.mubr.bf16.mxu0 %v5297
    %6041 = vmatmul.mubr.bf16.gmra.mrb[0].mxu0 %v5241
    %v6042 = vpop.f32.mrb[0].mxu0
    %v6043 = vadd.f32 %v5654, %v6042
    %v6044 = vpop.f32.mrb[0].mxu0
    %v6045 = vpop.f32.mrb[0].mxu0
    %v6046 = vadd.f32 %v5654, %v6045
    %v6047 = vpop.f32.mrb[0].mxu0
    %6048 = vmatprep.mubr.bf16.mxu0 %v5298
    %6049 = vmatmul.mubr.bf16.gmra.mrb[0].mxu0 %v5242
    %v6050 = vpop.f32.mrb[0].mxu0
    %v6051 = vadd.f32 %v5654, %v6050
    %v6052 = vpop.f32.mrb[0].mxu0
    %v6053 = vpop.f32.mrb[0].mxu0
    %v6054 = vadd.f32 %v5654, %v6053
    %v6055 = vpop.f32.mrb[0].mxu0
    %6056 = vmatprep.mubr.bf16.mxu0 %v5299
    %6057 = vmatmul.mubr.bf16.gmra.mrb[0].mxu0 %v5243
    %v6058 = vpop.f32.mrb[0].mxu0
    %v6059 = vadd.f32 %v5654, %v6058
    %v6060 = vpop.f32.mrb[0].mxu0
    %v6061 = vpop.f32.mrb[0].mxu0
    %v6062 = vadd.f32 %v5654, %v6061
    %v6063 = vpop.f32.mrb[0].mxu0
    %6064 = vmatprep.mubr.bf16.mxu0 %v5300
    %6065 = vmatmul.mubr.bf16.gmra.mrb[0].mxu0 %v5244
    %v6066 = vpop.f32.mrb[0].mxu0
    %v6067 = vadd.f32 %v5654, %v6066
    %v6068 = vpop.f32.mrb[0].mxu0
    %v6069 = vpop.f32.mrb[0].mxu0
    %v6070 = vadd.f32 %v5654, %v6069
    %v6071 = vpop.f32.mrb[0].mxu0
    %6072 = vmatprep.mubr.bf16.mxu0 %v5301
    %6073 = vmatmul.mubr.bf16.gmra.mrb[0].mxu0 %v5245
    %v6074 = vpop.f32.mrb[0].mxu0
    %v6075 = vadd.f32 %v5654, %v6074
    %v6076 = vpop.f32.mrb[0].mxu0
    %v6077 = vpop.f32.mrb[0].mxu0
    %v6078 = vadd.f32 %v5654, %v6077
    %v6079 = vpop.f32.mrb[0].mxu0
    %6080 = vmatprep.mubr.bf16.mxu0 %v5302
    %6081 = vmatmul.mubr.bf16.gmra.mrb[0].mxu0 %v5246
    %v6082 = vpop.f32.mrb[0].mxu0
    %v6083 = vadd.f32 %v5654, %v6082
    %v6084 = vpop.f32.mrb[0].mxu0
    %v6085 = vpop.f32.mrb[0].mxu0
    %v6086 = vadd.f32 %v5654, %v6085
    %v6087 = vpop.f32.mrb[0].mxu0
    %6088 = vdwg.mxu0
    %6089 = vmatprep.subr.bf16.mxu0 0
    %6090 = vmatpush1.bf16.msra.mxu0 %v5896
    %6091 = vmatprep.subr.bf16.mxu0 0
    %6092 = vmatpush1.bf16.msra.mxu0 %v5897
    %6093 = vmatprep.subr.bf16.mxu0 0
    %6094 = vmatpush1.bf16.msra.mxu0 %v5898
    %6095 = vmatprep.subr.bf16.mxu0 0
    %6096 = vmatpush1.bf16.msra.mxu0 %v5899
    %6097 = vmatprep.subr.bf16.mxu0 0
    %6098 = vmatpush1.bf16.msra.mxu0 %v5900
    %6099 = vmatprep.subr.bf16.mxu0 0
    %6100 = vmatpush1.bf16.msra.mxu0 %v5901
    %6101 = vmatprep.subr.bf16.mxu0 0
    %6102 = vmatpush1.bf16.msra.mxu0 %v5902
    %6103 = vmatprep.subr.bf16.mxu0 0
    %6104 = vmatpush1.bf16.msra.mxu0 %v5903
    %6105 = vmatprep.subr.bf16.mxu0 0
    %6106 = vmatpush1.bf16.msra.mxu0 %v5904
    %6107 = vmatprep.subr.bf16.mxu0 0
    %6108 = vmatpush1.bf16.msra.mxu0 %v5905
    %6109 = vmatprep.subr.bf16.mxu0 0
    %6110 = vmatpush1.bf16.msra.mxu0 %v5906
    %6111 = vmatprep.subr.bf16.mxu0 0
    %6112 = vmatpush1.bf16.msra.mxu0 %v5907
    %6113 = vmatprep.subr.bf16.mxu0 0
    %6114 = vmatpush1.bf16.msra.mxu0 %v5908
    %6115 = vmatprep.subr.bf16.mxu0 0
    %6116 = vmatpush1.bf16.msra.mxu0 %v5909
    %6117 = vmatprep.subr.bf16.mxu0 0
    %6118 = vmatpush1.bf16.msra.mxu0 %v5910
    %6119 = vmatprep.subr.bf16.mxu0 0
    %6120 = vmatpush1.bf16.msra.mxu0 %v5911
    %6121 = vmatprep.mubr.bf16.mxu0 %v5359
    %6122 = vmatmul.mubr.bf16.gmra.mrb[0].mxu0 %v5351
    %v6123 = vpop.f32.mrb[0].mxu0
    %v6124 = vadd.f32 %v6027, %v6123
    %v6125 = vpop.f32.mrb[0].mxu0
    %v6126 = vpop.f32.mrb[0].mxu0
    %v6127 = vadd.f32 %v6030, %v6126
    %v6128 = vpop.f32.mrb[0].mxu0
    %6129 = vmatprep.mubr.bf16.mxu0 %v5360
    %6130 = vmatmul.mubr.bf16.gmra.mrb[0].mxu0 %v5352
    %v6131 = vpop.f32.mrb[0].mxu0
    %v6132 = vadd.f32 %v6035, %v6131
    %v6133 = vpop.f32.mrb[0].mxu0
    %v6134 = vpop.f32.mrb[0].mxu0
    %v6135 = vadd.f32 %v6038, %v6134
    %v6136 = vpop.f32.mrb[0].mxu0
    %6137 = vmatprep.mubr.bf16.mxu0 %v5361
    %6138 = vmatmul.mubr.bf16.gmra.mrb[0].mxu0 %v5353
    %v6139 = vpop.f32.mrb[0].mxu0
    %v6140 = vadd.f32 %v6043, %v6139
    %v6141 = vpop.f32.mrb[0].mxu0
    %v6142 = vpop.f32.mrb[0].mxu0
    %v6143 = vadd.f32 %v6046, %v6142
    %v6144 = vpop.f32.mrb[0].mxu0
    %6145 = vmatprep.mubr.bf16.mxu0 %v5362
    %6146 = vmatmul.mubr.bf16.gmra.mrb[0].mxu0 %v5354
    %v6147 = vpop.f32.mrb[0].mxu0
    %v6148 = vadd.f32 %v6051, %v6147
    %v6149 = vpop.f32.mrb[0].mxu0
    %v6150 = vpop.f32.mrb[0].mxu0
    %v6151 = vadd.f32 %v6054, %v6150
    %v6152 = vpop.f32.mrb[0].mxu0
    %6153 = vmatprep.mubr.bf16.mxu0 %v5363
    %6154 = vmatmul.mubr.bf16.gmra.mrb[0].mxu0 %v5355
    %v6155 = vpop.f32.mrb[0].mxu0
    %v6156 = vadd.f32 %v6059, %v6155
    %v6157 = vpop.f32.mrb[0].mxu0
    %v6158 = vpop.f32.mrb[0].mxu0
    %v6159 = vadd.f32 %v6062, %v6158
    %v6160 = vpop.f32.mrb[0].mxu0
    %6161 = vmatprep.mubr.bf16.mxu0 %v5364
    %6162 = vmatmul.mubr.bf16.gmra.mrb[0].mxu0 %v5356
    %v6163 = vpop.f32.mrb[0].mxu0
    %v6164 = vadd.f32 %v6067, %v6163
    %v6165 = vpop.f32.mrb[0].mxu0
    %v6166 = vpop.f32.mrb[0].mxu0
    %v6167 = vadd.f32 %v6070, %v6166
    %v6168 = vpop.f32.mrb[0].mxu0
    %6169 = vmatprep.mubr.bf16.mxu0 %v5365
    %6170 = vmatmul.mubr.bf16.gmra.mrb[0].mxu0 %v5357
    %v6171 = vpop.f32.mrb[0].mxu0
    %v6172 = vadd.f32 %v6075, %v6171
    %v6173 = vpop.f32.mrb[0].mxu0
    %v6174 = vpop.f32.mrb[0].mxu0
    %v6175 = vadd.f32 %v6078, %v6174
    %v6176 = vpop.f32.mrb[0].mxu0
    %6177 = vmatprep.mubr.bf16.mxu0 %v5366
    %6178 = vmatmul.mubr.bf16.gmra.mrb[0].mxu0 %v5358
    %v6179 = vpop.f32.mrb[0].mxu0
    %v6180 = vadd.f32 %v6083, %v6179
    %v6181 = vpop.f32.mrb[0].mxu0
    %v6182 = vpop.f32.mrb[0].mxu0
    %v6183 = vadd.f32 %v6086, %v6182
    %v6184 = vpop.f32.mrb[0].mxu0
    %6185 = vdwg.mxu0
    %6186 = vmatprep.subr.bf16.mxu0 0
    %6187 = vmatpush1.bf16.msra.mxu0 %v5912
    %6188 = vmatprep.subr.bf16.mxu0 0
    %6189 = vmatpush1.bf16.msra.mxu0 %v5913
    %6190 = vmatprep.subr.bf16.mxu0 0
    %6191 = vmatpush1.bf16.msra.mxu0 %v5914
    %6192 = vmatprep.subr.bf16.mxu0 0
    %6193 = vmatpush1.bf16.msra.mxu0 %v5915
    %6194 = vmatprep.subr.bf16.mxu0 0
    %6195 = vmatpush1.bf16.msra.mxu0 %v5916
    %6196 = vmatprep.subr.bf16.mxu0 0
    %6197 = vmatpush1.bf16.msra.mxu0 %v5917
    %6198 = vmatprep.subr.bf16.mxu0 0
    %6199 = vmatpush1.bf16.msra.mxu0 %v5918
    %6200 = vmatprep.subr.bf16.mxu0 0
    %6201 = vmatpush1.bf16.msra.mxu0 %v5919
    %6202 = vmatprep.subr.bf16.mxu0 0
    %6203 = vmatpush1.bf16.msra.mxu0 %v5920
    %6204 = vmatprep.subr.bf16.mxu0 0
    %6205 = vmatpush1.bf16.msra.mxu0 %v5921
    %6206 = vmatprep.subr.bf16.mxu0 0
    %6207 = vmatpush1.bf16.msra.mxu0 %v5922
    %6208 = vmatprep.subr.bf16.mxu0 0
    %6209 = vmatpush1.bf16.msra.mxu0 %v5923
    %6210 = vmatprep.subr.bf16.mxu0 0
    %6211 = vmatpush1.bf16.msra.mxu0 %v5924
    %6212 = vmatprep.subr.bf16.mxu0 0
    %6213 = vmatpush1.bf16.msra.mxu0 %v5925
    %6214 = vmatprep.subr.bf16.mxu0 0
    %6215 = vmatpush1.bf16.msra.mxu0 %v5926
    %6216 = vmatprep.subr.bf16.mxu0 0
    %6217 = vmatpush1.bf16.msra.mxu0 %v5927
    %6218 = vmatprep.mubr.bf16.mxu0 %v5471
    %6219 = vmatmul.mubr.bf16.gmra.mrb[0].mxu0 %v5415
    %v6220 = vpop.f32.mrb[0].mxu0
    %v6221 = vadd.f32 %v6124, %v6220
    %v6222 = vpop.f32.mrb[0].mxu0
    %v6223 = vpop.f32.mrb[0].mxu0
    %v6224 = vadd.f32 %v6127, %v6223
    %v6225 = vpop.f32.mrb[0].mxu0
    %6226 = vmatprep.mubr.bf16.mxu0 %v5472
    %6227 = vmatmul.mubr.bf16.gmra.mrb[0].mxu0 %v5416
    %v6228 = vpop.f32.mrb[0].mxu0
    %v6229 = vadd.f32 %v6132, %v6228
    %v6230 = vpop.f32.mrb[0].mxu0
    %v6231 = vpop.f32.mrb[0].mxu0
    %v6232 = vadd.f32 %v6135, %v6231
    %v6233 = vpop.f32.mrb[0].mxu0
    %6234 = vmatprep.mubr.bf16.mxu0 %v5473
    %6235 = vmatmul.mubr.bf16.gmra.mrb[0].mxu0 %v5417
    %v6236 = vpop.f32.mrb[0].mxu0
    %v6237 = vadd.f32 %v6140, %v6236
    %v6238 = vpop.f32.mrb[0].mxu0
    %v6239 = vpop.f32.mrb[0].mxu0
    %v6240 = vadd.f32 %v6143, %v6239
    %v6241 = vpop.f32.mrb[0].mxu0
    %6242 = vmatprep.mubr.bf16.mxu0 %v5474
    %6243 = vmatmul.mubr.bf16.gmra.mrb[0].mxu0 %v5418
    %v6244 = vpop.f32.mrb[0].mxu0
    %v6245 = vadd.f32 %v6148, %v6244
    %v6246 = vpop.f32.mrb[0].mxu0
    %v6247 = vpop.f32.mrb[0].mxu0
    %v6248 = vadd.f32 %v6151, %v6247
    %v6249 = vpop.f32.mrb[0].mxu0
    %6250 = vmatprep.mubr.bf16.mxu0 %v5475
    %6251 = vmatmul.mubr.bf16.gmra.mrb[0].mxu0 %v5419
    %v6252 = vpop.f32.mrb[0].mxu0
    %v6253 = vadd.f32 %v6156, %v6252
    %v6254 = vpop.f32.mrb[0].mxu0
    %v6255 = vpop.f32.mrb[0].mxu0
    %v6256 = vadd.f32 %v6159, %v6255
    %v6257 = vpop.f32.mrb[0].mxu0
    %6258 = vmatprep.mubr.bf16.mxu0 %v5476
    %6259 = vmatmul.mubr.bf16.gmra.mrb[0].mxu0 %v5420
    %v6260 = vpop.f32.mrb[0].mxu0
    %v6261 = vadd.f32 %v6164, %v6260
    %v6262 = vpop.f32.mrb[0].mxu0
    %v6263 = vpop.f32.mrb[0].mxu0
    %v6264 = vadd.f32 %v6167, %v6263
    %v6265 = vpop.f32.mrb[0].mxu0
    %6266 = vmatprep.mubr.bf16.mxu0 %v5477
    %6267 = vmatmul.mubr.bf16.gmra.mrb[0].mxu0 %v5421
    %v6268 = vpop.f32.mrb[0].mxu0
    %v6269 = vadd.f32 %v6172, %v6268
    %v6270 = vpop.f32.mrb[0].mxu0
    %v6271 = vpop.f32.mrb[0].mxu0
    %v6272 = vadd.f32 %v6175, %v6271
    %v6273 = vpop.f32.mrb[0].mxu0
    %6274 = vmatprep.mubr.bf16.mxu0 %v5478
    %6275 = vmatmul.mubr.bf16.gmra.mrb[0].mxu0 %v5422
    %v6276 = vpop.f32.mrb[0].mxu0
    %v6277 = vadd.f32 %v6180, %v6276
    %v6278 = vpop.f32.mrb[0].mxu0
    %v6279 = vpop.f32.mrb[0].mxu0
    %v6280 = vadd.f32 %v6183, %v6279
    %v6281 = vpop.f32.mrb[0].mxu0
    %6282 = vdwg.mxu0
    %6283 = vmatprep.subr.bf16.mxu0 0
    %6284 = vmatpush1.bf16.msra.mxu0 %v5928
    %6285 = vmatprep.subr.bf16.mxu0 0
    %6286 = vmatpush1.bf16.msra.mxu0 %v5929
    %6287 = vmatprep.subr.bf16.mxu0 0
    %6288 = vmatpush1.bf16.msra.mxu0 %v5930
    %6289 = vmatprep.subr.bf16.mxu0 0
    %6290 = vmatpush1.bf16.msra.mxu0 %v5931
    %6291 = vmatprep.subr.bf16.mxu0 0
    %6292 = vmatpush1.bf16.msra.mxu0 %v5932
    %6293 = vmatprep.subr.bf16.mxu0 0
    %6294 = vmatpush1.bf16.msra.mxu0 %v5933
    %6295 = vmatprep.subr.bf16.mxu0 0
    %6296 = vmatpush1.bf16.msra.mxu0 %v5934
    %6297 = vmatprep.subr.bf16.mxu0 0
    %6298 = vmatpush1.bf16.msra.mxu0 %v5935
    %6299 = vmatprep.subr.bf16.mxu0 0
    %6300 = vmatpush1.bf16.msra.mxu0 0
    %6301 = vmatprep.subr.bf16.mxu0 0
    %6302 = vmatpush1.bf16.msra.mxu0 0
    %6303 = vmatprep.subr.bf16.mxu0 0
    %6304 = vmatpush1.bf16.msra.mxu0 0
    %6305 = vmatprep.subr.bf16.mxu0 0
    %6306 = vmatpush1.bf16.msra.mxu0 0
    %6307 = vmatprep.subr.bf16.mxu0 0
    %6308 = vmatpush1.bf16.msra.mxu0 0
    %6309 = vmatprep.subr.bf16.mxu0 0
    %6310 = vmatpush1.bf16.msra.mxu0 0
    %6311 = vmatprep.subr.bf16.mxu0 0
    %6312 = vmatpush1.bf16.msra.mxu0 0
    %6313 = vmatprep.subr.bf16.mxu0 0
    %6314 = vmatpush1.bf16.msra.mxu0 0
    %6315 = vmatprep.mubr.bf16.mxu0 0
    %6316 = vmatmul.mubr.bf16.gmra.mrb[0].mxu0 %v5527
    %v6317 = vpop.f32.mrb[0].mxu0
    %v6318 = vadd.f32 %v6221, %v6317
    %v6319 = vpop.f32.mrb[0].mxu0
    %v6320 = vpop.f32.mrb[0].mxu0
    %v6321 = vadd.f32 %v6224, %v6320
    %v6322 = vpop.f32.mrb[0].mxu0
    %6323 = vmatprep.mubr.bf16.mxu0 0
    %6324 = vmatmul.mubr.bf16.gmra.mrb[0].mxu0 %v5528
    %v6325 = vpop.f32.mrb[0].mxu0
    %v6326 = vadd.f32 %v6229, %v6325
    %v6327 = vpop.f32.mrb[0].mxu0
    %v6328 = vpop.f32.mrb[0].mxu0
    %v6329 = vadd.f32 %v6232, %v6328
    %v6330 = vpop.f32.mrb[0].mxu0
    %6331 = vmatprep.mubr.bf16.mxu0 0
    %6332 = vmatmul.mubr.bf16.gmra.mrb[0].mxu0 %v5529
    %v6333 = vpop.f32.mrb[0].mxu0
    %v6334 = vadd.f32 %v6237, %v6333
    %v6335 = vpop.f32.mrb[0].mxu0
    %v6336 = vpop.f32.mrb[0].mxu0
    %v6337 = vadd.f32 %v6240, %v6336
    %v6338 = vpop.f32.mrb[0].mxu0
    %6339 = vmatprep.mubr.bf16.mxu0 0
    %6340 = vmatmul.mubr.bf16.gmra.mrb[0].mxu0 %v5530
    %v6341 = vpop.f32.mrb[0].mxu0
    %v6342 = vadd.f32 %v6245, %v6341
    %v6343 = vpop.f32.mrb[0].mxu0
    %v6344 = vpop.f32.mrb[0].mxu0
    %v6345 = vadd.f32 %v6248, %v6344
    %v6346 = vpop.f32.mrb[0].mxu0
    %6347 = vmatprep.mubr.bf16.mxu0 0
    %6348 = vmatmul.mubr.bf16.gmra.mrb[0].mxu0 %v5531
    %v6349 = vpop.f32.mrb[0].mxu0
    %v6350 = vadd.f32 %v6253, %v6349
    %v6351 = vpop.f32.mrb[0].mxu0
    %v6352 = vpop.f32.mrb[0].mxu0
    %v6353 = vadd.f32 %v6256, %v6352
    %v6354 = vpop.f32.mrb[0].mxu0
    %6355 = vmatprep.mubr.bf16.mxu0 0
    %6356 = vmatmul.mubr.bf16.gmra.mrb[0].mxu0 %v5532
    %v6357 = vpop.f32.mrb[0].mxu0
    %v6358 = vadd.f32 %v6261, %v6357
    %v6359 = vpop.f32.mrb[0].mxu0
    %v6360 = vpop.f32.mrb[0].mxu0
    %v6361 = vadd.f32 %v6264, %v6360
    %v6362 = vpop.f32.mrb[0].mxu0
    %6363 = vmatprep.mubr.bf16.mxu0 0
    %6364 = vmatmul.mubr.bf16.gmra.mrb[0].mxu0 %v5533
    %v6365 = vpop.f32.mrb[0].mxu0
    %v6366 = vadd.f32 %v6269, %v6365
    %v6367 = vpop.f32.mrb[0].mxu0
    %v6368 = vpop.f32.mrb[0].mxu0
    %v6369 = vadd.f32 %v6272, %v6368
    %v6370 = vpop.f32.mrb[0].mxu0
    %6371 = vmatprep.mubr.bf16.mxu0 0
    %6372 = vmatmul.mubr.bf16.gmra.mrb[0].mxu0 %v5534
    %v6373 = vpop.f32.mrb[0].mxu0
    %v6374 = vadd.f32 %v6277, %v6373
    %v6375 = vpop.f32.mrb[0].mxu0
    %v6376 = vpop.f32.mrb[0].mxu0
    %v6377 = vadd.f32 %v6280, %v6376
    %v6378 = vpop.f32.mrb[0].mxu0
    %6379 = vdwg.mxu0
    %v6380 = vmax.f32 %v6318, 0.0
    %v6381 = vmax.f32 %v6321, 0.0
    %v6382 = vmax.f32 %v6326, 0.0
    %v6383 = vmax.f32 %v6329, 0.0
    %v6384 = vmax.f32 %v6334, 0.0
    %v6385 = vmax.f32 %v6337, 0.0
    %v6386 = vmax.f32 %v6342, 0.0
    %v6387 = vmax.f32 %v6345, 0.0
    %v6388 = vmax.f32 %v6350, 0.0
    %v6389 = vmax.f32 %v6353, 0.0
    %v6390 = vmax.f32 %v6358, 0.0
    %v6391 = vmax.f32 %v6361, 0.0
    %v6392 = vmax.f32 %v6366, 0.0
    %v6393 = vmax.f32 %v6369, 0.0
    %v6394 = vmax.f32 %v6374, 0.0
    %v6395 = vmax.f32 %v6377, 0.0
    %v6396 = vadd.f32 %v6380, %v4919
    %v6397 = vadd.f32 %v6381, %v4920
    %v6398 = vadd.f32 %v6382, %v4921
    %v6399 = vadd.f32 %v6383, %v4922
    %v6400 = vadd.f32 %v6384, %v4923
    %v6401 = vadd.f32 %v6385, %v4924
    %v6402 = vadd.f32 %v6386, %v4925
    %v6403 = vadd.f32 %v6387, %v4926
    %v6404 = vadd.f32 %v6388, %v4927
    %v6405 = vadd.f32 %v6389, %v4928
    %v6406 = vadd.f32 %v6390, %v4929
    %v6407 = vadd.f32 %v6391, %v4930
    %v6408 = vadd.f32 %v6392, %v4931
    %v6409 = vadd.f32 %v6393, %v4932
    %v6410 = vadd.f32 %v6394, %v4933
    %v6411 = vadd.f32 %v6395, %v4934
    %6412 = vst [vmem:[#allocation8] sm:$0xff] %v6396
    %6413 = vst [vmem:[#allocation8 + $0x8] sm:$0xff] %v6397
    %6414 = vst [vmem:[#allocation8 + $0x10] sm:$0xff] %v6398
    %6415 = vst [vmem:[#allocation8 + $0x18] sm:$0xff] %v6399
    %6416 = vst [vmem:[#allocation8 + $0x20] sm:$0xff] %v6400
    %6417 = vst [vmem:[#allocation8 + $0x28] sm:$0xff] %v6401
    %6418 = vst [vmem:[#allocation8 + $0x30] sm:$0xff] %v6402
    %6419 = vst [vmem:[#allocation8 + $0x38] sm:$0xff] %v6403
    %6420 = vst [vmem:[#allocation8 + $0x40] sm:$0xff] %v6404
    %6421 = vst [vmem:[#allocation8 + $0x48] sm:$0xff] %v6405
    %6422 = vst [vmem:[#allocation8 + $0x50] sm:$0xff] %v6406
    %6423 = vst [vmem:[#allocation8 + $0x58] sm:$0xff] %v6407
    %6424 = vst [vmem:[#allocation8 + $0x60] sm:$0xff] %v6408
    %6425 = vst [vmem:[#allocation8 + $0x68] sm:$0xff] %v6409
    %6426 = vst [vmem:[#allocation8 + $0x70] sm:$0xff] %v6410
    %6427 = vst [vmem:[#allocation8 + $0x78] sm:$0xff] %v6411
    // Predicated region
    $region38: #{tpu_custom_call.1} parent=1 // pred_check
      _
    $region39: #{tpu_custom_call.1} parent=1 // pred_check_branch
      %6429 = sbr.rel (0) target = $region41
    $region40: #{tpu_custom_call.1} parent=1 // pred_region
      %s6431 = ssub.s32 2048, 2048
      %6432 = vsyncadd [#allocation4], %s6431
      %s6433 = sshll.u32 [#allocation8], 4
      %s6434 = int_to_ptr.vmem [resolvable:$true] %s6433
      %6439 = dma.vmem_to_hbm [thread:$0]  %s6434, 2048, %s6, [#allocation4], 128, 128, 8
    $region41: #{tpu_custom_call.1} parent=1 // pred_fallthru
      _
    // Predicated region
    $region42: #{tpu_custom_call.1} parent=1 // pred_check
      _
    $region43: #{tpu_custom_call.1} parent=1 // pred_check_branch
      %6441 = sbr.rel (0) target = $region45
    $region44: #{tpu_custom_call.1} parent=1 // pred_region
      %6442 = dma.done [#allocation4], 2048
    $region45: #{tpu_custom_call.1} parent=1 // pred_fallthru
      _
    %6443 = vsyncpa [#allocation3], 1
    %6444 = vsyncpa [#allocation6], 1
    %6445 = vsyncpa [#allocation4], 1

</llo_original>
